<compile_context>
chip_gen: v6e
topology: v6e:2x2x1
jax: 0.10.0
libtpu: 0.0.40
codegen_flags: <defaults>
</compile_context>

<pallas_src>
import functools

import jax
import jax.numpy as jnp
from jax import lax
from jax.experimental import pallas as pl
from jax.experimental.pallas import tpu as pltpu

_EPS = 1e-5
_MXU_DTYPE = jnp.bfloat16   # matmul operand dtype; accumulation stays f32


# ----------------------------- Pallas kernels ------------------------------

def _bottleneck_kernel(x_ref, s_ref, b_ref, w_ref, bott_ref, st_ref):
    """relu(x*scale+bias) @ W1  (BN1 -> ReLU1 -> conv1x1) + BN2 partial stats.

    x_ref : (TILE_M, C_total) f32      feature-buffer tile (unused channels
                                       are zero and have zero scale/weights)
    w_ref : (C_total, cmid)   bf16     zero-padded 1x1 conv weight
    bott_ref : (TILE_M, cmid) f32      bottleneck output tile
    st_ref   : (1, 2, cmid)   f32      [sum, sum_of_squares] over this tile
    """
    a = jnp.maximum(x_ref[...] * s_ref[...] + b_ref[...], 0.0)          # f32 VPU
    y = jnp.dot(a.astype(w_ref.dtype), w_ref[...],
                preferred_element_type=jnp.float32)                     # MXU, f32 acc
    bott_ref[...] = y.astype(bott_ref.dtype)
    st = jnp.concatenate([jnp.sum(y, axis=0, keepdims=True),
                          jnp.sum(y * y, axis=0, keepdims=True)], axis=0)
    st_ref[...] = st.reshape(st_ref.shape)


def _conv3x3_bnrelu_kernel(x_ref, s_ref, b_ref, w_ref, o_ref, st_ref, *,
                           height, width):
    """Fused BN2-affine + ReLU2 + 3x3 "same" conv + next-layer BN1 stats.

    x_ref : (1, H*W, cmid) f32   bottleneck activations of one image
    w_ref : (9, cmid, G)   bf16  conv2 weight, tap index = kh*3 + kw
    o_ref : (1, H*W, G)    f32   new features of this image
    st_ref: (1, 2, G)      f32   [sum, sum_of_squares] of the new features

    Border taps are realized as static row shifts of the flat (H*W, C) slab
    (zero fill) plus a column-validity mask; no padded copy is materialized
    in HBM and everything stays in the lane-dense (rows, channels) layout.
    """
    hw = height * width
    cmid = x_ref.shape[-1]
    g = w_ref.shape[-1]

    a = jnp.maximum(x_ref[0] * s_ref[...] + b_ref[...], 0.0)            # f32
    am = a.astype(w_ref.dtype)                                          # bf16 MXU operand

    col = lax.broadcasted_iota(jnp.int32, (hw, 1), 0) % width
    acc = jnp.zeros((hw, g), jnp.float32)

    for dy in (-1, 0, 1):
        for dx in (-1, 0, 1):
            s = dy * width + dx                        # static flat-row shift
            if s > 0:
                shifted = jnp.concatenate(
                    [am[s:], jnp.zeros((s, cmid), am.dtype)], axis=0)
            elif s < 0:
                shifted = jnp.concatenate(
                    [jnp.zeros((-s, cmid), am.dtype), am[:hw + s]], axis=0)
            else:
                shifted = am
            if dx != 0:
                valid = jnp.logical_and(col + dx >= 0, col + dx < width)
                shifted = jnp.where(valid, shifted, jnp.zeros_like(shifted))
            tap = (dy + 1) * 3 + (dx + 1)
            acc = acc + jnp.dot(shifted, w_ref[tap],
                                preferred_element_type=jnp.float32)

    o_ref[0] = acc.astype(o_ref.dtype)
    st = jnp.concatenate([jnp.sum(acc, axis=0, keepdims=True),
                          jnp.sum(acc * acc, axis=0, keepdims=True)], axis=0)
    st_ref[...] = st.reshape(st_ref.shape)


# ------------------------------- wrappers -----------------------------------

def _pick_tile_m(m, target):
    """Largest multiple of 8 that divides m and is <= target (falls back to m)."""
    t = max(8, min(target, m))
    t -= t % 8
    while t > 0 and m % t:
        t -= 8
    return t if t > 0 else m


def _dense_layer(feat_buf, ssum, ssq, count, cin, p, *, tile_m):
    """One _DenseLayer forward; returns updated (feat_buf, ssum, ssq)."""
    n, h, w, c_total = feat_buf.shape
    m = n * h * w
    hw = h * w
    cmid = p["w1"].shape[1]
    g = p["w2"].shape[-1]
    grid_m = m // tile_m

    # --- BN1 scale/bias from cached per-channel sums (no extra HBM pass).
    mean1 = ssum[:cin] / count
    var1 = ssq[:cin] / count - mean1 * mean1          # biased var (PyTorch)
    sc1 = p["gamma1"] / jnp.sqrt(var1 + _EPS)
    bi1 = p["beta1"] - mean1 * sc1
    # Zero scale/bias/weight rows beyond `cin` so the not-yet-written tail of
    # the feature buffer (zeros) is inert.
    s1 = jnp.zeros((1, c_total), jnp.float32).at[0, :cin].set(sc1)
    b1 = jnp.zeros((1, c_total), jnp.float32).at[0, :cin].set(bi1)
    w1p = jnp.zeros((c_total, cmid), jnp.float32).at[:cin].set(p["w1"])
    w1p = w1p.astype(_MXU_DTYPE)

    # --- Kernel 1: BN1 -> ReLU1 -> conv1x1 (+ BN2 partial stats), tiled over M.
    x2d = feat_buf.reshape(m, c_total)                # metadata-only reshape
    bott, st2 = pl.pallas_call(
        _bottleneck_kernel,
        grid=(grid_m,),
        in_specs=[
            pl.BlockSpec((tile_m, c_total), lambda i: (i, 0)),
            pl.BlockSpec((1, c_total), lambda i: (0, 0)),
            pl.BlockSpec((1, c_total), lambda i: (0, 0)),
            pl.BlockSpec((c_total, cmid), lambda i: (0, 0)),
        ],
        out_specs=[
            pl.BlockSpec((tile_m, cmid), lambda i: (i, 0)),
            pl.BlockSpec((1, 2, cmid), lambda i: (i, 0, 0)),
        ],
        out_shape=[
            jax.ShapeDtypeStruct((m, cmid), jnp.float32),
            jax.ShapeDtypeStruct((grid_m, 2, cmid), jnp.float32),
        ],
        compiler_params=pltpu.CompilerParams(
            dimension_semantics=("parallel",)),
    )(x2d, s1, b1, w1p)

    # --- BN2 scale/bias from the per-tile partial sums (tiny JAX reduce).
    tot2 = jnp.sum(st2, axis=0)                       # (2, cmid)
    mean2 = tot2[0] / count
    var2 = tot2[1] / count - mean2 * mean2
    sc2 = p["gamma2"] / jnp.sqrt(var2 + _EPS)
    bi2 = p["beta2"] - mean2 * sc2
    s2 = sc2.reshape(1, cmid)
    b2 = bi2.reshape(1, cmid)

    # --- Kernel 2: fused BN2 -> ReLU2 -> conv3x3 (+ next-layer BN1 stats).
    bott3 = bott.reshape(n, hw, cmid)                 # metadata-only reshape
    w2 = p["w2"].astype(_MXU_DTYPE)
    conv_kernel = functools.partial(_conv3x3_bnrelu_kernel, height=h, width=w)
    new, st_new = pl.pallas_call(
        conv_kernel,
        grid=(n,),
        in_specs=[
            pl.BlockSpec((1, hw, cmid), lambda i: (i, 0, 0)),
            pl.BlockSpec((1, cmid), lambda i: (0, 0)),
            pl.BlockSpec((1, cmid), lambda i: (0, 0)),
            pl.BlockSpec((9, cmid, g), lambda i: (0, 0, 0)),
        ],
        out_specs=[
            pl.BlockSpec((1, hw, g), lambda i: (i, 0, 0)),
            pl.BlockSpec((1, 2, g), lambda i: (i, 0, 0)),
        ],
        out_shape=[
            jax.ShapeDtypeStruct((n, hw, g), jnp.float32),
            jax.ShapeDtypeStruct((n, 2, g), jnp.float32),
        ],
        compiler_params=pltpu.CompilerParams(
            dimension_semantics=("parallel",)),
    )(bott3, s2, b2, w2)
    # TODO(synk): F.dropout for drop_rate > 0 not implemented; example uses drop_rate = 0.

    # --- Write the new growth_rate channels into the feature buffer and cache
    #     their per-channel sums for later layers' BN1.
    feat_buf = feat_buf.at[..., cin:cin + g].set(new.reshape(n, h, w, g))
    st_tot = jnp.sum(st_new, axis=0)                  # (2, g)
    ssum = ssum.at[cin:cin + g].set(st_tot[0])
    ssq = ssq.at[cin:cin + g].set(st_tot[1])
    return feat_buf, ssum, ssq


def dense_block_forward(x_nchw, layer_params, *, tile_m=512):
    """_DenseBlock forward.  x_nchw: (N, C0, H, W); returns (N, C_total, H, W)."""
    n, c0, h, w = x_nchw.shape
    g = layer_params[0]["w2"].shape[-1]
    c_total = c0 + len(layer_params) * g
    count = float(n * h * w)
    tm = _pick_tile_m(n * h * w, tile_m)

    x = jnp.transpose(x_nchw, (0, 2, 3, 1)).astype(jnp.float32)   # NCHW->NHWC
    feat = jnp.zeros((n, h, w, c_total), jnp.float32).at[..., :c0].set(x)

    # One-time per-channel stats of the block input; every layer afterwards
    # reuses cached sums, so BN1 never re-reads old features for statistics.
    ssum = jnp.zeros((c_total,), jnp.float32).at[:c0].set(jnp.sum(x, axis=(0, 1, 2)))
    ssq = jnp.zeros((c_total,), jnp.float32).at[:c0].set(jnp.sum(x * x, axis=(0, 1, 2)))

    cin = c0
    for p in layer_params:
        feat, ssum, ssq = _dense_layer(feat, ssum, ssq, count, cin, p, tile_m=tm)
        cin += g
    # torch.cat(features, 1) is already materialized as the feature buffer.
    return jnp.transpose(feat, (0, 3, 1, 2))                      # NHWC->NCHW


# --------------------------- deterministic params ---------------------------

def init_params(key, num_layers, num_input_features, bn_size, growth_rate):
    params = []
    for i in range(num_layers):
        cin = num_input_features + i * growth_rate
        cmid = bn_size * growth_rate
        key, k1, k2, k3, k4, k5, k6 = jax.random.split(key, 7)
        params.append(dict(
            gamma1=1.0 + 0.1 * jax.random.normal(k1, (cin,), jnp.float32),
            beta1=0.1 * jax.random.normal(k2, (cin,), jnp.float32),
            # conv1 weight: torch (cmid, cin, 1, 1) stored here as (cin, cmid)
            w1=0.1 * jax.random.normal(k3, (cin, cmid), jnp.float32),
            gamma2=1.0 + 0.1 * jax.random.normal(k4, (cmid,), jnp.float32),
            beta2=0.1 * jax.random.normal(k5, (cmid,), jnp.float32),
            # conv2 weight: torch (g, cmid, 3, 3) stored here as (kh*3+kw, cmid, g)
            w2=0.1 * jax.random.normal(k6, (9, cmid, growth_rate), jnp.float32),
        ))
    return params


# ------------------------------ pure-JAX ref --------------------------------

def _ref_dense_block(x_nchw, layer_params, matmul_dtype=jnp.float32):
    """Reference forward.  matmul_dtype=bf16 mirrors the kernel's MXU precision
    (bf16 operands, f32 accumulation); f32 is the exact PyTorch-f32 math."""
    x = jnp.transpose(x_nchw, (0, 2, 3, 1))
    feats = [x]
    for p in layer_params:
        xc = jnp.concatenate(feats, axis=-1)
        m = xc.mean((0, 1, 2)); v = ((xc - m) ** 2).mean((0, 1, 2))
        a = jnp.maximum((xc - m) / jnp.sqrt(v + _EPS) * p["gamma1"] + p["beta1"], 0.0)
        bott = jnp.einsum("nhwc,cm->nhwm",
                          a.astype(matmul_dtype), p["w1"].astype(matmul_dtype),
                          preferred_element_type=jnp.float32)
        m2 = bott.mean((0, 1, 2)); v2 = ((bott - m2) ** 2).mean((0, 1, 2))
        a2 = jnp.maximum((bott - m2) / jnp.sqrt(v2 + _EPS) * p["gamma2"] + p["beta2"], 0.0)
        w2 = p["w2"].reshape(3, 3, a2.shape[-1], -1)          # HWIO
        new = lax.conv_general_dilated(
            a2.astype(matmul_dtype), w2.astype(matmul_dtype), (1, 1), "SAME",
            dimension_numbers=("NHWC", "HWIO", "NHWC"),
            preferred_element_type=jnp.float32)
        feats.append(new)
    return jnp.transpose(jnp.concatenate(feats, -1), (0, 3, 1, 2))


# ---------------------------------- main ------------------------------------

if __name__ == "__main__":
    num_layers, num_input_features = 3, 4
    bn_size, growth_rate, drop_rate = 4, 8, 0.0   # drop_rate=0 -> dropout is identity
    N, H, W = 2, 16, 16

    key = jax.random.PRNGKey(0)
    kx, kp = jax.random.split(key)
    x = jax.random.normal(kx, (N, num_input_features, H, W), jnp.float32)  # NCHW
    params = init_params(kp, num_layers, num_input_features, bn_size, growth_rate)

    # tile_m=128 exercises a multi-step row grid at these toy shapes; at
    # production sizes use the default 512(-1024) for ~HBM-roofline tiles.
    fwd = jax.jit(functools.partial(dense_block_forward, tile_m=128))
    out = jax.block_until_ready(fwd(x, params))

    expected_c = num_input_features + num_layers * growth_rate
    assert out.shape == (N, expected_c, H, W), out.shape

    # Tight check vs a reference using the same bf16-operand / f32-accumulate
    # matmul precision as the MXU path.
    ref_bf16 = jax.block_until_ready(_ref_dense_block(x, params, jnp.bfloat16))
    err_bf16 = float(jnp.max(jnp.abs(out - ref_bf16)))
    assert jnp.allclose(out, ref_bf16, atol=2e-3, rtol=2e-3), err_bf16

    # Loose sanity check vs the pure-f32 reference (difference is only the
    # deliberate bf16 rounding of matmul operands).
    ref_f32 = jax.block_until_ready(_ref_dense_block(x, params, jnp.float32))
    err_f32 = float(jnp.max(jnp.abs(out - ref_f32)))
    assert jnp.allclose(out, ref_f32, atol=5e-2, rtol=5e-2), err_f32

    print("KERNEL_OK")
</pallas_src>

<mosaic_0001>
module attributes {stable_mosaic.version = 11 : i64} {
  func.func @_bottleneck_kernel(%arg0: i32, %arg1: memref<128x28xf32, #tpu.memory_space<vmem>>, %arg2: memref<1x28xf32, #tpu.memory_space<vmem>>, %arg3: memref<1x28xf32, #tpu.memory_space<vmem>>, %arg4: memref<28x32xbf16, #tpu.memory_space<vmem>>, %arg5: memref<128x32xf32, #tpu.memory_space<vmem>>, %arg6: memref<1x2x32xf32, #tpu.memory_space<vmem>>) attributes {dimension_semantics = [#tpu.dimension_semantics<parallel>], iteration_bounds = array<i64: 4>, scalar_prefetch = 0 : i64, scratch_operands = 0 : i64, tpu.core_type = #tpu.core_type<tc>, window_params = [{transform_indices = @transform_0, window_bounds = array<i64: 128, 28>}, {pipeline_mode = #tpu.pipeline_mode<synchronous>, transform_indices = @transform_1, window_bounds = array<i64: 1, 28>}, {pipeline_mode = #tpu.pipeline_mode<synchronous>, transform_indices = @transform_2, window_bounds = array<i64: 1, 28>}, {pipeline_mode = #tpu.pipeline_mode<synchronous>, transform_indices = @transform_3, window_bounds = array<i64: 28, 32>}, {transform_indices = @transform_4, window_bounds = array<i64: 128, 32>}, {transform_indices = @transform_5, window_bounds = array<i64: 1, 2, 32>}]} {
    %c0 = arith.constant 0 : index
    %c0_0 = arith.constant 0 : index
    %0 = vector.load %arg1[%c0, %c0_0] : memref<128x28xf32, #tpu.memory_space<vmem>>, vector<128x28xf32>
    %c0_1 = arith.constant 0 : index
    %c0_2 = arith.constant 0 : index
    %1 = vector.load %arg2[%c0_1, %c0_2] : memref<1x28xf32, #tpu.memory_space<vmem>>, vector<1x28xf32>
    %2 = vector.broadcast %1 : vector<1x28xf32> to vector<128x28xf32>
    %3 = arith.mulf %0, %2 : vector<128x28xf32>
    %c0_3 = arith.constant 0 : index
    %c0_4 = arith.constant 0 : index
    %4 = vector.load %arg3[%c0_3, %c0_4] : memref<1x28xf32, #tpu.memory_space<vmem>>, vector<1x28xf32>
    %5 = vector.broadcast %4 : vector<1x28xf32> to vector<128x28xf32>
    %6 = arith.addf %3, %5 : vector<128x28xf32>
    %cst = arith.constant 0.000000e+00 : f32
    %7 = vector.broadcast %cst : f32 to vector<128x28xf32>
    %8 = arith.maximumf %6, %7 : vector<128x28xf32>
    %9 = arith.truncf %8 : vector<128x28xf32> to vector<128x28xbf16>
    %c0_5 = arith.constant 0 : index
    %c0_6 = arith.constant 0 : index
    %10 = vector.load %arg4[%c0_5, %c0_6] : memref<28x32xbf16, #tpu.memory_space<vmem>>, vector<28x32xbf16>
    %cst_7 = arith.constant dense<0.000000e+00> : vector<128x32xf32>
    %11 = tpu.matmul %9, %10, %cst_7 {dimension_numbers = #tpu.dot_dimension_numbers<[1], [0], [0], [1], [0, 0, 1, 1], [], []>} : vector<128x28xbf16>, vector<28x32xbf16>, vector<128x32xf32> -> vector<128x32xf32>
    %c0_8 = arith.constant 0 : index
    %c0_9 = arith.constant 0 : index
    %12 = vector.load %arg5[%c0_8, %c0_9] : memref<128x32xf32, #tpu.memory_space<vmem>>, vector<128x32xf32>
    tpu.vector_store %arg5[%c0_8, %c0_9], %11 {strides = array<i32>} : memref<128x32xf32, #tpu.memory_space<vmem>>, vector<128x32xf32>,
    %cst_10 = arith.constant dense<0.000000e+00> : vector<32xf32>
    %13 = vector.multi_reduction <add>, %11, %cst_10 [0] : vector<128x32xf32> to vector<32xf32>
    %14 = vector.shape_cast %13 : vector<32xf32> to vector<1x32xf32>
    %15 = arith.mulf %11, %11 : vector<128x32xf32>
    %cst_11 = arith.constant dense<0.000000e+00> : vector<32xf32>
    %16 = vector.multi_reduction <add>, %15, %cst_11 [0] : vector<128x32xf32> to vector<32xf32>
    %17 = vector.shape_cast %16 : vector<32xf32> to vector<1x32xf32>
    %18 = tpu.concatenate %14, %17 in 0 : vector<1x32xf32>, vector<1x32xf32> -> vector<2x32xf32>
    %19 = vector.shape_cast %18 : vector<2x32xf32> to vector<1x2x32xf32>
    %c0_12 = arith.constant 0 : index
    %c0_13 = arith.constant 0 : index
    %c0_14 = arith.constant 0 : index
    %20 = vector.load %arg6[%c0_12, %c0_13, %c0_14] : memref<1x2x32xf32, #tpu.memory_space<vmem>>, vector<1x2x32xf32>
    tpu.vector_store %arg6[%c0_12, %c0_13, %c0_14], %19 {strides = array<i32>} : memref<1x2x32xf32, #tpu.memory_space<vmem>>, vector<1x2x32xf32>,
    return
  }
  func.func @transform_0(%arg0: i32) -> (i32, i32) {
    %c0_i32 = arith.constant 0 : i32
    %c0_i32_0 = arith.constant 0 : i32
    return %arg0, %c0_i32 : i32, i32
  }
  func.func @transform_1(%arg0: i32) -> (i32, i32) {
    %c0_i32 = arith.constant 0 : i32
    %c0_i32_0 = arith.constant 0 : i32
    %c0_i32_1 = arith.constant 0 : i32
    return %c0_i32, %c0_i32_0 : i32, i32
  }
  func.func @transform_2(%arg0: i32) -> (i32, i32) {
    %c0_i32 = arith.constant 0 : i32
    %c0_i32_0 = arith.constant 0 : i32
    %c0_i32_1 = arith.constant 0 : i32
    return %c0_i32, %c0_i32_0 : i32, i32
  }
  func.func @transform_3(%arg0: i32) -> (i32, i32) {
    %c0_i32 = arith.constant 0 : i32
    %c0_i32_0 = arith.constant 0 : i32
    %c0_i32_1 = arith.constant 0 : i32
    return %c0_i32, %c0_i32_0 : i32, i32
  }
  func.func @transform_4(%arg0: i32) -> (i32, i32) {
    %c0_i32 = arith.constant 0 : i32
    %c0_i32_0 = arith.constant 0 : i32
    return %arg0, %c0_i32 : i32, i32
  }
  func.func @transform_5(%arg0: i32) -> (i32, i32, i32) {
    %c0_i32 = arith.constant 0 : i32
    %c0_i32_0 = arith.constant 0 : i32
    %c0_i32_1 = arith.constant 0 : i32
    return %arg0, %c0_i32, %c0_i32_0 : i32, i32, i32
  }
}

module attributes {stable_mosaic.version = 11 : i64} {
  func.func @_conv3x3_bnrelu_kernel(%arg0: i32, %arg1: memref<1x256x32xf32, #tpu.memory_space<vmem>>, %arg2: memref<1x32xf32, #tpu.memory_space<vmem>>, %arg3: memref<1x32xf32, #tpu.memory_space<vmem>>, %arg4: memref<9x32x8xbf16, #tpu.memory_space<vmem>>, %arg5: memref<1x256x8xf32, #tpu.memory_space<vmem>>, %arg6: memref<1x2x8xf32, #tpu.memory_space<vmem>>) attributes {dimension_semantics = [#tpu.dimension_semantics<parallel>], iteration_bounds = array<i64: 2>, scalar_prefetch = 0 : i64, scratch_operands = 0 : i64, tpu.core_type = #tpu.core_type<tc>, window_params = [{transform_indices = @transform_0, window_bounds = array<i64: 1, 256, 32>}, {pipeline_mode = #tpu.pipeline_mode<synchronous>, transform_indices = @transform_1, window_bounds = array<i64: 1, 32>}, {pipeline_mode = #tpu.pipeline_mode<synchronous>, transform_indices = @transform_2, window_bounds = array<i64: 1, 32>}, {pipeline_mode = #tpu.pipeline_mode<synchronous>, transform_indices = @transform_3, window_bounds = array<i64: 9, 32, 8>}, {transform_indices = @transform_4, window_bounds = array<i64: 1, 256, 8>}, {transform_indices = @transform_5, window_bounds = array<i64: 1, 2, 8>}]} {
    %c0 = arith.constant 0 : index
    %c0_0 = arith.constant 0 : index
    %c0_1 = arith.constant 0 : index
    %0 = vector.load %arg1[%c0, %c0_0, %c0_1] : memref<1x256x32xf32, #tpu.memory_space<vmem>>, vector<1x256x32xf32>
    %1 = vector.shape_cast %0 : vector<1x256x32xf32> to vector<256x32xf32>
    %c0_2 = arith.constant 0 : index
    %c0_3 = arith.constant 0 : index
    %2 = vector.load %arg2[%c0_2, %c0_3] : memref<1x32xf32, #tpu.memory_space<vmem>>, vector<1x32xf32>
    %3 = vector.broadcast %2 : vector<1x32xf32> to vector<256x32xf32>
    %4 = arith.mulf %1, %3 : vector<256x32xf32>
    %c0_4 = arith.constant 0 : index
    %c0_5 = arith.constant 0 : index
    %5 = vector.load %arg3[%c0_4, %c0_5] : memref<1x32xf32, #tpu.memory_space<vmem>>, vector<1x32xf32>
    %6 = vector.broadcast %5 : vector<1x32xf32> to vector<256x32xf32>
    %7 = arith.addf %4, %6 : vector<256x32xf32>
    %cst = arith.constant 0.000000e+00 : f32
    %8 = vector.broadcast %cst : f32 to vector<256x32xf32>
    %9 = arith.maximumf %7, %8 : vector<256x32xf32>
    %10 = arith.truncf %9 : vector<256x32xf32> to vector<256x32xbf16>
    %11 = tpu.iota {dimensions = array<i32: 0>} : vector<256x1xi32>
    %c16_i32 = arith.constant 16 : i32
    %c0_i32 = arith.constant 0 : i32
    %12 = arith.cmpi eq, %c16_i32, %c0_i32 : i32
    %c1_i32 = arith.constant 1 : i32
    %13 = arith.select %12, %c1_i32, %c16_i32 : i32
    %14 = vector.broadcast %13 : i32 to vector<256x1xi32>
    %15 = arith.remsi %11, %14 : vector<256x1xi32>
    %c0_i32_6 = arith.constant 0 : i32
    %16 = vector.broadcast %c0_i32_6 : i32 to vector<256x1xi32>
    %17 = arith.cmpi ne, %15, %16 : vector<256x1xi32>
    %c0_i32_7 = arith.constant 0 : i32
    %18 = vector.broadcast %c0_i32_7 : i32 to vector<256x1xi32>
    %19 = arith.cmpi slt, %15, %18 : vector<256x1xi32>
    %c0_i32_8 = arith.constant 0 : i32
    %20 = arith.cmpi slt, %13, %c0_i32_8 : i32
    %21 = vector.broadcast %20 : i1 to vector<256x1xi1>
    %22 = vector.broadcast %21 : vector<256x1xi1> to vector<256x1xi1>
    %23 = arith.xori %19, %22 : vector<256x1xi1>
    %24 = arith.andi %23, %17 : vector<256x1xi1>
    %25 = vector.broadcast %13 : i32 to vector<256x1xi32>
    %26 = arith.addi %15, %25 : vector<256x1xi32>
    %27 = arith.select %24, %26, %15 : vector<256x1xi1>, vector<256x1xi32>
    %cst_9 = arith.constant 0.000000e+00 : f32
    %28 = vector.broadcast %cst_9 : f32 to vector<256x8xf32>
    %cst_10 = arith.constant 0.000000e+00 : bf16
    %29 = vector.broadcast %cst_10 : bf16 to vector<17x32xbf16>
    %30 = vector.extract_strided_slice %10 {offsets = [0, 0], sizes = [239, 32], strides = [1, 1]} : vector<256x32xbf16> to vector<239x32xbf16>
    %31 = tpu.concatenate %29, %30 in 0 : vector<17x32xbf16>, vector<239x32xbf16> -> vector<256x32xbf16>
    %c-1_i32 = arith.constant -1 : i32
    %32 = vector.broadcast %c-1_i32 : i32 to vector<256x1xi32>
    %33 = arith.addi %27, %32 : vector<256x1xi32>
    %c0_i32_11 = arith.constant 0 : i32
    %34 = vector.broadcast %c0_i32_11 : i32 to vector<256x1xi32>
    %35 = arith.cmpi sge, %33, %34 : vector<256x1xi32>
    %c-1_i32_12 = arith.constant -1 : i32
    %36 = vector.broadcast %c-1_i32_12 : i32 to vector<256x1xi32>
    %37 = arith.addi %27, %36 : vector<256x1xi32>
    %c16_i32_13 = arith.constant 16 : i32
    %38 = vector.broadcast %c16_i32_13 : i32 to vector<256x1xi32>
    %39 = arith.cmpi slt, %37, %38 : vector<256x1xi32>
    %40 = arith.andi %35, %39 : vector<256x1xi1>
    %cst_14 = arith.constant 0.000000e+00 : bf16
    %41 = vector.broadcast %cst_14 : bf16 to vector<256x32xbf16>
    %42 = vector.shape_cast %40 : vector<256x1xi1> to vector<256x1xi1>
    %43 = vector.broadcast %42 : vector<256x1xi1> to vector<256x32xi1>
    %44 = arith.select %43, %31, %41 : vector<256x32xi1>, vector<256x32xbf16>
    %c0_15 = arith.constant 0 : index
    %c0_16 = arith.constant 0 : index
    %c0_17 = arith.constant 0 : index
    %45 = vector.load %arg4[%c0_15, %c0_16, %c0_17] : memref<9x32x8xbf16, #tpu.memory_space<vmem>>, vector<1x32x8xbf16>
    %46 = vector.shape_cast %45 : vector<1x32x8xbf16> to vector<32x8xbf16>
    %cst_18 = arith.constant dense<0.000000e+00> : vector<256x8xf32>
    %47 = tpu.matmul %44, %46, %cst_18 {dimension_numbers = #tpu.dot_dimension_numbers<[1], [0], [0], [1], [0, 0, 1, 1], [], []>} : vector<256x32xbf16>, vector<32x8xbf16>, vector<256x8xf32> -> vector<256x8xf32>
    %48 = arith.addf %28, %47 : vector<256x8xf32>
    %cst_19 = arith.constant 0.000000e+00 : bf16
    %49 = vector.broadcast %cst_19 : bf16 to vector<16x32xbf16>
    %50 = vector.extract_strided_slice %10 {offsets = [0, 0], sizes = [240, 32], strides = [1, 1]} : vector<256x32xbf16> to vector<240x32xbf16>
    %51 = tpu.concatenate %49, %50 in 0 : vector<16x32xbf16>, vector<240x32xbf16> -> vector<256x32xbf16>
    %c1 = arith.constant 1 : index
    %c0_20 = arith.constant 0 : index
    %c0_21 = arith.constant 0 : index
    %52 = vector.load %arg4[%c1, %c0_20, %c0_21] : memref<9x32x8xbf16, #tpu.memory_space<vmem>>, vector<1x32x8xbf16>
    %53 = vector.shape_cast %52 : vector<1x32x8xbf16> to vector<32x8xbf16>
    %cst_22 = arith.constant dense<0.000000e+00> : vector<256x8xf32>
    %54 = tpu.matmul %51, %53, %cst_22 {dimension_numbers = #tpu.dot_dimension_numbers<[1], [0], [0], [1], [0, 0, 1, 1], [], []>} : vector<256x32xbf16>, vector<32x8xbf16>, vector<256x8xf32> -> vector<256x8xf32>
    %55 = arith.addf %48, %54 : vector<256x8xf32>
    %cst_23 = arith.constant 0.000000e+00 : bf16
    %56 = vector.broadcast %cst_23 : bf16 to vector<15x32xbf16>
    %57 = vector.extract_strided_slice %10 {offsets = [0, 0], sizes = [241, 32], strides = [1, 1]} : vector<256x32xbf16> to vector<241x32xbf16>
    %58 = tpu.concatenate %56, %57 in 0 : vector<15x32xbf16>, vector<241x32xbf16> -> vector<256x32xbf16>
    %c1_i32_24 = arith.constant 1 : i32
    %59 = vector.broadcast %c1_i32_24 : i32 to vector<256x1xi32>
    %60 = arith.addi %27, %59 : vector<256x1xi32>
    %c0_i32_25 = arith.constant 0 : i32
    %61 = vector.broadcast %c0_i32_25 : i32 to vector<256x1xi32>
    %62 = arith.cmpi sge, %60, %61 : vector<256x1xi32>
    %c1_i32_26 = arith.constant 1 : i32
    %63 = vector.broadcast %c1_i32_26 : i32 to vector<256x1xi32>
    %64 = arith.addi %27, %63 : vector<256x1xi32>
    %c16_i32_27 = arith.constant 16 : i32
    %65 = vector.broadcast %c16_i32_27 : i32 to vector<256x1xi32>
    %66 = arith.cmpi slt, %64, %65 : vector<256x1xi32>
    %67 = arith.andi %62, %66 : vector<256x1xi1>
    %cst_28 = arith.constant 0.000000e+00 : bf16
    %68 = vector.broadcast %cst_28 : bf16 to vector<256x32xbf16>
    %69 = vector.shape_cast %67 : vector<256x1xi1> to vector<256x1xi1>
    %70 = vector.broadcast %69 : vector<256x1xi1> to vector<256x32xi1>
    %71 = arith.select %70, %58, %68 : vector<256x32xi1>, vector<256x32xbf16>
    %c2 = arith.constant 2 : index
    %c0_29 = arith.constant 0 : index
    %c0_30 = arith.constant 0 : index
    %72 = vector.load %arg4[%c2, %c0_29, %c0_30] : memref<9x32x8xbf16, #tpu.memory_space<vmem>>, vector<1x32x8xbf16>
    %73 = vector.shape_cast %72 : vector<1x32x8xbf16> to vector<32x8xbf16>
    %cst_31 = arith.constant dense<0.000000e+00> : vector<256x8xf32>
    %74 = tpu.matmul %71, %73, %cst_31 {dimension_numbers = #tpu.dot_dimension_numbers<[1], [0], [0], [1], [0, 0, 1, 1], [], []>} : vector<256x32xbf16>, vector<32x8xbf16>, vector<256x8xf32> -> vector<256x8xf32>
    %75 = arith.addf %55, %74 : vector<256x8xf32>
    %cst_32 = arith.constant 0.000000e+00 : bf16
    %76 = vector.broadcast %cst_32 : bf16 to vector<1x32xbf16>
    %77 = vector.extract_strided_slice %10 {offsets = [0, 0], sizes = [255, 32], strides = [1, 1]} : vector<256x32xbf16> to vector<255x32xbf16>
    %78 = tpu.concatenate %76, %77 in 0 : vector<1x32xbf16>, vector<255x32xbf16> -> vector<256x32xbf16>
    %c-1_i32_33 = arith.constant -1 : i32
    %79 = vector.broadcast %c-1_i32_33 : i32 to vector<256x1xi32>
    %80 = arith.addi %27, %79 : vector<256x1xi32>
    %c0_i32_34 = arith.constant 0 : i32
    %81 = vector.broadcast %c0_i32_34 : i32 to vector<256x1xi32>
    %82 = arith.cmpi sge, %80, %81 : vector<256x1xi32>
    %c-1_i32_35 = arith.constant -1 : i32
    %83 = vector.broadcast %c-1_i32_35 : i32 to vector<256x1xi32>
    %84 = arith.addi %27, %83 : vector<256x1xi32>
    %c16_i32_36 = arith.constant 16 : i32
    %85 = vector.broadcast %c16_i32_36 : i32 to vector<256x1xi32>
    %86 = arith.cmpi slt, %84, %85 : vector<256x1xi32>
    %87 = arith.andi %82, %86 : vector<256x1xi1>
    %cst_37 = arith.constant 0.000000e+00 : bf16
    %88 = vector.broadcast %cst_37 : bf16 to vector<256x32xbf16>
    %89 = vector.shape_cast %87 : vector<256x1xi1> to vector<256x1xi1>
    %90 = vector.broadcast %89 : vector<256x1xi1> to vector<256x32xi1>
    %91 = arith.select %90, %78, %88 : vector<256x32xi1>, vector<256x32xbf16>
    %c3 = arith.constant 3 : index
    %c0_38 = arith.constant 0 : index
    %c0_39 = arith.constant 0 : index
    %92 = vector.load %arg4[%c3, %c0_38, %c0_39] : memref<9x32x8xbf16, #tpu.memory_space<vmem>>, vector<1x32x8xbf16>
    %93 = vector.shape_cast %92 : vector<1x32x8xbf16> to vector<32x8xbf16>
    %cst_40 = arith.constant dense<0.000000e+00> : vector<256x8xf32>
    %94 = tpu.matmul %91, %93, %cst_40 {dimension_numbers = #tpu.dot_dimension_numbers<[1], [0], [0], [1], [0, 0, 1, 1], [], []>} : vector<256x32xbf16>, vector<32x8xbf16>, vector<256x8xf32> -> vector<256x8xf32>
    %95 = arith.addf %75, %94 : vector<256x8xf32>
    %c4 = arith.constant 4 : index
    %c0_41 = arith.constant 0 : index
    %c0_42 = arith.constant 0 : index
    %96 = vector.load %arg4[%c4, %c0_41, %c0_42] : memref<9x32x8xbf16, #tpu.memory_space<vmem>>, vector<1x32x8xbf16>
    %97 = vector.shape_cast %96 : vector<1x32x8xbf16> to vector<32x8xbf16>
    %cst_43 = arith.constant dense<0.000000e+00> : vector<256x8xf32>
    %98 = tpu.matmul %10, %97, %cst_43 {dimension_numbers = #tpu.dot_dimension_numbers<[1], [0], [0], [1], [0, 0, 1, 1], [], []>} : vector<256x32xbf16>, vector<32x8xbf16>, vector<256x8xf32> -> vector<256x8xf32>
    %99 = arith.addf %95, %98 : vector<256x8xf32>
    %100 = vector.extract_strided_slice %10 {offsets = [1, 0], sizes = [255, 32], strides = [1, 1]} : vector<256x32xbf16> to vector<255x32xbf16>
    %cst_44 = arith.constant 0.000000e+00 : bf16
    %101 = vector.broadcast %cst_44 : bf16 to vector<1x32xbf16>
    %102 = tpu.concatenate %100, %101 in 0 : vector<255x32xbf16>, vector<1x32xbf16> -> vector<256x32xbf16>
    %c1_i32_45 = arith.constant 1 : i32
    %103 = vector.broadcast %c1_i32_45 : i32 to vector<256x1xi32>
    %104 = arith.addi %27, %103 : vector<256x1xi32>
    %c0_i32_46 = arith.constant 0 : i32
    %105 = vector.broadcast %c0_i32_46 : i32 to vector<256x1xi32>
    %106 = arith.cmpi sge, %104, %105 : vector<256x1xi32>
    %c1_i32_47 = arith.constant 1 : i32
    %107 = vector.broadcast %c1_i32_47 : i32 to vector<256x1xi32>
    %108 = arith.addi %27, %107 : vector<256x1xi32>
    %c16_i32_48 = arith.constant 16 : i32
    %109 = vector.broadcast %c16_i32_48 : i32 to vector<256x1xi32>
    %110 = arith.cmpi slt, %108, %109 : vector<256x1xi32>
    %111 = arith.andi %106, %110 : vector<256x1xi1>
    %cst_49 = arith.constant 0.000000e+00 : bf16
    %112 = vector.broadcast %cst_49 : bf16 to vector<256x32xbf16>
    %113 = vector.shape_cast %111 : vector<256x1xi1> to vector<256x1xi1>
    %114 = vector.broadcast %113 : vector<256x1xi1> to vector<256x32xi1>
    %115 = arith.select %114, %102, %112 : vector<256x32xi1>, vector<256x32xbf16>
    %c5 = arith.constant 5 : index
    %c0_50 = arith.constant 0 : index
    %c0_51 = arith.constant 0 : index
    %116 = vector.load %arg4[%c5, %c0_50, %c0_51] : memref<9x32x8xbf16, #tpu.memory_space<vmem>>, vector<1x32x8xbf16>
    %117 = vector.shape_cast %116 : vector<1x32x8xbf16> to vector<32x8xbf16>
    %cst_52 = arith.constant dense<0.000000e+00> : vector<256x8xf32>
    %118 = tpu.matmul %115, %117, %cst_52 {dimension_numbers = #tpu.dot_dimension_numbers<[1], [0], [0], [1], [0, 0, 1, 1], [], []>} : vector<256x32xbf16>, vector<32x8xbf16>, vector<256x8xf32> -> vector<256x8xf32>
    %119 = arith.addf %99, %118 : vector<256x8xf32>
    %120 = vector.extract_strided_slice %10 {offsets = [15, 0], sizes = [241, 32], strides = [1, 1]} : vector<256x32xbf16> to vector<241x32xbf16>
    %cst_53 = arith.constant 0.000000e+00 : bf16
    %121 = vector.broadcast %cst_53 : bf16 to vector<15x32xbf16>
    %122 = tpu.concatenate %120, %121 in 0 : vector<241x32xbf16>, vector<15x32xbf16> -> vector<256x32xbf16>
    %c-1_i32_54 = arith.constant -1 : i32
    %123 = vector.broadcast %c-1_i32_54 : i32 to vector<256x1xi32>
    %124 = arith.addi %27, %123 : vector<256x1xi32>
    %c0_i32_55 = arith.constant 0 : i32
    %125 = vector.broadcast %c0_i32_55 : i32 to vector<256x1xi32>
    %126 = arith.cmpi sge, %124, %125 : vector<256x1xi32>
    %c-1_i32_56 = arith.constant -1 : i32
    %127 = vector.broadcast %c-1_i32_56 : i32 to vector<256x1xi32>
    %128 = arith.addi %27, %127 : vector<256x1xi32>
    %c16_i32_57 = arith.constant 16 : i32
    %129 = vector.broadcast %c16_i32_57 : i32 to vector<256x1xi32>
    %130 = arith.cmpi slt, %128, %129 : vector<256x1xi32>
    %131 = arith.andi %126, %130 : vector<256x1xi1>
    %cst_58 = arith.constant 0.000000e+00 : bf16
    %132 = vector.broadcast %cst_58 : bf16 to vector<256x32xbf16>
    %133 = vector.shape_cast %131 : vector<256x1xi1> to vector<256x1xi1>
    %134 = vector.broadcast %133 : vector<256x1xi1> to vector<256x32xi1>
    %135 = arith.select %134, %122, %132 : vector<256x32xi1>, vector<256x32xbf16>
    %c6 = arith.constant 6 : index
    %c0_59 = arith.constant 0 : index
    %c0_60 = arith.constant 0 : index
    %136 = vector.load %arg4[%c6, %c0_59, %c0_60] : memref<9x32x8xbf16, #tpu.memory_space<vmem>>, vector<1x32x8xbf16>
    %137 = vector.shape_cast %136 : vector<1x32x8xbf16> to vector<32x8xbf16>
    %cst_61 = arith.constant dense<0.000000e+00> : vector<256x8xf32>
    %138 = tpu.matmul %135, %137, %cst_61 {dimension_numbers = #tpu.dot_dimension_numbers<[1], [0], [0], [1], [0, 0, 1, 1], [], []>} : vector<256x32xbf16>, vector<32x8xbf16>, vector<256x8xf32> -> vector<256x8xf32>
    %139 = arith.addf %119, %138 : vector<256x8xf32>
    %140 = vector.extract_strided_slice %10 {offsets = [16, 0], sizes = [240, 32], strides = [1, 1]} : vector<256x32xbf16> to vector<240x32xbf16>
    %cst_62 = arith.constant 0.000000e+00 : bf16
    %141 = vector.broadcast %cst_62 : bf16 to vector<16x32xbf16>
    %142 = tpu.concatenate %140, %141 in 0 : vector<240x32xbf16>, vector<16x32xbf16> -> vector<256x32xbf16>
    %c7 = arith.constant 7 : index
    %c0_63 = arith.constant 0 : index
    %c0_64 = arith.constant 0 : index
    %143 = vector.load %arg4[%c7, %c0_63, %c0_64] : memref<9x32x8xbf16, #tpu.memory_space<vmem>>, vector<1x32x8xbf16>
    %144 = vector.shape_cast %143 : vector<1x32x8xbf16> to vector<32x8xbf16>
    %cst_65 = arith.constant dense<0.000000e+00> : vector<256x8xf32>
    %145 = tpu.matmul %142, %144, %cst_65 {dimension_numbers = #tpu.dot_dimension_numbers<[1], [0], [0], [1], [0, 0, 1, 1], [], []>} : vector<256x32xbf16>, vector<32x8xbf16>, vector<256x8xf32> -> vector<256x8xf32>
    %146 = arith.addf %139, %145 : vector<256x8xf32>
    %147 = vector.extract_strided_slice %10 {offsets = [17, 0], sizes = [239, 32], strides = [1, 1]} : vector<256x32xbf16> to vector<239x32xbf16>
    %cst_66 = arith.constant 0.000000e+00 : bf16
    %148 = vector.broadcast %cst_66 : bf16 to vector<17x32xbf16>
    %149 = tpu.concatenate %147, %148 in 0 : vector<239x32xbf16>, vector<17x32xbf16> -> vector<256x32xbf16>
    %c1_i32_67 = arith.constant 1 : i32
    %150 = vector.broadcast %c1_i32_67 : i32 to vector<256x1xi32>
    %151 = arith.addi %27, %150 : vector<256x1xi32>
    %c0_i32_68 = arith.constant 0 : i32
    %152 = vector.broadcast %c0_i32_68 : i32 to vector<256x1xi32>
    %153 = arith.cmpi sge, %151, %152 : vector<256x1xi32>
    %c1_i32_69 = arith.constant 1 : i32
    %154 = vector.broadcast %c1_i32_69 : i32 to vector<256x1xi32>
    %155 = arith.addi %27, %154 : vector<256x1xi32>
    %c16_i32_70 = arith.constant 16 : i32
    %156 = vector.broadcast %c16_i32_70 : i32 to vector<256x1xi32>
    %157 = arith.cmpi slt, %155, %156 : vector<256x1xi32>
    %158 = arith.andi %153, %157 : vector<256x1xi1>
    %cst_71 = arith.constant 0.000000e+00 : bf16
    %159 = vector.broadcast %cst_71 : bf16 to vector<256x32xbf16>
    %160 = vector.shape_cast %158 : vector<256x1xi1> to vector<256x1xi1>
    %161 = vector.broadcast %160 : vector<256x1xi1> to vector<256x32xi1>
    %162 = arith.select %161, %149, %159 : vector<256x32xi1>, vector<256x32xbf16>
    %c8 = arith.constant 8 : index
    %c0_72 = arith.constant 0 : index
    %c0_73 = arith.constant 0 : index
    %163 = vector.load %arg4[%c8, %c0_72, %c0_73] : memref<9x32x8xbf16, #tpu.memory_space<vmem>>, vector<1x32x8xbf16>
    %164 = vector.shape_cast %163 : vector<1x32x8xbf16> to vector<32x8xbf16>
    %cst_74 = arith.constant dense<0.000000e+00> : vector<256x8xf32>
    %165 = tpu.matmul %162, %164, %cst_74 {dimension_numbers = #tpu.dot_dimension_numbers<[1], [0], [0], [1], [0, 0, 1, 1], [], []>} : vector<256x32xbf16>, vector<32x8xbf16>, vector<256x8xf32> -> vector<256x8xf32>
    %166 = arith.addf %146, %165 : vector<256x8xf32>
    %c0_75 = arith.constant 0 : index
    %c0_76 = arith.constant 0 : index
    %c0_77 = arith.constant 0 : index
    %167 = vector.load %arg5[%c0_75, %c0_76, %c0_77] : memref<1x256x8xf32, #tpu.memory_space<vmem>>, vector<1x256x8xf32>
    %168 = vector.shape_cast %167 : vector<1x256x8xf32> to vector<256x8xf32>
    %169 = vector.shape_cast %166 : vector<256x8xf32> to vector<1x256x8xf32>
    tpu.vector_store %arg5[%c0_75, %c0_76, %c0_77], %169 {strides = array<i32>} : memref<1x256x8xf32, #tpu.memory_space<vmem>>, vector<1x256x8xf32>,
    %cst_78 = arith.constant dense<0.000000e+00> : vector<8xf32>
    %170 = vector.multi_reduction <add>, %166, %cst_78 [0] : vector<256x8xf32> to vector<8xf32>
    %171 = vector.shape_cast %170 : vector<8xf32> to vector<1x8xf32>
    %172 = arith.mulf %166, %166 : vector<256x8xf32>
    %cst_79 = arith.constant dense<0.000000e+00> : vector<8xf32>
    %173 = vector.multi_reduction <add>, %172, %cst_79 [0] : vector<256x8xf32> to vector<8xf32>
    %174 = vector.shape_cast %173 : vector<8xf32> to vector<1x8xf32>
    %175 = tpu.concatenate %171, %174 in 0 : vector<1x8xf32>, vector<1x8xf32> -> vector<2x8xf32>
    %176 = vector.shape_cast %175 : vector<2x8xf32> to vector<1x2x8xf32>
    %c0_80 = arith.constant 0 : index
    %c0_81 = arith.constant 0 : index
    %c0_82 = arith.constant 0 : index
    %177 = vector.load %arg6[%c0_80, %c0_81, %c0_82] : memref<1x2x8xf32, #tpu.memory_space<vmem>>, vector<1x2x8xf32>
    tpu.vector_store %arg6[%c0_80, %c0_81, %c0_82], %176 {strides = array<i32>} : memref<1x2x8xf32, #tpu.memory_space<vmem>>, vector<1x2x8xf32>,
    return
  }
  func.func @transform_0(%arg0: i32) -> (i32, i32, i32) {
    %c0_i32 = arith.constant 0 : i32
    %c0_i32_0 = arith.constant 0 : i32
    %c0_i32_1 = arith.constant 0 : i32
    return %arg0, %c0_i32, %c0_i32_0 : i32, i32, i32
  }
  func.func @transform_1(%arg0: i32) -> (i32, i32) {
    %c0_i32 = arith.constant 0 : i32
    %c0_i32_0 = arith.constant 0 : i32
    %c0_i32_1 = arith.constant 0 : i32
    return %c0_i32, %c0_i32_0 : i32, i32
  }
  func.func @transform_2(%arg0: i32) -> (i32, i32) {
    %c0_i32 = arith.constant 0 : i32
    %c0_i32_0 = arith.constant 0 : i32
    %c0_i32_1 = arith.constant 0 : i32
    return %c0_i32, %c0_i32_0 : i32, i32
  }
  func.func @transform_3(%arg0: i32) -> (i32, i32, i32) {
    %c0_i32 = arith.constant 0 : i32
    %c0_i32_0 = arith.constant 0 : i32
    %c0_i32_1 = arith.constant 0 : i32
    %c0_i32_2 = arith.constant 0 : i32
    return %c0_i32, %c0_i32_0, %c0_i32_1 : i32, i32, i32
  }
  func.func @transform_4(%arg0: i32) -> (i32, i32, i32) {
    %c0_i32 = arith.constant 0 : i32
    %c0_i32_0 = arith.constant 0 : i32
    %c0_i32_1 = arith.constant 0 : i32
    return %arg0, %c0_i32, %c0_i32_0 : i32, i32, i32
  }
  func.func @transform_5(%arg0: i32) -> (i32, i32, i32) {
    %c0_i32 = arith.constant 0 : i32
    %c0_i32_0 = arith.constant 0 : i32
    %c0_i32_1 = arith.constant 0 : i32
    return %arg0, %c0_i32, %c0_i32_0 : i32, i32, i32
  }
}

module attributes {stable_mosaic.version = 11 : i64} {
  func.func @_conv3x3_bnrelu_kernel(%arg0: i32, %arg1: memref<1x256x32xf32, #tpu.memory_space<vmem>>, %arg2: memref<1x32xf32, #tpu.memory_space<vmem>>, %arg3: memref<1x32xf32, #tpu.memory_space<vmem>>, %arg4: memref<9x32x8xbf16, #tpu.memory_space<vmem>>, %arg5: memref<1x256x8xf32, #tpu.memory_space<vmem>>, %arg6: memref<1x2x8xf32, #tpu.memory_space<vmem>>) attributes {dimension_semantics = [#tpu.dimension_semantics<parallel>], iteration_bounds = array<i64: 2>, scalar_prefetch = 0 : i64, scratch_operands = 0 : i64, tpu.core_type = #tpu.core_type<tc>, window_params = [{transform_indices = @transform_0, window_bounds = array<i64: 1, 256, 32>}, {pipeline_mode = #tpu.pipeline_mode<synchronous>, transform_indices = @transform_1, window_bounds = array<i64: 1, 32>}, {pipeline_mode = #tpu.pipeline_mode<synchronous>, transform_indices = @transform_2, window_bounds = array<i64: 1, 32>}, {pipeline_mode = #tpu.pipeline_mode<synchronous>, transform_indices = @transform_3, window_bounds = array<i64: 9, 32, 8>}, {transform_indices = @transform_4, window_bounds = array<i64: 1, 256, 8>}, {transform_indices = @transform_5, window_bounds = array<i64: 1, 2, 8>}]} {
    %c0 = arith.constant 0 : index
    %c0_0 = arith.constant 0 : index
    %c0_1 = arith.constant 0 : index
    %0 = vector.load %arg1[%c0, %c0_0, %c0_1] : memref<1x256x32xf32, #tpu.memory_space<vmem>>, vector<1x256x32xf32>
    %1 = vector.shape_cast %0 : vector<1x256x32xf32> to vector<256x32xf32>
    %c0_2 = arith.constant 0 : index
    %c0_3 = arith.constant 0 : index
    %2 = vector.load %arg2[%c0_2, %c0_3] : memref<1x32xf32, #tpu.memory_space<vmem>>, vector<1x32xf32>
    %3 = vector.broadcast %2 : vector<1x32xf32> to vector<256x32xf32>
    %4 = arith.mulf %1, %3 : vector<256x32xf32>
    %c0_4 = arith.constant 0 : index
    %c0_5 = arith.constant 0 : index
    %5 = vector.load %arg3[%c0_4, %c0_5] : memref<1x32xf32, #tpu.memory_space<vmem>>, vector<1x32xf32>
    %6 = vector.broadcast %5 : vector<1x32xf32> to vector<256x32xf32>
    %7 = arith.addf %4, %6 : vector<256x32xf32>
    %cst = arith.constant 0.000000e+00 : f32
    %8 = vector.broadcast %cst : f32 to vector<256x32xf32>
    %9 = arith.maximumf %7, %8 : vector<256x32xf32>
    %10 = arith.truncf %9 : vector<256x32xf32> to vector<256x32xbf16>
    %11 = tpu.iota {dimensions = array<i32: 0>} : vector<256x1xi32>
    %c16_i32 = arith.constant 16 : i32
    %c0_i32 = arith.constant 0 : i32
    %12 = arith.cmpi eq, %c16_i32, %c0_i32 : i32
    %c1_i32 = arith.constant 1 : i32
    %13 = arith.select %12, %c1_i32, %c16_i32 : i32
    %14 = vector.broadcast %13 : i32 to vector<256x1xi32>
    %15 = arith.remsi %11, %14 : vector<256x1xi32>
    %c0_i32_6 = arith.constant 0 : i32
    %16 = vector.broadcast %c0_i32_6 : i32 to vector<256x1xi32>
    %17 = arith.cmpi ne, %15, %16 : vector<256x1xi32>
    %c0_i32_7 = arith.constant 0 : i32
    %18 = vector.broadcast %c0_i32_7 : i32 to vector<256x1xi32>
    %19 = arith.cmpi slt, %15, %18 : vector<256x1xi32>
    %c0_i32_8 = arith.constant 0 : i32
    %20 = arith.cmpi slt, %13, %c0_i32_8 : i32
    %21 = vector.broadcast %20 : i1 to vector<256x1xi1>
    %22 = vector.broadcast %21 : vector<256x1xi1> to vector<256x1xi1>
    %23 = arith.xori %19, %22 : vector<256x1xi1>
    %24 = arith.andi %23, %17 : vector<256x1xi1>
    %25 = vector.broadcast %13 : i32 to vector<256x1xi32>
    %26 = arith.addi %15, %25 : vector<256x1xi32>
    %27 = arith.select %24, %26, %15 : vector<256x1xi1>, vector<256x1xi32>
    %cst_9 = arith.constant 0.000000e+00 : f32
    %28 = vector.broadcast %cst_9 : f32 to vector<256x8xf32>
    %cst_10 = arith.constant 0.000000e+00 : bf16
    %29 = vector.broadcast %cst_10 : bf16 to vector<17x32xbf16>
    %30 = vector.extract_strided_slice %10 {offsets = [0, 0], sizes = [239, 32], strides = [1, 1]} : vector<256x32xbf16> to vector<239x32xbf16>
    %31 = tpu.concatenate %29, %30 in 0 : vector<17x32xbf16>, vector<239x32xbf16> -> vector<256x32xbf16>
    %c-1_i32 = arith.constant -1 : i32
    %32 = vector.broadcast %c-1_i32 : i32 to vector<256x1xi32>
    %33 = arith.addi %27, %32 : vector<256x1xi32>
    %c0_i32_11 = arith.constant 0 : i32
    %34 = vector.broadcast %c0_i32_11 : i32 to vector<256x1xi32>
    %35 = arith.cmpi sge, %33, %34 : vector<256x1xi32>
    %c-1_i32_12 = arith.constant -1 : i32
    %36 = vector.broadcast %c-1_i32_12 : i32 to vector<256x1xi32>
    %37 = arith.addi %27, %36 : vector<256x1xi32>
    %c16_i32_13 = arith.constant 16 : i32
    %38 = vector.broadcast %c16_i32_13 : i32 to vector<256x1xi32>
    %39 = arith.cmpi slt, %37, %38 : vector<256x1xi32>
    %40 = arith.andi %35, %39 : vector<256x1xi1>
    %cst_14 = arith.constant 0.000000e+00 : bf16
    %41 = vector.broadcast %cst_14 : bf16 to vector<256x32xbf16>
    %42 = vector.shape_cast %40 : vector<256x1xi1> to vector<256x1xi1>
    %43 = vector.broadcast %42 : vector<256x1xi1> to vector<256x32xi1>
    %44 = arith.select %43, %31, %41 : vector<256x32xi1>, vector<256x32xbf16>
    %c0_15 = arith.constant 0 : index
    %c0_16 = arith.constant 0 : index
    %c0_17 = arith.constant 0 : index
    %45 = vector.load %arg4[%c0_15, %c0_16, %c0_17] : memref<9x32x8xbf16, #tpu.memory_space<vmem>>, vector<1x32x8xbf16>
    %46 = vector.shape_cast %45 : vector<1x32x8xbf16> to vector<32x8xbf16>
    %cst_18 = arith.constant dense<0.000000e+00> : vector<256x8xf32>
    %47 = tpu.matmul %44, %46, %cst_18 {dimension_numbers = #tpu.dot_dimension_numbers<[1], [0], [0], [1], [0, 0, 1, 1], [], []>} : vector<256x32xbf16>, vector<32x8xbf16>, vector<256x8xf32> -> vector<256x8xf32>
    %48 = arith.addf %28, %47 : vector<256x8xf32>
    %cst_19 = arith.constant 0.000000e+00 : bf16
    %49 = vector.broadcast %cst_19 : bf16 to vector<16x32xbf16>
    %50 = vector.extract_strided_slice %10 {offsets = [0, 0], sizes = [240, 32], strides = [1, 1]} : vector<256x32xbf16> to vector<240x32xbf16>
    %51 = tpu.concatenate %49, %50 in 0 : vector<16x32xbf16>, vector<240x32xbf16> -> vector<256x32xbf16>
    %c1 = arith.constant 1 : index
    %c0_20 = arith.constant 0 : index
    %c0_21 = arith.constant 0 : index
    %52 = vector.load %arg4[%c1, %c0_20, %c0_21] : memref<9x32x8xbf16, #tpu.memory_space<vmem>>, vector<1x32x8xbf16>
    %53 = vector.shape_cast %52 : vector<1x32x8xbf16> to vector<32x8xbf16>
    %cst_22 = arith.constant dense<0.000000e+00> : vector<256x8xf32>
    %54 = tpu.matmul %51, %53, %cst_22 {dimension_numbers = #tpu.dot_dimension_numbers<[1], [0], [0], [1], [0, 0, 1, 1], [], []>} : vector<256x32xbf16>, vector<32x8xbf16>, vector<256x8xf32> -> vector<256x8xf32>
    %55 = arith.addf %48, %54 : vector<256x8xf32>
    %cst_23 = arith.constant 0.000000e+00 : bf16
    %56 = vector.broadcast %cst_23 : bf16 to vector<15x32xbf16>
    %57 = vector.extract_strided_slice %10 {offsets = [0, 0], sizes = [241, 32], strides = [1, 1]} : vector<256x32xbf16> to vector<241x32xbf16>
    %58 = tpu.concatenate %56, %57 in 0 : vector<15x32xbf16>, vector<241x32xbf16> -> vector<256x32xbf16>
    %c1_i32_24 = arith.constant 1 : i32
    %59 = vector.broadcast %c1_i32_24 : i32 to vector<256x1xi32>
    %60 = arith.addi %27, %59 : vector<256x1xi32>
    %c0_i32_25 = arith.constant 0 : i32
    %61 = vector.broadcast %c0_i32_25 : i32 to vector<256x1xi32>
    %62 = arith.cmpi sge, %60, %61 : vector<256x1xi32>
    %c1_i32_26 = arith.constant 1 : i32
    %63 = vector.broadcast %c1_i32_26 : i32 to vector<256x1xi32>
    %64 = arith.addi %27, %63 : vector<256x1xi32>
    %c16_i32_27 = arith.constant 16 : i32
    %65 = vector.broadcast %c16_i32_27 : i32 to vector<256x1xi32>
    %66 = arith.cmpi slt, %64, %65 : vector<256x1xi32>
    %67 = arith.andi %62, %66 : vector<256x1xi1>
    %cst_28 = arith.constant 0.000000e+00 : bf16
    %68 = vector.broadcast %cst_28 : bf16 to vector<256x32xbf16>
    %69 = vector.shape_cast %67 : vector<256x1xi1> to vector<256x1xi1>
    %70 = vector.broadcast %69 : vector<256x1xi1> to vector<256x32xi1>
    %71 = arith.select %70, %58, %68 : vector<256x32xi1>, vector<256x32xbf16>
    %c2 = arith.constant 2 : index
    %c0_29 = arith.constant 0 : index
    %c0_30 = arith.constant 0 : index
    %72 = vector.load %arg4[%c2, %c0_29, %c0_30] : memref<9x32x8xbf16, #tpu.memory_space<vmem>>, vector<1x32x8xbf16>
    %73 = vector.shape_cast %72 : vector<1x32x8xbf16> to vector<32x8xbf16>
    %cst_31 = arith.constant dense<0.000000e+00> : vector<256x8xf32>
    %74 = tpu.matmul %71, %73, %cst_31 {dimension_numbers = #tpu.dot_dimension_numbers<[1], [0], [0], [1], [0, 0, 1, 1], [], []>} : vector<256x32xbf16>, vector<32x8xbf16>, vector<256x8xf32> -> vector<256x8xf32>
    %75 = arith.addf %55, %74 : vector<256x8xf32>
    %cst_32 = arith.constant 0.000000e+00 : bf16
    %76 = vector.broadcast %cst_32 : bf16 to vector<1x32xbf16>
    %77 = vector.extract_strided_slice %10 {offsets = [0, 0], sizes = [255, 32], strides = [1, 1]} : vector<256x32xbf16> to vector<255x32xbf16>
    %78 = tpu.concatenate %76, %77 in 0 : vector<1x32xbf16>, vector<255x32xbf16> -> vector<256x32xbf16>
    %c-1_i32_33 = arith.constant -1 : i32
    %79 = vector.broadcast %c-1_i32_33 : i32 to vector<256x1xi32>
    %80 = arith.addi %27, %79 : vector<256x1xi32>
    %c0_i32_34 = arith.constant 0 : i32
    %81 = vector.broadcast %c0_i32_34 : i32 to vector<256x1xi32>
    %82 = arith.cmpi sge, %80, %81 : vector<256x1xi32>
    %c-1_i32_35 = arith.constant -1 : i32
    %83 = vector.broadcast %c-1_i32_35 : i32 to vector<256x1xi32>
    %84 = arith.addi %27, %83 : vector<256x1xi32>
    %c16_i32_36 = arith.constant 16 : i32
    %85 = vector.broadcast %c16_i32_36 : i32 to vector<256x1xi32>
    %86 = arith.cmpi slt, %84, %85 : vector<256x1xi32>
    %87 = arith.andi %82, %86 : vector<256x1xi1>
    %cst_37 = arith.constant 0.000000e+00 : bf16
    %88 = vector.broadcast %cst_37 : bf16 to vector<256x32xbf16>
    %89 = vector.shape_cast %87 : vector<256x1xi1> to vector<256x1xi1>
    %90 = vector.broadcast %89 : vector<256x1xi1> to vector<256x32xi1>
    %91 = arith.select %90, %78, %88 : vector<256x32xi1>, vector<256x32xbf16>
    %c3 = arith.constant 3 : index
    %c0_38 = arith.constant 0 : index
    %c0_39 = arith.constant 0 : index
    %92 = vector.load %arg4[%c3, %c0_38, %c0_39] : memref<9x32x8xbf16, #tpu.memory_space<vmem>>, vector<1x32x8xbf16>
    %93 = vector.shape_cast %92 : vector<1x32x8xbf16> to vector<32x8xbf16>
    %cst_40 = arith.constant dense<0.000000e+00> : vector<256x8xf32>
    %94 = tpu.matmul %91, %93, %cst_40 {dimension_numbers = #tpu.dot_dimension_numbers<[1], [0], [0], [1], [0, 0, 1, 1], [], []>} : vector<256x32xbf16>, vector<32x8xbf16>, vector<256x8xf32> -> vector<256x8xf32>
    %95 = arith.addf %75, %94 : vector<256x8xf32>
    %c4 = arith.constant 4 : index
    %c0_41 = arith.constant 0 : index
    %c0_42 = arith.constant 0 : index
    %96 = vector.load %arg4[%c4, %c0_41, %c0_42] : memref<9x32x8xbf16, #tpu.memory_space<vmem>>, vector<1x32x8xbf16>
    %97 = vector.shape_cast %96 : vector<1x32x8xbf16> to vector<32x8xbf16>
    %cst_43 = arith.constant dense<0.000000e+00> : vector<256x8xf32>
    %98 = tpu.matmul %10, %97, %cst_43 {dimension_numbers = #tpu.dot_dimension_numbers<[1], [0], [0], [1], [0, 0, 1, 1], [], []>} : vector<256x32xbf16>, vector<32x8xbf16>, vector<256x8xf32> -> vector<256x8xf32>
    %99 = arith.addf %95, %98 : vector<256x8xf32>
    %100 = vector.extract_strided_slice %10 {offsets = [1, 0], sizes = [255, 32], strides = [1, 1]} : vector<256x32xbf16> to vector<255x32xbf16>
    %cst_44 = arith.constant 0.000000e+00 : bf16
    %101 = vector.broadcast %cst_44 : bf16 to vector<1x32xbf16>
    %102 = tpu.concatenate %100, %101 in 0 : vector<255x32xbf16>, vector<1x32xbf16> -> vector<256x32xbf16>
    %c1_i32_45 = arith.constant 1 : i32
    %103 = vector.broadcast %c1_i32_45 : i32 to vector<256x1xi32>
    %104 = arith.addi %27, %103 : vector<256x1xi32>
    %c0_i32_46 = arith.constant 0 : i32
    %105 = vector.broadcast %c0_i32_46 : i32 to vector<256x1xi32>
    %106 = arith.cmpi sge, %104, %105 : vector<256x1xi32>
    %c1_i32_47 = arith.constant 1 : i32
    %107 = vector.broadcast %c1_i32_47 : i32 to vector<256x1xi32>
    %108 = arith.addi %27, %107 : vector<256x1xi32>
    %c16_i32_48 = arith.constant 16 : i32
    %109 = vector.broadcast %c16_i32_48 : i32 to vector<256x1xi32>
    %110 = arith.cmpi slt, %108, %109 : vector<256x1xi32>
    %111 = arith.andi %106, %110 : vector<256x1xi1>
    %cst_49 = arith.constant 0.000000e+00 : bf16
    %112 = vector.broadcast %cst_49 : bf16 to vector<256x32xbf16>
    %113 = vector.shape_cast %111 : vector<256x1xi1> to vector<256x1xi1>
    %114 = vector.broadcast %113 : vector<256x1xi1> to vector<256x32xi1>
    %115 = arith.select %114, %102, %112 : vector<256x32xi1>, vector<256x32xbf16>
    %c5 = arith.constant 5 : index
    %c0_50 = arith.constant 0 : index
    %c0_51 = arith.constant 0 : index
    %116 = vector.load %arg4[%c5, %c0_50, %c0_51] : memref<9x32x8xbf16, #tpu.memory_space<vmem>>, vector<1x32x8xbf16>
    %117 = vector.shape_cast %116 : vector<1x32x8xbf16> to vector<32x8xbf16>
    %cst_52 = arith.constant dense<0.000000e+00> : vector<256x8xf32>
    %118 = tpu.matmul %115, %117, %cst_52 {dimension_numbers = #tpu.dot_dimension_numbers<[1], [0], [0], [1], [0, 0, 1, 1], [], []>} : vector<256x32xbf16>, vector<32x8xbf16>, vector<256x8xf32> -> vector<256x8xf32>
    %119 = arith.addf %99, %118 : vector<256x8xf32>
    %120 = vector.extract_strided_slice %10 {offsets = [15, 0], sizes = [241, 32], strides = [1, 1]} : vector<256x32xbf16> to vector<241x32xbf16>
    %cst_53 = arith.constant 0.000000e+00 : bf16
    %121 = vector.broadcast %cst_53 : bf16 to vector<15x32xbf16>
    %122 = tpu.concatenate %120, %121 in 0 : vector<241x32xbf16>, vector<15x32xbf16> -> vector<256x32xbf16>
    %c-1_i32_54 = arith.constant -1 : i32
    %123 = vector.broadcast %c-1_i32_54 : i32 to vector<256x1xi32>
    %124 = arith.addi %27, %123 : vector<256x1xi32>
    %c0_i32_55 = arith.constant 0 : i32
    %125 = vector.broadcast %c0_i32_55 : i32 to vector<256x1xi32>
    %126 = arith.cmpi sge, %124, %125 : vector<256x1xi32>
    %c-1_i32_56 = arith.constant -1 : i32
    %127 = vector.broadcast %c-1_i32_56 : i32 to vector<256x1xi32>
    %128 = arith.addi %27, %127 : vector<256x1xi32>
    %c16_i32_57 = arith.constant 16 : i32
    %129 = vector.broadcast %c16_i32_57 : i32 to vector<256x1xi32>
    %130 = arith.cmpi slt, %128, %129 : vector<256x1xi32>
    %131 = arith.andi %126, %130 : vector<256x1xi1>
    %cst_58 = arith.constant 0.000000e+00 : bf16
    %132 = vector.broadcast %cst_58 : bf16 to vector<256x32xbf16>
    %133 = vector.shape_cast %131 : vector<256x1xi1> to vector<256x1xi1>
    %134 = vector.broadcast %133 : vector<256x1xi1> to vector<256x32xi1>
    %135 = arith.select %134, %122, %132 : vector<256x32xi1>, vector<256x32xbf16>
    %c6 = arith.constant 6 : index
    %c0_59 = arith.constant 0 : index
    %c0_60 = arith.constant 0 : index
    %136 = vector.load %arg4[%c6, %c0_59, %c0_60] : memref<9x32x8xbf16, #tpu.memory_space<vmem>>, vector<1x32x8xbf16>
    %137 = vector.shape_cast %136 : vector<1x32x8xbf16> to vector<32x8xbf16>
    %cst_61 = arith.constant dense<0.000000e+00> : vector<256x8xf32>
    %138 = tpu.matmul %135, %137, %cst_61 {dimension_numbers = #tpu.dot_dimension_numbers<[1], [0], [0], [1], [0, 0, 1, 1], [], []>} : vector<256x32xbf16>, vector<32x8xbf16>, vector<256x8xf32> -> vector<256x8xf32>
    %139 = arith.addf %119, %138 : vector<256x8xf32>
    %140 = vector.extract_strided_slice %10 {offsets = [16, 0], sizes = [240, 32], strides = [1, 1]} : vector<256x32xbf16> to vector<240x32xbf16>
    %cst_62 = arith.constant 0.000000e+00 : bf16
    %141 = vector.broadcast %cst_62 : bf16 to vector<16x32xbf16>
    %142 = tpu.concatenate %140, %141 in 0 : vector<240x32xbf16>, vector<16x32xbf16> -> vector<256x32xbf16>
    %c7 = arith.constant 7 : index
    %c0_63 = arith.constant 0 : index
    %c0_64 = arith.constant 0 : index
    %143 = vector.load %arg4[%c7, %c0_63, %c0_64] : memref<9x32x8xbf16, #tpu.memory_space<vmem>>, vector<1x32x8xbf16>
    %144 = vector.shape_cast %143 : vector<1x32x8xbf16> to vector<32x8xbf16>
    %cst_65 = arith.constant dense<0.000000e+00> : vector<256x8xf32>
    %145 = tpu.matmul %142, %144, %cst_65 {dimension_numbers = #tpu.dot_dimension_numbers<[1], [0], [0], [1], [0, 0, 1, 1], [], []>} : vector<256x32xbf16>, vector<32x8xbf16>, vector<256x8xf32> -> vector<256x8xf32>
    %146 = arith.addf %139, %145 : vector<256x8xf32>
    %147 = vector.extract_strided_slice %10 {offsets = [17, 0], sizes = [239, 32], strides = [1, 1]} : vector<256x32xbf16> to vector<239x32xbf16>
    %cst_66 = arith.constant 0.000000e+00 : bf16
    %148 = vector.broadcast %cst_66 : bf16 to vector<17x32xbf16>
    %149 = tpu.concatenate %147, %148 in 0 : vector<239x32xbf16>, vector<17x32xbf16> -> vector<256x32xbf16>
    %c1_i32_67 = arith.constant 1 : i32
    %150 = vector.broadcast %c1_i32_67 : i32 to vector<256x1xi32>
    %151 = arith.addi %27, %150 : vector<256x1xi32>
    %c0_i32_68 = arith.constant 0 : i32
    %152 = vector.broadcast %c0_i32_68 : i32 to vector<256x1xi32>
    %153 = arith.cmpi sge, %151, %152 : vector<256x1xi32>
    %c1_i32_69 = arith.constant 1 : i32
    %154 = vector.broadcast %c1_i32_69 : i32 to vector<256x1xi32>
    %155 = arith.addi %27, %154 : vector<256x1xi32>
    %c16_i32_70 = arith.constant 16 : i32
    %156 = vector.broadcast %c16_i32_70 : i32 to vector<256x1xi32>
    %157 = arith.cmpi slt, %155, %156 : vector<256x1xi32>
    %158 = arith.andi %153, %157 : vector<256x1xi1>
    %cst_71 = arith.constant 0.000000e+00 : bf16
    %159 = vector.broadcast %cst_71 : bf16 to vector<256x32xbf16>
    %160 = vector.shape_cast %158 : vector<256x1xi1> to vector<256x1xi1>
    %161 = vector.broadcast %160 : vector<256x1xi1> to vector<256x32xi1>
    %162 = arith.select %161, %149, %159 : vector<256x32xi1>, vector<256x32xbf16>
    %c8 = arith.constant 8 : index
    %c0_72 = arith.constant 0 : index
    %c0_73 = arith.constant 0 : index
    %163 = vector.load %arg4[%c8, %c0_72, %c0_73] : memref<9x32x8xbf16, #tpu.memory_space<vmem>>, vector<1x32x8xbf16>
    %164 = vector.shape_cast %163 : vector<1x32x8xbf16> to vector<32x8xbf16>
    %cst_74 = arith.constant dense<0.000000e+00> : vector<256x8xf32>
    %165 = tpu.matmul %162, %164, %cst_74 {dimension_numbers = #tpu.dot_dimension_numbers<[1], [0], [0], [1], [0, 0, 1, 1], [], []>} : vector<256x32xbf16>, vector<32x8xbf16>, vector<256x8xf32> -> vector<256x8xf32>
    %166 = arith.addf %146, %165 : vector<256x8xf32>
    %c0_75 = arith.constant 0 : index
    %c0_76 = arith.constant 0 : index
    %c0_77 = arith.constant 0 : index
    %167 = vector.load %arg5[%c0_75, %c0_76, %c0_77] : memref<1x256x8xf32, #tpu.memory_space<vmem>>, vector<1x256x8xf32>
    %168 = vector.shape_cast %167 : vector<1x256x8xf32> to vector<256x8xf32>
    %169 = vector.shape_cast %166 : vector<256x8xf32> to vector<1x256x8xf32>
    tpu.vector_store %arg5[%c0_75, %c0_76, %c0_77], %169 {strides = array<i32>} : memref<1x256x8xf32, #tpu.memory_space<vmem>>, vector<1x256x8xf32>,
    %cst_78 = arith.constant dense<0.000000e+00> : vector<8xf32>
    %170 = vector.multi_reduction <add>, %166, %cst_78 [0] : vector<256x8xf32> to vector<8xf32>
    %171 = vector.shape_cast %170 : vector<8xf32> to vector<1x8xf32>
    %172 = arith.mulf %166, %166 : vector<256x8xf32>
    %cst_79 = arith.constant dense<0.000000e+00> : vector<8xf32>
    %173 = vector.multi_reduction <add>, %172, %cst_79 [0] : vector<256x8xf32> to vector<8xf32>
    %174 = vector.shape_cast %173 : vector<8xf32> to vector<1x8xf32>
    %175 = tpu.concatenate %171, %174 in 0 : vector<1x8xf32>, vector<1x8xf32> -> vector<2x8xf32>
    %176 = vector.shape_cast %175 : vector<2x8xf32> to vector<1x2x8xf32>
    %c0_80 = arith.constant 0 : index
    %c0_81 = arith.constant 0 : index
    %c0_82 = arith.constant 0 : index
    %177 = vector.load %arg6[%c0_80, %c0_81, %c0_82] : memref<1x2x8xf32, #tpu.memory_space<vmem>>, vector<1x2x8xf32>
    tpu.vector_store %arg6[%c0_80, %c0_81, %c0_82], %176 {strides = array<i32>} : memref<1x2x8xf32, #tpu.memory_space<vmem>>, vector<1x2x8xf32>,
    return
  }
  func.func @transform_0(%arg0: i32) -> (i32, i32, i32) {
    %c0_i32 = arith.constant 0 : i32
    %c0_i32_0 = arith.constant 0 : i32
    %c0_i32_1 = arith.constant 0 : i32
    return %arg0, %c0_i32, %c0_i32_0 : i32, i32, i32
  }
  func.func @transform_1(%arg0: i32) -> (i32, i32) {
    %c0_i32 = arith.constant 0 : i32
    %c0_i32_0 = arith.constant 0 : i32
    %c0_i32_1 = arith.constant 0 : i32
    return %c0_i32, %c0_i32_0 : i32, i32
  }
  func.func @transform_2(%arg0: i32) -> (i32, i32) {
    %c0_i32 = arith.constant 0 : i32
    %c0_i32_0 = arith.constant 0 : i32
    %c0_i32_1 = arith.constant 0 : i32
    return %c0_i32, %c0_i32_0 : i32, i32
  }
  func.func @transform_3(%arg0: i32) -> (i32, i32, i32) {
    %c0_i32 = arith.constant 0 : i32
    %c0_i32_0 = arith.constant 0 : i32
    %c0_i32_1 = arith.constant 0 : i32
    %c0_i32_2 = arith.constant 0 : i32
    return %c0_i32, %c0_i32_0, %c0_i32_1 : i32, i32, i32
  }
  func.func @transform_4(%arg0: i32) -> (i32, i32, i32) {
    %c0_i32 = arith.constant 0 : i32
    %c0_i32_0 = arith.constant 0 : i32
    %c0_i32_1 = arith.constant 0 : i32
    return %arg0, %c0_i32, %c0_i32_0 : i32, i32, i32
  }
  func.func @transform_5(%arg0: i32) -> (i32, i32, i32) {
    %c0_i32 = arith.constant 0 : i32
    %c0_i32_0 = arith.constant 0 : i32
    %c0_i32_1 = arith.constant 0 : i32
    return %arg0, %c0_i32, %c0_i32_0 : i32, i32, i32
  }
}

</mosaic_0001>

<llo_original>
// kernel: dense_block_forward.6
$region0: #{dense_block_forward.6}
  #allocation0 [shape = 'u32[]', space=smem, size = 0x4, offset = 0x4, fixed_abs, tag = 'smem constant byte address 0x4 - core index']
  #allocation1 [shape = 'u32[144,128]{1,0:T(1,128)}', space=vmem, size = 0x12000, scoped, tag = 'internal scratch']
  %s0 = inlined_call_operand.vmem [shape: f32[512,28], index: 0, kind: input, shape index: {}]
  %s1 = inlined_call_operand.vmem [shape: f32[1,28], index: 1, kind: input, shape index: {}]
  %s2 = inlined_call_operand.vmem [shape: f32[1,28], index: 2, kind: input, shape index: {}]
  %s3 = inlined_call_operand.vmem [shape: bf16[28,32], index: 3, kind: input, shape index: {}]
  %s4 = inlined_call_operand.vmem [shape: f32[512,32], index: 4, kind: output, shape index: {0}]
  %s5 = inlined_call_operand.vmem [shape: f32[4,2,32], index: 5, kind: output, shape index: {1}]
  %6 = xla_tuple %s4, %s5
  %s7 = sld [smem:[#allocation0]]
  $region57: #{dense_block_forward.6} parent=0
    _
  %s9 = ssub.s32 1, %s7
  %s10 = scalar_select 0, %s9, %s7
  loop: start=0, step=1, limit=6
  $region2: #{dense_block_forward.6} parent=0 // loop_pre_header
    _
  $region3: #{dense_block_forward.6} parent=0 // loop_header
    %s12 = sphi 0, %s16
    %p13 = scmp.ge.s32.totalorder %s12, 6
    %s22 = sphi 0, %s24
    %s25 = sphi 0, %s22
    %s26 = sphi 0, %s25
    %s42 = sphi 0, %s26
    %s46 = sphi 0, %s46
    %s48 = sphi 0, %s46
    %s49 = sphi 0, %s48
    %s63 = sphi 0, %s49
    %s67 = sphi 0, %s67
    %s69 = sphi 0, %s67
    %s70 = sphi 0, %s69
    %s84 = sphi 0, %s70
    %s88 = sphi 0, %s88
    %s90 = sphi 0, %s88
    %s91 = sphi 0, %s90
    %s105 = sphi 0, %s91
    %s111 = sphi 0, %s113
    %s114 = sphi 0, %s111
    %s115 = sphi 0, %s114
    %s131 = sphi 0, %s115
    %s137 = sphi 0, %s139
    %s140 = sphi 0, %s137
    %s141 = sphi 0, %s140
    %s157 = sphi 0, %s141
  $region4: #{dense_block_forward.6} parent=0 // loop_header_branch
    %15 = sbr.rel (%p13) target = $region8
  $region5: #{dense_block_forward.6} parent=0 // loop_body
    %s17 = ssub.s32 %s12, 1
    %s18 = ssub.s32 %s12, 2
    %s19 = sadd.s32 %s12, 1
    %s20 = ssub.s32 %s12, %s19
    %p21 = scmp.eq.s32.totalorder %s20, 0
    %s23 = sadd.s32 %s22, 1
    %s24 = scalar_select %p21, %s22, %s23
    %p27 = pneg %p21
    %p28 = scmp.eq.s32.totalorder %s12, 3
    %p29 = por %p27, %p28
    %p30 = scmp.ne.s32.totalorder %s22, %s25
    %p31 = scmp.eq.s32.totalorder %s12, 0
    %p32 = por %p30, %p31
    %p33 = scmp.ne.s32.totalorder %s22, %s25
    %p34 = scmp.eq.s32.totalorder %s17, 3
    %p35 = por %p33, %p34
    %p36 = scmp.ne.s32.totalorder %s25, %s26
    %p37 = scmp.eq.s32.totalorder %s17, 0
    %p38 = por %p36, %p37
    %p39 = scmp.ne.s32.totalorder %s25, %s26
    %p40 = scmp.eq.s32.totalorder %s18, 3
    %p41 = por %p39, %p40
    %p43 = scmp.ne.s32.totalorder %s26, %s42
    %p44 = scmp.eq.s32.totalorder %s18, 0
    %p45 = por %p43, %p44
    %s47 = sadd.s32 %s46, 1
    %p50 = scmp.eq.s32.totalorder %s12, 3
    %p51 = scmp.ne.s32.totalorder %s46, %s48
    %p52 = scmp.eq.s32.totalorder %s12, 0
    %p53 = por %p51, %p52
    %p54 = scmp.ne.s32.totalorder %s46, %s48
    %p55 = scmp.eq.s32.totalorder %s17, 3
    %p56 = por %p54, %p55
    %p57 = scmp.ne.s32.totalorder %s48, %s49
    %p58 = scmp.eq.s32.totalorder %s17, 0
    %p59 = por %p57, %p58
    %p60 = scmp.ne.s32.totalorder %s48, %s49
    %p61 = scmp.eq.s32.totalorder %s18, 3
    %p62 = por %p60, %p61
    %p64 = scmp.ne.s32.totalorder %s49, %s63
    %p65 = scmp.eq.s32.totalorder %s18, 0
    %p66 = por %p64, %p65
    %s68 = sadd.s32 %s67, 1
    %p71 = scmp.eq.s32.totalorder %s12, 3
    %p72 = scmp.ne.s32.totalorder %s67, %s69
    %p73 = scmp.eq.s32.totalorder %s12, 0
    %p74 = por %p72, %p73
    %p75 = scmp.ne.s32.totalorder %s67, %s69
    %p76 = scmp.eq.s32.totalorder %s17, 3
    %p77 = por %p75, %p76
    %p78 = scmp.ne.s32.totalorder %s69, %s70
    %p79 = scmp.eq.s32.totalorder %s17, 0
    %p80 = por %p78, %p79
    %p81 = scmp.ne.s32.totalorder %s69, %s70
    %p82 = scmp.eq.s32.totalorder %s18, 3
    %p83 = por %p81, %p82
    %p85 = scmp.ne.s32.totalorder %s70, %s84
    %p86 = scmp.eq.s32.totalorder %s18, 0
    %p87 = por %p85, %p86
    %s89 = sadd.s32 %s88, 1
    %p92 = scmp.eq.s32.totalorder %s12, 3
    %p93 = scmp.ne.s32.totalorder %s88, %s90
    %p94 = scmp.eq.s32.totalorder %s12, 0
    %p95 = por %p93, %p94
    %p96 = scmp.ne.s32.totalorder %s88, %s90
    %p97 = scmp.eq.s32.totalorder %s17, 3
    %p98 = por %p96, %p97
    %p99 = scmp.ne.s32.totalorder %s90, %s91
    %p100 = scmp.eq.s32.totalorder %s17, 0
    %p101 = por %p99, %p100
    %p102 = scmp.ne.s32.totalorder %s90, %s91
    %p103 = scmp.eq.s32.totalorder %s18, 3
    %p104 = por %p102, %p103
    %p106 = scmp.ne.s32.totalorder %s91, %s105
    %p107 = scmp.eq.s32.totalorder %s18, 0
    %p108 = por %p106, %p107
    %s109 = ssub.s32 %s12, %s19
    %p110 = scmp.eq.s32.totalorder %s109, 0
    %s112 = sadd.s32 %s111, 1
    %s113 = scalar_select %p110, %s111, %s112
    %p116 = pneg %p110
    %p117 = scmp.eq.s32.totalorder %s12, 3
    %p118 = por %p116, %p117
    %p119 = scmp.ne.s32.totalorder %s111, %s114
    %p120 = scmp.eq.s32.totalorder %s12, 0
    %p121 = por %p119, %p120
    %p122 = scmp.ne.s32.totalorder %s111, %s114
    %p123 = scmp.eq.s32.totalorder %s17, 3
    %p124 = por %p122, %p123
    %p125 = scmp.ne.s32.totalorder %s114, %s115
    %p126 = scmp.eq.s32.totalorder %s17, 0
    %p127 = por %p125, %p126
    %p128 = scmp.ne.s32.totalorder %s114, %s115
    %p129 = scmp.eq.s32.totalorder %s18, 3
    %p130 = por %p128, %p129
    %p132 = scmp.ne.s32.totalorder %s115, %s131
    %p133 = scmp.eq.s32.totalorder %s18, 0
    %p134 = por %p132, %p133
    %s135 = ssub.s32 %s12, %s19
    %p136 = scmp.eq.s32.totalorder %s135, 0
    %s138 = sadd.s32 %s137, 1
    %s139 = scalar_select %p136, %s137, %s138
    %p142 = pneg %p136
    %p143 = scmp.eq.s32.totalorder %s12, 3
    %p144 = por %p142, %p143
    %p145 = scmp.ne.s32.totalorder %s137, %s140
    %p146 = scmp.eq.s32.totalorder %s12, 0
    %p147 = por %p145, %p146
    %p148 = scmp.ne.s32.totalorder %s137, %s140
    %p149 = scmp.eq.s32.totalorder %s17, 3
    %p150 = por %p148, %p149
    %p151 = scmp.ne.s32.totalorder %s140, %s141
    %p152 = scmp.eq.s32.totalorder %s17, 0
    %p153 = por %p151, %p152
    %p154 = scmp.ne.s32.totalorder %s140, %s141
    %p155 = scmp.eq.s32.totalorder %s18, 3
    %p156 = por %p154, %p155
    %p158 = scmp.ne.s32.totalorder %s141, %s157
    %p159 = scmp.eq.s32.totalorder %s18, 0
    %p160 = por %p158, %p159
    %p161 = scmp.le.s32.totalorder 1, %s12
    %p162 = scmp.lt.s32.totalorder %s12, 5
    %p163 = pnand %p161, %p162
    %p164 = pneg %p163
    // Predicated region
    $region9: #{dense_block_forward.6} parent=5 // pred_check
      _
    $region10: #{dense_block_forward.6} parent=5 // pred_check_branch
      %166 = sbr.rel (%p163) target = $region12
    $region11: #{dense_block_forward.6} parent=5 // pred_region
      %s167 = ssub.s32 %s12, 1
      // Predicated region
      $region13: #{dense_block_forward.6} parent=11 // pred_check
        %p168 = pneg %p59
      $region14: #{dense_block_forward.6} parent=11 // pred_check_branch
        %170 = sbr.rel (%p168) target = $region16
      $region15: #{dense_block_forward.6} parent=11 // pred_region
        _
      $region16: #{dense_block_forward.6} parent=11 // pred_fallthru
        _
      // Predicated region
      $region17: #{dense_block_forward.6} parent=11 // pred_check
        %p171 = pneg %p80
      $region18: #{dense_block_forward.6} parent=11 // pred_check_branch
        %173 = sbr.rel (%p171) target = $region20
      $region19: #{dense_block_forward.6} parent=11 // pred_region
        _
      $region20: #{dense_block_forward.6} parent=11 // pred_fallthru
        _
      // Predicated region
      $region21: #{dense_block_forward.6} parent=11 // pred_check
        %p174 = pneg %p101
      $region22: #{dense_block_forward.6} parent=11 // pred_check_branch
        %176 = sbr.rel (%p174) target = $region24
      $region23: #{dense_block_forward.6} parent=11 // pred_region
        _
      $region24: #{dense_block_forward.6} parent=11 // pred_fallthru
        _
    $region12: #{dense_block_forward.6} parent=5 // pred_fallthru
      _
    %p177 = scmp.lt.s32.totalorder %s12, 4
    // Predicated region
    $region25: #{dense_block_forward.6} parent=5 // pred_check
      %p178 = pneg %p177
    $region26: #{dense_block_forward.6} parent=5 // pred_check_branch
      %180 = sbr.rel (%p178) target = $region28
    $region27: #{dense_block_forward.6} parent=5 // pred_region
      // Predicated region
      $region29: #{dense_block_forward.6} parent=27 // pred_check
        %p181 = pneg %p32
      $region30: #{dense_block_forward.6} parent=27 // pred_check_branch
        %183 = sbr.rel (%p181) target = $region32
      $region31: #{dense_block_forward.6} parent=27 // pred_region
        %s184 = smul.u32 16, %s12
        %p185 = scmp.lt.s32.totalorder %s184, 63
        %s186 = scalar_select %p185, %s184, 63
        %s187 = smul.addr %s186, 8
        %s188 = scalar_lea.vmem %s0, %s187
        %s189 = smul.u32 16, %s12
      $region32: #{dense_block_forward.6} parent=27 // pred_fallthru
        _
    $region28: #{dense_block_forward.6} parent=5 // pred_fallthru
      _
    %p190 = scmp.le.s32.totalorder 1, %s12
    %p191 = scmp.lt.s32.totalorder %s12, 5
    %p192 = pnand %p190, %p191
    %p193 = pneg %p192
    // Predicated region
    $region33: #{dense_block_forward.6} parent=5 // pred_check
      _
    $region34: #{dense_block_forward.6} parent=5 // pred_check_branch
      %195 = sbr.rel (%p192) target = $region36
    $region35: #{dense_block_forward.6} parent=5 // pred_region
      %s196 = ssub.s32 %s12, 1
      %s197 = smul.u32 16, %s17
      %p198 = scmp.lt.s32.totalorder %s197, 63
      %s199 = scalar_select %p198, %s197, 63
      %s200 = smul.addr %s199, 8
      %s201 = scalar_lea.vmem %s0, %s200
      %p202 = pneg %p38
      %p203 = pneg %p35
      %p204 = pneg %p59
      %p205 = pneg %p56
      %p206 = pneg %p80
      %p207 = pneg %p77
      %p208 = pneg %p101
      %p209 = pneg %p98
      %p210 = pneg %p127
      %p211 = pneg %p124
      %s212 = smul.u32 16, %s17
      %p213 = scmp.lt.s32.totalorder %s212, 63
      %s214 = scalar_select %p213, %s212, 63
      %s215 = smul.addr %s214, 8
      %s216 = scalar_lea.vmem %s4, %s215
      %p217 = pneg %p153
      %p218 = pneg %p150
      %p219 = scmp.lt.s32.totalorder %s17, 3
      %s220 = scalar_select %p219, %s17, 3
      %s221 = smul.addr %s220, 2
      %s222 = scalar_lea.vmem %s5, %s221
      %s223 = smul.u32 16, %s17
      %p224 = scmp.lt.s32.totalorder %s223, 63
      %s225 = scalar_select %p224, %s223, 63
      %s226 = smul.addr %s225, 8
      %s227 = scalar_lea.vmem %s0, %s226
      %s228 = smul.u32 16, %s17
      %s229 = smul.u32 16, %s17
      %p230 = scmp.lt.s32.totalorder %s229, 63
      %s231 = scalar_select %p230, %s229, 63
      %s232 = smul.addr %s231, 8
      %s233 = scalar_lea.vmem %s4, %s232
      %s234 = smul.u32 16, %s17
      %p235 = scmp.lt.s32.totalorder %s17, 3
      %s236 = scalar_select %p235, %s17, 3
      %s237 = smul.addr %s236, 2
      %s238 = scalar_lea.vmem %s5, %s237
      %v240 = vld [vmem:[%s227] sm:$0xff]
      %v241 = vld [vmem:[%s227 + $0x8] sm:$0xff]
      %v242 = vld [vmem:[%s227 + $0x10] sm:$0xff]
      %v243 = vld [vmem:[%s227 + $0x18] sm:$0xff]
      %v244 = vld [vmem:[%s227 + $0x20] sm:$0xff]
      %v245 = vld [vmem:[%s227 + $0x28] sm:$0xff]
      %v246 = vld [vmem:[%s227 + $0x30] sm:$0xff]
      %v247 = vld [vmem:[%s227 + $0x38] sm:$0xff]
      %v248 = vld [vmem:[%s227 + $0x40] sm:$0xff]
      %v249 = vld [vmem:[%s227 + $0x48] sm:$0xff]
      %v250 = vld [vmem:[%s227 + $0x50] sm:$0xff]
      %v251 = vld [vmem:[%s227 + $0x58] sm:$0xff]
      %v252 = vld [vmem:[%s227 + $0x60] sm:$0xff]
      %v253 = vld [vmem:[%s227 + $0x68] sm:$0xff]
      %v254 = vld [vmem:[%s227 + $0x70] sm:$0xff]
      %v255 = vld [vmem:[%s227 + $0x78] sm:$0xff]
      %v256 = vld [vmem:[%s1] sm:$0x1]
      %v258 = vlaneseq
      %v259 = vshrl.u32 %v258, 7
      %v260 = vsub.s32 0, %v259
      %v261 = vrot.slane %v256, %v260
      %v263 = vmul.f32 %v240, %v261
      %v264 = vmul.f32 %v241, %v261
      %v265 = vmul.f32 %v242, %v261
      %v266 = vmul.f32 %v243, %v261
      %v267 = vmul.f32 %v244, %v261
      %v268 = vmul.f32 %v245, %v261
      %v269 = vmul.f32 %v246, %v261
      %v270 = vmul.f32 %v247, %v261
      %v271 = vmul.f32 %v248, %v261
      %v272 = vmul.f32 %v249, %v261
      %v273 = vmul.f32 %v250, %v261
      %v274 = vmul.f32 %v251, %v261
      %v275 = vmul.f32 %v252, %v261
      %v276 = vmul.f32 %v253, %v261
      %v277 = vmul.f32 %v254, %v261
      %v278 = vmul.f32 %v255, %v261
      %v279 = vld [vmem:[%s2] sm:$0x1]
      %v281 = vlaneseq
      %v282 = vshrl.u32 %v281, 7
      %v283 = vsub.s32 0, %v282
      %v284 = vrot.slane %v279, %v283
      %v286 = vadd.f32 %v263, %v284
      %v287 = vadd.f32 %v264, %v284
      %v288 = vadd.f32 %v265, %v284
      %v289 = vadd.f32 %v266, %v284
      %v290 = vadd.f32 %v267, %v284
      %v291 = vadd.f32 %v268, %v284
      %v292 = vadd.f32 %v269, %v284
      %v293 = vadd.f32 %v270, %v284
      %v294 = vadd.f32 %v271, %v284
      %v295 = vadd.f32 %v272, %v284
      %v296 = vadd.f32 %v273, %v284
      %v297 = vadd.f32 %v274, %v284
      %v298 = vadd.f32 %v275, %v284
      %v299 = vadd.f32 %v276, %v284
      %v300 = vadd.f32 %v277, %v284
      %v301 = vadd.f32 %v278, %v284
      %v302 = vmax.f32 %v286, 0.0
      %v303 = vmax.f32 %v287, 0.0
      %v304 = vmax.f32 %v288, 0.0
      %v305 = vmax.f32 %v289, 0.0
      %v306 = vmax.f32 %v290, 0.0
      %v307 = vmax.f32 %v291, 0.0
      %v308 = vmax.f32 %v292, 0.0
      %v309 = vmax.f32 %v293, 0.0
      %v310 = vmax.f32 %v294, 0.0
      %v311 = vmax.f32 %v295, 0.0
      %v312 = vmax.f32 %v296, 0.0
      %v313 = vmax.f32 %v297, 0.0
      %v314 = vmax.f32 %v298, 0.0
      %v315 = vmax.f32 %v299, 0.0
      %v316 = vmax.f32 %v300, 0.0
      %v317 = vmax.f32 %v301, 0.0
      %v318 = vpack.c.bf16 %v303, %v302
      %v319 = vpack.c.bf16 %v305, %v304
      %v320 = vpack.c.bf16 %v307, %v306
      %v321 = vpack.c.bf16 %v309, %v308
      %v322 = vpack.c.bf16 %v311, %v310
      %v323 = vpack.c.bf16 %v313, %v312
      %v324 = vpack.c.bf16 %v315, %v314
      %v325 = vpack.c.bf16 %v317, %v316
      %v326 = vld [vmem:[%s3] sm:$0xf]
      %v327 = vld [vmem:[%s3 + $0x4] sm:$0xf]
      %v328 = vld [vmem:[%s3 + $0x8] sm:$0xf]
      %v329 = vld [vmem:[%s3 + $0xc] sm:$0x3]
      %v334 = vunpack.c.l.b16 %v326
      %v335 = vunpack.c.l.b16 %v327
      %v336 = vunpack.c.l.b16 %v328
      %v337 = vunpack.c.l.b16 %v329
      %v338 = vpack.c.b16 %v335, %v334
      %v339 = vpack.c.b16 %v337, %v336
      %vm341 = vcmask 228352
      %v343 = vsel %vm341, %v318, 0
      %v346 = vsel %vm341, %v319, 0
      %v349 = vsel %vm341, %v320, 0
      %v352 = vsel %vm341, %v321, 0
      %v355 = vsel %vm341, %v322, 0
      %v358 = vsel %vm341, %v323, 0
      %v361 = vsel %vm341, %v324, 0
      %v364 = vsel %vm341, %v325, 0
      %vm366 = vcmask 1045504
      %v368 = vsel %vm366, %v339, 0
      %370 = vmatprep.subr.bf16.mxu0 0
      %371 = vmatpush1.bf16.msra.mxu0 0
      %372 = vmatprep.subr.bf16.mxu0 0
      %373 = vmatpush1.bf16.msra.mxu0 0
      %374 = vmatprep.subr.bf16.mxu0 0
      %375 = vmatpush1.bf16.msra.mxu0 0
      %376 = vmatprep.subr.bf16.mxu0 0
      %377 = vmatpush1.bf16.msra.mxu0 0
      %378 = vmatprep.subr.bf16.mxu0 0
      %379 = vmatpush1.bf16.msra.mxu0 0
      %380 = vmatprep.subr.bf16.mxu0 0
      %381 = vmatpush1.bf16.msra.mxu0 0
      %382 = vmatprep.subr.bf16.mxu0 0
      %383 = vmatpush1.bf16.msra.mxu0 %v368
      %384 = vmatprep.subr.bf16.mxu0 0
      %385 = vmatpush1.bf16.msra.mxu0 %v338
      %386 = vmatprep.subr.bf16.mxu0 0
      %387 = vmatpush2.bf16.msra.mxu0 0
      %388 = vmatprep.subr.bf16.mxu0 0
      %389 = vmatpush2.bf16.msra.mxu0 0
      %390 = vmatprep.subr.bf16.mxu0 0
      %391 = vmatpush2.bf16.msra.mxu0 0
      %392 = vmatprep.subr.bf16.mxu0 0
      %393 = vmatpush2.bf16.msra.mxu0 0
      %394 = vmatprep.subr.bf16.mxu0 0
      %395 = vmatpush2.bf16.msra.mxu0 0
      %396 = vmatprep.subr.bf16.mxu0 0
      %397 = vmatpush2.bf16.msra.mxu0 0
      %398 = vmatprep.subr.bf16.mxu0 0
      %399 = vmatpush2.bf16.msra.mxu0 0
      %400 = vmatprep.subr.bf16.mxu0 0
      %401 = vmatpush2.bf16.msra.mxu0 0
      %402 = vmatprep.mubr.bf16.mxu0 0
      %403 = vmatmul.mubr.bf16.gmra.mxu0 %v343
      %v404 = vpop.f32.mrf.mxu0
      %v405 = vadd.f32 0.0, %v404
      %v406 = vpop.f32.mrf.mxu0
      %v407 = vpop.f32.mrf.mxu0
      %v408 = vadd.f32 0.0, %v407
      %v409 = vpop.f32.mrf.mxu0
      %410 = vmatprep.mubr.bf16.mxu0 0
      %411 = vmatmul.mubr.bf16.gmra.mxu0 %v346
      %v412 = vpop.f32.mrf.mxu0
      %v413 = vadd.f32 0.0, %v412
      %v414 = vpop.f32.mrf.mxu0
      %v415 = vpop.f32.mrf.mxu0
      %v416 = vadd.f32 0.0, %v415
      %v417 = vpop.f32.mrf.mxu0
      %418 = vmatprep.mubr.bf16.mxu0 0
      %419 = vmatmul.mubr.bf16.gmra.mxu0 %v349
      %v420 = vpop.f32.mrf.mxu0
      %v421 = vadd.f32 0.0, %v420
      %v422 = vpop.f32.mrf.mxu0
      %v423 = vpop.f32.mrf.mxu0
      %v424 = vadd.f32 0.0, %v423
      %v425 = vpop.f32.mrf.mxu0
      %426 = vmatprep.mubr.bf16.mxu0 0
      %427 = vmatmul.mubr.bf16.gmra.mxu0 %v352
      %v428 = vpop.f32.mrf.mxu0
      %v429 = vadd.f32 0.0, %v428
      %v430 = vpop.f32.mrf.mxu0
      %v431 = vpop.f32.mrf.mxu0
      %v432 = vadd.f32 0.0, %v431
      %v433 = vpop.f32.mrf.mxu0
      %434 = vmatprep.mubr.bf16.mxu0 0
      %435 = vmatmul.mubr.bf16.gmra.mxu0 %v355
      %v436 = vpop.f32.mrf.mxu0
      %v437 = vadd.f32 0.0, %v436
      %v438 = vpop.f32.mrf.mxu0
      %v439 = vpop.f32.mrf.mxu0
      %v440 = vadd.f32 0.0, %v439
      %v441 = vpop.f32.mrf.mxu0
      %442 = vmatprep.mubr.bf16.mxu0 0
      %443 = vmatmul.mubr.bf16.gmra.mxu0 %v358
      %v444 = vpop.f32.mrf.mxu0
      %v445 = vadd.f32 0.0, %v444
      %v446 = vpop.f32.mrf.mxu0
      %v447 = vpop.f32.mrf.mxu0
      %v448 = vadd.f32 0.0, %v447
      %v449 = vpop.f32.mrf.mxu0
      %450 = vmatprep.mubr.bf16.mxu0 0
      %451 = vmatmul.mubr.bf16.gmra.mxu0 %v361
      %v452 = vpop.f32.mrf.mxu0
      %v453 = vadd.f32 0.0, %v452
      %v454 = vpop.f32.mrf.mxu0
      %v455 = vpop.f32.mrf.mxu0
      %v456 = vadd.f32 0.0, %v455
      %v457 = vpop.f32.mrf.mxu0
      %458 = vmatprep.mubr.bf16.mxu0 0
      %459 = vmatmul.mubr.bf16.gmra.mxu0 %v364
      %v460 = vpop.f32.mrf.mxu0
      %v461 = vadd.f32 0.0, %v460
      %v462 = vpop.f32.mrf.mxu0
      %v463 = vpop.f32.mrf.mxu0
      %v464 = vadd.f32 0.0, %v463
      %v465 = vpop.f32.mrf.mxu0
      %466 = vdwg.mxu0
      %vm467 = vcmask 261120
      %468 = vst.msk [vmem:[%s233] sm:$0xff] %vm467, %v405
      %469 = vst.msk [vmem:[%s233 + $0x8] sm:$0xff] %vm467, %v408
      %470 = vst.msk [vmem:[%s233 + $0x10] sm:$0xff] %vm467, %v413
      %471 = vst.msk [vmem:[%s233 + $0x18] sm:$0xff] %vm467, %v416
      %472 = vst.msk [vmem:[%s233 + $0x20] sm:$0xff] %vm467, %v421
      %473 = vst.msk [vmem:[%s233 + $0x28] sm:$0xff] %vm467, %v424
      %474 = vst.msk [vmem:[%s233 + $0x30] sm:$0xff] %vm467, %v429
      %475 = vst.msk [vmem:[%s233 + $0x38] sm:$0xff] %vm467, %v432
      %476 = vst.msk [vmem:[%s233 + $0x40] sm:$0xff] %vm467, %v437
      %477 = vst.msk [vmem:[%s233 + $0x48] sm:$0xff] %vm467, %v440
      %478 = vst.msk [vmem:[%s233 + $0x50] sm:$0xff] %vm467, %v445
      %479 = vst.msk [vmem:[%s233 + $0x58] sm:$0xff] %vm467, %v448
      %480 = vst.msk [vmem:[%s233 + $0x60] sm:$0xff] %vm467, %v453
      %481 = vst.msk [vmem:[%s233 + $0x68] sm:$0xff] %vm467, %v456
      %482 = vst.msk [vmem:[%s233 + $0x70] sm:$0xff] %vm467, %v461
      %483 = vst.msk [vmem:[%s233 + $0x78] sm:$0xff] %vm467, %v464
      %v484 = vsel %vm467, %v405, 0.0
      %v485 = vsel %vm467, %v408, 0.0
      %v486 = vadd.f32 %v484, %v485
      %v487 = vsel %vm467, %v413, 0.0
      %v488 = vadd.f32 %v486, %v487
      %v489 = vsel %vm467, %v416, 0.0
      %v490 = vadd.f32 %v488, %v489
      %v491 = vsel %vm467, %v421, 0.0
      %v492 = vadd.f32 %v490, %v491
      %v493 = vsel %vm467, %v424, 0.0
      %v494 = vadd.f32 %v492, %v493
      %v495 = vsel %vm467, %v429, 0.0
      %v496 = vadd.f32 %v494, %v495
      %v497 = vsel %vm467, %v432, 0.0
      %v498 = vadd.f32 %v496, %v497
      %v499 = vsel %vm467, %v437, 0.0
      %v500 = vadd.f32 %v498, %v499
      %v501 = vsel %vm467, %v440, 0.0
      %v502 = vadd.f32 %v500, %v501
      %v503 = vsel %vm467, %v445, 0.0
      %v504 = vadd.f32 %v502, %v503
      %v505 = vsel %vm467, %v448, 0.0
      %v506 = vadd.f32 %v504, %v505
      %v507 = vsel %vm467, %v453, 0.0
      %v508 = vadd.f32 %v506, %v507
      %v509 = vsel %vm467, %v456, 0.0
      %v510 = vadd.f32 %v508, %v509
      %v511 = vsel %vm467, %v461, 0.0
      %v512 = vadd.f32 %v510, %v511
      %v513 = vsel %vm467, %v464, 0.0
      %v514 = vadd.f32 %v512, %v513
      %v515 = vrot.slane %v514, 4
      %v516 = vadd.f32 %v514, %v515
      %v517 = vrot.slane %v516, 2
      %v518 = vadd.f32 %v516, %v517
      %v519 = vrot.slane %v518, 1
      %v520 = vadd.f32 %v518, %v519
      %v521 = vmul.f32 %v405, %v405
      %v522 = vmul.f32 %v408, %v408
      %v523 = vmul.f32 %v413, %v413
      %v524 = vmul.f32 %v416, %v416
      %v525 = vmul.f32 %v421, %v421
      %v526 = vmul.f32 %v424, %v424
      %v527 = vmul.f32 %v429, %v429
      %v528 = vmul.f32 %v432, %v432
      %v529 = vmul.f32 %v437, %v437
      %v530 = vmul.f32 %v440, %v440
      %v531 = vmul.f32 %v445, %v445
      %v532 = vmul.f32 %v448, %v448
      %v533 = vmul.f32 %v453, %v453
      %v534 = vmul.f32 %v456, %v456
      %v535 = vmul.f32 %v461, %v461
      %v536 = vmul.f32 %v464, %v464
      %v537 = vsel %vm467, %v521, 0.0
      %v538 = vsel %vm467, %v522, 0.0
      %v539 = vadd.f32 %v537, %v538
      %v540 = vsel %vm467, %v523, 0.0
      %v541 = vadd.f32 %v539, %v540
      %v542 = vsel %vm467, %v524, 0.0
      %v543 = vadd.f32 %v541, %v542
      %v544 = vsel %vm467, %v525, 0.0
      %v545 = vadd.f32 %v543, %v544
      %v546 = vsel %vm467, %v526, 0.0
      %v547 = vadd.f32 %v545, %v546
      %v548 = vsel %vm467, %v527, 0.0
      %v549 = vadd.f32 %v547, %v548
      %v550 = vsel %vm467, %v528, 0.0
      %v551 = vadd.f32 %v549, %v550
      %v552 = vsel %vm467, %v529, 0.0
      %v553 = vadd.f32 %v551, %v552
      %v554 = vsel %vm467, %v530, 0.0
      %v555 = vadd.f32 %v553, %v554
      %v556 = vsel %vm467, %v531, 0.0
      %v557 = vadd.f32 %v555, %v556
      %v558 = vsel %vm467, %v532, 0.0
      %v559 = vadd.f32 %v557, %v558
      %v560 = vsel %vm467, %v533, 0.0
      %v561 = vadd.f32 %v559, %v560
      %v562 = vsel %vm467, %v534, 0.0
      %v563 = vadd.f32 %v561, %v562
      %v564 = vsel %vm467, %v535, 0.0
      %v565 = vadd.f32 %v563, %v564
      %v566 = vsel %vm467, %v536, 0.0
      %v567 = vadd.f32 %v565, %v566
      %v568 = vrot.slane %v567, 4
      %v569 = vadd.f32 %v567, %v568
      %v570 = vrot.slane %v569, 2
      %v571 = vadd.f32 %v569, %v570
      %v572 = vrot.slane %v571, 1
      %v573 = vadd.f32 %v571, %v572
      %vm574 = vcmask 1040384
      %v575 = vsel %vm574, %v520, %v573
      %vm576 = vcmask 254976
      %577 = vst.msk [vmem:[%s238] sm:$0x3] %vm576, %v575
      %s578 = smul.u32 16, %s17
      %p579 = scmp.lt.s32.totalorder %s578, 63
      %s580 = scalar_select %p579, %s578, 63
      %s581 = smul.addr %s580, 8
      %s582 = scalar_lea.vmem %s4, %s581
      %p583 = scmp.lt.s32.totalorder %s17, 3
      %s584 = scalar_select %p583, %s17, 3
      %s585 = smul.addr %s584, 2
      %s586 = scalar_lea.vmem %s5, %s585
      // Predicated region
      $region37: #{dense_block_forward.6} parent=35 // pred_check
        %p587 = pneg %p124
      $region38: #{dense_block_forward.6} parent=35 // pred_check_branch
        %589 = sbr.rel (%p587) target = $region40
      $region39: #{dense_block_forward.6} parent=35 // pred_region
        %s590 = smul.u32 16, %s17
      $region40: #{dense_block_forward.6} parent=35 // pred_fallthru
        _
      // Predicated region
      $region41: #{dense_block_forward.6} parent=35 // pred_check
        %p591 = pneg %p150
      $region42: #{dense_block_forward.6} parent=35 // pred_check_branch
        %593 = sbr.rel (%p591) target = $region44
      $region43: #{dense_block_forward.6} parent=35 // pred_region
        _
      $region44: #{dense_block_forward.6} parent=35 // pred_fallthru
        _
    $region36: #{dense_block_forward.6} parent=5 // pred_fallthru
      _
    %p594 = scmp.le.s32.totalorder 2, %s12
    // Predicated region
    $region45: #{dense_block_forward.6} parent=5 // pred_check
      %p595 = pneg %p594
    $region46: #{dense_block_forward.6} parent=5 // pred_check_branch
      %597 = sbr.rel (%p595) target = $region48
    $region47: #{dense_block_forward.6} parent=5 // pred_region
      %s598 = ssub.s32 %s12, 2
      // Predicated region
      $region49: #{dense_block_forward.6} parent=47 // pred_check
        %p599 = pneg %p130
      $region50: #{dense_block_forward.6} parent=47 // pred_check_branch
        %601 = sbr.rel (%p599) target = $region52
      $region51: #{dense_block_forward.6} parent=47 // pred_region
        %s602 = smul.u32 16, %s18
        %p603 = scmp.lt.s32.totalorder %s602, 63
        %s604 = scalar_select %p603, %s602, 63
        %s605 = smul.addr %s604, 8
        %s606 = scalar_lea.vmem %s4, %s605
      $region52: #{dense_block_forward.6} parent=47 // pred_fallthru
        _
      // Predicated region
      $region53: #{dense_block_forward.6} parent=47 // pred_check
        %p607 = pneg %p156
      $region54: #{dense_block_forward.6} parent=47 // pred_check_branch
        %609 = sbr.rel (%p607) target = $region56
      $region55: #{dense_block_forward.6} parent=47 // pred_region
        %p610 = scmp.lt.s32.totalorder %s18, 3
        %s611 = scalar_select %p610, %s18, 3
        %s612 = smul.addr %s611, 2
        %s613 = scalar_lea.vmem %s5, %s612
      $region56: #{dense_block_forward.6} parent=47 // pred_fallthru
        _
    $region48: #{dense_block_forward.6} parent=5 // pred_fallthru
      _
  $region6: #{dense_block_forward.6} parent=0 // loop_footer
    %s16 = sadd.s32 1, %s12
  $region7: #{dense_block_forward.6} parent=0 // loop_footer_branch
    %11 = sbr.rel target = $region3
  $region8: #{dense_block_forward.6} parent=0 // loop_exit
    _

// kernel: dense_block_forward.7
$region0: #{dense_block_forward.7}
  #allocation0 [shape = 'u32[]', space=smem, size = 0x4, offset = 0x4, fixed_abs, tag = 'smem constant byte address 0x4 - core index']
  #allocation1 [shape = 'u32[144,128]{1,0:T(1,128)}', space=vmem, size = 0x12000, scoped, tag = 'internal scratch']
  %s0 = inlined_call_operand.vmem [shape: f32[2,256,32], index: 0, kind: input, shape index: {}]
  %s1 = inlined_call_operand.vmem [shape: f32[1,32], index: 1, kind: input, shape index: {}]
  %s2 = inlined_call_operand.vmem [shape: f32[1,32], index: 2, kind: input, shape index: {}]
  %s3 = inlined_call_operand.vmem [shape: bf16[9,32,8], index: 3, kind: input, shape index: {}]
  %s4 = inlined_call_operand.vmem [shape: f32[2,256,8], index: 4, kind: output, shape index: {0}]
  %s5 = inlined_call_operand.vmem [shape: f32[2,2,8], index: 5, kind: output, shape index: {1}]
  %6 = xla_tuple %s4, %s5
  %s7 = sld [smem:[#allocation0]]
  $region57: #{dense_block_forward.7} parent=0
    _
  %s9 = ssub.s32 1, %s7
  %s10 = scalar_select 0, %s9, %s7
  loop: start=0, step=1, limit=4
  $region2: #{dense_block_forward.7} parent=0 // loop_pre_header
    _
  $region3: #{dense_block_forward.7} parent=0 // loop_header
    %s12 = sphi 0, %s16
    %p13 = scmp.ge.s32.totalorder %s12, 4
    %s22 = sphi 0, %s24
    %s25 = sphi 0, %s22
    %s26 = sphi 0, %s25
    %s42 = sphi 0, %s26
    %s46 = sphi 0, %s46
    %s48 = sphi 0, %s46
    %s49 = sphi 0, %s48
    %s63 = sphi 0, %s49
    %s67 = sphi 0, %s67
    %s69 = sphi 0, %s67
    %s70 = sphi 0, %s69
    %s84 = sphi 0, %s70
    %s88 = sphi 0, %s88
    %s90 = sphi 0, %s88
    %s91 = sphi 0, %s90
    %s105 = sphi 0, %s91
    %s111 = sphi 0, %s113
    %s114 = sphi 0, %s111
    %s115 = sphi 0, %s114
    %s131 = sphi 0, %s115
    %s137 = sphi 0, %s139
    %s140 = sphi 0, %s137
    %s141 = sphi 0, %s140
    %s157 = sphi 0, %s141
  $region4: #{dense_block_forward.7} parent=0 // loop_header_branch
    %15 = sbr.rel (%p13) target = $region8
  $region5: #{dense_block_forward.7} parent=0 // loop_body
    %s17 = ssub.s32 %s12, 1
    %s18 = ssub.s32 %s12, 2
    %s19 = sadd.s32 %s12, 1
    %s20 = ssub.s32 %s12, %s19
    %p21 = scmp.eq.s32.totalorder %s20, 0
    %s23 = sadd.s32 %s22, 1
    %s24 = scalar_select %p21, %s22, %s23
    %p27 = pneg %p21
    %p28 = scmp.eq.s32.totalorder %s12, 1
    %p29 = por %p27, %p28
    %p30 = scmp.ne.s32.totalorder %s22, %s25
    %p31 = scmp.eq.s32.totalorder %s12, 0
    %p32 = por %p30, %p31
    %p33 = scmp.ne.s32.totalorder %s22, %s25
    %p34 = scmp.eq.s32.totalorder %s17, 1
    %p35 = por %p33, %p34
    %p36 = scmp.ne.s32.totalorder %s25, %s26
    %p37 = scmp.eq.s32.totalorder %s17, 0
    %p38 = por %p36, %p37
    %p39 = scmp.ne.s32.totalorder %s25, %s26
    %p40 = scmp.eq.s32.totalorder %s18, 1
    %p41 = por %p39, %p40
    %p43 = scmp.ne.s32.totalorder %s26, %s42
    %p44 = scmp.eq.s32.totalorder %s18, 0
    %p45 = por %p43, %p44
    %s47 = sadd.s32 %s46, 1
    %p50 = scmp.eq.s32.totalorder %s12, 1
    %p51 = scmp.ne.s32.totalorder %s46, %s48
    %p52 = scmp.eq.s32.totalorder %s12, 0
    %p53 = por %p51, %p52
    %p54 = scmp.ne.s32.totalorder %s46, %s48
    %p55 = scmp.eq.s32.totalorder %s17, 1
    %p56 = por %p54, %p55
    %p57 = scmp.ne.s32.totalorder %s48, %s49
    %p58 = scmp.eq.s32.totalorder %s17, 0
    %p59 = por %p57, %p58
    %p60 = scmp.ne.s32.totalorder %s48, %s49
    %p61 = scmp.eq.s32.totalorder %s18, 1
    %p62 = por %p60, %p61
    %p64 = scmp.ne.s32.totalorder %s49, %s63
    %p65 = scmp.eq.s32.totalorder %s18, 0
    %p66 = por %p64, %p65
    %s68 = sadd.s32 %s67, 1
    %p71 = scmp.eq.s32.totalorder %s12, 1
    %p72 = scmp.ne.s32.totalorder %s67, %s69
    %p73 = scmp.eq.s32.totalorder %s12, 0
    %p74 = por %p72, %p73
    %p75 = scmp.ne.s32.totalorder %s67, %s69
    %p76 = scmp.eq.s32.totalorder %s17, 1
    %p77 = por %p75, %p76
    %p78 = scmp.ne.s32.totalorder %s69, %s70
    %p79 = scmp.eq.s32.totalorder %s17, 0
    %p80 = por %p78, %p79
    %p81 = scmp.ne.s32.totalorder %s69, %s70
    %p82 = scmp.eq.s32.totalorder %s18, 1
    %p83 = por %p81, %p82
    %p85 = scmp.ne.s32.totalorder %s70, %s84
    %p86 = scmp.eq.s32.totalorder %s18, 0
    %p87 = por %p85, %p86
    %s89 = sadd.s32 %s88, 1
    %p92 = scmp.eq.s32.totalorder %s12, 1
    %p93 = scmp.ne.s32.totalorder %s88, %s90
    %p94 = scmp.eq.s32.totalorder %s12, 0
    %p95 = por %p93, %p94
    %p96 = scmp.ne.s32.totalorder %s88, %s90
    %p97 = scmp.eq.s32.totalorder %s17, 1
    %p98 = por %p96, %p97
    %p99 = scmp.ne.s32.totalorder %s90, %s91
    %p100 = scmp.eq.s32.totalorder %s17, 0
    %p101 = por %p99, %p100
    %p102 = scmp.ne.s32.totalorder %s90, %s91
    %p103 = scmp.eq.s32.totalorder %s18, 1
    %p104 = por %p102, %p103
    %p106 = scmp.ne.s32.totalorder %s91, %s105
    %p107 = scmp.eq.s32.totalorder %s18, 0
    %p108 = por %p106, %p107
    %s109 = ssub.s32 %s12, %s19
    %p110 = scmp.eq.s32.totalorder %s109, 0
    %s112 = sadd.s32 %s111, 1
    %s113 = scalar_select %p110, %s111, %s112
    %p116 = pneg %p110
    %p117 = scmp.eq.s32.totalorder %s12, 1
    %p118 = por %p116, %p117
    %p119 = scmp.ne.s32.totalorder %s111, %s114
    %p120 = scmp.eq.s32.totalorder %s12, 0
    %p121 = por %p119, %p120
    %p122 = scmp.ne.s32.totalorder %s111, %s114
    %p123 = scmp.eq.s32.totalorder %s17, 1
    %p124 = por %p122, %p123
    %p125 = scmp.ne.s32.totalorder %s114, %s115
    %p126 = scmp.eq.s32.totalorder %s17, 0
    %p127 = por %p125, %p126
    %p128 = scmp.ne.s32.totalorder %s114, %s115
    %p129 = scmp.eq.s32.totalorder %s18, 1
    %p130 = por %p128, %p129
    %p132 = scmp.ne.s32.totalorder %s115, %s131
    %p133 = scmp.eq.s32.totalorder %s18, 0
    %p134 = por %p132, %p133
    %s135 = ssub.s32 %s12, %s19
    %p136 = scmp.eq.s32.totalorder %s135, 0
    %s138 = sadd.s32 %s137, 1
    %s139 = scalar_select %p136, %s137, %s138
    %p142 = pneg %p136
    %p143 = scmp.eq.s32.totalorder %s12, 1
    %p144 = por %p142, %p143
    %p145 = scmp.ne.s32.totalorder %s137, %s140
    %p146 = scmp.eq.s32.totalorder %s12, 0
    %p147 = por %p145, %p146
    %p148 = scmp.ne.s32.totalorder %s137, %s140
    %p149 = scmp.eq.s32.totalorder %s17, 1
    %p150 = por %p148, %p149
    %p151 = scmp.ne.s32.totalorder %s140, %s141
    %p152 = scmp.eq.s32.totalorder %s17, 0
    %p153 = por %p151, %p152
    %p154 = scmp.ne.s32.totalorder %s140, %s141
    %p155 = scmp.eq.s32.totalorder %s18, 1
    %p156 = por %p154, %p155
    %p158 = scmp.ne.s32.totalorder %s141, %s157
    %p159 = scmp.eq.s32.totalorder %s18, 0
    %p160 = por %p158, %p159
    %p161 = scmp.le.s32.totalorder 1, %s12
    %p162 = scmp.lt.s32.totalorder %s12, 3
    %p163 = pnand %p161, %p162
    %p164 = pneg %p163
    // Predicated region
    $region9: #{dense_block_forward.7} parent=5 // pred_check
      _
    $region10: #{dense_block_forward.7} parent=5 // pred_check_branch
      %166 = sbr.rel (%p163) target = $region12
    $region11: #{dense_block_forward.7} parent=5 // pred_region
      %s167 = ssub.s32 %s12, 1
      // Predicated region
      $region13: #{dense_block_forward.7} parent=11 // pred_check
        %p168 = pneg %p59
      $region14: #{dense_block_forward.7} parent=11 // pred_check_branch
        %170 = sbr.rel (%p168) target = $region16
      $region15: #{dense_block_forward.7} parent=11 // pred_region
        _
      $region16: #{dense_block_forward.7} parent=11 // pred_fallthru
        _
      // Predicated region
      $region17: #{dense_block_forward.7} parent=11 // pred_check
        %p171 = pneg %p80
      $region18: #{dense_block_forward.7} parent=11 // pred_check_branch
        %173 = sbr.rel (%p171) target = $region20
      $region19: #{dense_block_forward.7} parent=11 // pred_region
        _
      $region20: #{dense_block_forward.7} parent=11 // pred_fallthru
        _
      // Predicated region
      $region21: #{dense_block_forward.7} parent=11 // pred_check
        %p174 = pneg %p101
      $region22: #{dense_block_forward.7} parent=11 // pred_check_branch
        %176 = sbr.rel (%p174) target = $region24
      $region23: #{dense_block_forward.7} parent=11 // pred_region
        _
      $region24: #{dense_block_forward.7} parent=11 // pred_fallthru
        _
    $region12: #{dense_block_forward.7} parent=5 // pred_fallthru
      _
    %p177 = scmp.lt.s32.totalorder %s12, 2
    // Predicated region
    $region25: #{dense_block_forward.7} parent=5 // pred_check
      %p178 = pneg %p177
    $region26: #{dense_block_forward.7} parent=5 // pred_check_branch
      %180 = sbr.rel (%p178) target = $region28
    $region27: #{dense_block_forward.7} parent=5 // pred_region
      // Predicated region
      $region29: #{dense_block_forward.7} parent=27 // pred_check
        %p181 = pneg %p32
      $region30: #{dense_block_forward.7} parent=27 // pred_check_branch
        %183 = sbr.rel (%p181) target = $region32
      $region31: #{dense_block_forward.7} parent=27 // pred_region
        %p184 = scmp.lt.s32.totalorder %s12, 1
        %s185 = scalar_select %p184, %s12, 1
        %s186 = smul.addr %s185, 32
        %s187 = smul.addr %s186, 8
        %s188 = scalar_lea.vmem %s0, %s187
      $region32: #{dense_block_forward.7} parent=27 // pred_fallthru
        _
    $region28: #{dense_block_forward.7} parent=5 // pred_fallthru
      _
    %p189 = scmp.le.s32.totalorder 1, %s12
    %p190 = scmp.lt.s32.totalorder %s12, 3
    %p191 = pnand %p189, %p190
    %p192 = pneg %p191
    // Predicated region
    $region33: #{dense_block_forward.7} parent=5 // pred_check
      _
    $region34: #{dense_block_forward.7} parent=5 // pred_check_branch
      %194 = sbr.rel (%p191) target = $region36
    $region35: #{dense_block_forward.7} parent=5 // pred_region
      %s195 = ssub.s32 %s12, 1
      %p196 = scmp.lt.s32.totalorder %s17, 1
      %s197 = scalar_select %p196, %s17, 1
      %s198 = smul.addr %s197, 32
      %s199 = smul.addr %s198, 8
      %s200 = scalar_lea.vmem %s0, %s199
      %p201 = pneg %p38
      %p202 = pneg %p35
      %p203 = pneg %p59
      %p204 = pneg %p56
      %p205 = pneg %p80
      %p206 = pneg %p77
      %p207 = pneg %p101
      %p208 = pneg %p98
      %p209 = pneg %p127
      %p210 = pneg %p124
      %p211 = scmp.lt.s32.totalorder %s17, 1
      %s212 = scalar_select %p211, %s17, 1
      %s213 = smul.addr %s212, 32
      %s214 = smul.addr %s213, 8
      %s215 = scalar_lea.vmem %s4, %s214
      %p216 = pneg %p153
      %p217 = pneg %p150
      %p218 = scmp.lt.s32.totalorder %s17, 1
      %s219 = scalar_select %p218, %s17, 1
      %s220 = smul.addr %s219, 2
      %s221 = scalar_lea.vmem %s5, %s220
      %p222 = scmp.lt.s32.totalorder %s17, 1
      %s223 = scalar_select %p222, %s17, 1
      %s224 = smul.addr %s223, 32
      %s225 = smul.addr %s224, 8
      %s226 = scalar_lea.vmem %s0, %s225
      %p227 = scmp.lt.s32.totalorder %s17, 1
      %s228 = scalar_select %p227, %s17, 1
      %s229 = smul.addr %s228, 32
      %s230 = smul.addr %s229, 8
      %s231 = scalar_lea.vmem %s4, %s230
      %p232 = scmp.lt.s32.totalorder %s17, 1
      %s233 = scalar_select %p232, %s17, 1
      %s234 = smul.addr %s233, 2
      %s235 = scalar_lea.vmem %s5, %s234
      %v239 = vld [vmem:[%s226] sm:$0xff]
      %v240 = vld [vmem:[%s226 + $0x8] sm:$0xff]
      %v241 = vld [vmem:[%s226 + $0x10] sm:$0xff]
      %v242 = vld [vmem:[%s226 + $0x18] sm:$0xff]
      %v243 = vld [vmem:[%s226 + $0x20] sm:$0xff]
      %v244 = vld [vmem:[%s226 + $0x28] sm:$0xff]
      %v245 = vld [vmem:[%s226 + $0x30] sm:$0xff]
      %v246 = vld [vmem:[%s226 + $0x38] sm:$0xff]
      %v247 = vld [vmem:[%s226 + $0x40] sm:$0xff]
      %v248 = vld [vmem:[%s226 + $0x48] sm:$0xff]
      %v249 = vld [vmem:[%s226 + $0x50] sm:$0xff]
      %v250 = vld [vmem:[%s226 + $0x58] sm:$0xff]
      %v251 = vld [vmem:[%s226 + $0x60] sm:$0xff]
      %v252 = vld [vmem:[%s226 + $0x68] sm:$0xff]
      %v253 = vld [vmem:[%s226 + $0x70] sm:$0xff]
      %v254 = vld [vmem:[%s226 + $0x78] sm:$0xff]
      %v255 = vld [vmem:[%s226 + $0x80] sm:$0xff]
      %v256 = vld [vmem:[%s226 + $0x88] sm:$0xff]
      %v257 = vld [vmem:[%s226 + $0x90] sm:$0xff]
      %v258 = vld [vmem:[%s226 + $0x98] sm:$0xff]
      %v259 = vld [vmem:[%s226 + $0xa0] sm:$0xff]
      %v260 = vld [vmem:[%s226 + $0xa8] sm:$0xff]
      %v261 = vld [vmem:[%s226 + $0xb0] sm:$0xff]
      %v262 = vld [vmem:[%s226 + $0xb8] sm:$0xff]
      %v263 = vld [vmem:[%s226 + $0xc0] sm:$0xff]
      %v264 = vld [vmem:[%s226 + $0xc8] sm:$0xff]
      %v265 = vld [vmem:[%s226 + $0xd0] sm:$0xff]
      %v266 = vld [vmem:[%s226 + $0xd8] sm:$0xff]
      %v267 = vld [vmem:[%s226 + $0xe0] sm:$0xff]
      %v268 = vld [vmem:[%s226 + $0xe8] sm:$0xff]
      %v269 = vld [vmem:[%s226 + $0xf0] sm:$0xff]
      %v270 = vld [vmem:[%s226 + $0xf8] sm:$0xff]
      %v271 = vld [vmem:[%s1] sm:$0x1]
      %v273 = vlaneseq
      %v274 = vshrl.u32 %v273, 7
      %v275 = vsub.s32 0, %v274
      %v276 = vrot.slane %v271, %v275
      %v278 = vmul.f32 %v239, %v276
      %v279 = vmul.f32 %v240, %v276
      %v280 = vmul.f32 %v241, %v276
      %v281 = vmul.f32 %v242, %v276
      %v282 = vmul.f32 %v243, %v276
      %v283 = vmul.f32 %v244, %v276
      %v284 = vmul.f32 %v245, %v276
      %v285 = vmul.f32 %v246, %v276
      %v286 = vmul.f32 %v247, %v276
      %v287 = vmul.f32 %v248, %v276
      %v288 = vmul.f32 %v249, %v276
      %v289 = vmul.f32 %v250, %v276
      %v290 = vmul.f32 %v251, %v276
      %v291 = vmul.f32 %v252, %v276
      %v292 = vmul.f32 %v253, %v276
      %v293 = vmul.f32 %v254, %v276
      %v294 = vmul.f32 %v255, %v276
      %v295 = vmul.f32 %v256, %v276
      %v296 = vmul.f32 %v257, %v276
      %v297 = vmul.f32 %v258, %v276
      %v298 = vmul.f32 %v259, %v276
      %v299 = vmul.f32 %v260, %v276
      %v300 = vmul.f32 %v261, %v276
      %v301 = vmul.f32 %v262, %v276
      %v302 = vmul.f32 %v263, %v276
      %v303 = vmul.f32 %v264, %v276
      %v304 = vmul.f32 %v265, %v276
      %v305 = vmul.f32 %v266, %v276
      %v306 = vmul.f32 %v267, %v276
      %v307 = vmul.f32 %v268, %v276
      %v308 = vmul.f32 %v269, %v276
      %v309 = vmul.f32 %v270, %v276
      %v310 = vld [vmem:[%s2] sm:$0x1]
      %v312 = vlaneseq
      %v313 = vshrl.u32 %v312, 7
      %v314 = vsub.s32 0, %v313
      %v315 = vrot.slane %v310, %v314
      %v317 = vadd.f32 %v278, %v315
      %v318 = vadd.f32 %v279, %v315
      %v319 = vadd.f32 %v280, %v315
      %v320 = vadd.f32 %v281, %v315
      %v321 = vadd.f32 %v282, %v315
      %v322 = vadd.f32 %v283, %v315
      %v323 = vadd.f32 %v284, %v315
      %v324 = vadd.f32 %v285, %v315
      %v325 = vadd.f32 %v286, %v315
      %v326 = vadd.f32 %v287, %v315
      %v327 = vadd.f32 %v288, %v315
      %v328 = vadd.f32 %v289, %v315
      %v329 = vadd.f32 %v290, %v315
      %v330 = vadd.f32 %v291, %v315
      %v331 = vadd.f32 %v292, %v315
      %v332 = vadd.f32 %v293, %v315
      %v333 = vadd.f32 %v294, %v315
      %v334 = vadd.f32 %v295, %v315
      %v335 = vadd.f32 %v296, %v315
      %v336 = vadd.f32 %v297, %v315
      %v337 = vadd.f32 %v298, %v315
      %v338 = vadd.f32 %v299, %v315
      %v339 = vadd.f32 %v300, %v315
      %v340 = vadd.f32 %v301, %v315
      %v341 = vadd.f32 %v302, %v315
      %v342 = vadd.f32 %v303, %v315
      %v343 = vadd.f32 %v304, %v315
      %v344 = vadd.f32 %v305, %v315
      %v345 = vadd.f32 %v306, %v315
      %v346 = vadd.f32 %v307, %v315
      %v347 = vadd.f32 %v308, %v315
      %v348 = vadd.f32 %v309, %v315
      %v349 = vmax.f32 %v317, 0.0
      %v350 = vmax.f32 %v318, 0.0
      %v351 = vmax.f32 %v319, 0.0
      %v352 = vmax.f32 %v320, 0.0
      %v353 = vmax.f32 %v321, 0.0
      %v354 = vmax.f32 %v322, 0.0
      %v355 = vmax.f32 %v323, 0.0
      %v356 = vmax.f32 %v324, 0.0
      %v357 = vmax.f32 %v325, 0.0
      %v358 = vmax.f32 %v326, 0.0
      %v359 = vmax.f32 %v327, 0.0
      %v360 = vmax.f32 %v328, 0.0
      %v361 = vmax.f32 %v329, 0.0
      %v362 = vmax.f32 %v330, 0.0
      %v363 = vmax.f32 %v331, 0.0
      %v364 = vmax.f32 %v332, 0.0
      %v365 = vmax.f32 %v333, 0.0
      %v366 = vmax.f32 %v334, 0.0
      %v367 = vmax.f32 %v335, 0.0
      %v368 = vmax.f32 %v336, 0.0
      %v369 = vmax.f32 %v337, 0.0
      %v370 = vmax.f32 %v338, 0.0
      %v371 = vmax.f32 %v339, 0.0
      %v372 = vmax.f32 %v340, 0.0
      %v373 = vmax.f32 %v341, 0.0
      %v374 = vmax.f32 %v342, 0.0
      %v375 = vmax.f32 %v343, 0.0
      %v376 = vmax.f32 %v344, 0.0
      %v377 = vmax.f32 %v345, 0.0
      %v378 = vmax.f32 %v346, 0.0
      %v379 = vmax.f32 %v347, 0.0
      %v380 = vmax.f32 %v348, 0.0
      %v381 = vpack.c.bf16 %v350, %v349
      %v382 = vpack.c.bf16 %v352, %v351
      %v383 = vpack.c.bf16 %v354, %v353
      %v384 = vpack.c.bf16 %v356, %v355
      %v385 = vpack.c.bf16 %v358, %v357
      %v386 = vpack.c.bf16 %v360, %v359
      %v387 = vpack.c.bf16 %v362, %v361
      %v388 = vpack.c.bf16 %v364, %v363
      %v389 = vpack.c.bf16 %v366, %v365
      %v390 = vpack.c.bf16 %v368, %v367
      %v391 = vpack.c.bf16 %v370, %v369
      %v392 = vpack.c.bf16 %v372, %v371
      %v393 = vpack.c.bf16 %v374, %v373
      %v394 = vpack.c.bf16 %v376, %v375
      %v395 = vpack.c.bf16 %v378, %v377
      %v396 = vpack.c.bf16 %v380, %v379
      %v397 = vlaneseq
      %v398 = vshrl.u32 %v397, 7
      %v399 = vadd.s32 %v398, 8
      %v400 = vadd.s32 %v398, 16
      %v401 = vadd.s32 %v398, 24
      %v402 = vadd.s32 %v398, 32
      %v403 = vadd.s32 %v398, 40
      %v404 = vadd.s32 %v398, 48
      %v405 = vadd.s32 %v398, 56
      %v406 = vadd.s32 %v398, 64
      %v407 = vadd.s32 %v398, 72
      %v408 = vadd.s32 %v398, 80
      %v409 = vadd.s32 %v398, 88
      %v410 = vadd.s32 %v398, 96
      %v411 = vadd.s32 %v398, 104
      %v412 = vadd.s32 %v398, 112
      %v413 = vadd.s32 %v398, 120
      %v414 = vadd.s32 %v398, 128
      %v415 = vadd.s32 %v398, 136
      %v416 = vadd.s32 %v398, 144
      %v417 = vadd.s32 %v398, 152
      %v418 = vadd.s32 %v398, 160
      %v419 = vadd.s32 %v398, 168
      %v420 = vadd.s32 %v398, 176
      %v421 = vadd.s32 %v398, 184
      %v422 = vadd.s32 %v398, 192
      %v423 = vadd.s32 %v398, 200
      %v424 = vadd.s32 %v398, 208
      %v425 = vadd.s32 %v398, 216
      %v426 = vadd.s32 %v398, 224
      %v427 = vadd.s32 %v398, 232
      %v428 = vadd.s32 %v398, 240
      %v429 = vadd.s32 %v398, 248
      %vm430 = vcmp.lt.s32.totalorder %v398, 0
      %v431 = vsub.s32 0, %v398
      %v432 = vsel %vm430, %v431, %v398
      %v433 = vshrl.u32 %v432, 4
      %v434 = vand.u32 %v432, 15
      %v435 = vsub.s32 0, %v434
      %v436 = vsel %vm430, %v435, %v434
      %vm437 = vcmp.lt.s32.totalorder %v399, 0
      %v438 = vsub.s32 0, %v399
      %v439 = vsel %vm437, %v438, %v399
      %v440 = vshrl.u32 %v439, 4
      %v441 = vand.u32 %v439, 15
      %v442 = vsub.s32 0, %v441
      %v443 = vsel %vm437, %v442, %v441
      %vm444 = vcmp.lt.s32.totalorder %v400, 0
      %v445 = vsub.s32 0, %v400
      %v446 = vsel %vm444, %v445, %v400
      %v447 = vshrl.u32 %v446, 4
      %v448 = vand.u32 %v446, 15
      %v449 = vsub.s32 0, %v448
      %v450 = vsel %vm444, %v449, %v448
      %vm451 = vcmp.lt.s32.totalorder %v401, 0
      %v452 = vsub.s32 0, %v401
      %v453 = vsel %vm451, %v452, %v401
      %v454 = vshrl.u32 %v453, 4
      %v455 = vand.u32 %v453, 15
      %v456 = vsub.s32 0, %v455
      %v457 = vsel %vm451, %v456, %v455
      %vm458 = vcmp.lt.s32.totalorder %v402, 0
      %v459 = vsub.s32 0, %v402
      %v460 = vsel %vm458, %v459, %v402
      %v461 = vshrl.u32 %v460, 4
      %v462 = vand.u32 %v460, 15
      %v463 = vsub.s32 0, %v462
      %v464 = vsel %vm458, %v463, %v462
      %vm465 = vcmp.lt.s32.totalorder %v403, 0
      %v466 = vsub.s32 0, %v403
      %v467 = vsel %vm465, %v466, %v403
      %v468 = vshrl.u32 %v467, 4
      %v469 = vand.u32 %v467, 15
      %v470 = vsub.s32 0, %v469
      %v471 = vsel %vm465, %v470, %v469
      %vm472 = vcmp.lt.s32.totalorder %v404, 0
      %v473 = vsub.s32 0, %v404
      %v474 = vsel %vm472, %v473, %v404
      %v475 = vshrl.u32 %v474, 4
      %v476 = vand.u32 %v474, 15
      %v477 = vsub.s32 0, %v476
      %v478 = vsel %vm472, %v477, %v476
      %vm479 = vcmp.lt.s32.totalorder %v405, 0
      %v480 = vsub.s32 0, %v405
      %v481 = vsel %vm479, %v480, %v405
      %v482 = vshrl.u32 %v481, 4
      %v483 = vand.u32 %v481, 15
      %v484 = vsub.s32 0, %v483
      %v485 = vsel %vm479, %v484, %v483
      %vm486 = vcmp.lt.s32.totalorder %v406, 0
      %v487 = vsub.s32 0, %v406
      %v488 = vsel %vm486, %v487, %v406
      %v489 = vshrl.u32 %v488, 4
      %v490 = vand.u32 %v488, 15
      %v491 = vsub.s32 0, %v490
      %v492 = vsel %vm486, %v491, %v490
      %vm493 = vcmp.lt.s32.totalorder %v407, 0
      %v494 = vsub.s32 0, %v407
      %v495 = vsel %vm493, %v494, %v407
      %v496 = vshrl.u32 %v495, 4
      %v497 = vand.u32 %v495, 15
      %v498 = vsub.s32 0, %v497
      %v499 = vsel %vm493, %v498, %v497
      %vm500 = vcmp.lt.s32.totalorder %v408, 0
      %v501 = vsub.s32 0, %v408
      %v502 = vsel %vm500, %v501, %v408
      %v503 = vshrl.u32 %v502, 4
      %v504 = vand.u32 %v502, 15
      %v505 = vsub.s32 0, %v504
      %v506 = vsel %vm500, %v505, %v504
      %vm507 = vcmp.lt.s32.totalorder %v409, 0
      %v508 = vsub.s32 0, %v409
      %v509 = vsel %vm507, %v508, %v409
      %v510 = vshrl.u32 %v509, 4
      %v511 = vand.u32 %v509, 15
      %v512 = vsub.s32 0, %v511
      %v513 = vsel %vm507, %v512, %v511
      %vm514 = vcmp.lt.s32.totalorder %v410, 0
      %v515 = vsub.s32 0, %v410
      %v516 = vsel %vm514, %v515, %v410
      %v517 = vshrl.u32 %v516, 4
      %v518 = vand.u32 %v516, 15
      %v519 = vsub.s32 0, %v518
      %v520 = vsel %vm514, %v519, %v518
      %vm521 = vcmp.lt.s32.totalorder %v411, 0
      %v522 = vsub.s32 0, %v411
      %v523 = vsel %vm521, %v522, %v411
      %v524 = vshrl.u32 %v523, 4
      %v525 = vand.u32 %v523, 15
      %v526 = vsub.s32 0, %v525
      %v527 = vsel %vm521, %v526, %v525
      %vm528 = vcmp.lt.s32.totalorder %v412, 0
      %v529 = vsub.s32 0, %v412
      %v530 = vsel %vm528, %v529, %v412
      %v531 = vshrl.u32 %v530, 4
      %v532 = vand.u32 %v530, 15
      %v533 = vsub.s32 0, %v532
      %v534 = vsel %vm528, %v533, %v532
      %vm535 = vcmp.lt.s32.totalorder %v413, 0
      %v536 = vsub.s32 0, %v413
      %v537 = vsel %vm535, %v536, %v413
      %v538 = vshrl.u32 %v537, 4
      %v539 = vand.u32 %v537, 15
      %v540 = vsub.s32 0, %v539
      %v541 = vsel %vm535, %v540, %v539
      %vm542 = vcmp.lt.s32.totalorder %v414, 0
      %v543 = vsub.s32 0, %v414
      %v544 = vsel %vm542, %v543, %v414
      %v545 = vshrl.u32 %v544, 4
      %v546 = vand.u32 %v544, 15
      %v547 = vsub.s32 0, %v546
      %v548 = vsel %vm542, %v547, %v546
      %vm549 = vcmp.lt.s32.totalorder %v415, 0
      %v550 = vsub.s32 0, %v415
      %v551 = vsel %vm549, %v550, %v415
      %v552 = vshrl.u32 %v551, 4
      %v553 = vand.u32 %v551, 15
      %v554 = vsub.s32 0, %v553
      %v555 = vsel %vm549, %v554, %v553
      %vm556 = vcmp.lt.s32.totalorder %v416, 0
      %v557 = vsub.s32 0, %v416
      %v558 = vsel %vm556, %v557, %v416
      %v559 = vshrl.u32 %v558, 4
      %v560 = vand.u32 %v558, 15
      %v561 = vsub.s32 0, %v560
      %v562 = vsel %vm556, %v561, %v560
      %vm563 = vcmp.lt.s32.totalorder %v417, 0
      %v564 = vsub.s32 0, %v417
      %v565 = vsel %vm563, %v564, %v417
      %v566 = vshrl.u32 %v565, 4
      %v567 = vand.u32 %v565, 15
      %v568 = vsub.s32 0, %v567
      %v569 = vsel %vm563, %v568, %v567
      %vm570 = vcmp.lt.s32.totalorder %v418, 0
      %v571 = vsub.s32 0, %v418
      %v572 = vsel %vm570, %v571, %v418
      %v573 = vshrl.u32 %v572, 4
      %v574 = vand.u32 %v572, 15
      %v575 = vsub.s32 0, %v574
      %v576 = vsel %vm570, %v575, %v574
      %vm577 = vcmp.lt.s32.totalorder %v419, 0
      %v578 = vsub.s32 0, %v419
      %v579 = vsel %vm577, %v578, %v419
      %v580 = vshrl.u32 %v579, 4
      %v581 = vand.u32 %v579, 15
      %v582 = vsub.s32 0, %v581
      %v583 = vsel %vm577, %v582, %v581
      %vm584 = vcmp.lt.s32.totalorder %v420, 0
      %v585 = vsub.s32 0, %v420
      %v586 = vsel %vm584, %v585, %v420
      %v587 = vshrl.u32 %v586, 4
      %v588 = vand.u32 %v586, 15
      %v589 = vsub.s32 0, %v588
      %v590 = vsel %vm584, %v589, %v588
      %vm591 = vcmp.lt.s32.totalorder %v421, 0
      %v592 = vsub.s32 0, %v421
      %v593 = vsel %vm591, %v592, %v421
      %v594 = vshrl.u32 %v593, 4
      %v595 = vand.u32 %v593, 15
      %v596 = vsub.s32 0, %v595
      %v597 = vsel %vm591, %v596, %v595
      %vm598 = vcmp.lt.s32.totalorder %v422, 0
      %v599 = vsub.s32 0, %v422
      %v600 = vsel %vm598, %v599, %v422
      %v601 = vshrl.u32 %v600, 4
      %v602 = vand.u32 %v600, 15
      %v603 = vsub.s32 0, %v602
      %v604 = vsel %vm598, %v603, %v602
      %vm605 = vcmp.lt.s32.totalorder %v423, 0
      %v606 = vsub.s32 0, %v423
      %v607 = vsel %vm605, %v606, %v423
      %v608 = vshrl.u32 %v607, 4
      %v609 = vand.u32 %v607, 15
      %v610 = vsub.s32 0, %v609
      %v611 = vsel %vm605, %v610, %v609
      %vm612 = vcmp.lt.s32.totalorder %v424, 0
      %v613 = vsub.s32 0, %v424
      %v614 = vsel %vm612, %v613, %v424
      %v615 = vshrl.u32 %v614, 4
      %v616 = vand.u32 %v614, 15
      %v617 = vsub.s32 0, %v616
      %v618 = vsel %vm612, %v617, %v616
      %vm619 = vcmp.lt.s32.totalorder %v425, 0
      %v620 = vsub.s32 0, %v425
      %v621 = vsel %vm619, %v620, %v425
      %v622 = vshrl.u32 %v621, 4
      %v623 = vand.u32 %v621, 15
      %v624 = vsub.s32 0, %v623
      %v625 = vsel %vm619, %v624, %v623
      %vm626 = vcmp.lt.s32.totalorder %v426, 0
      %v627 = vsub.s32 0, %v426
      %v628 = vsel %vm626, %v627, %v426
      %v629 = vshrl.u32 %v628, 4
      %v630 = vand.u32 %v628, 15
      %v631 = vsub.s32 0, %v630
      %v632 = vsel %vm626, %v631, %v630
      %vm633 = vcmp.lt.s32.totalorder %v427, 0
      %v634 = vsub.s32 0, %v427
      %v635 = vsel %vm633, %v634, %v427
      %v636 = vshrl.u32 %v635, 4
      %v637 = vand.u32 %v635, 15
      %v638 = vsub.s32 0, %v637
      %v639 = vsel %vm633, %v638, %v637
      %vm640 = vcmp.lt.s32.totalorder %v428, 0
      %v641 = vsub.s32 0, %v428
      %v642 = vsel %vm640, %v641, %v428
      %v643 = vshrl.u32 %v642, 4
      %v644 = vand.u32 %v642, 15
      %v645 = vsub.s32 0, %v644
      %v646 = vsel %vm640, %v645, %v644
      %vm647 = vcmp.lt.s32.totalorder %v429, 0
      %v648 = vsub.s32 0, %v429
      %v649 = vsel %vm647, %v648, %v429
      %v650 = vshrl.u32 %v649, 4
      %v651 = vand.u32 %v649, 15
      %v652 = vsub.s32 0, %v651
      %v653 = vsel %vm647, %v652, %v651
      %vm654 = vcmp.ne.s32.totalorder %v436, 0
      %vm655 = vcmp.ne.s32.totalorder %v443, 0
      %vm656 = vcmp.ne.s32.totalorder %v450, 0
      %vm657 = vcmp.ne.s32.totalorder %v457, 0
      %vm658 = vcmp.ne.s32.totalorder %v464, 0
      %vm659 = vcmp.ne.s32.totalorder %v471, 0
      %vm660 = vcmp.ne.s32.totalorder %v478, 0
      %vm661 = vcmp.ne.s32.totalorder %v485, 0
      %vm662 = vcmp.ne.s32.totalorder %v492, 0
      %vm663 = vcmp.ne.s32.totalorder %v499, 0
      %vm664 = vcmp.ne.s32.totalorder %v506, 0
      %vm665 = vcmp.ne.s32.totalorder %v513, 0
      %vm666 = vcmp.ne.s32.totalorder %v520, 0
      %vm667 = vcmp.ne.s32.totalorder %v527, 0
      %vm668 = vcmp.ne.s32.totalorder %v534, 0
      %vm669 = vcmp.ne.s32.totalorder %v541, 0
      %vm670 = vcmp.ne.s32.totalorder %v548, 0
      %vm671 = vcmp.ne.s32.totalorder %v555, 0
      %vm672 = vcmp.ne.s32.totalorder %v562, 0
      %vm673 = vcmp.ne.s32.totalorder %v569, 0
      %vm674 = vcmp.ne.s32.totalorder %v576, 0
      %vm675 = vcmp.ne.s32.totalorder %v583, 0
      %vm676 = vcmp.ne.s32.totalorder %v590, 0
      %vm677 = vcmp.ne.s32.totalorder %v597, 0
      %vm678 = vcmp.ne.s32.totalorder %v604, 0
      %vm679 = vcmp.ne.s32.totalorder %v611, 0
      %vm680 = vcmp.ne.s32.totalorder %v618, 0
      %vm681 = vcmp.ne.s32.totalorder %v625, 0
      %vm682 = vcmp.ne.s32.totalorder %v632, 0
      %vm683 = vcmp.ne.s32.totalorder %v639, 0
      %vm684 = vcmp.ne.s32.totalorder %v646, 0
      %vm685 = vcmp.ne.s32.totalorder %v653, 0
      %vm686 = vcmp.lt.s32.totalorder %v436, 0
      %vm687 = vcmp.lt.s32.totalorder %v443, 0
      %vm688 = vcmp.lt.s32.totalorder %v450, 0
      %vm689 = vcmp.lt.s32.totalorder %v457, 0
      %vm690 = vcmp.lt.s32.totalorder %v464, 0
      %vm691 = vcmp.lt.s32.totalorder %v471, 0
      %vm692 = vcmp.lt.s32.totalorder %v478, 0
      %vm693 = vcmp.lt.s32.totalorder %v485, 0
      %vm694 = vcmp.lt.s32.totalorder %v492, 0
      %vm695 = vcmp.lt.s32.totalorder %v499, 0
      %vm696 = vcmp.lt.s32.totalorder %v506, 0
      %vm697 = vcmp.lt.s32.totalorder %v513, 0
      %vm698 = vcmp.lt.s32.totalorder %v520, 0
      %vm699 = vcmp.lt.s32.totalorder %v527, 0
      %vm700 = vcmp.lt.s32.totalorder %v534, 0
      %vm701 = vcmp.lt.s32.totalorder %v541, 0
      %vm702 = vcmp.lt.s32.totalorder %v548, 0
      %vm703 = vcmp.lt.s32.totalorder %v555, 0
      %vm704 = vcmp.lt.s32.totalorder %v562, 0
      %vm705 = vcmp.lt.s32.totalorder %v569, 0
      %vm706 = vcmp.lt.s32.totalorder %v576, 0
      %vm707 = vcmp.lt.s32.totalorder %v583, 0
      %vm708 = vcmp.lt.s32.totalorder %v590, 0
      %vm709 = vcmp.lt.s32.totalorder %v597, 0
      %vm710 = vcmp.lt.s32.totalorder %v604, 0
      %vm711 = vcmp.lt.s32.totalorder %v611, 0
      %vm712 = vcmp.lt.s32.totalorder %v618, 0
      %vm713 = vcmp.lt.s32.totalorder %v625, 0
      %vm714 = vcmp.lt.s32.totalorder %v632, 0
      %vm715 = vcmp.lt.s32.totalorder %v639, 0
      %vm716 = vcmp.lt.s32.totalorder %v646, 0
      %vm717 = vcmp.lt.s32.totalorder %v653, 0
      %vm718 = vmand %vm686, %vm654
      %vm719 = vmand %vm687, %vm655
      %vm720 = vmand %vm688, %vm656
      %vm721 = vmand %vm689, %vm657
      %vm722 = vmand %vm690, %vm658
      %vm723 = vmand %vm691, %vm659
      %vm724 = vmand %vm692, %vm660
      %vm725 = vmand %vm693, %vm661
      %vm726 = vmand %vm694, %vm662
      %vm727 = vmand %vm695, %vm663
      %vm728 = vmand %vm696, %vm664
      %vm729 = vmand %vm697, %vm665
      %vm730 = vmand %vm698, %vm666
      %vm731 = vmand %vm699, %vm667
      %vm732 = vmand %vm700, %vm668
      %vm733 = vmand %vm701, %vm669
      %vm734 = vmand %vm702, %vm670
      %vm735 = vmand %vm703, %vm671
      %vm736 = vmand %vm704, %vm672
      %vm737 = vmand %vm705, %vm673
      %vm738 = vmand %vm706, %vm674
      %vm739 = vmand %vm707, %vm675
      %vm740 = vmand %vm708, %vm676
      %vm741 = vmand %vm709, %vm677
      %vm742 = vmand %vm710, %vm678
      %vm743 = vmand %vm711, %vm679
      %vm744 = vmand %vm712, %vm680
      %vm745 = vmand %vm713, %vm681
      %vm746 = vmand %vm714, %vm682
      %vm747 = vmand %vm715, %vm683
      %vm748 = vmand %vm716, %vm684
      %vm749 = vmand %vm717, %vm685
      %v750 = vadd.s32 %v436, 16
      %v751 = vadd.s32 %v443, 16
      %v752 = vadd.s32 %v450, 16
      %v753 = vadd.s32 %v457, 16
      %v754 = vadd.s32 %v464, 16
      %v755 = vadd.s32 %v471, 16
      %v756 = vadd.s32 %v478, 16
      %v757 = vadd.s32 %v485, 16
      %v758 = vadd.s32 %v492, 16
      %v759 = vadd.s32 %v499, 16
      %v760 = vadd.s32 %v506, 16
      %v761 = vadd.s32 %v513, 16
      %v762 = vadd.s32 %v520, 16
      %v763 = vadd.s32 %v527, 16
      %v764 = vadd.s32 %v534, 16
      %v765 = vadd.s32 %v541, 16
      %v766 = vadd.s32 %v548, 16
      %v767 = vadd.s32 %v555, 16
      %v768 = vadd.s32 %v562, 16
      %v769 = vadd.s32 %v569, 16
      %v770 = vadd.s32 %v576, 16
      %v771 = vadd.s32 %v583, 16
      %v772 = vadd.s32 %v590, 16
      %v773 = vadd.s32 %v597, 16
      %v774 = vadd.s32 %v604, 16
      %v775 = vadd.s32 %v611, 16
      %v776 = vadd.s32 %v618, 16
      %v777 = vadd.s32 %v625, 16
      %v778 = vadd.s32 %v632, 16
      %v779 = vadd.s32 %v639, 16
      %v780 = vadd.s32 %v646, 16
      %v781 = vadd.s32 %v653, 16
      %v782 = vsel %vm718, %v750, %v436
      %v783 = vsel %vm719, %v751, %v443
      %v784 = vsel %vm720, %v752, %v450
      %v785 = vsel %vm721, %v753, %v457
      %v786 = vsel %vm722, %v754, %v464
      %v787 = vsel %vm723, %v755, %v471
      %v788 = vsel %vm724, %v756, %v478
      %v789 = vsel %vm725, %v757, %v485
      %v790 = vsel %vm726, %v758, %v492
      %v791 = vsel %vm727, %v759, %v499
      %v792 = vsel %vm728, %v760, %v506
      %v793 = vsel %vm729, %v761, %v513
      %v794 = vsel %vm730, %v762, %v520
      %v795 = vsel %vm731, %v763, %v527
      %v796 = vsel %vm732, %v764, %v534
      %v797 = vsel %vm733, %v765, %v541
      %v798 = vsel %vm734, %v766, %v548
      %v799 = vsel %vm735, %v767, %v555
      %v800 = vsel %vm736, %v768, %v562
      %v801 = vsel %vm737, %v769, %v569
      %v802 = vsel %vm738, %v770, %v576
      %v803 = vsel %vm739, %v771, %v583
      %v804 = vsel %vm740, %v772, %v590
      %v805 = vsel %vm741, %v773, %v597
      %v806 = vsel %vm742, %v774, %v604
      %v807 = vsel %vm743, %v775, %v611
      %v808 = vsel %vm744, %v776, %v618
      %v809 = vsel %vm745, %v777, %v625
      %v810 = vsel %vm746, %v778, %v632
      %v811 = vsel %vm747, %v779, %v639
      %v812 = vsel %vm748, %v780, %v646
      %v813 = vsel %vm749, %v781, %v653
      %vm814 = vsmask.f32 256
      %v816 = vshrl.u32 %v381, 16
      %v818 = vrot.slane %v816, 7
      %v819 = vshll.u32 %v381, 16
      %v821 = vor.u32 %v818, %v819
      %v823 = vshrl.u32 %v382, 16
      %v825 = vrot.slane %v823, 7
      %v826 = vshll.u32 %v382, 16
      %v828 = vor.u32 %v825, %v826
      %v829 = vsel %vm814, %v818, %v828
      %v831 = vshrl.u32 %v383, 16
      %v833 = vrot.slane %v831, 7
      %v834 = vshll.u32 %v383, 16
      %v836 = vor.u32 %v833, %v834
      %v837 = vsel %vm814, %v825, %v836
      %v839 = vshrl.u32 %v384, 16
      %v841 = vrot.slane %v839, 7
      %v842 = vshll.u32 %v384, 16
      %v844 = vor.u32 %v841, %v842
      %v845 = vsel %vm814, %v833, %v844
      %v847 = vshrl.u32 %v385, 16
      %v849 = vrot.slane %v847, 7
      %v850 = vshll.u32 %v385, 16
      %v852 = vor.u32 %v849, %v850
      %v853 = vsel %vm814, %v841, %v852
      %v855 = vshrl.u32 %v386, 16
      %v857 = vrot.slane %v855, 7
      %v858 = vshll.u32 %v386, 16
      %v860 = vor.u32 %v857, %v858
      %v861 = vsel %vm814, %v849, %v860
      %v863 = vshrl.u32 %v387, 16
      %v865 = vrot.slane %v863, 7
      %v866 = vshll.u32 %v387, 16
      %v868 = vor.u32 %v865, %v866
      %v869 = vsel %vm814, %v857, %v868
      %v871 = vshrl.u32 %v388, 16
      %v873 = vrot.slane %v871, 7
      %v874 = vshll.u32 %v388, 16
      %v876 = vor.u32 %v873, %v874
      %v877 = vsel %vm814, %v865, %v876
      %v879 = vshrl.u32 %v389, 16
      %v881 = vrot.slane %v879, 7
      %v882 = vshll.u32 %v389, 16
      %v884 = vor.u32 %v881, %v882
      %v885 = vsel %vm814, %v873, %v884
      %v887 = vshrl.u32 %v390, 16
      %v889 = vrot.slane %v887, 7
      %v890 = vshll.u32 %v390, 16
      %v892 = vor.u32 %v889, %v890
      %v893 = vsel %vm814, %v881, %v892
      %v895 = vshrl.u32 %v391, 16
      %v897 = vrot.slane %v895, 7
      %v898 = vshll.u32 %v391, 16
      %v900 = vor.u32 %v897, %v898
      %v901 = vsel %vm814, %v889, %v900
      %v903 = vshrl.u32 %v392, 16
      %v905 = vrot.slane %v903, 7
      %v906 = vshll.u32 %v392, 16
      %v908 = vor.u32 %v905, %v906
      %v909 = vsel %vm814, %v897, %v908
      %v911 = vshrl.u32 %v393, 16
      %v913 = vrot.slane %v911, 7
      %v914 = vshll.u32 %v393, 16
      %v916 = vor.u32 %v913, %v914
      %v917 = vsel %vm814, %v905, %v916
      %v919 = vshrl.u32 %v394, 16
      %v921 = vrot.slane %v919, 7
      %v922 = vshll.u32 %v394, 16
      %v924 = vor.u32 %v921, %v922
      %v925 = vsel %vm814, %v913, %v924
      %v927 = vshrl.u32 %v395, 16
      %v929 = vrot.slane %v927, 7
      %v930 = vshll.u32 %v395, 16
      %v932 = vor.u32 %v929, %v930
      %v933 = vsel %vm814, %v921, %v932
      %vm949 = vcmask 1040384
      %vm950 = vmand %vm949, %vm814
      %v951 = vsel %vm950, 0, %v821
      %v952 = vadd.s32 %v782, 4294967295
      %v953 = vadd.s32 %v783, 4294967295
      %v954 = vadd.s32 %v784, 4294967295
      %v955 = vadd.s32 %v785, 4294967295
      %v956 = vadd.s32 %v786, 4294967295
      %v957 = vadd.s32 %v787, 4294967295
      %v958 = vadd.s32 %v788, 4294967295
      %v959 = vadd.s32 %v789, 4294967295
      %v960 = vadd.s32 %v790, 4294967295
      %v961 = vadd.s32 %v791, 4294967295
      %v962 = vadd.s32 %v792, 4294967295
      %v963 = vadd.s32 %v793, 4294967295
      %v964 = vadd.s32 %v794, 4294967295
      %v965 = vadd.s32 %v795, 4294967295
      %v966 = vadd.s32 %v796, 4294967295
      %v967 = vadd.s32 %v797, 4294967295
      %v968 = vadd.s32 %v798, 4294967295
      %v969 = vadd.s32 %v799, 4294967295
      %v970 = vadd.s32 %v800, 4294967295
      %v971 = vadd.s32 %v801, 4294967295
      %v972 = vadd.s32 %v802, 4294967295
      %v973 = vadd.s32 %v803, 4294967295
      %v974 = vadd.s32 %v804, 4294967295
      %v975 = vadd.s32 %v805, 4294967295
      %v976 = vadd.s32 %v806, 4294967295
      %v977 = vadd.s32 %v807, 4294967295
      %v978 = vadd.s32 %v808, 4294967295
      %v979 = vadd.s32 %v809, 4294967295
      %v980 = vadd.s32 %v810, 4294967295
      %v981 = vadd.s32 %v811, 4294967295
      %v982 = vadd.s32 %v812, 4294967295
      %v983 = vadd.s32 %v813, 4294967295
      %vm984 = vcmp.ge.s32.totalorder %v952, 0
      %vm985 = vcmp.ge.s32.totalorder %v953, 0
      %vm986 = vcmp.ge.s32.totalorder %v954, 0
      %vm987 = vcmp.ge.s32.totalorder %v955, 0
      %vm988 = vcmp.ge.s32.totalorder %v956, 0
      %vm989 = vcmp.ge.s32.totalorder %v957, 0
      %vm990 = vcmp.ge.s32.totalorder %v958, 0
      %vm991 = vcmp.ge.s32.totalorder %v959, 0
      %vm992 = vcmp.ge.s32.totalorder %v960, 0
      %vm993 = vcmp.ge.s32.totalorder %v961, 0
      %vm994 = vcmp.ge.s32.totalorder %v962, 0
      %vm995 = vcmp.ge.s32.totalorder %v963, 0
      %vm996 = vcmp.ge.s32.totalorder %v964, 0
      %vm997 = vcmp.ge.s32.totalorder %v965, 0
      %vm998 = vcmp.ge.s32.totalorder %v966, 0
      %vm999 = vcmp.ge.s32.totalorder %v967, 0
      %vm1000 = vcmp.ge.s32.totalorder %v968, 0
      %vm1001 = vcmp.ge.s32.totalorder %v969, 0
      %vm1002 = vcmp.ge.s32.totalorder %v970, 0
      %vm1003 = vcmp.ge.s32.totalorder %v971, 0
      %vm1004 = vcmp.ge.s32.totalorder %v972, 0
      %vm1005 = vcmp.ge.s32.totalorder %v973, 0
      %vm1006 = vcmp.ge.s32.totalorder %v974, 0
      %vm1007 = vcmp.ge.s32.totalorder %v975, 0
      %vm1008 = vcmp.ge.s32.totalorder %v976, 0
      %vm1009 = vcmp.ge.s32.totalorder %v977, 0
      %vm1010 = vcmp.ge.s32.totalorder %v978, 0
      %vm1011 = vcmp.ge.s32.totalorder %v979, 0
      %vm1012 = vcmp.ge.s32.totalorder %v980, 0
      %vm1013 = vcmp.ge.s32.totalorder %v981, 0
      %vm1014 = vcmp.ge.s32.totalorder %v982, 0
      %vm1015 = vcmp.ge.s32.totalorder %v983, 0
      %vm1016 = vcmp.lt.s32.totalorder %v952, 16
      %vm1017 = vcmp.lt.s32.totalorder %v953, 16
      %vm1018 = vcmp.lt.s32.totalorder %v954, 16
      %vm1019 = vcmp.lt.s32.totalorder %v955, 16
      %vm1020 = vcmp.lt.s32.totalorder %v956, 16
      %vm1021 = vcmp.lt.s32.totalorder %v957, 16
      %vm1022 = vcmp.lt.s32.totalorder %v958, 16
      %vm1023 = vcmp.lt.s32.totalorder %v959, 16
      %vm1024 = vcmp.lt.s32.totalorder %v960, 16
      %vm1025 = vcmp.lt.s32.totalorder %v961, 16
      %vm1026 = vcmp.lt.s32.totalorder %v962, 16
      %vm1027 = vcmp.lt.s32.totalorder %v963, 16
      %vm1028 = vcmp.lt.s32.totalorder %v964, 16
      %vm1029 = vcmp.lt.s32.totalorder %v965, 16
      %vm1030 = vcmp.lt.s32.totalorder %v966, 16
      %vm1031 = vcmp.lt.s32.totalorder %v967, 16
      %vm1032 = vcmp.lt.s32.totalorder %v968, 16
      %vm1033 = vcmp.lt.s32.totalorder %v969, 16
      %vm1034 = vcmp.lt.s32.totalorder %v970, 16
      %vm1035 = vcmp.lt.s32.totalorder %v971, 16
      %vm1036 = vcmp.lt.s32.totalorder %v972, 16
      %vm1037 = vcmp.lt.s32.totalorder %v973, 16
      %vm1038 = vcmp.lt.s32.totalorder %v974, 16
      %vm1039 = vcmp.lt.s32.totalorder %v975, 16
      %vm1040 = vcmp.lt.s32.totalorder %v976, 16
      %vm1041 = vcmp.lt.s32.totalorder %v977, 16
      %vm1042 = vcmp.lt.s32.totalorder %v978, 16
      %vm1043 = vcmp.lt.s32.totalorder %v979, 16
      %vm1044 = vcmp.lt.s32.totalorder %v980, 16
      %vm1045 = vcmp.lt.s32.totalorder %v981, 16
      %vm1046 = vcmp.lt.s32.totalorder %v982, 16
      %vm1047 = vcmp.lt.s32.totalorder %v983, 16
      %vm1048 = vmand %vm984, %vm1016
      %vm1049 = vmand %vm985, %vm1017
      %vm1050 = vmand %vm986, %vm1018
      %vm1051 = vmand %vm987, %vm1019
      %vm1052 = vmand %vm988, %vm1020
      %vm1053 = vmand %vm989, %vm1021
      %vm1054 = vmand %vm990, %vm1022
      %vm1055 = vmand %vm991, %vm1023
      %vm1056 = vmand %vm992, %vm1024
      %vm1057 = vmand %vm993, %vm1025
      %vm1058 = vmand %vm994, %vm1026
      %vm1059 = vmand %vm995, %vm1027
      %vm1060 = vmand %vm996, %vm1028
      %vm1061 = vmand %vm997, %vm1029
      %vm1062 = vmand %vm998, %vm1030
      %vm1063 = vmand %vm999, %vm1031
      %vm1064 = vmand %vm1000, %vm1032
      %vm1065 = vmand %vm1001, %vm1033
      %vm1066 = vmand %vm1002, %vm1034
      %vm1067 = vmand %vm1003, %vm1035
      %vm1068 = vmand %vm1004, %vm1036
      %vm1069 = vmand %vm1005, %vm1037
      %vm1070 = vmand %vm1006, %vm1038
      %vm1071 = vmand %vm1007, %vm1039
      %vm1072 = vmand %vm1008, %vm1040
      %vm1073 = vmand %vm1009, %vm1041
      %vm1074 = vmand %vm1010, %vm1042
      %vm1075 = vmand %vm1011, %vm1043
      %vm1076 = vmand %vm1012, %vm1044
      %vm1077 = vmand %vm1013, %vm1045
      %vm1078 = vmand %vm1014, %vm1046
      %vm1079 = vmand %vm1015, %vm1047
      %v1080 = vsel %vm1048, 1, 0
      %v1081 = vsel %vm1049, 1, 0
      %v1082 = vsel %vm1050, 1, 0
      %v1083 = vsel %vm1051, 1, 0
      %v1084 = vsel %vm1052, 1, 0
      %v1085 = vsel %vm1053, 1, 0
      %v1086 = vsel %vm1054, 1, 0
      %v1087 = vsel %vm1055, 1, 0
      %v1088 = vsel %vm1056, 1, 0
      %v1089 = vsel %vm1057, 1, 0
      %v1090 = vsel %vm1058, 1, 0
      %v1091 = vsel %vm1059, 1, 0
      %v1092 = vsel %vm1060, 1, 0
      %v1093 = vsel %vm1061, 1, 0
      %v1094 = vsel %vm1062, 1, 0
      %v1095 = vsel %vm1063, 1, 0
      %v1096 = vsel %vm1064, 1, 0
      %v1097 = vsel %vm1065, 1, 0
      %v1098 = vsel %vm1066, 1, 0
      %v1099 = vsel %vm1067, 1, 0
      %v1100 = vsel %vm1068, 1, 0
      %v1101 = vsel %vm1069, 1, 0
      %v1102 = vsel %vm1070, 1, 0
      %v1103 = vsel %vm1071, 1, 0
      %v1104 = vsel %vm1072, 1, 0
      %v1105 = vsel %vm1073, 1, 0
      %v1106 = vsel %vm1074, 1, 0
      %v1107 = vsel %vm1075, 1, 0
      %v1108 = vsel %vm1076, 1, 0
      %v1109 = vsel %vm1077, 1, 0
      %v1110 = vsel %vm1078, 1, 0
      %v1111 = vsel %vm1079, 1, 0
      %vm1112 = vcmp.eq.s32.totalorder %v1080, 1
      %vm1113 = vcmp.eq.s32.totalorder %v1081, 1
      %vm1114 = vcmp.eq.s32.totalorder %v1082, 1
      %vm1115 = vcmp.eq.s32.totalorder %v1083, 1
      %vm1116 = vcmp.eq.s32.totalorder %v1084, 1
      %vm1117 = vcmp.eq.s32.totalorder %v1085, 1
      %vm1118 = vcmp.eq.s32.totalorder %v1086, 1
      %vm1119 = vcmp.eq.s32.totalorder %v1087, 1
      %vm1120 = vcmp.eq.s32.totalorder %v1088, 1
      %vm1121 = vcmp.eq.s32.totalorder %v1089, 1
      %vm1122 = vcmp.eq.s32.totalorder %v1090, 1
      %vm1123 = vcmp.eq.s32.totalorder %v1091, 1
      %vm1124 = vcmp.eq.s32.totalorder %v1092, 1
      %vm1125 = vcmp.eq.s32.totalorder %v1093, 1
      %vm1126 = vcmp.eq.s32.totalorder %v1094, 1
      %vm1127 = vcmp.eq.s32.totalorder %v1095, 1
      %vm1128 = vcmp.eq.s32.totalorder %v1096, 1
      %vm1129 = vcmp.eq.s32.totalorder %v1097, 1
      %vm1130 = vcmp.eq.s32.totalorder %v1098, 1
      %vm1131 = vcmp.eq.s32.totalorder %v1099, 1
      %vm1132 = vcmp.eq.s32.totalorder %v1100, 1
      %vm1133 = vcmp.eq.s32.totalorder %v1101, 1
      %vm1134 = vcmp.eq.s32.totalorder %v1102, 1
      %vm1135 = vcmp.eq.s32.totalorder %v1103, 1
      %vm1136 = vcmp.eq.s32.totalorder %v1104, 1
      %vm1137 = vcmp.eq.s32.totalorder %v1105, 1
      %vm1138 = vcmp.eq.s32.totalorder %v1106, 1
      %vm1139 = vcmp.eq.s32.totalorder %v1107, 1
      %vm1140 = vcmp.eq.s32.totalorder %v1108, 1
      %vm1141 = vcmp.eq.s32.totalorder %v1109, 1
      %vm1142 = vcmp.eq.s32.totalorder %v1110, 1
      %vm1143 = vcmp.eq.s32.totalorder %v1111, 1
      %vm1144 = vmpackc.low %vm1114, %vm1114
      %vm1145 = vmpackc.low %vm1115, %vm1115
      %vm1146 = vmpackc.low %vm1116, %vm1116
      %vm1147 = vmpackc.low %vm1117, %vm1117
      %vm1148 = vmpackc.low %vm1118, %vm1118
      %vm1149 = vmpackc.low %vm1119, %vm1119
      %vm1150 = vmpackc.low %vm1120, %vm1120
      %vm1151 = vmpackc.low %vm1121, %vm1121
      %vm1152 = vmpackc.low %vm1122, %vm1122
      %vm1153 = vmpackc.low %vm1123, %vm1123
      %vm1154 = vmpackc.low %vm1124, %vm1124
      %vm1155 = vmpackc.low %vm1125, %vm1125
      %vm1156 = vmpackc.low %vm1126, %vm1126
      %vm1157 = vmpackc.low %vm1127, %vm1127
      %vm1158 = vmpackc.low %vm1128, %vm1128
      %vm1159 = vmpackc.low %vm1129, %vm1129
      %vm1160 = vmpackc.low %vm1130, %vm1130
      %vm1161 = vmpackc.low %vm1131, %vm1131
      %vm1162 = vmpackc.low %vm1132, %vm1132
      %vm1163 = vmpackc.low %vm1133, %vm1133
      %vm1164 = vmpackc.low %vm1134, %vm1134
      %vm1165 = vmpackc.low %vm1135, %vm1135
      %vm1166 = vmpackc.low %vm1136, %vm1136
      %vm1167 = vmpackc.low %vm1137, %vm1137
      %vm1168 = vmpackc.low %vm1138, %vm1138
      %vm1169 = vmpackc.low %vm1139, %vm1139
      %vm1170 = vmpackc.low %vm1140, %vm1140
      %vm1171 = vmpackc.low %vm1141, %vm1141
      %vm1172 = vmpackc.low %vm1142, %vm1142
      %vm1173 = vmpackc.low %vm1143, %vm1143
      %v1174 = vsel %vm1144, 65537, 0
      %v1175 = vsel %vm1145, 65537, 0
      %v1176 = vsel %vm1146, 65537, 0
      %v1177 = vsel %vm1147, 65537, 0
      %v1178 = vsel %vm1148, 65537, 0
      %v1179 = vsel %vm1149, 65537, 0
      %v1180 = vsel %vm1150, 65537, 0
      %v1181 = vsel %vm1151, 65537, 0
      %v1182 = vsel %vm1152, 65537, 0
      %v1183 = vsel %vm1153, 65537, 0
      %v1184 = vsel %vm1154, 65537, 0
      %v1185 = vsel %vm1155, 65537, 0
      %v1186 = vsel %vm1156, 65537, 0
      %v1187 = vsel %vm1157, 65537, 0
      %v1188 = vsel %vm1158, 65537, 0
      %v1189 = vsel %vm1159, 65537, 0
      %v1190 = vsel %vm1160, 65537, 0
      %v1191 = vsel %vm1161, 65537, 0
      %v1192 = vsel %vm1162, 65537, 0
      %v1193 = vsel %vm1163, 65537, 0
      %v1194 = vsel %vm1164, 65537, 0
      %v1195 = vsel %vm1165, 65537, 0
      %v1196 = vsel %vm1166, 65537, 0
      %v1197 = vsel %vm1167, 65537, 0
      %v1198 = vsel %vm1168, 65537, 0
      %v1199 = vsel %vm1169, 65537, 0
      %v1200 = vsel %vm1170, 65537, 0
      %v1201 = vsel %vm1171, 65537, 0
      %v1202 = vsel %vm1172, 65537, 0
      %v1203 = vsel %vm1173, 65537, 0
      %v1204 = vunpack.c.l.b16 %v1174
      %v1205 = vunpack.c.l.b16 %v1175
      %v1206 = vunpack.c.l.b16 %v1176
      %v1207 = vunpack.c.l.b16 %v1177
      %v1208 = vunpack.c.l.b16 %v1178
      %v1209 = vunpack.c.l.b16 %v1179
      %v1210 = vunpack.c.l.b16 %v1180
      %v1211 = vunpack.c.l.b16 %v1181
      %v1212 = vunpack.c.l.b16 %v1182
      %v1213 = vunpack.c.l.b16 %v1183
      %v1214 = vunpack.c.l.b16 %v1184
      %v1215 = vunpack.c.l.b16 %v1185
      %v1216 = vunpack.c.l.b16 %v1186
      %v1217 = vunpack.c.l.b16 %v1187
      %v1218 = vunpack.c.l.b16 %v1188
      %v1219 = vunpack.c.l.b16 %v1189
      %v1220 = vunpack.c.l.b16 %v1190
      %v1221 = vunpack.c.l.b16 %v1191
      %v1222 = vunpack.c.l.b16 %v1192
      %v1223 = vunpack.c.l.b16 %v1193
      %v1224 = vunpack.c.l.b16 %v1194
      %v1225 = vunpack.c.l.b16 %v1195
      %v1226 = vunpack.c.l.b16 %v1196
      %v1227 = vunpack.c.l.b16 %v1197
      %v1228 = vunpack.c.l.b16 %v1198
      %v1229 = vunpack.c.l.b16 %v1199
      %v1230 = vunpack.c.l.b16 %v1200
      %v1231 = vunpack.c.l.b16 %v1201
      %v1232 = vunpack.c.l.b16 %v1202
      %v1233 = vunpack.c.l.b16 %v1203
      %v1234 = vpack.c.b16 %v1205, %v1204
      %v1235 = vpack.c.b16 %v1207, %v1206
      %v1236 = vpack.c.b16 %v1209, %v1208
      %v1237 = vpack.c.b16 %v1211, %v1210
      %v1238 = vpack.c.b16 %v1213, %v1212
      %v1239 = vpack.c.b16 %v1215, %v1214
      %v1240 = vpack.c.b16 %v1217, %v1216
      %v1241 = vpack.c.b16 %v1219, %v1218
      %v1242 = vpack.c.b16 %v1221, %v1220
      %v1243 = vpack.c.b16 %v1223, %v1222
      %v1244 = vpack.c.b16 %v1225, %v1224
      %v1245 = vpack.c.b16 %v1227, %v1226
      %v1246 = vpack.c.b16 %v1229, %v1228
      %v1247 = vpack.c.b16 %v1231, %v1230
      %v1248 = vpack.c.b16 %v1233, %v1232
      %vm1249 = vcmp.ne.s16.totalorder %v1234, 0
      %vm1250 = vcmp.ne.s16.totalorder %v1235, 0
      %vm1251 = vcmp.ne.s16.totalorder %v1236, 0
      %vm1252 = vcmp.ne.s16.totalorder %v1237, 0
      %vm1253 = vcmp.ne.s16.totalorder %v1238, 0
      %vm1254 = vcmp.ne.s16.totalorder %v1239, 0
      %vm1255 = vcmp.ne.s16.totalorder %v1240, 0
      %vm1256 = vcmp.ne.s16.totalorder %v1241, 0
      %vm1257 = vcmp.ne.s16.totalorder %v1242, 0
      %vm1258 = vcmp.ne.s16.totalorder %v1243, 0
      %vm1259 = vcmp.ne.s16.totalorder %v1244, 0
      %vm1260 = vcmp.ne.s16.totalorder %v1245, 0
      %vm1261 = vcmp.ne.s16.totalorder %v1246, 0
      %vm1262 = vcmp.ne.s16.totalorder %v1247, 0
      %vm1263 = vcmp.ne.s16.totalorder %v1248, 0
      %v1264 = vsel %vm1249, %v951, 0
      %v1265 = vsel %vm1250, %v829, 0
      %v1266 = vsel %vm1251, %v837, 0
      %v1267 = vsel %vm1252, %v845, 0
      %v1268 = vsel %vm1253, %v853, 0
      %v1269 = vsel %vm1254, %v861, 0
      %v1270 = vsel %vm1255, %v869, 0
      %v1271 = vsel %vm1256, %v877, 0
      %v1272 = vsel %vm1257, %v885, 0
      %v1273 = vsel %vm1258, %v893, 0
      %v1274 = vsel %vm1259, %v901, 0
      %v1275 = vsel %vm1260, %v909, 0
      %v1276 = vsel %vm1261, %v917, 0
      %v1277 = vsel %vm1262, %v925, 0
      %v1278 = vsel %vm1263, %v933, 0
      %v1279 = vld [vmem:[%s3] sm:$0xf]
      %v1280 = vld [vmem:[%s3 + $0x4] sm:$0xf]
      %v1281 = vld [vmem:[%s3 + $0x8] sm:$0xf]
      %v1282 = vld [vmem:[%s3 + $0xc] sm:$0xf]
      %s1283 = scalar_lea.vmem %s3, 16
      %v1284 = vld [vmem:[%s1283] sm:$0xf]
      %v1285 = vld [vmem:[%s1283 + $0x4] sm:$0xf]
      %v1286 = vld [vmem:[%s1283 + $0x8] sm:$0xf]
      %v1287 = vld [vmem:[%s1283 + $0xc] sm:$0xf]
      %v1292 = vunpack.c.l.b16 %v1284
      %v1293 = vunpack.c.l.b16 %v1285
      %v1294 = vunpack.c.l.b16 %v1286
      %v1295 = vunpack.c.l.b16 %v1287
      %v1296 = vpack.c.b16 %v1293, %v1292
      %v1297 = vpack.c.b16 %v1295, %v1294
      %vm1300 = vcmask 261120
      %v1302 = vsel %vm1300, 0, 0
      %v1304 = vsel %vm1300, %v381, 0
      %v1306 = vsel %vm1300, %v382, 0
      %v1308 = vsel %vm1300, %v383, 0
      %v1310 = vsel %vm1300, %v384, 0
      %v1312 = vsel %vm1300, %v385, 0
      %v1314 = vsel %vm1300, %v386, 0
      %v1316 = vsel %vm1300, %v387, 0
      %v1318 = vsel %vm1300, %v388, 0
      %v1320 = vsel %vm1300, %v389, 0
      %v1322 = vsel %vm1300, %v390, 0
      %v1324 = vsel %vm1300, %v391, 0
      %v1326 = vsel %vm1300, %v392, 0
      %v1328 = vsel %vm1300, %v393, 0
      %v1330 = vsel %vm1300, %v394, 0
      %v1332 = vsel %vm1300, %v395, 0
      %1334 = vmatprep.subr.bf16.mxu0 0
      %1335 = vmatpush1.bf16.msra.mxu0 0
      %1336 = vmatprep.subr.bf16.mxu0 0
      %1337 = vmatpush1.bf16.msra.mxu0 0
      %1338 = vmatprep.subr.bf16.mxu0 0
      %1339 = vmatpush1.bf16.msra.mxu0 0
      %1340 = vmatprep.subr.bf16.mxu0 0
      %1341 = vmatpush1.bf16.msra.mxu0 0
      %1342 = vmatprep.subr.bf16.mxu0 0
      %1343 = vmatpush1.bf16.msra.mxu0 0
      %1344 = vmatprep.subr.bf16.mxu0 0
      %1345 = vmatpush1.bf16.msra.mxu0 0
      %1346 = vmatprep.subr.bf16.mxu0 0
      %1347 = vmatpush1.bf16.msra.mxu0 %v1297
      %1348 = vmatprep.subr.bf16.mxu0 0
      %1349 = vmatpush1.bf16.msra.mxu0 %v1296
      %1350 = vmatprep.subr.bf16.mxu0 0
      %1351 = vmatpush2.bf16.msra.mxu0 0
      %1352 = vmatprep.subr.bf16.mxu0 0
      %1353 = vmatpush2.bf16.msra.mxu0 0
      %1354 = vmatprep.subr.bf16.mxu0 0
      %1355 = vmatpush2.bf16.msra.mxu0 0
      %1356 = vmatprep.subr.bf16.mxu0 0
      %1357 = vmatpush2.bf16.msra.mxu0 0
      %1358 = vmatprep.subr.bf16.mxu0 0
      %1359 = vmatpush2.bf16.msra.mxu0 0
      %1360 = vmatprep.subr.bf16.mxu0 0
      %1361 = vmatpush2.bf16.msra.mxu0 0
      %1362 = vmatprep.subr.bf16.mxu0 0
      %1363 = vmatpush2.bf16.msra.mxu0 0
      %1364 = vmatprep.subr.bf16.mxu0 0
      %1365 = vmatpush2.bf16.msra.mxu0 0
      %1366 = vmatprep.mubr.bf16.mxu0 0
      %1367 = vmatmul.mubr.bf16.gmra.mxu0 %v1302
      %v1368 = vpop.f32.mrf.mxu0
      %v1369 = vadd.f32 0.0, %v1368
      %v1370 = vpop.f32.mrf.mxu0
      %v1371 = vpop.f32.mrf.mxu0
      %v1372 = vadd.f32 0.0, %v1371
      %v1373 = vpop.f32.mrf.mxu0
      %1374 = vmatprep.mubr.bf16.mxu0 0
      %1375 = vmatmul.mubr.bf16.gmra.mxu0 %v1304
      %v1376 = vpop.f32.mrf.mxu0
      %v1377 = vadd.f32 0.0, %v1376
      %v1378 = vpop.f32.mrf.mxu0
      %v1379 = vpop.f32.mrf.mxu0
      %v1380 = vadd.f32 0.0, %v1379
      %v1381 = vpop.f32.mrf.mxu0
      %1382 = vmatprep.mubr.bf16.mxu0 0
      %1383 = vmatmul.mubr.bf16.gmra.mxu0 %v1306
      %v1384 = vpop.f32.mrf.mxu0
      %v1385 = vadd.f32 0.0, %v1384
      %v1386 = vpop.f32.mrf.mxu0
      %v1387 = vpop.f32.mrf.mxu0
      %v1388 = vadd.f32 0.0, %v1387
      %v1389 = vpop.f32.mrf.mxu0
      %1390 = vmatprep.mubr.bf16.mxu0 0
      %1391 = vmatmul.mubr.bf16.gmra.mxu0 %v1308
      %v1392 = vpop.f32.mrf.mxu0
      %v1393 = vadd.f32 0.0, %v1392
      %v1394 = vpop.f32.mrf.mxu0
      %v1395 = vpop.f32.mrf.mxu0
      %v1396 = vadd.f32 0.0, %v1395
      %v1397 = vpop.f32.mrf.mxu0
      %1398 = vmatprep.mubr.bf16.mxu0 0
      %1399 = vmatmul.mubr.bf16.gmra.mxu0 %v1310
      %v1400 = vpop.f32.mrf.mxu0
      %v1401 = vadd.f32 0.0, %v1400
      %v1402 = vpop.f32.mrf.mxu0
      %v1403 = vpop.f32.mrf.mxu0
      %v1404 = vadd.f32 0.0, %v1403
      %v1405 = vpop.f32.mrf.mxu0
      %1406 = vmatprep.mubr.bf16.mxu0 0
      %1407 = vmatmul.mubr.bf16.gmra.mxu0 %v1312
      %v1408 = vpop.f32.mrf.mxu0
      %v1409 = vadd.f32 0.0, %v1408
      %v1410 = vpop.f32.mrf.mxu0
      %v1411 = vpop.f32.mrf.mxu0
      %v1412 = vadd.f32 0.0, %v1411
      %v1413 = vpop.f32.mrf.mxu0
      %1414 = vmatprep.mubr.bf16.mxu0 0
      %1415 = vmatmul.mubr.bf16.gmra.mxu0 %v1314
      %v1416 = vpop.f32.mrf.mxu0
      %v1417 = vadd.f32 0.0, %v1416
      %v1418 = vpop.f32.mrf.mxu0
      %v1419 = vpop.f32.mrf.mxu0
      %v1420 = vadd.f32 0.0, %v1419
      %v1421 = vpop.f32.mrf.mxu0
      %1422 = vmatprep.mubr.bf16.mxu0 0
      %1423 = vmatmul.mubr.bf16.gmra.mxu0 %v1316
      %v1424 = vpop.f32.mrf.mxu0
      %v1425 = vadd.f32 0.0, %v1424
      %v1426 = vpop.f32.mrf.mxu0
      %v1427 = vpop.f32.mrf.mxu0
      %v1428 = vadd.f32 0.0, %v1427
      %v1429 = vpop.f32.mrf.mxu0
      %1430 = vmatprep.mubr.bf16.mxu0 0
      %1431 = vmatmul.mubr.bf16.gmra.mxu0 %v1318
      %v1432 = vpop.f32.mrf.mxu0
      %v1433 = vadd.f32 0.0, %v1432
      %v1434 = vpop.f32.mrf.mxu0
      %v1435 = vpop.f32.mrf.mxu0
      %v1436 = vadd.f32 0.0, %v1435
      %v1437 = vpop.f32.mrf.mxu0
      %1438 = vmatprep.mubr.bf16.mxu0 0
      %1439 = vmatmul.mubr.bf16.gmra.mxu0 %v1320
      %v1440 = vpop.f32.mrf.mxu0
      %v1441 = vadd.f32 0.0, %v1440
      %v1442 = vpop.f32.mrf.mxu0
      %v1443 = vpop.f32.mrf.mxu0
      %v1444 = vadd.f32 0.0, %v1443
      %v1445 = vpop.f32.mrf.mxu0
      %1446 = vmatprep.mubr.bf16.mxu0 0
      %1447 = vmatmul.mubr.bf16.gmra.mxu0 %v1322
      %v1448 = vpop.f32.mrf.mxu0
      %v1449 = vadd.f32 0.0, %v1448
      %v1450 = vpop.f32.mrf.mxu0
      %v1451 = vpop.f32.mrf.mxu0
      %v1452 = vadd.f32 0.0, %v1451
      %v1453 = vpop.f32.mrf.mxu0
      %1454 = vmatprep.mubr.bf16.mxu0 0
      %1455 = vmatmul.mubr.bf16.gmra.mxu0 %v1324
      %v1456 = vpop.f32.mrf.mxu0
      %v1457 = vadd.f32 0.0, %v1456
      %v1458 = vpop.f32.mrf.mxu0
      %v1459 = vpop.f32.mrf.mxu0
      %v1460 = vadd.f32 0.0, %v1459
      %v1461 = vpop.f32.mrf.mxu0
      %1462 = vmatprep.mubr.bf16.mxu0 0
      %1463 = vmatmul.mubr.bf16.gmra.mxu0 %v1326
      %v1464 = vpop.f32.mrf.mxu0
      %v1465 = vadd.f32 0.0, %v1464
      %v1466 = vpop.f32.mrf.mxu0
      %v1467 = vpop.f32.mrf.mxu0
      %v1468 = vadd.f32 0.0, %v1467
      %v1469 = vpop.f32.mrf.mxu0
      %1470 = vmatprep.mubr.bf16.mxu0 0
      %1471 = vmatmul.mubr.bf16.gmra.mxu0 %v1328
      %v1472 = vpop.f32.mrf.mxu0
      %v1473 = vadd.f32 0.0, %v1472
      %v1474 = vpop.f32.mrf.mxu0
      %v1475 = vpop.f32.mrf.mxu0
      %v1476 = vadd.f32 0.0, %v1475
      %v1477 = vpop.f32.mrf.mxu0
      %1478 = vmatprep.mubr.bf16.mxu0 0
      %1479 = vmatmul.mubr.bf16.gmra.mxu0 %v1330
      %v1480 = vpop.f32.mrf.mxu0
      %v1481 = vadd.f32 0.0, %v1480
      %v1482 = vpop.f32.mrf.mxu0
      %v1483 = vpop.f32.mrf.mxu0
      %v1484 = vadd.f32 0.0, %v1483
      %v1485 = vpop.f32.mrf.mxu0
      %1486 = vmatprep.mubr.bf16.mxu0 0
      %1487 = vmatmul.mubr.bf16.gmra.mxu0 %v1332
      %v1488 = vpop.f32.mrf.mxu0
      %v1489 = vadd.f32 0.0, %v1488
      %v1490 = vpop.f32.mrf.mxu0
      %v1491 = vpop.f32.mrf.mxu0
      %v1492 = vadd.f32 0.0, %v1491
      %v1493 = vpop.f32.mrf.mxu0
      %1494 = vdwg.mxu0
      %v1499 = vunpack.c.l.b16 %v1279
      %v1500 = vunpack.c.l.b16 %v1280
      %v1501 = vunpack.c.l.b16 %v1281
      %v1502 = vunpack.c.l.b16 %v1282
      %v1503 = vpack.c.b16 %v1500, %v1499
      %v1504 = vpack.c.b16 %v1502, %v1501
      %v1508 = vsel %vm1300, %v1264, 0
      %v1511 = vsel %vm1300, %v1265, 0
      %v1514 = vsel %vm1300, %v1266, 0
      %v1517 = vsel %vm1300, %v1267, 0
      %v1520 = vsel %vm1300, %v1268, 0
      %v1523 = vsel %vm1300, %v1269, 0
      %v1526 = vsel %vm1300, %v1270, 0
      %v1529 = vsel %vm1300, %v1271, 0
      %v1532 = vsel %vm1300, %v1272, 0
      %v1535 = vsel %vm1300, %v1273, 0
      %v1538 = vsel %vm1300, %v1274, 0
      %v1541 = vsel %vm1300, %v1275, 0
      %v1544 = vsel %vm1300, %v1276, 0
      %v1547 = vsel %vm1300, %v1277, 0
      %v1550 = vsel %vm1300, %v1278, 0
      %1552 = vmatprep.subr.bf16.mxu0 0
      %1553 = vmatpush1.bf16.msra.mxu0 0
      %1554 = vmatprep.subr.bf16.mxu0 0
      %1555 = vmatpush1.bf16.msra.mxu0 0
      %1556 = vmatprep.subr.bf16.mxu0 0
      %1557 = vmatpush1.bf16.msra.mxu0 0
      %1558 = vmatprep.subr.bf16.mxu0 0
      %1559 = vmatpush1.bf16.msra.mxu0 0
      %1560 = vmatprep.subr.bf16.mxu0 0
      %1561 = vmatpush1.bf16.msra.mxu0 0
      %1562 = vmatprep.subr.bf16.mxu0 0
      %1563 = vmatpush1.bf16.msra.mxu0 0
      %1564 = vmatprep.subr.bf16.mxu0 0
      %1565 = vmatpush1.bf16.msra.mxu0 %v1504
      %1566 = vmatprep.subr.bf16.mxu0 0
      %1567 = vmatpush1.bf16.msra.mxu0 %v1503
      %1568 = vmatprep.subr.bf16.mxu0 0
      %1569 = vmatpush2.bf16.msra.mxu0 0
      %1570 = vmatprep.subr.bf16.mxu0 0
      %1571 = vmatpush2.bf16.msra.mxu0 0
      %1572 = vmatprep.subr.bf16.mxu0 0
      %1573 = vmatpush2.bf16.msra.mxu0 0
      %1574 = vmatprep.subr.bf16.mxu0 0
      %1575 = vmatpush2.bf16.msra.mxu0 0
      %1576 = vmatprep.subr.bf16.mxu0 0
      %1577 = vmatpush2.bf16.msra.mxu0 0
      %1578 = vmatprep.subr.bf16.mxu0 0
      %1579 = vmatpush2.bf16.msra.mxu0 0
      %1580 = vmatprep.subr.bf16.mxu0 0
      %1581 = vmatpush2.bf16.msra.mxu0 0
      %1582 = vmatprep.subr.bf16.mxu0 0
      %1583 = vmatpush2.bf16.msra.mxu0 0
      %1584 = vmatprep.mubr.bf16.mxu0 0
      %1585 = vmatmul.mubr.bf16.gmra.mxu0 %v1302
      %v1586 = vpop.f32.mrf.mxu0
      %v1587 = vadd.f32 %v1369, %v1586
      %v1588 = vpop.f32.mrf.mxu0
      %v1589 = vpop.f32.mrf.mxu0
      %v1590 = vadd.f32 %v1372, %v1589
      %v1591 = vpop.f32.mrf.mxu0
      %1592 = vmatprep.mubr.bf16.mxu0 0
      %1593 = vmatmul.mubr.bf16.gmra.mxu0 %v1508
      %v1594 = vpop.f32.mrf.mxu0
      %v1595 = vadd.f32 %v1377, %v1594
      %v1596 = vpop.f32.mrf.mxu0
      %v1597 = vpop.f32.mrf.mxu0
      %v1598 = vadd.f32 %v1380, %v1597
      %v1599 = vpop.f32.mrf.mxu0
      %1600 = vmatprep.mubr.bf16.mxu0 0
      %1601 = vmatmul.mubr.bf16.gmra.mxu0 %v1511
      %v1602 = vpop.f32.mrf.mxu0
      %v1603 = vadd.f32 %v1385, %v1602
      %v1604 = vpop.f32.mrf.mxu0
      %v1605 = vpop.f32.mrf.mxu0
      %v1606 = vadd.f32 %v1388, %v1605
      %v1607 = vpop.f32.mrf.mxu0
      %1608 = vmatprep.mubr.bf16.mxu0 0
      %1609 = vmatmul.mubr.bf16.gmra.mxu0 %v1514
      %v1610 = vpop.f32.mrf.mxu0
      %v1611 = vadd.f32 %v1393, %v1610
      %v1612 = vpop.f32.mrf.mxu0
      %v1613 = vpop.f32.mrf.mxu0
      %v1614 = vadd.f32 %v1396, %v1613
      %v1615 = vpop.f32.mrf.mxu0
      %1616 = vmatprep.mubr.bf16.mxu0 0
      %1617 = vmatmul.mubr.bf16.gmra.mxu0 %v1517
      %v1618 = vpop.f32.mrf.mxu0
      %v1619 = vadd.f32 %v1401, %v1618
      %v1620 = vpop.f32.mrf.mxu0
      %v1621 = vpop.f32.mrf.mxu0
      %v1622 = vadd.f32 %v1404, %v1621
      %v1623 = vpop.f32.mrf.mxu0
      %1624 = vmatprep.mubr.bf16.mxu0 0
      %1625 = vmatmul.mubr.bf16.gmra.mxu0 %v1520
      %v1626 = vpop.f32.mrf.mxu0
      %v1627 = vadd.f32 %v1409, %v1626
      %v1628 = vpop.f32.mrf.mxu0
      %v1629 = vpop.f32.mrf.mxu0
      %v1630 = vadd.f32 %v1412, %v1629
      %v1631 = vpop.f32.mrf.mxu0
      %1632 = vmatprep.mubr.bf16.mxu0 0
      %1633 = vmatmul.mubr.bf16.gmra.mxu0 %v1523
      %v1634 = vpop.f32.mrf.mxu0
      %v1635 = vadd.f32 %v1417, %v1634
      %v1636 = vpop.f32.mrf.mxu0
      %v1637 = vpop.f32.mrf.mxu0
      %v1638 = vadd.f32 %v1420, %v1637
      %v1639 = vpop.f32.mrf.mxu0
      %1640 = vmatprep.mubr.bf16.mxu0 0
      %1641 = vmatmul.mubr.bf16.gmra.mxu0 %v1526
      %v1642 = vpop.f32.mrf.mxu0
      %v1643 = vadd.f32 %v1425, %v1642
      %v1644 = vpop.f32.mrf.mxu0
      %v1645 = vpop.f32.mrf.mxu0
      %v1646 = vadd.f32 %v1428, %v1645
      %v1647 = vpop.f32.mrf.mxu0
      %1648 = vmatprep.mubr.bf16.mxu0 0
      %1649 = vmatmul.mubr.bf16.gmra.mxu0 %v1529
      %v1650 = vpop.f32.mrf.mxu0
      %v1651 = vadd.f32 %v1433, %v1650
      %v1652 = vpop.f32.mrf.mxu0
      %v1653 = vpop.f32.mrf.mxu0
      %v1654 = vadd.f32 %v1436, %v1653
      %v1655 = vpop.f32.mrf.mxu0
      %1656 = vmatprep.mubr.bf16.mxu0 0
      %1657 = vmatmul.mubr.bf16.gmra.mxu0 %v1532
      %v1658 = vpop.f32.mrf.mxu0
      %v1659 = vadd.f32 %v1441, %v1658
      %v1660 = vpop.f32.mrf.mxu0
      %v1661 = vpop.f32.mrf.mxu0
      %v1662 = vadd.f32 %v1444, %v1661
      %v1663 = vpop.f32.mrf.mxu0
      %1664 = vmatprep.mubr.bf16.mxu0 0
      %1665 = vmatmul.mubr.bf16.gmra.mxu0 %v1535
      %v1666 = vpop.f32.mrf.mxu0
      %v1667 = vadd.f32 %v1449, %v1666
      %v1668 = vpop.f32.mrf.mxu0
      %v1669 = vpop.f32.mrf.mxu0
      %v1670 = vadd.f32 %v1452, %v1669
      %v1671 = vpop.f32.mrf.mxu0
      %1672 = vmatprep.mubr.bf16.mxu0 0
      %1673 = vmatmul.mubr.bf16.gmra.mxu0 %v1538
      %v1674 = vpop.f32.mrf.mxu0
      %v1675 = vadd.f32 %v1457, %v1674
      %v1676 = vpop.f32.mrf.mxu0
      %v1677 = vpop.f32.mrf.mxu0
      %v1678 = vadd.f32 %v1460, %v1677
      %v1679 = vpop.f32.mrf.mxu0
      %1680 = vmatprep.mubr.bf16.mxu0 0
      %1681 = vmatmul.mubr.bf16.gmra.mxu0 %v1541
      %v1682 = vpop.f32.mrf.mxu0
      %v1683 = vadd.f32 %v1465, %v1682
      %v1684 = vpop.f32.mrf.mxu0
      %v1685 = vpop.f32.mrf.mxu0
      %v1686 = vadd.f32 %v1468, %v1685
      %v1687 = vpop.f32.mrf.mxu0
      %1688 = vmatprep.mubr.bf16.mxu0 0
      %1689 = vmatmul.mubr.bf16.gmra.mxu0 %v1544
      %v1690 = vpop.f32.mrf.mxu0
      %v1691 = vadd.f32 %v1473, %v1690
      %v1692 = vpop.f32.mrf.mxu0
      %v1693 = vpop.f32.mrf.mxu0
      %v1694 = vadd.f32 %v1476, %v1693
      %v1695 = vpop.f32.mrf.mxu0
      %1696 = vmatprep.mubr.bf16.mxu0 0
      %1697 = vmatmul.mubr.bf16.gmra.mxu0 %v1547
      %v1698 = vpop.f32.mrf.mxu0
      %v1699 = vadd.f32 %v1481, %v1698
      %v1700 = vpop.f32.mrf.mxu0
      %v1701 = vpop.f32.mrf.mxu0
      %v1702 = vadd.f32 %v1484, %v1701
      %v1703 = vpop.f32.mrf.mxu0
      %1704 = vmatprep.mubr.bf16.mxu0 0
      %1705 = vmatmul.mubr.bf16.gmra.mxu0 %v1550
      %v1706 = vpop.f32.mrf.mxu0
      %v1707 = vadd.f32 %v1489, %v1706
      %v1708 = vpop.f32.mrf.mxu0
      %v1709 = vpop.f32.mrf.mxu0
      %v1710 = vadd.f32 %v1492, %v1709
      %v1711 = vpop.f32.mrf.mxu0
      %1712 = vdwg.mxu0
      %vm1713 = vsmask.f32 7424
      %v1714 = vrot.slane %v819, 1
      %v1715 = vor.u32 %v816, %v1714
      %v1716 = vrot.slane %v826, 1
      %v1717 = vsel %vm1713, %v1715, %v1716
      %v1718 = vor.u32 %v823, %v1716
      %v1719 = vrot.slane %v834, 1
      %v1720 = vsel %vm1713, %v1718, %v1719
      %v1721 = vor.u32 %v831, %v1719
      %v1722 = vrot.slane %v842, 1
      %v1723 = vsel %vm1713, %v1721, %v1722
      %v1724 = vor.u32 %v839, %v1722
      %v1725 = vrot.slane %v850, 1
      %v1726 = vsel %vm1713, %v1724, %v1725
      %v1727 = vor.u32 %v847, %v1725
      %v1728 = vrot.slane %v858, 1
      %v1729 = vsel %vm1713, %v1727, %v1728
      %v1730 = vor.u32 %v855, %v1728
      %v1731 = vrot.slane %v866, 1
      %v1732 = vsel %vm1713, %v1730, %v1731
      %v1733 = vor.u32 %v863, %v1731
      %v1734 = vrot.slane %v874, 1
      %v1735 = vsel %vm1713, %v1733, %v1734
      %v1736 = vor.u32 %v871, %v1734
      %v1737 = vrot.slane %v882, 1
      %v1738 = vsel %vm1713, %v1736, %v1737
      %v1739 = vor.u32 %v879, %v1737
      %v1740 = vrot.slane %v890, 1
      %v1741 = vsel %vm1713, %v1739, %v1740
      %v1742 = vor.u32 %v887, %v1740
      %v1743 = vrot.slane %v898, 1
      %v1744 = vsel %vm1713, %v1742, %v1743
      %v1745 = vor.u32 %v895, %v1743
      %v1746 = vrot.slane %v906, 1
      %v1747 = vsel %vm1713, %v1745, %v1746
      %v1748 = vor.u32 %v903, %v1746
      %v1749 = vrot.slane %v914, 1
      %v1750 = vsel %vm1713, %v1748, %v1749
      %v1751 = vor.u32 %v911, %v1749
      %v1752 = vrot.slane %v922, 1
      %v1753 = vsel %vm1713, %v1751, %v1752
      %v1754 = vor.u32 %v919, %v1752
      %v1755 = vrot.slane %v930, 1
      %v1756 = vsel %vm1713, %v1754, %v1755
      %v1757 = vor.u32 %v927, %v1755
      %v1759 = vshll.u32 %v396, 16
      %v1761 = vrot.slane %v1759, 1
      %v1762 = vsel %vm1713, %v1757, %v1761
      %vm1779 = vcmask 1047552
      %vm1780 = vmand %vm1779, %vm1713
      %v1781 = vsel %vm1780, 0, %v1714
      %v1782 = vadd.s32 %v782, 1
      %v1783 = vadd.s32 %v783, 1
      %v1784 = vadd.s32 %v784, 1
      %v1785 = vadd.s32 %v785, 1
      %v1786 = vadd.s32 %v786, 1
      %v1787 = vadd.s32 %v787, 1
      %v1788 = vadd.s32 %v788, 1
      %v1789 = vadd.s32 %v789, 1
      %v1790 = vadd.s32 %v790, 1
      %v1791 = vadd.s32 %v791, 1
      %v1792 = vadd.s32 %v792, 1
      %v1793 = vadd.s32 %v793, 1
      %v1794 = vadd.s32 %v794, 1
      %v1795 = vadd.s32 %v795, 1
      %v1796 = vadd.s32 %v796, 1
      %v1797 = vadd.s32 %v797, 1
      %v1798 = vadd.s32 %v798, 1
      %v1799 = vadd.s32 %v799, 1
      %v1800 = vadd.s32 %v800, 1
      %v1801 = vadd.s32 %v801, 1
      %v1802 = vadd.s32 %v802, 1
      %v1803 = vadd.s32 %v803, 1
      %v1804 = vadd.s32 %v804, 1
      %v1805 = vadd.s32 %v805, 1
      %v1806 = vadd.s32 %v806, 1
      %v1807 = vadd.s32 %v807, 1
      %v1808 = vadd.s32 %v808, 1
      %v1809 = vadd.s32 %v809, 1
      %v1810 = vadd.s32 %v810, 1
      %v1811 = vadd.s32 %v811, 1
      %v1812 = vadd.s32 %v812, 1
      %v1813 = vadd.s32 %v813, 1
      %vm1814 = vcmp.ge.s32.totalorder %v1782, 0
      %vm1815 = vcmp.ge.s32.totalorder %v1783, 0
      %vm1816 = vcmp.ge.s32.totalorder %v1784, 0
      %vm1817 = vcmp.ge.s32.totalorder %v1785, 0
      %vm1818 = vcmp.ge.s32.totalorder %v1786, 0
      %vm1819 = vcmp.ge.s32.totalorder %v1787, 0
      %vm1820 = vcmp.ge.s32.totalorder %v1788, 0
      %vm1821 = vcmp.ge.s32.totalorder %v1789, 0
      %vm1822 = vcmp.ge.s32.totalorder %v1790, 0
      %vm1823 = vcmp.ge.s32.totalorder %v1791, 0
      %vm1824 = vcmp.ge.s32.totalorder %v1792, 0
      %vm1825 = vcmp.ge.s32.totalorder %v1793, 0
      %vm1826 = vcmp.ge.s32.totalorder %v1794, 0
      %vm1827 = vcmp.ge.s32.totalorder %v1795, 0
      %vm1828 = vcmp.ge.s32.totalorder %v1796, 0
      %vm1829 = vcmp.ge.s32.totalorder %v1797, 0
      %vm1830 = vcmp.ge.s32.totalorder %v1798, 0
      %vm1831 = vcmp.ge.s32.totalorder %v1799, 0
      %vm1832 = vcmp.ge.s32.totalorder %v1800, 0
      %vm1833 = vcmp.ge.s32.totalorder %v1801, 0
      %vm1834 = vcmp.ge.s32.totalorder %v1802, 0
      %vm1835 = vcmp.ge.s32.totalorder %v1803, 0
      %vm1836 = vcmp.ge.s32.totalorder %v1804, 0
      %vm1837 = vcmp.ge.s32.totalorder %v1805, 0
      %vm1838 = vcmp.ge.s32.totalorder %v1806, 0
      %vm1839 = vcmp.ge.s32.totalorder %v1807, 0
      %vm1840 = vcmp.ge.s32.totalorder %v1808, 0
      %vm1841 = vcmp.ge.s32.totalorder %v1809, 0
      %vm1842 = vcmp.ge.s32.totalorder %v1810, 0
      %vm1843 = vcmp.ge.s32.totalorder %v1811, 0
      %vm1844 = vcmp.ge.s32.totalorder %v1812, 0
      %vm1845 = vcmp.ge.s32.totalorder %v1813, 0
      %vm1846 = vcmp.lt.s32.totalorder %v1782, 16
      %vm1847 = vcmp.lt.s32.totalorder %v1783, 16
      %vm1848 = vcmp.lt.s32.totalorder %v1784, 16
      %vm1849 = vcmp.lt.s32.totalorder %v1785, 16
      %vm1850 = vcmp.lt.s32.totalorder %v1786, 16
      %vm1851 = vcmp.lt.s32.totalorder %v1787, 16
      %vm1852 = vcmp.lt.s32.totalorder %v1788, 16
      %vm1853 = vcmp.lt.s32.totalorder %v1789, 16
      %vm1854 = vcmp.lt.s32.totalorder %v1790, 16
      %vm1855 = vcmp.lt.s32.totalorder %v1791, 16
      %vm1856 = vcmp.lt.s32.totalorder %v1792, 16
      %vm1857 = vcmp.lt.s32.totalorder %v1793, 16
      %vm1858 = vcmp.lt.s32.totalorder %v1794, 16
      %vm1859 = vcmp.lt.s32.totalorder %v1795, 16
      %vm1860 = vcmp.lt.s32.totalorder %v1796, 16
      %vm1861 = vcmp.lt.s32.totalorder %v1797, 16
      %vm1862 = vcmp.lt.s32.totalorder %v1798, 16
      %vm1863 = vcmp.lt.s32.totalorder %v1799, 16
      %vm1864 = vcmp.lt.s32.totalorder %v1800, 16
      %vm1865 = vcmp.lt.s32.totalorder %v1801, 16
      %vm1866 = vcmp.lt.s32.totalorder %v1802, 16
      %vm1867 = vcmp.lt.s32.totalorder %v1803, 16
      %vm1868 = vcmp.lt.s32.totalorder %v1804, 16
      %vm1869 = vcmp.lt.s32.totalorder %v1805, 16
      %vm1870 = vcmp.lt.s32.totalorder %v1806, 16
      %vm1871 = vcmp.lt.s32.totalorder %v1807, 16
      %vm1872 = vcmp.lt.s32.totalorder %v1808, 16
      %vm1873 = vcmp.lt.s32.totalorder %v1809, 16
      %vm1874 = vcmp.lt.s32.totalorder %v1810, 16
      %vm1875 = vcmp.lt.s32.totalorder %v1811, 16
      %vm1876 = vcmp.lt.s32.totalorder %v1812, 16
      %vm1877 = vcmp.lt.s32.totalorder %v1813, 16
      %vm1878 = vmand %vm1814, %vm1846
      %vm1879 = vmand %vm1815, %vm1847
      %vm1880 = vmand %vm1816, %vm1848
      %vm1881 = vmand %vm1817, %vm1849
      %vm1882 = vmand %vm1818, %vm1850
      %vm1883 = vmand %vm1819, %vm1851
      %vm1884 = vmand %vm1820, %vm1852
      %vm1885 = vmand %vm1821, %vm1853
      %vm1886 = vmand %vm1822, %vm1854
      %vm1887 = vmand %vm1823, %vm1855
      %vm1888 = vmand %vm1824, %vm1856
      %vm1889 = vmand %vm1825, %vm1857
      %vm1890 = vmand %vm1826, %vm1858
      %vm1891 = vmand %vm1827, %vm1859
      %vm1892 = vmand %vm1828, %vm1860
      %vm1893 = vmand %vm1829, %vm1861
      %vm1894 = vmand %vm1830, %vm1862
      %vm1895 = vmand %vm1831, %vm1863
      %vm1896 = vmand %vm1832, %vm1864
      %vm1897 = vmand %vm1833, %vm1865
      %vm1898 = vmand %vm1834, %vm1866
      %vm1899 = vmand %vm1835, %vm1867
      %vm1900 = vmand %vm1836, %vm1868
      %vm1901 = vmand %vm1837, %vm1869
      %vm1902 = vmand %vm1838, %vm1870
      %vm1903 = vmand %vm1839, %vm1871
      %vm1904 = vmand %vm1840, %vm1872
      %vm1905 = vmand %vm1841, %vm1873
      %vm1906 = vmand %vm1842, %vm1874
      %vm1907 = vmand %vm1843, %vm1875
      %vm1908 = vmand %vm1844, %vm1876
      %vm1909 = vmand %vm1845, %vm1877
      %v1910 = vsel %vm1878, 1, 0
      %v1911 = vsel %vm1879, 1, 0
      %v1912 = vsel %vm1880, 1, 0
      %v1913 = vsel %vm1881, 1, 0
      %v1914 = vsel %vm1882, 1, 0
      %v1915 = vsel %vm1883, 1, 0
      %v1916 = vsel %vm1884, 1, 0
      %v1917 = vsel %vm1885, 1, 0
      %v1918 = vsel %vm1886, 1, 0
      %v1919 = vsel %vm1887, 1, 0
      %v1920 = vsel %vm1888, 1, 0
      %v1921 = vsel %vm1889, 1, 0
      %v1922 = vsel %vm1890, 1, 0
      %v1923 = vsel %vm1891, 1, 0
      %v1924 = vsel %vm1892, 1, 0
      %v1925 = vsel %vm1893, 1, 0
      %v1926 = vsel %vm1894, 1, 0
      %v1927 = vsel %vm1895, 1, 0
      %v1928 = vsel %vm1896, 1, 0
      %v1929 = vsel %vm1897, 1, 0
      %v1930 = vsel %vm1898, 1, 0
      %v1931 = vsel %vm1899, 1, 0
      %v1932 = vsel %vm1900, 1, 0
      %v1933 = vsel %vm1901, 1, 0
      %v1934 = vsel %vm1902, 1, 0
      %v1935 = vsel %vm1903, 1, 0
      %v1936 = vsel %vm1904, 1, 0
      %v1937 = vsel %vm1905, 1, 0
      %v1938 = vsel %vm1906, 1, 0
      %v1939 = vsel %vm1907, 1, 0
      %v1940 = vsel %vm1908, 1, 0
      %v1941 = vsel %vm1909, 1, 0
      %vm1942 = vcmp.eq.s32.totalorder %v1910, 1
      %vm1943 = vcmp.eq.s32.totalorder %v1911, 1
      %vm1944 = vcmp.eq.s32.totalorder %v1912, 1
      %vm1945 = vcmp.eq.s32.totalorder %v1913, 1
      %vm1946 = vcmp.eq.s32.totalorder %v1914, 1
      %vm1947 = vcmp.eq.s32.totalorder %v1915, 1
      %vm1948 = vcmp.eq.s32.totalorder %v1916, 1
      %vm1949 = vcmp.eq.s32.totalorder %v1917, 1
      %vm1950 = vcmp.eq.s32.totalorder %v1918, 1
      %vm1951 = vcmp.eq.s32.totalorder %v1919, 1
      %vm1952 = vcmp.eq.s32.totalorder %v1920, 1
      %vm1953 = vcmp.eq.s32.totalorder %v1921, 1
      %vm1954 = vcmp.eq.s32.totalorder %v1922, 1
      %vm1955 = vcmp.eq.s32.totalorder %v1923, 1
      %vm1956 = vcmp.eq.s32.totalorder %v1924, 1
      %vm1957 = vcmp.eq.s32.totalorder %v1925, 1
      %vm1958 = vcmp.eq.s32.totalorder %v1926, 1
      %vm1959 = vcmp.eq.s32.totalorder %v1927, 1
      %vm1960 = vcmp.eq.s32.totalorder %v1928, 1
      %vm1961 = vcmp.eq.s32.totalorder %v1929, 1
      %vm1962 = vcmp.eq.s32.totalorder %v1930, 1
      %vm1963 = vcmp.eq.s32.totalorder %v1931, 1
      %vm1964 = vcmp.eq.s32.totalorder %v1932, 1
      %vm1965 = vcmp.eq.s32.totalorder %v1933, 1
      %vm1966 = vcmp.eq.s32.totalorder %v1934, 1
      %vm1967 = vcmp.eq.s32.totalorder %v1935, 1
      %vm1968 = vcmp.eq.s32.totalorder %v1936, 1
      %vm1969 = vcmp.eq.s32.totalorder %v1937, 1
      %vm1970 = vcmp.eq.s32.totalorder %v1938, 1
      %vm1971 = vcmp.eq.s32.totalorder %v1939, 1
      %vm1972 = vcmp.eq.s32.totalorder %v1940, 1
      %vm1973 = vcmp.eq.s32.totalorder %v1941, 1
      %vm1974 = vmpackc.low %vm1942, %vm1942
      %vm1975 = vmpackc.low %vm1943, %vm1943
      %vm1976 = vmpackc.low %vm1944, %vm1944
      %vm1977 = vmpackc.low %vm1945, %vm1945
      %vm1978 = vmpackc.low %vm1946, %vm1946
      %vm1979 = vmpackc.low %vm1947, %vm1947
      %vm1980 = vmpackc.low %vm1948, %vm1948
      %vm1981 = vmpackc.low %vm1949, %vm1949
      %vm1982 = vmpackc.low %vm1950, %vm1950
      %vm1983 = vmpackc.low %vm1951, %vm1951
      %vm1984 = vmpackc.low %vm1952, %vm1952
      %vm1985 = vmpackc.low %vm1953, %vm1953
      %vm1986 = vmpackc.low %vm1954, %vm1954
      %vm1987 = vmpackc.low %vm1955, %vm1955
      %vm1988 = vmpackc.low %vm1956, %vm1956
      %vm1989 = vmpackc.low %vm1957, %vm1957
      %vm1990 = vmpackc.low %vm1958, %vm1958
      %vm1991 = vmpackc.low %vm1959, %vm1959
      %vm1992 = vmpackc.low %vm1960, %vm1960
      %vm1993 = vmpackc.low %vm1961, %vm1961
      %vm1994 = vmpackc.low %vm1962, %vm1962
      %vm1995 = vmpackc.low %vm1963, %vm1963
      %vm1996 = vmpackc.low %vm1964, %vm1964
      %vm1997 = vmpackc.low %vm1965, %vm1965
      %vm1998 = vmpackc.low %vm1966, %vm1966
      %vm1999 = vmpackc.low %vm1967, %vm1967
      %vm2000 = vmpackc.low %vm1968, %vm1968
      %vm2001 = vmpackc.low %vm1969, %vm1969
      %vm2002 = vmpackc.low %vm1970, %vm1970
      %vm2003 = vmpackc.low %vm1971, %vm1971
      %vm2004 = vmpackc.low %vm1972, %vm1972
      %vm2005 = vmpackc.low %vm1973, %vm1973
      %v2006 = vsel %vm1974, 65537, 0
      %v2007 = vsel %vm1975, 65537, 0
      %v2008 = vsel %vm1976, 65537, 0
      %v2009 = vsel %vm1977, 65537, 0
      %v2010 = vsel %vm1978, 65537, 0
      %v2011 = vsel %vm1979, 65537, 0
      %v2012 = vsel %vm1980, 65537, 0
      %v2013 = vsel %vm1981, 65537, 0
      %v2014 = vsel %vm1982, 65537, 0
      %v2015 = vsel %vm1983, 65537, 0
      %v2016 = vsel %vm1984, 65537, 0
      %v2017 = vsel %vm1985, 65537, 0
      %v2018 = vsel %vm1986, 65537, 0
      %v2019 = vsel %vm1987, 65537, 0
      %v2020 = vsel %vm1988, 65537, 0
      %v2021 = vsel %vm1989, 65537, 0
      %v2022 = vsel %vm1990, 65537, 0
      %v2023 = vsel %vm1991, 65537, 0
      %v2024 = vsel %vm1992, 65537, 0
      %v2025 = vsel %vm1993, 65537, 0
      %v2026 = vsel %vm1994, 65537, 0
      %v2027 = vsel %vm1995, 65537, 0
      %v2028 = vsel %vm1996, 65537, 0
      %v2029 = vsel %vm1997, 65537, 0
      %v2030 = vsel %vm1998, 65537, 0
      %v2031 = vsel %vm1999, 65537, 0
      %v2032 = vsel %vm2000, 65537, 0
      %v2033 = vsel %vm2001, 65537, 0
      %v2034 = vsel %vm2002, 65537, 0
      %v2035 = vsel %vm2003, 65537, 0
      %v2036 = vsel %vm2004, 65537, 0
      %v2037 = vsel %vm2005, 65537, 0
      %v2038 = vunpack.c.l.b16 %v2006
      %v2039 = vunpack.c.l.b16 %v2007
      %v2040 = vunpack.c.l.b16 %v2008
      %v2041 = vunpack.c.l.b16 %v2009
      %v2042 = vunpack.c.l.b16 %v2010
      %v2043 = vunpack.c.l.b16 %v2011
      %v2044 = vunpack.c.l.b16 %v2012
      %v2045 = vunpack.c.l.b16 %v2013
      %v2046 = vunpack.c.l.b16 %v2014
      %v2047 = vunpack.c.l.b16 %v2015
      %v2048 = vunpack.c.l.b16 %v2016
      %v2049 = vunpack.c.l.b16 %v2017
      %v2050 = vunpack.c.l.b16 %v2018
      %v2051 = vunpack.c.l.b16 %v2019
      %v2052 = vunpack.c.l.b16 %v2020
      %v2053 = vunpack.c.l.b16 %v2021
      %v2054 = vunpack.c.l.b16 %v2022
      %v2055 = vunpack.c.l.b16 %v2023
      %v2056 = vunpack.c.l.b16 %v2024
      %v2057 = vunpack.c.l.b16 %v2025
      %v2058 = vunpack.c.l.b16 %v2026
      %v2059 = vunpack.c.l.b16 %v2027
      %v2060 = vunpack.c.l.b16 %v2028
      %v2061 = vunpack.c.l.b16 %v2029
      %v2062 = vunpack.c.l.b16 %v2030
      %v2063 = vunpack.c.l.b16 %v2031
      %v2064 = vunpack.c.l.b16 %v2032
      %v2065 = vunpack.c.l.b16 %v2033
      %v2066 = vunpack.c.l.b16 %v2034
      %v2067 = vunpack.c.l.b16 %v2035
      %v2068 = vunpack.c.l.b16 %v2036
      %v2069 = vunpack.c.l.b16 %v2037
      %v2070 = vpack.c.b16 %v2039, %v2038
      %v2071 = vpack.c.b16 %v2041, %v2040
      %v2072 = vpack.c.b16 %v2043, %v2042
      %v2073 = vpack.c.b16 %v2045, %v2044
      %v2074 = vpack.c.b16 %v2047, %v2046
      %v2075 = vpack.c.b16 %v2049, %v2048
      %v2076 = vpack.c.b16 %v2051, %v2050
      %v2077 = vpack.c.b16 %v2053, %v2052
      %v2078 = vpack.c.b16 %v2055, %v2054
      %v2079 = vpack.c.b16 %v2057, %v2056
      %v2080 = vpack.c.b16 %v2059, %v2058
      %v2081 = vpack.c.b16 %v2061, %v2060
      %v2082 = vpack.c.b16 %v2063, %v2062
      %v2083 = vpack.c.b16 %v2065, %v2064
      %v2084 = vpack.c.b16 %v2067, %v2066
      %v2085 = vpack.c.b16 %v2069, %v2068
      %vm2086 = vcmp.ne.s16.totalorder %v2070, 0
      %vm2087 = vcmp.ne.s16.totalorder %v2071, 0
      %vm2088 = vcmp.ne.s16.totalorder %v2072, 0
      %vm2089 = vcmp.ne.s16.totalorder %v2073, 0
      %vm2090 = vcmp.ne.s16.totalorder %v2074, 0
      %vm2091 = vcmp.ne.s16.totalorder %v2075, 0
      %vm2092 = vcmp.ne.s16.totalorder %v2076, 0
      %vm2093 = vcmp.ne.s16.totalorder %v2077, 0
      %vm2094 = vcmp.ne.s16.totalorder %v2078, 0
      %vm2095 = vcmp.ne.s16.totalorder %v2079, 0
      %vm2096 = vcmp.ne.s16.totalorder %v2080, 0
      %vm2097 = vcmp.ne.s16.totalorder %v2081, 0
      %vm2098 = vcmp.ne.s16.totalorder %v2082, 0
      %vm2099 = vcmp.ne.s16.totalorder %v2083, 0
      %vm2100 = vcmp.ne.s16.totalorder %v2084, 0
      %vm2101 = vcmp.ne.s16.totalorder %v2085, 0
      %v2102 = vsel %vm2086, %v1781, 0
      %v2103 = vsel %vm2087, %v1717, 0
      %v2104 = vsel %vm2088, %v1720, 0
      %v2105 = vsel %vm2089, %v1723, 0
      %v2106 = vsel %vm2090, %v1726, 0
      %v2107 = vsel %vm2091, %v1729, 0
      %v2108 = vsel %vm2092, %v1732, 0
      %v2109 = vsel %vm2093, %v1735, 0
      %v2110 = vsel %vm2094, %v1738, 0
      %v2111 = vsel %vm2095, %v1741, 0
      %v2112 = vsel %vm2096, %v1744, 0
      %v2113 = vsel %vm2097, %v1747, 0
      %v2114 = vsel %vm2098, %v1750, 0
      %v2115 = vsel %vm2099, %v1753, 0
      %v2116 = vsel %vm2100, %v1756, 0
      %v2117 = vsel %vm2101, %v1762, 0
      %s2118 = scalar_lea.vmem %s3, 32
      %v2119 = vld [vmem:[%s2118] sm:$0xf]
      %v2120 = vld [vmem:[%s2118 + $0x4] sm:$0xf]
      %v2121 = vld [vmem:[%s2118 + $0x8] sm:$0xf]
      %v2122 = vld [vmem:[%s2118 + $0xc] sm:$0xf]
      %v2127 = vunpack.c.l.b16 %v2119
      %v2128 = vunpack.c.l.b16 %v2120
      %v2129 = vunpack.c.l.b16 %v2121
      %v2130 = vunpack.c.l.b16 %v2122
      %v2131 = vpack.c.b16 %v2128, %v2127
      %v2132 = vpack.c.b16 %v2130, %v2129
      %v2136 = vsel %vm1300, %v2102, 0
      %v2139 = vsel %vm1300, %v2103, 0
      %v2142 = vsel %vm1300, %v2104, 0
      %v2145 = vsel %vm1300, %v2105, 0
      %v2148 = vsel %vm1300, %v2106, 0
      %v2151 = vsel %vm1300, %v2107, 0
      %v2154 = vsel %vm1300, %v2108, 0
      %v2157 = vsel %vm1300, %v2109, 0
      %v2160 = vsel %vm1300, %v2110, 0
      %v2163 = vsel %vm1300, %v2111, 0
      %v2166 = vsel %vm1300, %v2112, 0
      %v2169 = vsel %vm1300, %v2113, 0
      %v2172 = vsel %vm1300, %v2114, 0
      %v2175 = vsel %vm1300, %v2115, 0
      %v2178 = vsel %vm1300, %v2116, 0
      %v2181 = vsel %vm1300, %v2117, 0
      %2183 = vmatprep.subr.bf16.mxu0 0
      %2184 = vmatpush1.bf16.msra.mxu0 0
      %2185 = vmatprep.subr.bf16.mxu0 0
      %2186 = vmatpush1.bf16.msra.mxu0 0
      %2187 = vmatprep.subr.bf16.mxu0 0
      %2188 = vmatpush1.bf16.msra.mxu0 0
      %2189 = vmatprep.subr.bf16.mxu0 0
      %2190 = vmatpush1.bf16.msra.mxu0 0
      %2191 = vmatprep.subr.bf16.mxu0 0
      %2192 = vmatpush1.bf16.msra.mxu0 0
      %2193 = vmatprep.subr.bf16.mxu0 0
      %2194 = vmatpush1.bf16.msra.mxu0 0
      %2195 = vmatprep.subr.bf16.mxu0 0
      %2196 = vmatpush1.bf16.msra.mxu0 %v2132
      %2197 = vmatprep.subr.bf16.mxu0 0
      %2198 = vmatpush1.bf16.msra.mxu0 %v2131
      %2199 = vmatprep.subr.bf16.mxu0 0
      %2200 = vmatpush2.bf16.msra.mxu0 0
      %2201 = vmatprep.subr.bf16.mxu0 0
      %2202 = vmatpush2.bf16.msra.mxu0 0
      %2203 = vmatprep.subr.bf16.mxu0 0
      %2204 = vmatpush2.bf16.msra.mxu0 0
      %2205 = vmatprep.subr.bf16.mxu0 0
      %2206 = vmatpush2.bf16.msra.mxu0 0
      %2207 = vmatprep.subr.bf16.mxu0 0
      %2208 = vmatpush2.bf16.msra.mxu0 0
      %2209 = vmatprep.subr.bf16.mxu0 0
      %2210 = vmatpush2.bf16.msra.mxu0 0
      %2211 = vmatprep.subr.bf16.mxu0 0
      %2212 = vmatpush2.bf16.msra.mxu0 0
      %2213 = vmatprep.subr.bf16.mxu0 0
      %2214 = vmatpush2.bf16.msra.mxu0 0
      %2215 = vmatprep.mubr.bf16.mxu0 0
      %2216 = vmatmul.mubr.bf16.gmra.mxu0 %v2136
      %v2217 = vpop.f32.mrf.mxu0
      %v2218 = vadd.f32 0.0, %v2217
      %v2219 = vpop.f32.mrf.mxu0
      %v2220 = vpop.f32.mrf.mxu0
      %v2221 = vadd.f32 0.0, %v2220
      %v2222 = vpop.f32.mrf.mxu0
      %2223 = vmatprep.mubr.bf16.mxu0 0
      %2224 = vmatmul.mubr.bf16.gmra.mxu0 %v2139
      %v2225 = vpop.f32.mrf.mxu0
      %v2226 = vadd.f32 0.0, %v2225
      %v2227 = vpop.f32.mrf.mxu0
      %v2228 = vpop.f32.mrf.mxu0
      %v2229 = vadd.f32 0.0, %v2228
      %v2230 = vpop.f32.mrf.mxu0
      %2231 = vmatprep.mubr.bf16.mxu0 0
      %2232 = vmatmul.mubr.bf16.gmra.mxu0 %v2142
      %v2233 = vpop.f32.mrf.mxu0
      %v2234 = vadd.f32 0.0, %v2233
      %v2235 = vpop.f32.mrf.mxu0
      %v2236 = vpop.f32.mrf.mxu0
      %v2237 = vadd.f32 0.0, %v2236
      %v2238 = vpop.f32.mrf.mxu0
      %2239 = vmatprep.mubr.bf16.mxu0 0
      %2240 = vmatmul.mubr.bf16.gmra.mxu0 %v2145
      %v2241 = vpop.f32.mrf.mxu0
      %v2242 = vadd.f32 0.0, %v2241
      %v2243 = vpop.f32.mrf.mxu0
      %v2244 = vpop.f32.mrf.mxu0
      %v2245 = vadd.f32 0.0, %v2244
      %v2246 = vpop.f32.mrf.mxu0
      %2247 = vmatprep.mubr.bf16.mxu0 0
      %2248 = vmatmul.mubr.bf16.gmra.mxu0 %v2148
      %v2249 = vpop.f32.mrf.mxu0
      %v2250 = vadd.f32 0.0, %v2249
      %v2251 = vpop.f32.mrf.mxu0
      %v2252 = vpop.f32.mrf.mxu0
      %v2253 = vadd.f32 0.0, %v2252
      %v2254 = vpop.f32.mrf.mxu0
      %2255 = vmatprep.mubr.bf16.mxu0 0
      %2256 = vmatmul.mubr.bf16.gmra.mxu0 %v2151
      %v2257 = vpop.f32.mrf.mxu0
      %v2258 = vadd.f32 0.0, %v2257
      %v2259 = vpop.f32.mrf.mxu0
      %v2260 = vpop.f32.mrf.mxu0
      %v2261 = vadd.f32 0.0, %v2260
      %v2262 = vpop.f32.mrf.mxu0
      %2263 = vmatprep.mubr.bf16.mxu0 0
      %2264 = vmatmul.mubr.bf16.gmra.mxu0 %v2154
      %v2265 = vpop.f32.mrf.mxu0
      %v2266 = vadd.f32 0.0, %v2265
      %v2267 = vpop.f32.mrf.mxu0
      %v2268 = vpop.f32.mrf.mxu0
      %v2269 = vadd.f32 0.0, %v2268
      %v2270 = vpop.f32.mrf.mxu0
      %2271 = vmatprep.mubr.bf16.mxu0 0
      %2272 = vmatmul.mubr.bf16.gmra.mxu0 %v2157
      %v2273 = vpop.f32.mrf.mxu0
      %v2274 = vadd.f32 0.0, %v2273
      %v2275 = vpop.f32.mrf.mxu0
      %v2276 = vpop.f32.mrf.mxu0
      %v2277 = vadd.f32 0.0, %v2276
      %v2278 = vpop.f32.mrf.mxu0
      %2279 = vmatprep.mubr.bf16.mxu0 0
      %2280 = vmatmul.mubr.bf16.gmra.mxu0 %v2160
      %v2281 = vpop.f32.mrf.mxu0
      %v2282 = vadd.f32 0.0, %v2281
      %v2283 = vpop.f32.mrf.mxu0
      %v2284 = vpop.f32.mrf.mxu0
      %v2285 = vadd.f32 0.0, %v2284
      %v2286 = vpop.f32.mrf.mxu0
      %2287 = vmatprep.mubr.bf16.mxu0 0
      %2288 = vmatmul.mubr.bf16.gmra.mxu0 %v2163
      %v2289 = vpop.f32.mrf.mxu0
      %v2290 = vadd.f32 0.0, %v2289
      %v2291 = vpop.f32.mrf.mxu0
      %v2292 = vpop.f32.mrf.mxu0
      %v2293 = vadd.f32 0.0, %v2292
      %v2294 = vpop.f32.mrf.mxu0
      %2295 = vmatprep.mubr.bf16.mxu0 0
      %2296 = vmatmul.mubr.bf16.gmra.mxu0 %v2166
      %v2297 = vpop.f32.mrf.mxu0
      %v2298 = vadd.f32 0.0, %v2297
      %v2299 = vpop.f32.mrf.mxu0
      %v2300 = vpop.f32.mrf.mxu0
      %v2301 = vadd.f32 0.0, %v2300
      %v2302 = vpop.f32.mrf.mxu0
      %2303 = vmatprep.mubr.bf16.mxu0 0
      %2304 = vmatmul.mubr.bf16.gmra.mxu0 %v2169
      %v2305 = vpop.f32.mrf.mxu0
      %v2306 = vadd.f32 0.0, %v2305
      %v2307 = vpop.f32.mrf.mxu0
      %v2308 = vpop.f32.mrf.mxu0
      %v2309 = vadd.f32 0.0, %v2308
      %v2310 = vpop.f32.mrf.mxu0
      %2311 = vmatprep.mubr.bf16.mxu0 0
      %2312 = vmatmul.mubr.bf16.gmra.mxu0 %v2172
      %v2313 = vpop.f32.mrf.mxu0
      %v2314 = vadd.f32 0.0, %v2313
      %v2315 = vpop.f32.mrf.mxu0
      %v2316 = vpop.f32.mrf.mxu0
      %v2317 = vadd.f32 0.0, %v2316
      %v2318 = vpop.f32.mrf.mxu0
      %2319 = vmatprep.mubr.bf16.mxu0 0
      %2320 = vmatmul.mubr.bf16.gmra.mxu0 %v2175
      %v2321 = vpop.f32.mrf.mxu0
      %v2322 = vadd.f32 0.0, %v2321
      %v2323 = vpop.f32.mrf.mxu0
      %v2324 = vpop.f32.mrf.mxu0
      %v2325 = vadd.f32 0.0, %v2324
      %v2326 = vpop.f32.mrf.mxu0
      %2327 = vmatprep.mubr.bf16.mxu0 0
      %2328 = vmatmul.mubr.bf16.gmra.mxu0 %v2178
      %v2329 = vpop.f32.mrf.mxu0
      %v2330 = vadd.f32 0.0, %v2329
      %v2331 = vpop.f32.mrf.mxu0
      %v2332 = vpop.f32.mrf.mxu0
      %v2333 = vadd.f32 0.0, %v2332
      %v2334 = vpop.f32.mrf.mxu0
      %2335 = vmatprep.mubr.bf16.mxu0 0
      %2336 = vmatmul.mubr.bf16.gmra.mxu0 %v2181
      %v2337 = vpop.f32.mrf.mxu0
      %v2338 = vadd.f32 0.0, %v2337
      %v2339 = vpop.f32.mrf.mxu0
      %v2340 = vpop.f32.mrf.mxu0
      %v2341 = vadd.f32 0.0, %v2340
      %v2342 = vpop.f32.mrf.mxu0
      %2343 = vdwg.mxu0
      %v2344 = vadd.f32 %v1587, %v2218
      %v2345 = vadd.f32 %v1590, %v2221
      %v2346 = vadd.f32 %v1595, %v2226
      %v2347 = vadd.f32 %v1598, %v2229
      %v2348 = vadd.f32 %v1603, %v2234
      %v2349 = vadd.f32 %v1606, %v2237
      %v2350 = vadd.f32 %v1611, %v2242
      %v2351 = vadd.f32 %v1614, %v2245
      %v2352 = vadd.f32 %v1619, %v2250
      %v2353 = vadd.f32 %v1622, %v2253
      %v2354 = vadd.f32 %v1627, %v2258
      %v2355 = vadd.f32 %v1630, %v2261
      %v2356 = vadd.f32 %v1635, %v2266
      %v2357 = vadd.f32 %v1638, %v2269
      %v2358 = vadd.f32 %v1643, %v2274
      %v2359 = vadd.f32 %v1646, %v2277
      %v2360 = vadd.f32 %v1651, %v2282
      %v2361 = vadd.f32 %v1654, %v2285
      %v2362 = vadd.f32 %v1659, %v2290
      %v2363 = vadd.f32 %v1662, %v2293
      %v2364 = vadd.f32 %v1667, %v2298
      %v2365 = vadd.f32 %v1670, %v2301
      %v2366 = vadd.f32 %v1675, %v2306
      %v2367 = vadd.f32 %v1678, %v2309
      %v2368 = vadd.f32 %v1683, %v2314
      %v2369 = vadd.f32 %v1686, %v2317
      %v2370 = vadd.f32 %v1691, %v2322
      %v2371 = vadd.f32 %v1694, %v2325
      %v2372 = vadd.f32 %v1699, %v2330
      %v2373 = vadd.f32 %v1702, %v2333
      %v2374 = vadd.f32 %v1707, %v2338
      %v2375 = vadd.f32 %v1710, %v2341
      %v2376 = vshrl.u32 %v396, 16
      %v2378 = vrot.slane %v2376, 7
      %v2379 = vor.u32 %v2378, %v1759
      %v2380 = vsel %vm814, %v929, %v2379
      %vm2382 = vmpackc.low %vm1112, %vm1112
      %vm2383 = vmpackc.low %vm1113, %vm1113
      %v2384 = vsel %vm2382, 65537, 0
      %v2385 = vsel %vm2383, 65537, 0
      %v2386 = vunpack.c.l.b16 %v2384
      %v2387 = vunpack.c.l.b16 %v2385
      %v2388 = vpack.c.b16 %v2387, %v2386
      %vm2389 = vcmp.ne.s16.totalorder %v2388, 0
      %v2390 = vsel %vm2389, %v951, 0
      %v2391 = vsel %vm1249, %v829, 0
      %v2392 = vsel %vm1250, %v837, 0
      %v2393 = vsel %vm1251, %v845, 0
      %v2394 = vsel %vm1252, %v853, 0
      %v2395 = vsel %vm1253, %v861, 0
      %v2396 = vsel %vm1254, %v869, 0
      %v2397 = vsel %vm1255, %v877, 0
      %v2398 = vsel %vm1256, %v885, 0
      %v2399 = vsel %vm1257, %v893, 0
      %v2400 = vsel %vm1258, %v901, 0
      %v2401 = vsel %vm1259, %v909, 0
      %v2402 = vsel %vm1260, %v917, 0
      %v2403 = vsel %vm1261, %v925, 0
      %v2404 = vsel %vm1262, %v933, 0
      %v2405 = vsel %vm1263, %v2380, 0
      %s2406 = scalar_lea.vmem %s3, 48
      %v2407 = vld [vmem:[%s2406] sm:$0xf]
      %v2408 = vld [vmem:[%s2406 + $0x4] sm:$0xf]
      %v2409 = vld [vmem:[%s2406 + $0x8] sm:$0xf]
      %v2410 = vld [vmem:[%s2406 + $0xc] sm:$0xf]
      %v2415 = vunpack.c.l.b16 %v2407
      %v2416 = vunpack.c.l.b16 %v2408
      %v2417 = vunpack.c.l.b16 %v2409
      %v2418 = vunpack.c.l.b16 %v2410
      %v2419 = vpack.c.b16 %v2416, %v2415
      %v2420 = vpack.c.b16 %v2418, %v2417
      %v2424 = vsel %vm1300, %v2390, 0
      %v2427 = vsel %vm1300, %v2391, 0
      %v2430 = vsel %vm1300, %v2392, 0
      %v2433 = vsel %vm1300, %v2393, 0
      %v2436 = vsel %vm1300, %v2394, 0
      %v2439 = vsel %vm1300, %v2395, 0
      %v2442 = vsel %vm1300, %v2396, 0
      %v2445 = vsel %vm1300, %v2397, 0
      %v2448 = vsel %vm1300, %v2398, 0
      %v2451 = vsel %vm1300, %v2399, 0
      %v2454 = vsel %vm1300, %v2400, 0
      %v2457 = vsel %vm1300, %v2401, 0
      %v2460 = vsel %vm1300, %v2402, 0
      %v2463 = vsel %vm1300, %v2403, 0
      %v2466 = vsel %vm1300, %v2404, 0
      %v2469 = vsel %vm1300, %v2405, 0
      %2471 = vmatprep.subr.bf16.mxu0 0
      %2472 = vmatpush1.bf16.msra.mxu0 0
      %2473 = vmatprep.subr.bf16.mxu0 0
      %2474 = vmatpush1.bf16.msra.mxu0 0
      %2475 = vmatprep.subr.bf16.mxu0 0
      %2476 = vmatpush1.bf16.msra.mxu0 0
      %2477 = vmatprep.subr.bf16.mxu0 0
      %2478 = vmatpush1.bf16.msra.mxu0 0
      %2479 = vmatprep.subr.bf16.mxu0 0
      %2480 = vmatpush1.bf16.msra.mxu0 0
      %2481 = vmatprep.subr.bf16.mxu0 0
      %2482 = vmatpush1.bf16.msra.mxu0 0
      %2483 = vmatprep.subr.bf16.mxu0 0
      %2484 = vmatpush1.bf16.msra.mxu0 %v2420
      %2485 = vmatprep.subr.bf16.mxu0 0
      %2486 = vmatpush1.bf16.msra.mxu0 %v2419
      %2487 = vmatprep.subr.bf16.mxu0 0
      %2488 = vmatpush2.bf16.msra.mxu0 0
      %2489 = vmatprep.subr.bf16.mxu0 0
      %2490 = vmatpush2.bf16.msra.mxu0 0
      %2491 = vmatprep.subr.bf16.mxu0 0
      %2492 = vmatpush2.bf16.msra.mxu0 0
      %2493 = vmatprep.subr.bf16.mxu0 0
      %2494 = vmatpush2.bf16.msra.mxu0 0
      %2495 = vmatprep.subr.bf16.mxu0 0
      %2496 = vmatpush2.bf16.msra.mxu0 0
      %2497 = vmatprep.subr.bf16.mxu0 0
      %2498 = vmatpush2.bf16.msra.mxu0 0
      %2499 = vmatprep.subr.bf16.mxu0 0
      %2500 = vmatpush2.bf16.msra.mxu0 0
      %2501 = vmatprep.subr.bf16.mxu0 0
      %2502 = vmatpush2.bf16.msra.mxu0 0
      %2503 = vmatprep.mubr.bf16.mxu0 0
      %2504 = vmatmul.mubr.bf16.gmra.mxu0 %v2424
      %v2505 = vpop.f32.mrf.mxu0
      %v2506 = vadd.f32 0.0, %v2505
      %v2507 = vpop.f32.mrf.mxu0
      %v2508 = vpop.f32.mrf.mxu0
      %v2509 = vadd.f32 0.0, %v2508
      %v2510 = vpop.f32.mrf.mxu0
      %2511 = vmatprep.mubr.bf16.mxu0 0
      %2512 = vmatmul.mubr.bf16.gmra.mxu0 %v2427
      %v2513 = vpop.f32.mrf.mxu0
      %v2514 = vadd.f32 0.0, %v2513
      %v2515 = vpop.f32.mrf.mxu0
      %v2516 = vpop.f32.mrf.mxu0
      %v2517 = vadd.f32 0.0, %v2516
      %v2518 = vpop.f32.mrf.mxu0
      %2519 = vmatprep.mubr.bf16.mxu0 0
      %2520 = vmatmul.mubr.bf16.gmra.mxu0 %v2430
      %v2521 = vpop.f32.mrf.mxu0
      %v2522 = vadd.f32 0.0, %v2521
      %v2523 = vpop.f32.mrf.mxu0
      %v2524 = vpop.f32.mrf.mxu0
      %v2525 = vadd.f32 0.0, %v2524
      %v2526 = vpop.f32.mrf.mxu0
      %2527 = vmatprep.mubr.bf16.mxu0 0
      %2528 = vmatmul.mubr.bf16.gmra.mxu0 %v2433
      %v2529 = vpop.f32.mrf.mxu0
      %v2530 = vadd.f32 0.0, %v2529
      %v2531 = vpop.f32.mrf.mxu0
      %v2532 = vpop.f32.mrf.mxu0
      %v2533 = vadd.f32 0.0, %v2532
      %v2534 = vpop.f32.mrf.mxu0
      %2535 = vmatprep.mubr.bf16.mxu0 0
      %2536 = vmatmul.mubr.bf16.gmra.mxu0 %v2436
      %v2537 = vpop.f32.mrf.mxu0
      %v2538 = vadd.f32 0.0, %v2537
      %v2539 = vpop.f32.mrf.mxu0
      %v2540 = vpop.f32.mrf.mxu0
      %v2541 = vadd.f32 0.0, %v2540
      %v2542 = vpop.f32.mrf.mxu0
      %2543 = vmatprep.mubr.bf16.mxu0 0
      %2544 = vmatmul.mubr.bf16.gmra.mxu0 %v2439
      %v2545 = vpop.f32.mrf.mxu0
      %v2546 = vadd.f32 0.0, %v2545
      %v2547 = vpop.f32.mrf.mxu0
      %v2548 = vpop.f32.mrf.mxu0
      %v2549 = vadd.f32 0.0, %v2548
      %v2550 = vpop.f32.mrf.mxu0
      %2551 = vmatprep.mubr.bf16.mxu0 0
      %2552 = vmatmul.mubr.bf16.gmra.mxu0 %v2442
      %v2553 = vpop.f32.mrf.mxu0
      %v2554 = vadd.f32 0.0, %v2553
      %v2555 = vpop.f32.mrf.mxu0
      %v2556 = vpop.f32.mrf.mxu0
      %v2557 = vadd.f32 0.0, %v2556
      %v2558 = vpop.f32.mrf.mxu0
      %2559 = vmatprep.mubr.bf16.mxu0 0
      %2560 = vmatmul.mubr.bf16.gmra.mxu0 %v2445
      %v2561 = vpop.f32.mrf.mxu0
      %v2562 = vadd.f32 0.0, %v2561
      %v2563 = vpop.f32.mrf.mxu0
      %v2564 = vpop.f32.mrf.mxu0
      %v2565 = vadd.f32 0.0, %v2564
      %v2566 = vpop.f32.mrf.mxu0
      %2567 = vmatprep.mubr.bf16.mxu0 0
      %2568 = vmatmul.mubr.bf16.gmra.mxu0 %v2448
      %v2569 = vpop.f32.mrf.mxu0
      %v2570 = vadd.f32 0.0, %v2569
      %v2571 = vpop.f32.mrf.mxu0
      %v2572 = vpop.f32.mrf.mxu0
      %v2573 = vadd.f32 0.0, %v2572
      %v2574 = vpop.f32.mrf.mxu0
      %2575 = vmatprep.mubr.bf16.mxu0 0
      %2576 = vmatmul.mubr.bf16.gmra.mxu0 %v2451
      %v2577 = vpop.f32.mrf.mxu0
      %v2578 = vadd.f32 0.0, %v2577
      %v2579 = vpop.f32.mrf.mxu0
      %v2580 = vpop.f32.mrf.mxu0
      %v2581 = vadd.f32 0.0, %v2580
      %v2582 = vpop.f32.mrf.mxu0
      %2583 = vmatprep.mubr.bf16.mxu0 0
      %2584 = vmatmul.mubr.bf16.gmra.mxu0 %v2454
      %v2585 = vpop.f32.mrf.mxu0
      %v2586 = vadd.f32 0.0, %v2585
      %v2587 = vpop.f32.mrf.mxu0
      %v2588 = vpop.f32.mrf.mxu0
      %v2589 = vadd.f32 0.0, %v2588
      %v2590 = vpop.f32.mrf.mxu0
      %2591 = vmatprep.mubr.bf16.mxu0 0
      %2592 = vmatmul.mubr.bf16.gmra.mxu0 %v2457
      %v2593 = vpop.f32.mrf.mxu0
      %v2594 = vadd.f32 0.0, %v2593
      %v2595 = vpop.f32.mrf.mxu0
      %v2596 = vpop.f32.mrf.mxu0
      %v2597 = vadd.f32 0.0, %v2596
      %v2598 = vpop.f32.mrf.mxu0
      %2599 = vmatprep.mubr.bf16.mxu0 0
      %2600 = vmatmul.mubr.bf16.gmra.mxu0 %v2460
      %v2601 = vpop.f32.mrf.mxu0
      %v2602 = vadd.f32 0.0, %v2601
      %v2603 = vpop.f32.mrf.mxu0
      %v2604 = vpop.f32.mrf.mxu0
      %v2605 = vadd.f32 0.0, %v2604
      %v2606 = vpop.f32.mrf.mxu0
      %2607 = vmatprep.mubr.bf16.mxu0 0
      %2608 = vmatmul.mubr.bf16.gmra.mxu0 %v2463
      %v2609 = vpop.f32.mrf.mxu0
      %v2610 = vadd.f32 0.0, %v2609
      %v2611 = vpop.f32.mrf.mxu0
      %v2612 = vpop.f32.mrf.mxu0
      %v2613 = vadd.f32 0.0, %v2612
      %v2614 = vpop.f32.mrf.mxu0
      %2615 = vmatprep.mubr.bf16.mxu0 0
      %2616 = vmatmul.mubr.bf16.gmra.mxu0 %v2466
      %v2617 = vpop.f32.mrf.mxu0
      %v2618 = vadd.f32 0.0, %v2617
      %v2619 = vpop.f32.mrf.mxu0
      %v2620 = vpop.f32.mrf.mxu0
      %v2621 = vadd.f32 0.0, %v2620
      %v2622 = vpop.f32.mrf.mxu0
      %2623 = vmatprep.mubr.bf16.mxu0 0
      %2624 = vmatmul.mubr.bf16.gmra.mxu0 %v2469
      %v2625 = vpop.f32.mrf.mxu0
      %v2626 = vadd.f32 0.0, %v2625
      %v2627 = vpop.f32.mrf.mxu0
      %v2628 = vpop.f32.mrf.mxu0
      %v2629 = vadd.f32 0.0, %v2628
      %v2630 = vpop.f32.mrf.mxu0
      %2631 = vdwg.mxu0
      %v2632 = vadd.f32 %v2344, %v2506
      %v2633 = vadd.f32 %v2345, %v2509
      %v2634 = vadd.f32 %v2346, %v2514
      %v2635 = vadd.f32 %v2347, %v2517
      %v2636 = vadd.f32 %v2348, %v2522
      %v2637 = vadd.f32 %v2349, %v2525
      %v2638 = vadd.f32 %v2350, %v2530
      %v2639 = vadd.f32 %v2351, %v2533
      %v2640 = vadd.f32 %v2352, %v2538
      %v2641 = vadd.f32 %v2353, %v2541
      %v2642 = vadd.f32 %v2354, %v2546
      %v2643 = vadd.f32 %v2355, %v2549
      %v2644 = vadd.f32 %v2356, %v2554
      %v2645 = vadd.f32 %v2357, %v2557
      %v2646 = vadd.f32 %v2358, %v2562
      %v2647 = vadd.f32 %v2359, %v2565
      %v2648 = vadd.f32 %v2360, %v2570
      %v2649 = vadd.f32 %v2361, %v2573
      %v2650 = vadd.f32 %v2362, %v2578
      %v2651 = vadd.f32 %v2363, %v2581
      %v2652 = vadd.f32 %v2364, %v2586
      %v2653 = vadd.f32 %v2365, %v2589
      %v2654 = vadd.f32 %v2366, %v2594
      %v2655 = vadd.f32 %v2367, %v2597
      %v2656 = vadd.f32 %v2368, %v2602
      %v2657 = vadd.f32 %v2369, %v2605
      %v2658 = vadd.f32 %v2370, %v2610
      %v2659 = vadd.f32 %v2371, %v2613
      %v2660 = vadd.f32 %v2372, %v2618
      %v2661 = vadd.f32 %v2373, %v2621
      %v2662 = vadd.f32 %v2374, %v2626
      %v2663 = vadd.f32 %v2375, %v2629
      %s2664 = scalar_lea.vmem %s3, 64
      %v2665 = vld [vmem:[%s2664] sm:$0xf]
      %v2666 = vld [vmem:[%s2664 + $0x4] sm:$0xf]
      %v2667 = vld [vmem:[%s2664 + $0x8] sm:$0xf]
      %v2668 = vld [vmem:[%s2664 + $0xc] sm:$0xf]
      %v2673 = vunpack.c.l.b16 %v2665
      %v2674 = vunpack.c.l.b16 %v2666
      %v2675 = vunpack.c.l.b16 %v2667
      %v2676 = vunpack.c.l.b16 %v2668
      %v2677 = vpack.c.b16 %v2674, %v2673
      %v2678 = vpack.c.b16 %v2676, %v2675
      %v2681 = vsel %vm1300, %v396, 0
      %2683 = vmatprep.subr.bf16.mxu0 0
      %2684 = vmatpush1.bf16.msra.mxu0 0
      %2685 = vmatprep.subr.bf16.mxu0 0
      %2686 = vmatpush1.bf16.msra.mxu0 0
      %2687 = vmatprep.subr.bf16.mxu0 0
      %2688 = vmatpush1.bf16.msra.mxu0 0
      %2689 = vmatprep.subr.bf16.mxu0 0
      %2690 = vmatpush1.bf16.msra.mxu0 0
      %2691 = vmatprep.subr.bf16.mxu0 0
      %2692 = vmatpush1.bf16.msra.mxu0 0
      %2693 = vmatprep.subr.bf16.mxu0 0
      %2694 = vmatpush1.bf16.msra.mxu0 0
      %2695 = vmatprep.subr.bf16.mxu0 0
      %2696 = vmatpush1.bf16.msra.mxu0 %v2678
      %2697 = vmatprep.subr.bf16.mxu0 0
      %2698 = vmatpush1.bf16.msra.mxu0 %v2677
      %2699 = vmatprep.subr.bf16.mxu0 0
      %2700 = vmatpush2.bf16.msra.mxu0 0
      %2701 = vmatprep.subr.bf16.mxu0 0
      %2702 = vmatpush2.bf16.msra.mxu0 0
      %2703 = vmatprep.subr.bf16.mxu0 0
      %2704 = vmatpush2.bf16.msra.mxu0 0
      %2705 = vmatprep.subr.bf16.mxu0 0
      %2706 = vmatpush2.bf16.msra.mxu0 0
      %2707 = vmatprep.subr.bf16.mxu0 0
      %2708 = vmatpush2.bf16.msra.mxu0 0
      %2709 = vmatprep.subr.bf16.mxu0 0
      %2710 = vmatpush2.bf16.msra.mxu0 0
      %2711 = vmatprep.subr.bf16.mxu0 0
      %2712 = vmatpush2.bf16.msra.mxu0 0
      %2713 = vmatprep.subr.bf16.mxu0 0
      %2714 = vmatpush2.bf16.msra.mxu0 0
      %2715 = vmatprep.mubr.bf16.mxu0 0
      %2716 = vmatmul.mubr.bf16.gmra.mxu0 %v1304
      %v2717 = vpop.f32.mrf.mxu0
      %v2718 = vadd.f32 0.0, %v2717
      %v2719 = vpop.f32.mrf.mxu0
      %v2720 = vpop.f32.mrf.mxu0
      %v2721 = vadd.f32 0.0, %v2720
      %v2722 = vpop.f32.mrf.mxu0
      %2723 = vmatprep.mubr.bf16.mxu0 0
      %2724 = vmatmul.mubr.bf16.gmra.mxu0 %v1306
      %v2725 = vpop.f32.mrf.mxu0
      %v2726 = vadd.f32 0.0, %v2725
      %v2727 = vpop.f32.mrf.mxu0
      %v2728 = vpop.f32.mrf.mxu0
      %v2729 = vadd.f32 0.0, %v2728
      %v2730 = vpop.f32.mrf.mxu0
      %2731 = vmatprep.mubr.bf16.mxu0 0
      %2732 = vmatmul.mubr.bf16.gmra.mxu0 %v1308
      %v2733 = vpop.f32.mrf.mxu0
      %v2734 = vadd.f32 0.0, %v2733
      %v2735 = vpop.f32.mrf.mxu0
      %v2736 = vpop.f32.mrf.mxu0
      %v2737 = vadd.f32 0.0, %v2736
      %v2738 = vpop.f32.mrf.mxu0
      %2739 = vmatprep.mubr.bf16.mxu0 0
      %2740 = vmatmul.mubr.bf16.gmra.mxu0 %v1310
      %v2741 = vpop.f32.mrf.mxu0
      %v2742 = vadd.f32 0.0, %v2741
      %v2743 = vpop.f32.mrf.mxu0
      %v2744 = vpop.f32.mrf.mxu0
      %v2745 = vadd.f32 0.0, %v2744
      %v2746 = vpop.f32.mrf.mxu0
      %2747 = vmatprep.mubr.bf16.mxu0 0
      %2748 = vmatmul.mubr.bf16.gmra.mxu0 %v1312
      %v2749 = vpop.f32.mrf.mxu0
      %v2750 = vadd.f32 0.0, %v2749
      %v2751 = vpop.f32.mrf.mxu0
      %v2752 = vpop.f32.mrf.mxu0
      %v2753 = vadd.f32 0.0, %v2752
      %v2754 = vpop.f32.mrf.mxu0
      %2755 = vmatprep.mubr.bf16.mxu0 0
      %2756 = vmatmul.mubr.bf16.gmra.mxu0 %v1314
      %v2757 = vpop.f32.mrf.mxu0
      %v2758 = vadd.f32 0.0, %v2757
      %v2759 = vpop.f32.mrf.mxu0
      %v2760 = vpop.f32.mrf.mxu0
      %v2761 = vadd.f32 0.0, %v2760
      %v2762 = vpop.f32.mrf.mxu0
      %2763 = vmatprep.mubr.bf16.mxu0 0
      %2764 = vmatmul.mubr.bf16.gmra.mxu0 %v1316
      %v2765 = vpop.f32.mrf.mxu0
      %v2766 = vadd.f32 0.0, %v2765
      %v2767 = vpop.f32.mrf.mxu0
      %v2768 = vpop.f32.mrf.mxu0
      %v2769 = vadd.f32 0.0, %v2768
      %v2770 = vpop.f32.mrf.mxu0
      %2771 = vmatprep.mubr.bf16.mxu0 0
      %2772 = vmatmul.mubr.bf16.gmra.mxu0 %v1318
      %v2773 = vpop.f32.mrf.mxu0
      %v2774 = vadd.f32 0.0, %v2773
      %v2775 = vpop.f32.mrf.mxu0
      %v2776 = vpop.f32.mrf.mxu0
      %v2777 = vadd.f32 0.0, %v2776
      %v2778 = vpop.f32.mrf.mxu0
      %2779 = vmatprep.mubr.bf16.mxu0 0
      %2780 = vmatmul.mubr.bf16.gmra.mxu0 %v1320
      %v2781 = vpop.f32.mrf.mxu0
      %v2782 = vadd.f32 0.0, %v2781
      %v2783 = vpop.f32.mrf.mxu0
      %v2784 = vpop.f32.mrf.mxu0
      %v2785 = vadd.f32 0.0, %v2784
      %v2786 = vpop.f32.mrf.mxu0
      %2787 = vmatprep.mubr.bf16.mxu0 0
      %2788 = vmatmul.mubr.bf16.gmra.mxu0 %v1322
      %v2789 = vpop.f32.mrf.mxu0
      %v2790 = vadd.f32 0.0, %v2789
      %v2791 = vpop.f32.mrf.mxu0
      %v2792 = vpop.f32.mrf.mxu0
      %v2793 = vadd.f32 0.0, %v2792
      %v2794 = vpop.f32.mrf.mxu0
      %2795 = vmatprep.mubr.bf16.mxu0 0
      %2796 = vmatmul.mubr.bf16.gmra.mxu0 %v1324
      %v2797 = vpop.f32.mrf.mxu0
      %v2798 = vadd.f32 0.0, %v2797
      %v2799 = vpop.f32.mrf.mxu0
      %v2800 = vpop.f32.mrf.mxu0
      %v2801 = vadd.f32 0.0, %v2800
      %v2802 = vpop.f32.mrf.mxu0
      %2803 = vmatprep.mubr.bf16.mxu0 0
      %2804 = vmatmul.mubr.bf16.gmra.mxu0 %v1326
      %v2805 = vpop.f32.mrf.mxu0
      %v2806 = vadd.f32 0.0, %v2805
      %v2807 = vpop.f32.mrf.mxu0
      %v2808 = vpop.f32.mrf.mxu0
      %v2809 = vadd.f32 0.0, %v2808
      %v2810 = vpop.f32.mrf.mxu0
      %2811 = vmatprep.mubr.bf16.mxu0 0
      %2812 = vmatmul.mubr.bf16.gmra.mxu0 %v1328
      %v2813 = vpop.f32.mrf.mxu0
      %v2814 = vadd.f32 0.0, %v2813
      %v2815 = vpop.f32.mrf.mxu0
      %v2816 = vpop.f32.mrf.mxu0
      %v2817 = vadd.f32 0.0, %v2816
      %v2818 = vpop.f32.mrf.mxu0
      %2819 = vmatprep.mubr.bf16.mxu0 0
      %2820 = vmatmul.mubr.bf16.gmra.mxu0 %v1330
      %v2821 = vpop.f32.mrf.mxu0
      %v2822 = vadd.f32 0.0, %v2821
      %v2823 = vpop.f32.mrf.mxu0
      %v2824 = vpop.f32.mrf.mxu0
      %v2825 = vadd.f32 0.0, %v2824
      %v2826 = vpop.f32.mrf.mxu0
      %2827 = vmatprep.mubr.bf16.mxu0 0
      %2828 = vmatmul.mubr.bf16.gmra.mxu0 %v1332
      %v2829 = vpop.f32.mrf.mxu0
      %v2830 = vadd.f32 0.0, %v2829
      %v2831 = vpop.f32.mrf.mxu0
      %v2832 = vpop.f32.mrf.mxu0
      %v2833 = vadd.f32 0.0, %v2832
      %v2834 = vpop.f32.mrf.mxu0
      %2835 = vmatprep.mubr.bf16.mxu0 0
      %2836 = vmatmul.mubr.bf16.gmra.mxu0 %v2681
      %v2837 = vpop.f32.mrf.mxu0
      %v2838 = vadd.f32 0.0, %v2837
      %v2839 = vpop.f32.mrf.mxu0
      %v2840 = vpop.f32.mrf.mxu0
      %v2841 = vadd.f32 0.0, %v2840
      %v2842 = vpop.f32.mrf.mxu0
      %2843 = vdwg.mxu0
      %v2844 = vadd.f32 %v2632, %v2718
      %v2845 = vadd.f32 %v2633, %v2721
      %v2846 = vadd.f32 %v2634, %v2726
      %v2847 = vadd.f32 %v2635, %v2729
      %v2848 = vadd.f32 %v2636, %v2734
      %v2849 = vadd.f32 %v2637, %v2737
      %v2850 = vadd.f32 %v2638, %v2742
      %v2851 = vadd.f32 %v2639, %v2745
      %v2852 = vadd.f32 %v2640, %v2750
      %v2853 = vadd.f32 %v2641, %v2753
      %v2854 = vadd.f32 %v2642, %v2758
      %v2855 = vadd.f32 %v2643, %v2761
      %v2856 = vadd.f32 %v2644, %v2766
      %v2857 = vadd.f32 %v2645, %v2769
      %v2858 = vadd.f32 %v2646, %v2774
      %v2859 = vadd.f32 %v2647, %v2777
      %v2860 = vadd.f32 %v2648, %v2782
      %v2861 = vadd.f32 %v2649, %v2785
      %v2862 = vadd.f32 %v2650, %v2790
      %v2863 = vadd.f32 %v2651, %v2793
      %v2864 = vadd.f32 %v2652, %v2798
      %v2865 = vadd.f32 %v2653, %v2801
      %v2866 = vadd.f32 %v2654, %v2806
      %v2867 = vadd.f32 %v2655, %v2809
      %v2868 = vadd.f32 %v2656, %v2814
      %v2869 = vadd.f32 %v2657, %v2817
      %v2870 = vadd.f32 %v2658, %v2822
      %v2871 = vadd.f32 %v2659, %v2825
      %v2872 = vadd.f32 %v2660, %v2830
      %v2873 = vadd.f32 %v2661, %v2833
      %v2874 = vadd.f32 %v2662, %v2838
      %v2875 = vadd.f32 %v2663, %v2841
      %v2876 = vor.u32 %v2376, %v1761
      %v2878 = vsel %vm1780, %v2876, 0
      %v2879 = vsel %vm2086, %v1717, 0
      %v2880 = vsel %vm2087, %v1720, 0
      %v2881 = vsel %vm2088, %v1723, 0
      %v2882 = vsel %vm2089, %v1726, 0
      %v2883 = vsel %vm2090, %v1729, 0
      %v2884 = vsel %vm2091, %v1732, 0
      %v2885 = vsel %vm2092, %v1735, 0
      %v2886 = vsel %vm2093, %v1738, 0
      %v2887 = vsel %vm2094, %v1741, 0
      %v2888 = vsel %vm2095, %v1744, 0
      %v2889 = vsel %vm2096, %v1747, 0
      %v2890 = vsel %vm2097, %v1750, 0
      %v2891 = vsel %vm2098, %v1753, 0
      %v2892 = vsel %vm2099, %v1756, 0
      %v2893 = vsel %vm2100, %v1762, 0
      %v2894 = vsel %vm2101, %v2878, 0
      %s2895 = scalar_lea.vmem %s3, 80
      %v2896 = vld [vmem:[%s2895] sm:$0xf]
      %v2897 = vld [vmem:[%s2895 + $0x4] sm:$0xf]
      %v2898 = vld [vmem:[%s2895 + $0x8] sm:$0xf]
      %v2899 = vld [vmem:[%s2895 + $0xc] sm:$0xf]
      %v2904 = vunpack.c.l.b16 %v2896
      %v2905 = vunpack.c.l.b16 %v2897
      %v2906 = vunpack.c.l.b16 %v2898
      %v2907 = vunpack.c.l.b16 %v2899
      %v2908 = vpack.c.b16 %v2905, %v2904
      %v2909 = vpack.c.b16 %v2907, %v2906
      %v2913 = vsel %vm1300, %v2879, 0
      %v2916 = vsel %vm1300, %v2880, 0
      %v2919 = vsel %vm1300, %v2881, 0
      %v2922 = vsel %vm1300, %v2882, 0
      %v2925 = vsel %vm1300, %v2883, 0
      %v2928 = vsel %vm1300, %v2884, 0
      %v2931 = vsel %vm1300, %v2885, 0
      %v2934 = vsel %vm1300, %v2886, 0
      %v2937 = vsel %vm1300, %v2887, 0
      %v2940 = vsel %vm1300, %v2888, 0
      %v2943 = vsel %vm1300, %v2889, 0
      %v2946 = vsel %vm1300, %v2890, 0
      %v2949 = vsel %vm1300, %v2891, 0
      %v2952 = vsel %vm1300, %v2892, 0
      %v2955 = vsel %vm1300, %v2893, 0
      %v2958 = vsel %vm1300, %v2894, 0
      %2960 = vmatprep.subr.bf16.mxu0 0
      %2961 = vmatpush1.bf16.msra.mxu0 0
      %2962 = vmatprep.subr.bf16.mxu0 0
      %2963 = vmatpush1.bf16.msra.mxu0 0
      %2964 = vmatprep.subr.bf16.mxu0 0
      %2965 = vmatpush1.bf16.msra.mxu0 0
      %2966 = vmatprep.subr.bf16.mxu0 0
      %2967 = vmatpush1.bf16.msra.mxu0 0
      %2968 = vmatprep.subr.bf16.mxu0 0
      %2969 = vmatpush1.bf16.msra.mxu0 0
      %2970 = vmatprep.subr.bf16.mxu0 0
      %2971 = vmatpush1.bf16.msra.mxu0 0
      %2972 = vmatprep.subr.bf16.mxu0 0
      %2973 = vmatpush1.bf16.msra.mxu0 %v2909
      %2974 = vmatprep.subr.bf16.mxu0 0
      %2975 = vmatpush1.bf16.msra.mxu0 %v2908
      %2976 = vmatprep.subr.bf16.mxu0 0
      %2977 = vmatpush2.bf16.msra.mxu0 0
      %2978 = vmatprep.subr.bf16.mxu0 0
      %2979 = vmatpush2.bf16.msra.mxu0 0
      %2980 = vmatprep.subr.bf16.mxu0 0
      %2981 = vmatpush2.bf16.msra.mxu0 0
      %2982 = vmatprep.subr.bf16.mxu0 0
      %2983 = vmatpush2.bf16.msra.mxu0 0
      %2984 = vmatprep.subr.bf16.mxu0 0
      %2985 = vmatpush2.bf16.msra.mxu0 0
      %2986 = vmatprep.subr.bf16.mxu0 0
      %2987 = vmatpush2.bf16.msra.mxu0 0
      %2988 = vmatprep.subr.bf16.mxu0 0
      %2989 = vmatpush2.bf16.msra.mxu0 0
      %2990 = vmatprep.subr.bf16.mxu0 0
      %2991 = vmatpush2.bf16.msra.mxu0 0
      %2992 = vmatprep.mubr.bf16.mxu0 0
      %2993 = vmatmul.mubr.bf16.gmra.mxu0 %v2913
      %v2994 = vpop.f32.mrf.mxu0
      %v2995 = vadd.f32 0.0, %v2994
      %v2996 = vpop.f32.mrf.mxu0
      %v2997 = vpop.f32.mrf.mxu0
      %v2998 = vadd.f32 0.0, %v2997
      %v2999 = vpop.f32.mrf.mxu0
      %3000 = vmatprep.mubr.bf16.mxu0 0
      %3001 = vmatmul.mubr.bf16.gmra.mxu0 %v2916
      %v3002 = vpop.f32.mrf.mxu0
      %v3003 = vadd.f32 0.0, %v3002
      %v3004 = vpop.f32.mrf.mxu0
      %v3005 = vpop.f32.mrf.mxu0
      %v3006 = vadd.f32 0.0, %v3005
      %v3007 = vpop.f32.mrf.mxu0
      %3008 = vmatprep.mubr.bf16.mxu0 0
      %3009 = vmatmul.mubr.bf16.gmra.mxu0 %v2919
      %v3010 = vpop.f32.mrf.mxu0
      %v3011 = vadd.f32 0.0, %v3010
      %v3012 = vpop.f32.mrf.mxu0
      %v3013 = vpop.f32.mrf.mxu0
      %v3014 = vadd.f32 0.0, %v3013
      %v3015 = vpop.f32.mrf.mxu0
      %3016 = vmatprep.mubr.bf16.mxu0 0
      %3017 = vmatmul.mubr.bf16.gmra.mxu0 %v2922
      %v3018 = vpop.f32.mrf.mxu0
      %v3019 = vadd.f32 0.0, %v3018
      %v3020 = vpop.f32.mrf.mxu0
      %v3021 = vpop.f32.mrf.mxu0
      %v3022 = vadd.f32 0.0, %v3021
      %v3023 = vpop.f32.mrf.mxu0
      %3024 = vmatprep.mubr.bf16.mxu0 0
      %3025 = vmatmul.mubr.bf16.gmra.mxu0 %v2925
      %v3026 = vpop.f32.mrf.mxu0
      %v3027 = vadd.f32 0.0, %v3026
      %v3028 = vpop.f32.mrf.mxu0
      %v3029 = vpop.f32.mrf.mxu0
      %v3030 = vadd.f32 0.0, %v3029
      %v3031 = vpop.f32.mrf.mxu0
      %3032 = vmatprep.mubr.bf16.mxu0 0
      %3033 = vmatmul.mubr.bf16.gmra.mxu0 %v2928
      %v3034 = vpop.f32.mrf.mxu0
      %v3035 = vadd.f32 0.0, %v3034
      %v3036 = vpop.f32.mrf.mxu0
      %v3037 = vpop.f32.mrf.mxu0
      %v3038 = vadd.f32 0.0, %v3037
      %v3039 = vpop.f32.mrf.mxu0
      %3040 = vmatprep.mubr.bf16.mxu0 0
      %3041 = vmatmul.mubr.bf16.gmra.mxu0 %v2931
      %v3042 = vpop.f32.mrf.mxu0
      %v3043 = vadd.f32 0.0, %v3042
      %v3044 = vpop.f32.mrf.mxu0
      %v3045 = vpop.f32.mrf.mxu0
      %v3046 = vadd.f32 0.0, %v3045
      %v3047 = vpop.f32.mrf.mxu0
      %3048 = vmatprep.mubr.bf16.mxu0 0
      %3049 = vmatmul.mubr.bf16.gmra.mxu0 %v2934
      %v3050 = vpop.f32.mrf.mxu0
      %v3051 = vadd.f32 0.0, %v3050
      %v3052 = vpop.f32.mrf.mxu0
      %v3053 = vpop.f32.mrf.mxu0
      %v3054 = vadd.f32 0.0, %v3053
      %v3055 = vpop.f32.mrf.mxu0
      %3056 = vmatprep.mubr.bf16.mxu0 0
      %3057 = vmatmul.mubr.bf16.gmra.mxu0 %v2937
      %v3058 = vpop.f32.mrf.mxu0
      %v3059 = vadd.f32 0.0, %v3058
      %v3060 = vpop.f32.mrf.mxu0
      %v3061 = vpop.f32.mrf.mxu0
      %v3062 = vadd.f32 0.0, %v3061
      %v3063 = vpop.f32.mrf.mxu0
      %3064 = vmatprep.mubr.bf16.mxu0 0
      %3065 = vmatmul.mubr.bf16.gmra.mxu0 %v2940
      %v3066 = vpop.f32.mrf.mxu0
      %v3067 = vadd.f32 0.0, %v3066
      %v3068 = vpop.f32.mrf.mxu0
      %v3069 = vpop.f32.mrf.mxu0
      %v3070 = vadd.f32 0.0, %v3069
      %v3071 = vpop.f32.mrf.mxu0
      %3072 = vmatprep.mubr.bf16.mxu0 0
      %3073 = vmatmul.mubr.bf16.gmra.mxu0 %v2943
      %v3074 = vpop.f32.mrf.mxu0
      %v3075 = vadd.f32 0.0, %v3074
      %v3076 = vpop.f32.mrf.mxu0
      %v3077 = vpop.f32.mrf.mxu0
      %v3078 = vadd.f32 0.0, %v3077
      %v3079 = vpop.f32.mrf.mxu0
      %3080 = vmatprep.mubr.bf16.mxu0 0
      %3081 = vmatmul.mubr.bf16.gmra.mxu0 %v2946
      %v3082 = vpop.f32.mrf.mxu0
      %v3083 = vadd.f32 0.0, %v3082
      %v3084 = vpop.f32.mrf.mxu0
      %v3085 = vpop.f32.mrf.mxu0
      %v3086 = vadd.f32 0.0, %v3085
      %v3087 = vpop.f32.mrf.mxu0
      %3088 = vmatprep.mubr.bf16.mxu0 0
      %3089 = vmatmul.mubr.bf16.gmra.mxu0 %v2949
      %v3090 = vpop.f32.mrf.mxu0
      %v3091 = vadd.f32 0.0, %v3090
      %v3092 = vpop.f32.mrf.mxu0
      %v3093 = vpop.f32.mrf.mxu0
      %v3094 = vadd.f32 0.0, %v3093
      %v3095 = vpop.f32.mrf.mxu0
      %3096 = vmatprep.mubr.bf16.mxu0 0
      %3097 = vmatmul.mubr.bf16.gmra.mxu0 %v2952
      %v3098 = vpop.f32.mrf.mxu0
      %v3099 = vadd.f32 0.0, %v3098
      %v3100 = vpop.f32.mrf.mxu0
      %v3101 = vpop.f32.mrf.mxu0
      %v3102 = vadd.f32 0.0, %v3101
      %v3103 = vpop.f32.mrf.mxu0
      %3104 = vmatprep.mubr.bf16.mxu0 0
      %3105 = vmatmul.mubr.bf16.gmra.mxu0 %v2955
      %v3106 = vpop.f32.mrf.mxu0
      %v3107 = vadd.f32 0.0, %v3106
      %v3108 = vpop.f32.mrf.mxu0
      %v3109 = vpop.f32.mrf.mxu0
      %v3110 = vadd.f32 0.0, %v3109
      %v3111 = vpop.f32.mrf.mxu0
      %3112 = vmatprep.mubr.bf16.mxu0 0
      %3113 = vmatmul.mubr.bf16.gmra.mxu0 %v2958
      %v3114 = vpop.f32.mrf.mxu0
      %v3115 = vadd.f32 0.0, %v3114
      %v3116 = vpop.f32.mrf.mxu0
      %v3117 = vpop.f32.mrf.mxu0
      %v3118 = vadd.f32 0.0, %v3117
      %v3119 = vpop.f32.mrf.mxu0
      %3120 = vdwg.mxu0
      %v3121 = vadd.f32 %v2844, %v2995
      %v3122 = vadd.f32 %v2845, %v2998
      %v3123 = vadd.f32 %v2846, %v3003
      %v3124 = vadd.f32 %v2847, %v3006
      %v3125 = vadd.f32 %v2848, %v3011
      %v3126 = vadd.f32 %v2849, %v3014
      %v3127 = vadd.f32 %v2850, %v3019
      %v3128 = vadd.f32 %v2851, %v3022
      %v3129 = vadd.f32 %v2852, %v3027
      %v3130 = vadd.f32 %v2853, %v3030
      %v3131 = vadd.f32 %v2854, %v3035
      %v3132 = vadd.f32 %v2855, %v3038
      %v3133 = vadd.f32 %v2856, %v3043
      %v3134 = vadd.f32 %v2857, %v3046
      %v3135 = vadd.f32 %v2858, %v3051
      %v3136 = vadd.f32 %v2859, %v3054
      %v3137 = vadd.f32 %v2860, %v3059
      %v3138 = vadd.f32 %v2861, %v3062
      %v3139 = vadd.f32 %v2862, %v3067
      %v3140 = vadd.f32 %v2863, %v3070
      %v3141 = vadd.f32 %v2864, %v3075
      %v3142 = vadd.f32 %v2865, %v3078
      %v3143 = vadd.f32 %v2866, %v3083
      %v3144 = vadd.f32 %v2867, %v3086
      %v3145 = vadd.f32 %v2868, %v3091
      %v3146 = vadd.f32 %v2869, %v3094
      %v3147 = vadd.f32 %v2870, %v3099
      %v3148 = vadd.f32 %v2871, %v3102
      %v3149 = vadd.f32 %v2872, %v3107
      %v3150 = vadd.f32 %v2873, %v3110
      %v3151 = vadd.f32 %v2874, %v3115
      %v3152 = vadd.f32 %v2875, %v3118
      %v3154 = vsel %vm950, %v2378, 0
      %v3155 = vsel %vm2389, %v829, 0
      %v3156 = vsel %vm1249, %v837, 0
      %v3157 = vsel %vm1250, %v845, 0
      %v3158 = vsel %vm1251, %v853, 0
      %v3159 = vsel %vm1252, %v861, 0
      %v3160 = vsel %vm1253, %v869, 0
      %v3161 = vsel %vm1254, %v877, 0
      %v3162 = vsel %vm1255, %v885, 0
      %v3163 = vsel %vm1256, %v893, 0
      %v3164 = vsel %vm1257, %v901, 0
      %v3165 = vsel %vm1258, %v909, 0
      %v3166 = vsel %vm1259, %v917, 0
      %v3167 = vsel %vm1260, %v925, 0
      %v3168 = vsel %vm1261, %v933, 0
      %v3169 = vsel %vm1262, %v2380, 0
      %v3170 = vsel %vm1263, %v3154, 0
      %s3171 = scalar_lea.vmem %s3, 96
      %v3172 = vld [vmem:[%s3171] sm:$0xf]
      %v3173 = vld [vmem:[%s3171 + $0x4] sm:$0xf]
      %v3174 = vld [vmem:[%s3171 + $0x8] sm:$0xf]
      %v3175 = vld [vmem:[%s3171 + $0xc] sm:$0xf]
      %v3180 = vunpack.c.l.b16 %v3172
      %v3181 = vunpack.c.l.b16 %v3173
      %v3182 = vunpack.c.l.b16 %v3174
      %v3183 = vunpack.c.l.b16 %v3175
      %v3184 = vpack.c.b16 %v3181, %v3180
      %v3185 = vpack.c.b16 %v3183, %v3182
      %v3189 = vsel %vm1300, %v3155, 0
      %v3192 = vsel %vm1300, %v3156, 0
      %v3195 = vsel %vm1300, %v3157, 0
      %v3198 = vsel %vm1300, %v3158, 0
      %v3201 = vsel %vm1300, %v3159, 0
      %v3204 = vsel %vm1300, %v3160, 0
      %v3207 = vsel %vm1300, %v3161, 0
      %v3210 = vsel %vm1300, %v3162, 0
      %v3213 = vsel %vm1300, %v3163, 0
      %v3216 = vsel %vm1300, %v3164, 0
      %v3219 = vsel %vm1300, %v3165, 0
      %v3222 = vsel %vm1300, %v3166, 0
      %v3225 = vsel %vm1300, %v3167, 0
      %v3228 = vsel %vm1300, %v3168, 0
      %v3231 = vsel %vm1300, %v3169, 0
      %v3234 = vsel %vm1300, %v3170, 0
      %3236 = vmatprep.subr.bf16.mxu0 0
      %3237 = vmatpush1.bf16.msra.mxu0 0
      %3238 = vmatprep.subr.bf16.mxu0 0
      %3239 = vmatpush1.bf16.msra.mxu0 0
      %3240 = vmatprep.subr.bf16.mxu0 0
      %3241 = vmatpush1.bf16.msra.mxu0 0
      %3242 = vmatprep.subr.bf16.mxu0 0
      %3243 = vmatpush1.bf16.msra.mxu0 0
      %3244 = vmatprep.subr.bf16.mxu0 0
      %3245 = vmatpush1.bf16.msra.mxu0 0
      %3246 = vmatprep.subr.bf16.mxu0 0
      %3247 = vmatpush1.bf16.msra.mxu0 0
      %3248 = vmatprep.subr.bf16.mxu0 0
      %3249 = vmatpush1.bf16.msra.mxu0 %v3185
      %3250 = vmatprep.subr.bf16.mxu0 0
      %3251 = vmatpush1.bf16.msra.mxu0 %v3184
      %3252 = vmatprep.subr.bf16.mxu0 0
      %3253 = vmatpush2.bf16.msra.mxu0 0
      %3254 = vmatprep.subr.bf16.mxu0 0
      %3255 = vmatpush2.bf16.msra.mxu0 0
      %3256 = vmatprep.subr.bf16.mxu0 0
      %3257 = vmatpush2.bf16.msra.mxu0 0
      %3258 = vmatprep.subr.bf16.mxu0 0
      %3259 = vmatpush2.bf16.msra.mxu0 0
      %3260 = vmatprep.subr.bf16.mxu0 0
      %3261 = vmatpush2.bf16.msra.mxu0 0
      %3262 = vmatprep.subr.bf16.mxu0 0
      %3263 = vmatpush2.bf16.msra.mxu0 0
      %3264 = vmatprep.subr.bf16.mxu0 0
      %3265 = vmatpush2.bf16.msra.mxu0 0
      %3266 = vmatprep.subr.bf16.mxu0 0
      %3267 = vmatpush2.bf16.msra.mxu0 0
      %3268 = vmatprep.mubr.bf16.mxu0 0
      %3269 = vmatmul.mubr.bf16.gmra.mxu0 %v3189
      %v3270 = vpop.f32.mrf.mxu0
      %v3271 = vadd.f32 0.0, %v3270
      %v3272 = vpop.f32.mrf.mxu0
      %v3273 = vpop.f32.mrf.mxu0
      %v3274 = vadd.f32 0.0, %v3273
      %v3275 = vpop.f32.mrf.mxu0
      %3276 = vmatprep.mubr.bf16.mxu0 0
      %3277 = vmatmul.mubr.bf16.gmra.mxu0 %v3192
      %v3278 = vpop.f32.mrf.mxu0
      %v3279 = vadd.f32 0.0, %v3278
      %v3280 = vpop.f32.mrf.mxu0
      %v3281 = vpop.f32.mrf.mxu0
      %v3282 = vadd.f32 0.0, %v3281
      %v3283 = vpop.f32.mrf.mxu0
      %3284 = vmatprep.mubr.bf16.mxu0 0
      %3285 = vmatmul.mubr.bf16.gmra.mxu0 %v3195
      %v3286 = vpop.f32.mrf.mxu0
      %v3287 = vadd.f32 0.0, %v3286
      %v3288 = vpop.f32.mrf.mxu0
      %v3289 = vpop.f32.mrf.mxu0
      %v3290 = vadd.f32 0.0, %v3289
      %v3291 = vpop.f32.mrf.mxu0
      %3292 = vmatprep.mubr.bf16.mxu0 0
      %3293 = vmatmul.mubr.bf16.gmra.mxu0 %v3198
      %v3294 = vpop.f32.mrf.mxu0
      %v3295 = vadd.f32 0.0, %v3294
      %v3296 = vpop.f32.mrf.mxu0
      %v3297 = vpop.f32.mrf.mxu0
      %v3298 = vadd.f32 0.0, %v3297
      %v3299 = vpop.f32.mrf.mxu0
      %3300 = vmatprep.mubr.bf16.mxu0 0
      %3301 = vmatmul.mubr.bf16.gmra.mxu0 %v3201
      %v3302 = vpop.f32.mrf.mxu0
      %v3303 = vadd.f32 0.0, %v3302
      %v3304 = vpop.f32.mrf.mxu0
      %v3305 = vpop.f32.mrf.mxu0
      %v3306 = vadd.f32 0.0, %v3305
      %v3307 = vpop.f32.mrf.mxu0
      %3308 = vmatprep.mubr.bf16.mxu0 0
      %3309 = vmatmul.mubr.bf16.gmra.mxu0 %v3204
      %v3310 = vpop.f32.mrf.mxu0
      %v3311 = vadd.f32 0.0, %v3310
      %v3312 = vpop.f32.mrf.mxu0
      %v3313 = vpop.f32.mrf.mxu0
      %v3314 = vadd.f32 0.0, %v3313
      %v3315 = vpop.f32.mrf.mxu0
      %3316 = vmatprep.mubr.bf16.mxu0 0
      %3317 = vmatmul.mubr.bf16.gmra.mxu0 %v3207
      %v3318 = vpop.f32.mrf.mxu0
      %v3319 = vadd.f32 0.0, %v3318
      %v3320 = vpop.f32.mrf.mxu0
      %v3321 = vpop.f32.mrf.mxu0
      %v3322 = vadd.f32 0.0, %v3321
      %v3323 = vpop.f32.mrf.mxu0
      %3324 = vmatprep.mubr.bf16.mxu0 0
      %3325 = vmatmul.mubr.bf16.gmra.mxu0 %v3210
      %v3326 = vpop.f32.mrf.mxu0
      %v3327 = vadd.f32 0.0, %v3326
      %v3328 = vpop.f32.mrf.mxu0
      %v3329 = vpop.f32.mrf.mxu0
      %v3330 = vadd.f32 0.0, %v3329
      %v3331 = vpop.f32.mrf.mxu0
      %3332 = vmatprep.mubr.bf16.mxu0 0
      %3333 = vmatmul.mubr.bf16.gmra.mxu0 %v3213
      %v3334 = vpop.f32.mrf.mxu0
      %v3335 = vadd.f32 0.0, %v3334
      %v3336 = vpop.f32.mrf.mxu0
      %v3337 = vpop.f32.mrf.mxu0
      %v3338 = vadd.f32 0.0, %v3337
      %v3339 = vpop.f32.mrf.mxu0
      %3340 = vmatprep.mubr.bf16.mxu0 0
      %3341 = vmatmul.mubr.bf16.gmra.mxu0 %v3216
      %v3342 = vpop.f32.mrf.mxu0
      %v3343 = vadd.f32 0.0, %v3342
      %v3344 = vpop.f32.mrf.mxu0
      %v3345 = vpop.f32.mrf.mxu0
      %v3346 = vadd.f32 0.0, %v3345
      %v3347 = vpop.f32.mrf.mxu0
      %3348 = vmatprep.mubr.bf16.mxu0 0
      %3349 = vmatmul.mubr.bf16.gmra.mxu0 %v3219
      %v3350 = vpop.f32.mrf.mxu0
      %v3351 = vadd.f32 0.0, %v3350
      %v3352 = vpop.f32.mrf.mxu0
      %v3353 = vpop.f32.mrf.mxu0
      %v3354 = vadd.f32 0.0, %v3353
      %v3355 = vpop.f32.mrf.mxu0
      %3356 = vmatprep.mubr.bf16.mxu0 0
      %3357 = vmatmul.mubr.bf16.gmra.mxu0 %v3222
      %v3358 = vpop.f32.mrf.mxu0
      %v3359 = vadd.f32 0.0, %v3358
      %v3360 = vpop.f32.mrf.mxu0
      %v3361 = vpop.f32.mrf.mxu0
      %v3362 = vadd.f32 0.0, %v3361
      %v3363 = vpop.f32.mrf.mxu0
      %3364 = vmatprep.mubr.bf16.mxu0 0
      %3365 = vmatmul.mubr.bf16.gmra.mxu0 %v3225
      %v3366 = vpop.f32.mrf.mxu0
      %v3367 = vadd.f32 0.0, %v3366
      %v3368 = vpop.f32.mrf.mxu0
      %v3369 = vpop.f32.mrf.mxu0
      %v3370 = vadd.f32 0.0, %v3369
      %v3371 = vpop.f32.mrf.mxu0
      %3372 = vmatprep.mubr.bf16.mxu0 0
      %3373 = vmatmul.mubr.bf16.gmra.mxu0 %v3228
      %v3374 = vpop.f32.mrf.mxu0
      %v3375 = vadd.f32 0.0, %v3374
      %v3376 = vpop.f32.mrf.mxu0
      %v3377 = vpop.f32.mrf.mxu0
      %v3378 = vadd.f32 0.0, %v3377
      %v3379 = vpop.f32.mrf.mxu0
      %3380 = vmatprep.mubr.bf16.mxu0 0
      %3381 = vmatmul.mubr.bf16.gmra.mxu0 %v3231
      %v3382 = vpop.f32.mrf.mxu0
      %v3383 = vadd.f32 0.0, %v3382
      %v3384 = vpop.f32.mrf.mxu0
      %v3385 = vpop.f32.mrf.mxu0
      %v3386 = vadd.f32 0.0, %v3385
      %v3387 = vpop.f32.mrf.mxu0
      %3388 = vmatprep.mubr.bf16.mxu0 0
      %3389 = vmatmul.mubr.bf16.gmra.mxu0 %v3234
      %v3390 = vpop.f32.mrf.mxu0
      %v3391 = vadd.f32 0.0, %v3390
      %v3392 = vpop.f32.mrf.mxu0
      %v3393 = vpop.f32.mrf.mxu0
      %v3394 = vadd.f32 0.0, %v3393
      %v3395 = vpop.f32.mrf.mxu0
      %3396 = vdwg.mxu0
      %v3397 = vadd.f32 %v3121, %v3271
      %v3398 = vadd.f32 %v3122, %v3274
      %v3399 = vadd.f32 %v3123, %v3279
      %v3400 = vadd.f32 %v3124, %v3282
      %v3401 = vadd.f32 %v3125, %v3287
      %v3402 = vadd.f32 %v3126, %v3290
      %v3403 = vadd.f32 %v3127, %v3295
      %v3404 = vadd.f32 %v3128, %v3298
      %v3405 = vadd.f32 %v3129, %v3303
      %v3406 = vadd.f32 %v3130, %v3306
      %v3407 = vadd.f32 %v3131, %v3311
      %v3408 = vadd.f32 %v3132, %v3314
      %v3409 = vadd.f32 %v3133, %v3319
      %v3410 = vadd.f32 %v3134, %v3322
      %v3411 = vadd.f32 %v3135, %v3327
      %v3412 = vadd.f32 %v3136, %v3330
      %v3413 = vadd.f32 %v3137, %v3335
      %v3414 = vadd.f32 %v3138, %v3338
      %v3415 = vadd.f32 %v3139, %v3343
      %v3416 = vadd.f32 %v3140, %v3346
      %v3417 = vadd.f32 %v3141, %v3351
      %v3418 = vadd.f32 %v3142, %v3354
      %v3419 = vadd.f32 %v3143, %v3359
      %v3420 = vadd.f32 %v3144, %v3362
      %v3421 = vadd.f32 %v3145, %v3367
      %v3422 = vadd.f32 %v3146, %v3370
      %v3423 = vadd.f32 %v3147, %v3375
      %v3424 = vadd.f32 %v3148, %v3378
      %v3425 = vadd.f32 %v3149, %v3383
      %v3426 = vadd.f32 %v3150, %v3386
      %v3427 = vadd.f32 %v3151, %v3391
      %v3428 = vadd.f32 %v3152, %v3394
      %s3429 = scalar_lea.vmem %s3, 112
      %v3430 = vld [vmem:[%s3429] sm:$0xf]
      %v3431 = vld [vmem:[%s3429 + $0x4] sm:$0xf]
      %v3432 = vld [vmem:[%s3429 + $0x8] sm:$0xf]
      %v3433 = vld [vmem:[%s3429 + $0xc] sm:$0xf]
      %v3438 = vunpack.c.l.b16 %v3430
      %v3439 = vunpack.c.l.b16 %v3431
      %v3440 = vunpack.c.l.b16 %v3432
      %v3441 = vunpack.c.l.b16 %v3433
      %v3442 = vpack.c.b16 %v3439, %v3438
      %v3443 = vpack.c.b16 %v3441, %v3440
      %3446 = vmatprep.subr.bf16.mxu0 0
      %3447 = vmatpush1.bf16.msra.mxu0 0
      %3448 = vmatprep.subr.bf16.mxu0 0
      %3449 = vmatpush1.bf16.msra.mxu0 0
      %3450 = vmatprep.subr.bf16.mxu0 0
      %3451 = vmatpush1.bf16.msra.mxu0 0
      %3452 = vmatprep.subr.bf16.mxu0 0
      %3453 = vmatpush1.bf16.msra.mxu0 0
      %3454 = vmatprep.subr.bf16.mxu0 0
      %3455 = vmatpush1.bf16.msra.mxu0 0
      %3456 = vmatprep.subr.bf16.mxu0 0
      %3457 = vmatpush1.bf16.msra.mxu0 0
      %3458 = vmatprep.subr.bf16.mxu0 0
      %3459 = vmatpush1.bf16.msra.mxu0 %v3443
      %3460 = vmatprep.subr.bf16.mxu0 0
      %3461 = vmatpush1.bf16.msra.mxu0 %v3442
      %3462 = vmatprep.subr.bf16.mxu0 0
      %3463 = vmatpush2.bf16.msra.mxu0 0
      %3464 = vmatprep.subr.bf16.mxu0 0
      %3465 = vmatpush2.bf16.msra.mxu0 0
      %3466 = vmatprep.subr.bf16.mxu0 0
      %3467 = vmatpush2.bf16.msra.mxu0 0
      %3468 = vmatprep.subr.bf16.mxu0 0
      %3469 = vmatpush2.bf16.msra.mxu0 0
      %3470 = vmatprep.subr.bf16.mxu0 0
      %3471 = vmatpush2.bf16.msra.mxu0 0
      %3472 = vmatprep.subr.bf16.mxu0 0
      %3473 = vmatpush2.bf16.msra.mxu0 0
      %3474 = vmatprep.subr.bf16.mxu0 0
      %3475 = vmatpush2.bf16.msra.mxu0 0
      %3476 = vmatprep.subr.bf16.mxu0 0
      %3477 = vmatpush2.bf16.msra.mxu0 0
      %3478 = vmatprep.mubr.bf16.mxu0 0
      %3479 = vmatmul.mubr.bf16.gmra.mxu0 %v1306
      %v3480 = vpop.f32.mrf.mxu0
      %v3481 = vadd.f32 0.0, %v3480
      %v3482 = vpop.f32.mrf.mxu0
      %v3483 = vpop.f32.mrf.mxu0
      %v3484 = vadd.f32 0.0, %v3483
      %v3485 = vpop.f32.mrf.mxu0
      %3486 = vmatprep.mubr.bf16.mxu0 0
      %3487 = vmatmul.mubr.bf16.gmra.mxu0 %v1308
      %v3488 = vpop.f32.mrf.mxu0
      %v3489 = vadd.f32 0.0, %v3488
      %v3490 = vpop.f32.mrf.mxu0
      %v3491 = vpop.f32.mrf.mxu0
      %v3492 = vadd.f32 0.0, %v3491
      %v3493 = vpop.f32.mrf.mxu0
      %3494 = vmatprep.mubr.bf16.mxu0 0
      %3495 = vmatmul.mubr.bf16.gmra.mxu0 %v1310
      %v3496 = vpop.f32.mrf.mxu0
      %v3497 = vadd.f32 0.0, %v3496
      %v3498 = vpop.f32.mrf.mxu0
      %v3499 = vpop.f32.mrf.mxu0
      %v3500 = vadd.f32 0.0, %v3499
      %v3501 = vpop.f32.mrf.mxu0
      %3502 = vmatprep.mubr.bf16.mxu0 0
      %3503 = vmatmul.mubr.bf16.gmra.mxu0 %v1312
      %v3504 = vpop.f32.mrf.mxu0
      %v3505 = vadd.f32 0.0, %v3504
      %v3506 = vpop.f32.mrf.mxu0
      %v3507 = vpop.f32.mrf.mxu0
      %v3508 = vadd.f32 0.0, %v3507
      %v3509 = vpop.f32.mrf.mxu0
      %3510 = vmatprep.mubr.bf16.mxu0 0
      %3511 = vmatmul.mubr.bf16.gmra.mxu0 %v1314
      %v3512 = vpop.f32.mrf.mxu0
      %v3513 = vadd.f32 0.0, %v3512
      %v3514 = vpop.f32.mrf.mxu0
      %v3515 = vpop.f32.mrf.mxu0
      %v3516 = vadd.f32 0.0, %v3515
      %v3517 = vpop.f32.mrf.mxu0
      %3518 = vmatprep.mubr.bf16.mxu0 0
      %3519 = vmatmul.mubr.bf16.gmra.mxu0 %v1316
      %v3520 = vpop.f32.mrf.mxu0
      %v3521 = vadd.f32 0.0, %v3520
      %v3522 = vpop.f32.mrf.mxu0
      %v3523 = vpop.f32.mrf.mxu0
      %v3524 = vadd.f32 0.0, %v3523
      %v3525 = vpop.f32.mrf.mxu0
      %3526 = vmatprep.mubr.bf16.mxu0 0
      %3527 = vmatmul.mubr.bf16.gmra.mxu0 %v1318
      %v3528 = vpop.f32.mrf.mxu0
      %v3529 = vadd.f32 0.0, %v3528
      %v3530 = vpop.f32.mrf.mxu0
      %v3531 = vpop.f32.mrf.mxu0
      %v3532 = vadd.f32 0.0, %v3531
      %v3533 = vpop.f32.mrf.mxu0
      %3534 = vmatprep.mubr.bf16.mxu0 0
      %3535 = vmatmul.mubr.bf16.gmra.mxu0 %v1320
      %v3536 = vpop.f32.mrf.mxu0
      %v3537 = vadd.f32 0.0, %v3536
      %v3538 = vpop.f32.mrf.mxu0
      %v3539 = vpop.f32.mrf.mxu0
      %v3540 = vadd.f32 0.0, %v3539
      %v3541 = vpop.f32.mrf.mxu0
      %3542 = vmatprep.mubr.bf16.mxu0 0
      %3543 = vmatmul.mubr.bf16.gmra.mxu0 %v1322
      %v3544 = vpop.f32.mrf.mxu0
      %v3545 = vadd.f32 0.0, %v3544
      %v3546 = vpop.f32.mrf.mxu0
      %v3547 = vpop.f32.mrf.mxu0
      %v3548 = vadd.f32 0.0, %v3547
      %v3549 = vpop.f32.mrf.mxu0
      %3550 = vmatprep.mubr.bf16.mxu0 0
      %3551 = vmatmul.mubr.bf16.gmra.mxu0 %v1324
      %v3552 = vpop.f32.mrf.mxu0
      %v3553 = vadd.f32 0.0, %v3552
      %v3554 = vpop.f32.mrf.mxu0
      %v3555 = vpop.f32.mrf.mxu0
      %v3556 = vadd.f32 0.0, %v3555
      %v3557 = vpop.f32.mrf.mxu0
      %3558 = vmatprep.mubr.bf16.mxu0 0
      %3559 = vmatmul.mubr.bf16.gmra.mxu0 %v1326
      %v3560 = vpop.f32.mrf.mxu0
      %v3561 = vadd.f32 0.0, %v3560
      %v3562 = vpop.f32.mrf.mxu0
      %v3563 = vpop.f32.mrf.mxu0
      %v3564 = vadd.f32 0.0, %v3563
      %v3565 = vpop.f32.mrf.mxu0
      %3566 = vmatprep.mubr.bf16.mxu0 0
      %3567 = vmatmul.mubr.bf16.gmra.mxu0 %v1328
      %v3568 = vpop.f32.mrf.mxu0
      %v3569 = vadd.f32 0.0, %v3568
      %v3570 = vpop.f32.mrf.mxu0
      %v3571 = vpop.f32.mrf.mxu0
      %v3572 = vadd.f32 0.0, %v3571
      %v3573 = vpop.f32.mrf.mxu0
      %3574 = vmatprep.mubr.bf16.mxu0 0
      %3575 = vmatmul.mubr.bf16.gmra.mxu0 %v1330
      %v3576 = vpop.f32.mrf.mxu0
      %v3577 = vadd.f32 0.0, %v3576
      %v3578 = vpop.f32.mrf.mxu0
      %v3579 = vpop.f32.mrf.mxu0
      %v3580 = vadd.f32 0.0, %v3579
      %v3581 = vpop.f32.mrf.mxu0
      %3582 = vmatprep.mubr.bf16.mxu0 0
      %3583 = vmatmul.mubr.bf16.gmra.mxu0 %v1332
      %v3584 = vpop.f32.mrf.mxu0
      %v3585 = vadd.f32 0.0, %v3584
      %v3586 = vpop.f32.mrf.mxu0
      %v3587 = vpop.f32.mrf.mxu0
      %v3588 = vadd.f32 0.0, %v3587
      %v3589 = vpop.f32.mrf.mxu0
      %3590 = vmatprep.mubr.bf16.mxu0 0
      %3591 = vmatmul.mubr.bf16.gmra.mxu0 %v2681
      %v3592 = vpop.f32.mrf.mxu0
      %v3593 = vadd.f32 0.0, %v3592
      %v3594 = vpop.f32.mrf.mxu0
      %v3595 = vpop.f32.mrf.mxu0
      %v3596 = vadd.f32 0.0, %v3595
      %v3597 = vpop.f32.mrf.mxu0
      %3598 = vmatprep.mubr.bf16.mxu0 0
      %3599 = vmatmul.mubr.bf16.gmra.mxu0 %v1302
      %v3600 = vpop.f32.mrf.mxu0
      %v3601 = vadd.f32 0.0, %v3600
      %v3602 = vpop.f32.mrf.mxu0
      %v3603 = vpop.f32.mrf.mxu0
      %v3604 = vadd.f32 0.0, %v3603
      %v3605 = vpop.f32.mrf.mxu0
      %3606 = vdwg.mxu0
      %v3607 = vadd.f32 %v3397, %v3481
      %v3608 = vadd.f32 %v3398, %v3484
      %v3609 = vadd.f32 %v3399, %v3489
      %v3610 = vadd.f32 %v3400, %v3492
      %v3611 = vadd.f32 %v3401, %v3497
      %v3612 = vadd.f32 %v3402, %v3500
      %v3613 = vadd.f32 %v3403, %v3505
      %v3614 = vadd.f32 %v3404, %v3508
      %v3615 = vadd.f32 %v3405, %v3513
      %v3616 = vadd.f32 %v3406, %v3516
      %v3617 = vadd.f32 %v3407, %v3521
      %v3618 = vadd.f32 %v3408, %v3524
      %v3619 = vadd.f32 %v3409, %v3529
      %v3620 = vadd.f32 %v3410, %v3532
      %v3621 = vadd.f32 %v3411, %v3537
      %v3622 = vadd.f32 %v3412, %v3540
      %v3623 = vadd.f32 %v3413, %v3545
      %v3624 = vadd.f32 %v3414, %v3548
      %v3625 = vadd.f32 %v3415, %v3553
      %v3626 = vadd.f32 %v3416, %v3556
      %v3627 = vadd.f32 %v3417, %v3561
      %v3628 = vadd.f32 %v3418, %v3564
      %v3629 = vadd.f32 %v3419, %v3569
      %v3630 = vadd.f32 %v3420, %v3572
      %v3631 = vadd.f32 %v3421, %v3577
      %v3632 = vadd.f32 %v3422, %v3580
      %v3633 = vadd.f32 %v3423, %v3585
      %v3634 = vadd.f32 %v3424, %v3588
      %v3635 = vadd.f32 %v3425, %v3593
      %v3636 = vadd.f32 %v3426, %v3596
      %v3637 = vadd.f32 %v3427, %v3601
      %v3638 = vadd.f32 %v3428, %v3604
      %v3639 = vsel %vm2086, %v1720, 0
      %v3640 = vsel %vm2087, %v1723, 0
      %v3641 = vsel %vm2088, %v1726, 0
      %v3642 = vsel %vm2089, %v1729, 0
      %v3643 = vsel %vm2090, %v1732, 0
      %v3644 = vsel %vm2091, %v1735, 0
      %v3645 = vsel %vm2092, %v1738, 0
      %v3646 = vsel %vm2093, %v1741, 0
      %v3647 = vsel %vm2094, %v1744, 0
      %v3648 = vsel %vm2095, %v1747, 0
      %v3649 = vsel %vm2096, %v1750, 0
      %v3650 = vsel %vm2097, %v1753, 0
      %v3651 = vsel %vm2098, %v1756, 0
      %v3652 = vsel %vm2099, %v1762, 0
      %v3653 = vsel %vm2100, %v2878, 0
      %s3654 = scalar_lea.vmem %s3, 128
      %v3655 = vld [vmem:[%s3654] sm:$0xf]
      %v3656 = vld [vmem:[%s3654 + $0x4] sm:$0xf]
      %v3657 = vld [vmem:[%s3654 + $0x8] sm:$0xf]
      %v3658 = vld [vmem:[%s3654 + $0xc] sm:$0xf]
      %v3663 = vunpack.c.l.b16 %v3655
      %v3664 = vunpack.c.l.b16 %v3656
      %v3665 = vunpack.c.l.b16 %v3657
      %v3666 = vunpack.c.l.b16 %v3658
      %v3667 = vpack.c.b16 %v3664, %v3663
      %v3668 = vpack.c.b16 %v3666, %v3665
      %v3672 = vsel %vm1300, %v3639, 0
      %v3675 = vsel %vm1300, %v3640, 0
      %v3678 = vsel %vm1300, %v3641, 0
      %v3681 = vsel %vm1300, %v3642, 0
      %v3684 = vsel %vm1300, %v3643, 0
      %v3687 = vsel %vm1300, %v3644, 0
      %v3690 = vsel %vm1300, %v3645, 0
      %v3693 = vsel %vm1300, %v3646, 0
      %v3696 = vsel %vm1300, %v3647, 0
      %v3699 = vsel %vm1300, %v3648, 0
      %v3702 = vsel %vm1300, %v3649, 0
      %v3705 = vsel %vm1300, %v3650, 0
      %v3708 = vsel %vm1300, %v3651, 0
      %v3711 = vsel %vm1300, %v3652, 0
      %v3714 = vsel %vm1300, %v3653, 0
      %3716 = vmatprep.subr.bf16.mxu0 0
      %3717 = vmatpush1.bf16.msra.mxu0 0
      %3718 = vmatprep.subr.bf16.mxu0 0
      %3719 = vmatpush1.bf16.msra.mxu0 0
      %3720 = vmatprep.subr.bf16.mxu0 0
      %3721 = vmatpush1.bf16.msra.mxu0 0
      %3722 = vmatprep.subr.bf16.mxu0 0
      %3723 = vmatpush1.bf16.msra.mxu0 0
      %3724 = vmatprep.subr.bf16.mxu0 0
      %3725 = vmatpush1.bf16.msra.mxu0 0
      %3726 = vmatprep.subr.bf16.mxu0 0
      %3727 = vmatpush1.bf16.msra.mxu0 0
      %3728 = vmatprep.subr.bf16.mxu0 0
      %3729 = vmatpush1.bf16.msra.mxu0 %v3668
      %3730 = vmatprep.subr.bf16.mxu0 0
      %3731 = vmatpush1.bf16.msra.mxu0 %v3667
      %3732 = vmatprep.subr.bf16.mxu0 0
      %3733 = vmatpush2.bf16.msra.mxu0 0
      %3734 = vmatprep.subr.bf16.mxu0 0
      %3735 = vmatpush2.bf16.msra.mxu0 0
      %3736 = vmatprep.subr.bf16.mxu0 0
      %3737 = vmatpush2.bf16.msra.mxu0 0
      %3738 = vmatprep.subr.bf16.mxu0 0
      %3739 = vmatpush2.bf16.msra.mxu0 0
      %3740 = vmatprep.subr.bf16.mxu0 0
      %3741 = vmatpush2.bf16.msra.mxu0 0
      %3742 = vmatprep.subr.bf16.mxu0 0
      %3743 = vmatpush2.bf16.msra.mxu0 0
      %3744 = vmatprep.subr.bf16.mxu0 0
      %3745 = vmatpush2.bf16.msra.mxu0 0
      %3746 = vmatprep.subr.bf16.mxu0 0
      %3747 = vmatpush2.bf16.msra.mxu0 0
      %3748 = vmatprep.mubr.bf16.mxu0 0
      %3749 = vmatmul.mubr.bf16.gmra.mxu0 %v3672
      %v3750 = vpop.f32.mrf.mxu0
      %v3751 = vadd.f32 0.0, %v3750
      %v3752 = vpop.f32.mrf.mxu0
      %v3753 = vpop.f32.mrf.mxu0
      %v3754 = vadd.f32 0.0, %v3753
      %v3755 = vpop.f32.mrf.mxu0
      %3756 = vmatprep.mubr.bf16.mxu0 0
      %3757 = vmatmul.mubr.bf16.gmra.mxu0 %v3675
      %v3758 = vpop.f32.mrf.mxu0
      %v3759 = vadd.f32 0.0, %v3758
      %v3760 = vpop.f32.mrf.mxu0
      %v3761 = vpop.f32.mrf.mxu0
      %v3762 = vadd.f32 0.0, %v3761
      %v3763 = vpop.f32.mrf.mxu0
      %3764 = vmatprep.mubr.bf16.mxu0 0
      %3765 = vmatmul.mubr.bf16.gmra.mxu0 %v3678
      %v3766 = vpop.f32.mrf.mxu0
      %v3767 = vadd.f32 0.0, %v3766
      %v3768 = vpop.f32.mrf.mxu0
      %v3769 = vpop.f32.mrf.mxu0
      %v3770 = vadd.f32 0.0, %v3769
      %v3771 = vpop.f32.mrf.mxu0
      %3772 = vmatprep.mubr.bf16.mxu0 0
      %3773 = vmatmul.mubr.bf16.gmra.mxu0 %v3681
      %v3774 = vpop.f32.mrf.mxu0
      %v3775 = vadd.f32 0.0, %v3774
      %v3776 = vpop.f32.mrf.mxu0
      %v3777 = vpop.f32.mrf.mxu0
      %v3778 = vadd.f32 0.0, %v3777
      %v3779 = vpop.f32.mrf.mxu0
      %3780 = vmatprep.mubr.bf16.mxu0 0
      %3781 = vmatmul.mubr.bf16.gmra.mxu0 %v3684
      %v3782 = vpop.f32.mrf.mxu0
      %v3783 = vadd.f32 0.0, %v3782
      %v3784 = vpop.f32.mrf.mxu0
      %v3785 = vpop.f32.mrf.mxu0
      %v3786 = vadd.f32 0.0, %v3785
      %v3787 = vpop.f32.mrf.mxu0
      %3788 = vmatprep.mubr.bf16.mxu0 0
      %3789 = vmatmul.mubr.bf16.gmra.mxu0 %v3687
      %v3790 = vpop.f32.mrf.mxu0
      %v3791 = vadd.f32 0.0, %v3790
      %v3792 = vpop.f32.mrf.mxu0
      %v3793 = vpop.f32.mrf.mxu0
      %v3794 = vadd.f32 0.0, %v3793
      %v3795 = vpop.f32.mrf.mxu0
      %3796 = vmatprep.mubr.bf16.mxu0 0
      %3797 = vmatmul.mubr.bf16.gmra.mxu0 %v3690
      %v3798 = vpop.f32.mrf.mxu0
      %v3799 = vadd.f32 0.0, %v3798
      %v3800 = vpop.f32.mrf.mxu0
      %v3801 = vpop.f32.mrf.mxu0
      %v3802 = vadd.f32 0.0, %v3801
      %v3803 = vpop.f32.mrf.mxu0
      %3804 = vmatprep.mubr.bf16.mxu0 0
      %3805 = vmatmul.mubr.bf16.gmra.mxu0 %v3693
      %v3806 = vpop.f32.mrf.mxu0
      %v3807 = vadd.f32 0.0, %v3806
      %v3808 = vpop.f32.mrf.mxu0
      %v3809 = vpop.f32.mrf.mxu0
      %v3810 = vadd.f32 0.0, %v3809
      %v3811 = vpop.f32.mrf.mxu0
      %3812 = vmatprep.mubr.bf16.mxu0 0
      %3813 = vmatmul.mubr.bf16.gmra.mxu0 %v3696
      %v3814 = vpop.f32.mrf.mxu0
      %v3815 = vadd.f32 0.0, %v3814
      %v3816 = vpop.f32.mrf.mxu0
      %v3817 = vpop.f32.mrf.mxu0
      %v3818 = vadd.f32 0.0, %v3817
      %v3819 = vpop.f32.mrf.mxu0
      %3820 = vmatprep.mubr.bf16.mxu0 0
      %3821 = vmatmul.mubr.bf16.gmra.mxu0 %v3699
      %v3822 = vpop.f32.mrf.mxu0
      %v3823 = vadd.f32 0.0, %v3822
      %v3824 = vpop.f32.mrf.mxu0
      %v3825 = vpop.f32.mrf.mxu0
      %v3826 = vadd.f32 0.0, %v3825
      %v3827 = vpop.f32.mrf.mxu0
      %3828 = vmatprep.mubr.bf16.mxu0 0
      %3829 = vmatmul.mubr.bf16.gmra.mxu0 %v3702
      %v3830 = vpop.f32.mrf.mxu0
      %v3831 = vadd.f32 0.0, %v3830
      %v3832 = vpop.f32.mrf.mxu0
      %v3833 = vpop.f32.mrf.mxu0
      %v3834 = vadd.f32 0.0, %v3833
      %v3835 = vpop.f32.mrf.mxu0
      %3836 = vmatprep.mubr.bf16.mxu0 0
      %3837 = vmatmul.mubr.bf16.gmra.mxu0 %v3705
      %v3838 = vpop.f32.mrf.mxu0
      %v3839 = vadd.f32 0.0, %v3838
      %v3840 = vpop.f32.mrf.mxu0
      %v3841 = vpop.f32.mrf.mxu0
      %v3842 = vadd.f32 0.0, %v3841
      %v3843 = vpop.f32.mrf.mxu0
      %3844 = vmatprep.mubr.bf16.mxu0 0
      %3845 = vmatmul.mubr.bf16.gmra.mxu0 %v3708
      %v3846 = vpop.f32.mrf.mxu0
      %v3847 = vadd.f32 0.0, %v3846
      %v3848 = vpop.f32.mrf.mxu0
      %v3849 = vpop.f32.mrf.mxu0
      %v3850 = vadd.f32 0.0, %v3849
      %v3851 = vpop.f32.mrf.mxu0
      %3852 = vmatprep.mubr.bf16.mxu0 0
      %3853 = vmatmul.mubr.bf16.gmra.mxu0 %v3711
      %v3854 = vpop.f32.mrf.mxu0
      %v3855 = vadd.f32 0.0, %v3854
      %v3856 = vpop.f32.mrf.mxu0
      %v3857 = vpop.f32.mrf.mxu0
      %v3858 = vadd.f32 0.0, %v3857
      %v3859 = vpop.f32.mrf.mxu0
      %3860 = vmatprep.mubr.bf16.mxu0 0
      %3861 = vmatmul.mubr.bf16.gmra.mxu0 %v3714
      %v3862 = vpop.f32.mrf.mxu0
      %v3863 = vadd.f32 0.0, %v3862
      %v3864 = vpop.f32.mrf.mxu0
      %v3865 = vpop.f32.mrf.mxu0
      %v3866 = vadd.f32 0.0, %v3865
      %v3867 = vpop.f32.mrf.mxu0
      %3868 = vmatprep.mubr.bf16.mxu0 0
      %3869 = vmatmul.mubr.bf16.gmra.mxu0 %v1302
      %v3870 = vpop.f32.mrf.mxu0
      %v3871 = vadd.f32 0.0, %v3870
      %v3872 = vpop.f32.mrf.mxu0
      %v3873 = vpop.f32.mrf.mxu0
      %v3874 = vadd.f32 0.0, %v3873
      %v3875 = vpop.f32.mrf.mxu0
      %3876 = vdwg.mxu0
      %v3877 = vadd.f32 %v3607, %v3751
      %v3878 = vadd.f32 %v3608, %v3754
      %v3879 = vadd.f32 %v3609, %v3759
      %v3880 = vadd.f32 %v3610, %v3762
      %v3881 = vadd.f32 %v3611, %v3767
      %v3882 = vadd.f32 %v3612, %v3770
      %v3883 = vadd.f32 %v3613, %v3775
      %v3884 = vadd.f32 %v3614, %v3778
      %v3885 = vadd.f32 %v3615, %v3783
      %v3886 = vadd.f32 %v3616, %v3786
      %v3887 = vadd.f32 %v3617, %v3791
      %v3888 = vadd.f32 %v3618, %v3794
      %v3889 = vadd.f32 %v3619, %v3799
      %v3890 = vadd.f32 %v3620, %v3802
      %v3891 = vadd.f32 %v3621, %v3807
      %v3892 = vadd.f32 %v3622, %v3810
      %v3893 = vadd.f32 %v3623, %v3815
      %v3894 = vadd.f32 %v3624, %v3818
      %v3895 = vadd.f32 %v3625, %v3823
      %v3896 = vadd.f32 %v3626, %v3826
      %v3897 = vadd.f32 %v3627, %v3831
      %v3898 = vadd.f32 %v3628, %v3834
      %v3899 = vadd.f32 %v3629, %v3839
      %v3900 = vadd.f32 %v3630, %v3842
      %v3901 = vadd.f32 %v3631, %v3847
      %v3902 = vadd.f32 %v3632, %v3850
      %v3903 = vadd.f32 %v3633, %v3855
      %v3904 = vadd.f32 %v3634, %v3858
      %v3905 = vadd.f32 %v3635, %v3863
      %v3906 = vadd.f32 %v3636, %v3866
      %v3907 = vadd.f32 %v3637, %v3871
      %v3908 = vadd.f32 %v3638, %v3874
      %vm3909 = vcmask 64512
      %3910 = vst.msk [vmem:[%s231] sm:$0xff] %vm3909, %v3877
      %3911 = vst.msk [vmem:[%s231 + $0x8] sm:$0xff] %vm3909, %v3878
      %3912 = vst.msk [vmem:[%s231 + $0x10] sm:$0xff] %vm3909, %v3879
      %3913 = vst.msk [vmem:[%s231 + $0x18] sm:$0xff] %vm3909, %v3880
      %3914 = vst.msk [vmem:[%s231 + $0x20] sm:$0xff] %vm3909, %v3881
      %3915 = vst.msk [vmem:[%s231 + $0x28] sm:$0xff] %vm3909, %v3882
      %3916 = vst.msk [vmem:[%s231 + $0x30] sm:$0xff] %vm3909, %v3883
      %3917 = vst.msk [vmem:[%s231 + $0x38] sm:$0xff] %vm3909, %v3884
      %3918 = vst.msk [vmem:[%s231 + $0x40] sm:$0xff] %vm3909, %v3885
      %3919 = vst.msk [vmem:[%s231 + $0x48] sm:$0xff] %vm3909, %v3886
      %3920 = vst.msk [vmem:[%s231 + $0x50] sm:$0xff] %vm3909, %v3887
      %3921 = vst.msk [vmem:[%s231 + $0x58] sm:$0xff] %vm3909, %v3888
      %3922 = vst.msk [vmem:[%s231 + $0x60] sm:$0xff] %vm3909, %v3889
      %3923 = vst.msk [vmem:[%s231 + $0x68] sm:$0xff] %vm3909, %v3890
      %3924 = vst.msk [vmem:[%s231 + $0x70] sm:$0xff] %vm3909, %v3891
      %3925 = vst.msk [vmem:[%s231 + $0x78] sm:$0xff] %vm3909, %v3892
      %3926 = vst.msk [vmem:[%s231 + $0x80] sm:$0xff] %vm3909, %v3893
      %3927 = vst.msk [vmem:[%s231 + $0x88] sm:$0xff] %vm3909, %v3894
      %3928 = vst.msk [vmem:[%s231 + $0x90] sm:$0xff] %vm3909, %v3895
      %3929 = vst.msk [vmem:[%s231 + $0x98] sm:$0xff] %vm3909, %v3896
      %3930 = vst.msk [vmem:[%s231 + $0xa0] sm:$0xff] %vm3909, %v3897
      %3931 = vst.msk [vmem:[%s231 + $0xa8] sm:$0xff] %vm3909, %v3898
      %3932 = vst.msk [vmem:[%s231 + $0xb0] sm:$0xff] %vm3909, %v3899
      %3933 = vst.msk [vmem:[%s231 + $0xb8] sm:$0xff] %vm3909, %v3900
      %3934 = vst.msk [vmem:[%s231 + $0xc0] sm:$0xff] %vm3909, %v3901
      %3935 = vst.msk [vmem:[%s231 + $0xc8] sm:$0xff] %vm3909, %v3902
      %3936 = vst.msk [vmem:[%s231 + $0xd0] sm:$0xff] %vm3909, %v3903
      %3937 = vst.msk [vmem:[%s231 + $0xd8] sm:$0xff] %vm3909, %v3904
      %3938 = vst.msk [vmem:[%s231 + $0xe0] sm:$0xff] %vm3909, %v3905
      %3939 = vst.msk [vmem:[%s231 + $0xe8] sm:$0xff] %vm3909, %v3906
      %3940 = vst.msk [vmem:[%s231 + $0xf0] sm:$0xff] %vm3909, %v3907
      %3941 = vst.msk [vmem:[%s231 + $0xf8] sm:$0xff] %vm3909, %v3908
      %v3942 = vsel %vm3909, %v3877, 0.0
      %v3943 = vsel %vm3909, %v3878, 0.0
      %v3944 = vadd.f32 %v3942, %v3943
      %v3945 = vsel %vm3909, %v3879, 0.0
      %v3946 = vadd.f32 %v3944, %v3945
      %v3947 = vsel %vm3909, %v3880, 0.0
      %v3948 = vadd.f32 %v3946, %v3947
      %v3949 = vsel %vm3909, %v3881, 0.0
      %v3950 = vadd.f32 %v3948, %v3949
      %v3951 = vsel %vm3909, %v3882, 0.0
      %v3952 = vadd.f32 %v3950, %v3951
      %v3953 = vsel %vm3909, %v3883, 0.0
      %v3954 = vadd.f32 %v3952, %v3953
      %v3955 = vsel %vm3909, %v3884, 0.0
      %v3956 = vadd.f32 %v3954, %v3955
      %v3957 = vsel %vm3909, %v3885, 0.0
      %v3958 = vadd.f32 %v3956, %v3957
      %v3959 = vsel %vm3909, %v3886, 0.0
      %v3960 = vadd.f32 %v3958, %v3959
      %v3961 = vsel %vm3909, %v3887, 0.0
      %v3962 = vadd.f32 %v3960, %v3961
      %v3963 = vsel %vm3909, %v3888, 0.0
      %v3964 = vadd.f32 %v3962, %v3963
      %v3965 = vsel %vm3909, %v3889, 0.0
      %v3966 = vadd.f32 %v3964, %v3965
      %v3967 = vsel %vm3909, %v3890, 0.0
      %v3968 = vadd.f32 %v3966, %v3967
      %v3969 = vsel %vm3909, %v3891, 0.0
      %v3970 = vadd.f32 %v3968, %v3969
      %v3971 = vsel %vm3909, %v3892, 0.0
      %v3972 = vadd.f32 %v3970, %v3971
      %v3973 = vsel %vm3909, %v3893, 0.0
      %v3974 = vadd.f32 %v3972, %v3973
      %v3975 = vsel %vm3909, %v3894, 0.0
      %v3976 = vadd.f32 %v3974, %v3975
      %v3977 = vsel %vm3909, %v3895, 0.0
      %v3978 = vadd.f32 %v3976, %v3977
      %v3979 = vsel %vm3909, %v3896, 0.0
      %v3980 = vadd.f32 %v3978, %v3979
      %v3981 = vsel %vm3909, %v3897, 0.0
      %v3982 = vadd.f32 %v3980, %v3981
      %v3983 = vsel %vm3909, %v3898, 0.0
      %v3984 = vadd.f32 %v3982, %v3983
      %v3985 = vsel %vm3909, %v3899, 0.0
      %v3986 = vadd.f32 %v3984, %v3985
      %v3987 = vsel %vm3909, %v3900, 0.0
      %v3988 = vadd.f32 %v3986, %v3987
      %v3989 = vsel %vm3909, %v3901, 0.0
      %v3990 = vadd.f32 %v3988, %v3989
      %v3991 = vsel %vm3909, %v3902, 0.0
      %v3992 = vadd.f32 %v3990, %v3991
      %v3993 = vsel %vm3909, %v3903, 0.0
      %v3994 = vadd.f32 %v3992, %v3993
      %v3995 = vsel %vm3909, %v3904, 0.0
      %v3996 = vadd.f32 %v3994, %v3995
      %v3997 = vsel %vm3909, %v3905, 0.0
      %v3998 = vadd.f32 %v3996, %v3997
      %v3999 = vsel %vm3909, %v3906, 0.0
      %v4000 = vadd.f32 %v3998, %v3999
      %v4001 = vsel %vm3909, %v3907, 0.0
      %v4002 = vadd.f32 %v4000, %v4001
      %v4003 = vsel %vm3909, %v3908, 0.0
      %v4004 = vadd.f32 %v4002, %v4003
      %v4005 = vrot.slane %v4004, 4
      %v4006 = vadd.f32 %v4004, %v4005
      %v4007 = vrot.slane %v4006, 2
      %v4008 = vadd.f32 %v4006, %v4007
      %v4009 = vrot.slane %v4008, 1
      %v4010 = vadd.f32 %v4008, %v4009
      %v4011 = vmul.f32 %v3877, %v3877
      %v4012 = vmul.f32 %v3878, %v3878
      %v4013 = vmul.f32 %v3879, %v3879
      %v4014 = vmul.f32 %v3880, %v3880
      %v4015 = vmul.f32 %v3881, %v3881
      %v4016 = vmul.f32 %v3882, %v3882
      %v4017 = vmul.f32 %v3883, %v3883
      %v4018 = vmul.f32 %v3884, %v3884
      %v4019 = vmul.f32 %v3885, %v3885
      %v4020 = vmul.f32 %v3886, %v3886
      %v4021 = vmul.f32 %v3887, %v3887
      %v4022 = vmul.f32 %v3888, %v3888
      %v4023 = vmul.f32 %v3889, %v3889
      %v4024 = vmul.f32 %v3890, %v3890
      %v4025 = vmul.f32 %v3891, %v3891
      %v4026 = vmul.f32 %v3892, %v3892
      %v4027 = vmul.f32 %v3893, %v3893
      %v4028 = vmul.f32 %v3894, %v3894
      %v4029 = vmul.f32 %v3895, %v3895
      %v4030 = vmul.f32 %v3896, %v3896
      %v4031 = vmul.f32 %v3897, %v3897
      %v4032 = vmul.f32 %v3898, %v3898
      %v4033 = vmul.f32 %v3899, %v3899
      %v4034 = vmul.f32 %v3900, %v3900
      %v4035 = vmul.f32 %v3901, %v3901
      %v4036 = vmul.f32 %v3902, %v3902
      %v4037 = vmul.f32 %v3903, %v3903
      %v4038 = vmul.f32 %v3904, %v3904
      %v4039 = vmul.f32 %v3905, %v3905
      %v4040 = vmul.f32 %v3906, %v3906
      %v4041 = vmul.f32 %v3907, %v3907
      %v4042 = vmul.f32 %v3908, %v3908
      %v4043 = vsel %vm3909, %v4011, 0.0
      %v4044 = vsel %vm3909, %v4012, 0.0
      %v4045 = vadd.f32 %v4043, %v4044
      %v4046 = vsel %vm3909, %v4013, 0.0
      %v4047 = vadd.f32 %v4045, %v4046
      %v4048 = vsel %vm3909, %v4014, 0.0
      %v4049 = vadd.f32 %v4047, %v4048
      %v4050 = vsel %vm3909, %v4015, 0.0
      %v4051 = vadd.f32 %v4049, %v4050
      %v4052 = vsel %vm3909, %v4016, 0.0
      %v4053 = vadd.f32 %v4051, %v4052
      %v4054 = vsel %vm3909, %v4017, 0.0
      %v4055 = vadd.f32 %v4053, %v4054
      %v4056 = vsel %vm3909, %v4018, 0.0
      %v4057 = vadd.f32 %v4055, %v4056
      %v4058 = vsel %vm3909, %v4019, 0.0
      %v4059 = vadd.f32 %v4057, %v4058
      %v4060 = vsel %vm3909, %v4020, 0.0
      %v4061 = vadd.f32 %v4059, %v4060
      %v4062 = vsel %vm3909, %v4021, 0.0
      %v4063 = vadd.f32 %v4061, %v4062
      %v4064 = vsel %vm3909, %v4022, 0.0
      %v4065 = vadd.f32 %v4063, %v4064
      %v4066 = vsel %vm3909, %v4023, 0.0
      %v4067 = vadd.f32 %v4065, %v4066
      %v4068 = vsel %vm3909, %v4024, 0.0
      %v4069 = vadd.f32 %v4067, %v4068
      %v4070 = vsel %vm3909, %v4025, 0.0
      %v4071 = vadd.f32 %v4069, %v4070
      %v4072 = vsel %vm3909, %v4026, 0.0
      %v4073 = vadd.f32 %v4071, %v4072
      %v4074 = vsel %vm3909, %v4027, 0.0
      %v4075 = vadd.f32 %v4073, %v4074
      %v4076 = vsel %vm3909, %v4028, 0.0
      %v4077 = vadd.f32 %v4075, %v4076
      %v4078 = vsel %vm3909, %v4029, 0.0
      %v4079 = vadd.f32 %v4077, %v4078
      %v4080 = vsel %vm3909, %v4030, 0.0
      %v4081 = vadd.f32 %v4079, %v4080
      %v4082 = vsel %vm3909, %v4031, 0.0
      %v4083 = vadd.f32 %v4081, %v4082
      %v4084 = vsel %vm3909, %v4032, 0.0
      %v4085 = vadd.f32 %v4083, %v4084
      %v4086 = vsel %vm3909, %v4033, 0.0
      %v4087 = vadd.f32 %v4085, %v4086
      %v4088 = vsel %vm3909, %v4034, 0.0
      %v4089 = vadd.f32 %v4087, %v4088
      %v4090 = vsel %vm3909, %v4035, 0.0
      %v4091 = vadd.f32 %v4089, %v4090
      %v4092 = vsel %vm3909, %v4036, 0.0
      %v4093 = vadd.f32 %v4091, %v4092
      %v4094 = vsel %vm3909, %v4037, 0.0
      %v4095 = vadd.f32 %v4093, %v4094
      %v4096 = vsel %vm3909, %v4038, 0.0
      %v4097 = vadd.f32 %v4095, %v4096
      %v4098 = vsel %vm3909, %v4039, 0.0
      %v4099 = vadd.f32 %v4097, %v4098
      %v4100 = vsel %vm3909, %v4040, 0.0
      %v4101 = vadd.f32 %v4099, %v4100
      %v4102 = vsel %vm3909, %v4041, 0.0
      %v4103 = vadd.f32 %v4101, %v4102
      %v4104 = vsel %vm3909, %v4042, 0.0
      %v4105 = vadd.f32 %v4103, %v4104
      %v4106 = vrot.slane %v4105, 4
      %v4107 = vadd.f32 %v4105, %v4106
      %v4108 = vrot.slane %v4107, 2
      %v4109 = vadd.f32 %v4107, %v4108
      %v4110 = vrot.slane %v4109, 1
      %v4111 = vadd.f32 %v4109, %v4110
      %vm4112 = vcmask 1040384
      %v4113 = vsel %vm4112, %v4010, %v4111
      %vm4114 = vcmask 58368
      %4115 = vst.msk [vmem:[%s235] sm:$0x3] %vm4114, %v4113
      %p4116 = scmp.lt.s32.totalorder %s17, 1
      %s4117 = scalar_select %p4116, %s17, 1
      %s4118 = smul.addr %s4117, 32
      %s4119 = smul.addr %s4118, 8
      %s4120 = scalar_lea.vmem %s4, %s4119
      %p4121 = scmp.lt.s32.totalorder %s17, 1
      %s4122 = scalar_select %p4121, %s17, 1
      %s4123 = smul.addr %s4122, 2
      %s4124 = scalar_lea.vmem %s5, %s4123
      // Predicated region
      $region37: #{dense_block_forward.7} parent=35 // pred_check
        %p4125 = pneg %p124
      $region38: #{dense_block_forward.7} parent=35 // pred_check_branch
        %4127 = sbr.rel (%p4125) target = $region40
      $region39: #{dense_block_forward.7} parent=35 // pred_region
        _
      $region40: #{dense_block_forward.7} parent=35 // pred_fallthru
        _
      // Predicated region
      $region41: #{dense_block_forward.7} parent=35 // pred_check
        %p4128 = pneg %p150
      $region42: #{dense_block_forward.7} parent=35 // pred_check_branch
        %4130 = sbr.rel (%p4128) target = $region44
      $region43: #{dense_block_forward.7} parent=35 // pred_region
        _
      $region44: #{dense_block_forward.7} parent=35 // pred_fallthru
        _
    $region36: #{dense_block_forward.7} parent=5 // pred_fallthru
      _
    %p4131 = scmp.le.s32.totalorder 2, %s12
    // Predicated region
    $region45: #{dense_block_forward.7} parent=5 // pred_check
      %p4132 = pneg %p4131
    $region46: #{dense_block_forward.7} parent=5 // pred_check_branch
      %4134 = sbr.rel (%p4132) target = $region48
    $region47: #{dense_block_forward.7} parent=5 // pred_region
      %s4135 = ssub.s32 %s12, 2
      // Predicated region
      $region49: #{dense_block_forward.7} parent=47 // pred_check
        %p4136 = pneg %p130
      $region50: #{dense_block_forward.7} parent=47 // pred_check_branch
        %4138 = sbr.rel (%p4136) target = $region52
      $region51: #{dense_block_forward.7} parent=47 // pred_region
        %p4139 = scmp.lt.s32.totalorder %s18, 1
        %s4140 = scalar_select %p4139, %s18, 1
        %s4141 = smul.addr %s4140, 32
        %s4142 = smul.addr %s4141, 8
        %s4143 = scalar_lea.vmem %s4, %s4142
      $region52: #{dense_block_forward.7} parent=47 // pred_fallthru
        _
      // Predicated region
      $region53: #{dense_block_forward.7} parent=47 // pred_check
        %p4144 = pneg %p156
      $region54: #{dense_block_forward.7} parent=47 // pred_check_branch
        %4146 = sbr.rel (%p4144) target = $region56
      $region55: #{dense_block_forward.7} parent=47 // pred_region
        %p4147 = scmp.lt.s32.totalorder %s18, 1
        %s4148 = scalar_select %p4147, %s18, 1
        %s4149 = smul.addr %s4148, 2
        %s4150 = scalar_lea.vmem %s5, %s4149
      $region56: #{dense_block_forward.7} parent=47 // pred_fallthru
        _
    $region48: #{dense_block_forward.7} parent=5 // pred_fallthru
      _
  $region6: #{dense_block_forward.7} parent=0 // loop_footer
    %s16 = sadd.s32 1, %s12
  $region7: #{dense_block_forward.7} parent=0 // loop_footer_branch
    %11 = sbr.rel target = $region3
  $region8: #{dense_block_forward.7} parent=0 // loop_exit
    _

// kernel: dense_block_forward.11
$region0: #{dense_block_forward.11}
  #allocation0 [shape = 'u32[]', space=smem, size = 0x4, offset = 0x4, fixed_abs, tag = 'smem constant byte address 0x4 - core index']
  #allocation1 [shape = 'u32[144,128]{1,0:T(1,128)}', space=vmem, size = 0x12000, scoped, tag = 'internal scratch']
  %s0 = inlined_call_operand.vmem [shape: f32[2,256,32], index: 0, kind: input, shape index: {}]
  %s1 = inlined_call_operand.vmem [shape: f32[1,32], index: 1, kind: input, shape index: {}]
  %s2 = inlined_call_operand.vmem [shape: f32[1,32], index: 2, kind: input, shape index: {}]
  %s3 = inlined_call_operand.vmem [shape: bf16[9,32,8], index: 3, kind: input, shape index: {}]
  %s4 = inlined_call_operand.vmem [shape: f32[2,256,8], index: 4, kind: output, shape index: {0}]
  %s5 = inlined_call_operand.hbm [shape: f32[2,2,8], index: 5, kind: output, shape index: {1}]
  %6 = xla_tuple %s4, %s5
  %s7 = sld [smem:[#allocation0]]
  $region57: #{dense_block_forward.11} parent=0
    _
  %s9 = ssub.s32 1, %s7
  %s10 = scalar_select 0, %s9, %s7
  $region1: #{dense_block_forward.11} parent=0
    #allocation2 [shape = 'u8[2048]{0}', space=vmem, size = 0x800, scoped, tag = 'output window, operand 1']
    #allocation3 [shape = 's32[2]{0}', space=sflag, size = 0x8, scoped, tag = 'scoped memory for dense_block_forward.11']
    %11 = vsyncpa [#allocation3], 0
    %s12 = scalar_lea.sflag [#allocation3], 1
    %13 = vsyncpa %s12, 0
    loop: start=0, step=1, limit=4
    $region2: #{dense_block_forward.11} parent=1 // loop_pre_header
      _
    $region3: #{dense_block_forward.11} parent=1 // loop_header
      %s15 = sphi 0, %s19
      %p16 = scmp.ge.s32.totalorder %s15, 4
      %s25 = sphi 0, %s27
      %s28 = sphi 0, %s25
      %s29 = sphi 0, %s28
      %s45 = sphi 0, %s29
      %s49 = sphi 0, %s49
      %s51 = sphi 0, %s49
      %s52 = sphi 0, %s51
      %s66 = sphi 0, %s52
      %s70 = sphi 0, %s70
      %s72 = sphi 0, %s70
      %s73 = sphi 0, %s72
      %s87 = sphi 0, %s73
      %s91 = sphi 0, %s91
      %s93 = sphi 0, %s91
      %s94 = sphi 0, %s93
      %s108 = sphi 0, %s94
      %s114 = sphi 0, %s116
      %s117 = sphi 0, %s114
      %s118 = sphi 0, %s117
      %s134 = sphi 0, %s118
      %s140 = sphi 0, %s142
      %s143 = sphi 0, %s140
      %s144 = sphi 0, %s143
      %s160 = sphi 0, %s144
    $region4: #{dense_block_forward.11} parent=1 // loop_header_branch
      %18 = sbr.rel (%p16) target = $region8
    $region5: #{dense_block_forward.11} parent=1 // loop_body
      %s20 = ssub.s32 %s15, 1
      %s21 = ssub.s32 %s15, 2
      %s22 = sadd.s32 %s15, 1
      %s23 = ssub.s32 %s15, %s22
      %p24 = scmp.eq.s32.totalorder %s23, 0
      %s26 = sadd.s32 %s25, 1
      %s27 = scalar_select %p24, %s25, %s26
      %p30 = pneg %p24
      %p31 = scmp.eq.s32.totalorder %s15, 1
      %p32 = por %p30, %p31
      %p33 = scmp.ne.s32.totalorder %s25, %s28
      %p34 = scmp.eq.s32.totalorder %s15, 0
      %p35 = por %p33, %p34
      %p36 = scmp.ne.s32.totalorder %s25, %s28
      %p37 = scmp.eq.s32.totalorder %s20, 1
      %p38 = por %p36, %p37
      %p39 = scmp.ne.s32.totalorder %s28, %s29
      %p40 = scmp.eq.s32.totalorder %s20, 0
      %p41 = por %p39, %p40
      %p42 = scmp.ne.s32.totalorder %s28, %s29
      %p43 = scmp.eq.s32.totalorder %s21, 1
      %p44 = por %p42, %p43
      %p46 = scmp.ne.s32.totalorder %s29, %s45
      %p47 = scmp.eq.s32.totalorder %s21, 0
      %p48 = por %p46, %p47
      %s50 = sadd.s32 %s49, 1
      %p53 = scmp.eq.s32.totalorder %s15, 1
      %p54 = scmp.ne.s32.totalorder %s49, %s51
      %p55 = scmp.eq.s32.totalorder %s15, 0
      %p56 = por %p54, %p55
      %p57 = scmp.ne.s32.totalorder %s49, %s51
      %p58 = scmp.eq.s32.totalorder %s20, 1
      %p59 = por %p57, %p58
      %p60 = scmp.ne.s32.totalorder %s51, %s52
      %p61 = scmp.eq.s32.totalorder %s20, 0
      %p62 = por %p60, %p61
      %p63 = scmp.ne.s32.totalorder %s51, %s52
      %p64 = scmp.eq.s32.totalorder %s21, 1
      %p65 = por %p63, %p64
      %p67 = scmp.ne.s32.totalorder %s52, %s66
      %p68 = scmp.eq.s32.totalorder %s21, 0
      %p69 = por %p67, %p68
      %s71 = sadd.s32 %s70, 1
      %p74 = scmp.eq.s32.totalorder %s15, 1
      %p75 = scmp.ne.s32.totalorder %s70, %s72
      %p76 = scmp.eq.s32.totalorder %s15, 0
      %p77 = por %p75, %p76
      %p78 = scmp.ne.s32.totalorder %s70, %s72
      %p79 = scmp.eq.s32.totalorder %s20, 1
      %p80 = por %p78, %p79
      %p81 = scmp.ne.s32.totalorder %s72, %s73
      %p82 = scmp.eq.s32.totalorder %s20, 0
      %p83 = por %p81, %p82
      %p84 = scmp.ne.s32.totalorder %s72, %s73
      %p85 = scmp.eq.s32.totalorder %s21, 1
      %p86 = por %p84, %p85
      %p88 = scmp.ne.s32.totalorder %s73, %s87
      %p89 = scmp.eq.s32.totalorder %s21, 0
      %p90 = por %p88, %p89
      %s92 = sadd.s32 %s91, 1
      %p95 = scmp.eq.s32.totalorder %s15, 1
      %p96 = scmp.ne.s32.totalorder %s91, %s93
      %p97 = scmp.eq.s32.totalorder %s15, 0
      %p98 = por %p96, %p97
      %p99 = scmp.ne.s32.totalorder %s91, %s93
      %p100 = scmp.eq.s32.totalorder %s20, 1
      %p101 = por %p99, %p100
      %p102 = scmp.ne.s32.totalorder %s93, %s94
      %p103 = scmp.eq.s32.totalorder %s20, 0
      %p104 = por %p102, %p103
      %p105 = scmp.ne.s32.totalorder %s93, %s94
      %p106 = scmp.eq.s32.totalorder %s21, 1
      %p107 = por %p105, %p106
      %p109 = scmp.ne.s32.totalorder %s94, %s108
      %p110 = scmp.eq.s32.totalorder %s21, 0
      %p111 = por %p109, %p110
      %s112 = ssub.s32 %s15, %s22
      %p113 = scmp.eq.s32.totalorder %s112, 0
      %s115 = sadd.s32 %s114, 1
      %s116 = scalar_select %p113, %s114, %s115
      %p119 = pneg %p113
      %p120 = scmp.eq.s32.totalorder %s15, 1
      %p121 = por %p119, %p120
      %p122 = scmp.ne.s32.totalorder %s114, %s117
      %p123 = scmp.eq.s32.totalorder %s15, 0
      %p124 = por %p122, %p123
      %p125 = scmp.ne.s32.totalorder %s114, %s117
      %p126 = scmp.eq.s32.totalorder %s20, 1
      %p127 = por %p125, %p126
      %p128 = scmp.ne.s32.totalorder %s117, %s118
      %p129 = scmp.eq.s32.totalorder %s20, 0
      %p130 = por %p128, %p129
      %p131 = scmp.ne.s32.totalorder %s117, %s118
      %p132 = scmp.eq.s32.totalorder %s21, 1
      %p133 = por %p131, %p132
      %p135 = scmp.ne.s32.totalorder %s118, %s134
      %p136 = scmp.eq.s32.totalorder %s21, 0
      %p137 = por %p135, %p136
      %s138 = ssub.s32 %s15, %s22
      %p139 = scmp.eq.s32.totalorder %s138, 0
      %s141 = sadd.s32 %s140, 1
      %s142 = scalar_select %p139, %s140, %s141
      %p145 = pneg %p139
      %p146 = scmp.eq.s32.totalorder %s15, 1
      %p147 = por %p145, %p146
      %p148 = scmp.ne.s32.totalorder %s140, %s143
      %p149 = scmp.eq.s32.totalorder %s15, 0
      %p150 = por %p148, %p149
      %p151 = scmp.ne.s32.totalorder %s140, %s143
      %p152 = scmp.eq.s32.totalorder %s20, 1
      %p153 = por %p151, %p152
      %p154 = scmp.ne.s32.totalorder %s143, %s144
      %p155 = scmp.eq.s32.totalorder %s20, 0
      %p156 = por %p154, %p155
      %p157 = scmp.ne.s32.totalorder %s143, %s144
      %p158 = scmp.eq.s32.totalorder %s21, 1
      %p159 = por %p157, %p158
      %p161 = scmp.ne.s32.totalorder %s144, %s160
      %p162 = scmp.eq.s32.totalorder %s21, 0
      %p163 = por %p161, %p162
      %p164 = scmp.le.s32.totalorder 1, %s15
      %p165 = scmp.lt.s32.totalorder %s15, 3
      %p166 = pnand %p164, %p165
      %p167 = pneg %p166
      // Predicated region
      $region9: #{dense_block_forward.11} parent=5 // pred_check
        _
      $region10: #{dense_block_forward.11} parent=5 // pred_check_branch
        %169 = sbr.rel (%p166) target = $region12
      $region11: #{dense_block_forward.11} parent=5 // pred_region
        %s170 = ssub.s32 %s15, 1
        // Predicated region
        $region13: #{dense_block_forward.11} parent=11 // pred_check
          %p171 = pneg %p62
        $region14: #{dense_block_forward.11} parent=11 // pred_check_branch
          %173 = sbr.rel (%p171) target = $region16
        $region15: #{dense_block_forward.11} parent=11 // pred_region
          _
        $region16: #{dense_block_forward.11} parent=11 // pred_fallthru
          _
        // Predicated region
        $region17: #{dense_block_forward.11} parent=11 // pred_check
          %p174 = pneg %p83
        $region18: #{dense_block_forward.11} parent=11 // pred_check_branch
          %176 = sbr.rel (%p174) target = $region20
        $region19: #{dense_block_forward.11} parent=11 // pred_region
          _
        $region20: #{dense_block_forward.11} parent=11 // pred_fallthru
          _
        // Predicated region
        $region21: #{dense_block_forward.11} parent=11 // pred_check
          %p177 = pneg %p104
        $region22: #{dense_block_forward.11} parent=11 // pred_check_branch
          %179 = sbr.rel (%p177) target = $region24
        $region23: #{dense_block_forward.11} parent=11 // pred_region
          _
        $region24: #{dense_block_forward.11} parent=11 // pred_fallthru
          _
      $region12: #{dense_block_forward.11} parent=5 // pred_fallthru
        _
      %p180 = scmp.lt.s32.totalorder %s15, 2
      // Predicated region
      $region25: #{dense_block_forward.11} parent=5 // pred_check
        %p181 = pneg %p180
      $region26: #{dense_block_forward.11} parent=5 // pred_check_branch
        %183 = sbr.rel (%p181) target = $region28
      $region27: #{dense_block_forward.11} parent=5 // pred_region
        // Predicated region
        $region29: #{dense_block_forward.11} parent=27 // pred_check
          %p184 = pneg %p35
        $region30: #{dense_block_forward.11} parent=27 // pred_check_branch
          %186 = sbr.rel (%p184) target = $region32
        $region31: #{dense_block_forward.11} parent=27 // pred_region
          %p187 = scmp.lt.s32.totalorder %s15, 1
          %s188 = scalar_select %p187, %s15, 1
          %s189 = smul.addr %s188, 32
          %s190 = smul.addr %s189, 8
          %s191 = scalar_lea.vmem %s0, %s190
        $region32: #{dense_block_forward.11} parent=27 // pred_fallthru
          _
      $region28: #{dense_block_forward.11} parent=5 // pred_fallthru
        _
      %p192 = scmp.le.s32.totalorder 1, %s15
      %p193 = scmp.lt.s32.totalorder %s15, 3
      %p194 = pnand %p192, %p193
      %p195 = pneg %p194
      // Predicated region
      $region33: #{dense_block_forward.11} parent=5 // pred_check
        _
      $region34: #{dense_block_forward.11} parent=5 // pred_check_branch
        %197 = sbr.rel (%p194) target = $region36
      $region35: #{dense_block_forward.11} parent=5 // pred_region
        %s198 = ssub.s32 %s15, 1
        %p199 = scmp.lt.s32.totalorder %s20, 1
        %s200 = scalar_select %p199, %s20, 1
        %s201 = smul.addr %s200, 32
        %s202 = smul.addr %s201, 8
        %s203 = scalar_lea.vmem %s0, %s202
        %p204 = pneg %p41
        %p205 = pneg %p38
        %p206 = pneg %p62
        %p207 = pneg %p59
        %p208 = pneg %p83
        %p209 = pneg %p80
        %p210 = pneg %p104
        %p211 = pneg %p101
        %p212 = pneg %p130
        %p213 = pneg %p127
        %p214 = scmp.lt.s32.totalorder %s20, 1
        %s215 = scalar_select %p214, %s20, 1
        %s216 = smul.addr %s215, 32
        %s217 = smul.addr %s216, 8
        %s218 = scalar_lea.vmem %s4, %s217
        %p219 = pneg %p156
        %p220 = pneg %p153
        %s221 = sand.u32 %s143, 1
        %s222 = scalar_lea.sflag [#allocation3], %s221
        %s223 = sand.u32 %s143, 1
        %s224 = smul.addr %s223, 2
        %s225 = scalar_lea.vmem [#allocation2], %s224
        %p226 = scmp.lt.s32.totalorder %s20, 1
        %s227 = scalar_select %p226, %s20, 1
        %s228 = smul.addr %s227, 32
        %s229 = smul.addr %s228, 8
        %s230 = scalar_lea.vmem %s0, %s229
        %p231 = scmp.lt.s32.totalorder %s20, 1
        %s232 = scalar_select %p231, %s20, 1
        %s233 = smul.addr %s232, 32
        %s234 = smul.addr %s233, 8
        %s235 = scalar_lea.vmem %s4, %s234
        %v239 = vld [vmem:[%s230] sm:$0xff]
        %v240 = vld [vmem:[%s230 + $0x8] sm:$0xff]
        %v241 = vld [vmem:[%s230 + $0x10] sm:$0xff]
        %v242 = vld [vmem:[%s230 + $0x18] sm:$0xff]
        %v243 = vld [vmem:[%s230 + $0x20] sm:$0xff]
        %v244 = vld [vmem:[%s230 + $0x28] sm:$0xff]
        %v245 = vld [vmem:[%s230 + $0x30] sm:$0xff]
        %v246 = vld [vmem:[%s230 + $0x38] sm:$0xff]
        %v247 = vld [vmem:[%s230 + $0x40] sm:$0xff]
        %v248 = vld [vmem:[%s230 + $0x48] sm:$0xff]
        %v249 = vld [vmem:[%s230 + $0x50] sm:$0xff]
        %v250 = vld [vmem:[%s230 + $0x58] sm:$0xff]
        %v251 = vld [vmem:[%s230 + $0x60] sm:$0xff]
        %v252 = vld [vmem:[%s230 + $0x68] sm:$0xff]
        %v253 = vld [vmem:[%s230 + $0x70] sm:$0xff]
        %v254 = vld [vmem:[%s230 + $0x78] sm:$0xff]
        %v255 = vld [vmem:[%s230 + $0x80] sm:$0xff]
        %v256 = vld [vmem:[%s230 + $0x88] sm:$0xff]
        %v257 = vld [vmem:[%s230 + $0x90] sm:$0xff]
        %v258 = vld [vmem:[%s230 + $0x98] sm:$0xff]
        %v259 = vld [vmem:[%s230 + $0xa0] sm:$0xff]
        %v260 = vld [vmem:[%s230 + $0xa8] sm:$0xff]
        %v261 = vld [vmem:[%s230 + $0xb0] sm:$0xff]
        %v262 = vld [vmem:[%s230 + $0xb8] sm:$0xff]
        %v263 = vld [vmem:[%s230 + $0xc0] sm:$0xff]
        %v264 = vld [vmem:[%s230 + $0xc8] sm:$0xff]
        %v265 = vld [vmem:[%s230 + $0xd0] sm:$0xff]
        %v266 = vld [vmem:[%s230 + $0xd8] sm:$0xff]
        %v267 = vld [vmem:[%s230 + $0xe0] sm:$0xff]
        %v268 = vld [vmem:[%s230 + $0xe8] sm:$0xff]
        %v269 = vld [vmem:[%s230 + $0xf0] sm:$0xff]
        %v270 = vld [vmem:[%s230 + $0xf8] sm:$0xff]
        %v271 = vld [vmem:[%s1] sm:$0x1]
        %v273 = vlaneseq
        %v274 = vshrl.u32 %v273, 7
        %v275 = vsub.s32 0, %v274
        %v276 = vrot.slane %v271, %v275
        %v278 = vmul.f32 %v239, %v276
        %v279 = vmul.f32 %v240, %v276
        %v280 = vmul.f32 %v241, %v276
        %v281 = vmul.f32 %v242, %v276
        %v282 = vmul.f32 %v243, %v276
        %v283 = vmul.f32 %v244, %v276
        %v284 = vmul.f32 %v245, %v276
        %v285 = vmul.f32 %v246, %v276
        %v286 = vmul.f32 %v247, %v276
        %v287 = vmul.f32 %v248, %v276
        %v288 = vmul.f32 %v249, %v276
        %v289 = vmul.f32 %v250, %v276
        %v290 = vmul.f32 %v251, %v276
        %v291 = vmul.f32 %v252, %v276
        %v292 = vmul.f32 %v253, %v276
        %v293 = vmul.f32 %v254, %v276
        %v294 = vmul.f32 %v255, %v276
        %v295 = vmul.f32 %v256, %v276
        %v296 = vmul.f32 %v257, %v276
        %v297 = vmul.f32 %v258, %v276
        %v298 = vmul.f32 %v259, %v276
        %v299 = vmul.f32 %v260, %v276
        %v300 = vmul.f32 %v261, %v276
        %v301 = vmul.f32 %v262, %v276
        %v302 = vmul.f32 %v263, %v276
        %v303 = vmul.f32 %v264, %v276
        %v304 = vmul.f32 %v265, %v276
        %v305 = vmul.f32 %v266, %v276
        %v306 = vmul.f32 %v267, %v276
        %v307 = vmul.f32 %v268, %v276
        %v308 = vmul.f32 %v269, %v276
        %v309 = vmul.f32 %v270, %v276
        %v310 = vld [vmem:[%s2] sm:$0x1]
        %v312 = vlaneseq
        %v313 = vshrl.u32 %v312, 7
        %v314 = vsub.s32 0, %v313
        %v315 = vrot.slane %v310, %v314
        %v317 = vadd.f32 %v278, %v315
        %v318 = vadd.f32 %v279, %v315
        %v319 = vadd.f32 %v280, %v315
        %v320 = vadd.f32 %v281, %v315
        %v321 = vadd.f32 %v282, %v315
        %v322 = vadd.f32 %v283, %v315
        %v323 = vadd.f32 %v284, %v315
        %v324 = vadd.f32 %v285, %v315
        %v325 = vadd.f32 %v286, %v315
        %v326 = vadd.f32 %v287, %v315
        %v327 = vadd.f32 %v288, %v315
        %v328 = vadd.f32 %v289, %v315
        %v329 = vadd.f32 %v290, %v315
        %v330 = vadd.f32 %v291, %v315
        %v331 = vadd.f32 %v292, %v315
        %v332 = vadd.f32 %v293, %v315
        %v333 = vadd.f32 %v294, %v315
        %v334 = vadd.f32 %v295, %v315
        %v335 = vadd.f32 %v296, %v315
        %v336 = vadd.f32 %v297, %v315
        %v337 = vadd.f32 %v298, %v315
        %v338 = vadd.f32 %v299, %v315
        %v339 = vadd.f32 %v300, %v315
        %v340 = vadd.f32 %v301, %v315
        %v341 = vadd.f32 %v302, %v315
        %v342 = vadd.f32 %v303, %v315
        %v343 = vadd.f32 %v304, %v315
        %v344 = vadd.f32 %v305, %v315
        %v345 = vadd.f32 %v306, %v315
        %v346 = vadd.f32 %v307, %v315
        %v347 = vadd.f32 %v308, %v315
        %v348 = vadd.f32 %v309, %v315
        %v349 = vmax.f32 %v317, 0.0
        %v350 = vmax.f32 %v318, 0.0
        %v351 = vmax.f32 %v319, 0.0
        %v352 = vmax.f32 %v320, 0.0
        %v353 = vmax.f32 %v321, 0.0
        %v354 = vmax.f32 %v322, 0.0
        %v355 = vmax.f32 %v323, 0.0
        %v356 = vmax.f32 %v324, 0.0
        %v357 = vmax.f32 %v325, 0.0
        %v358 = vmax.f32 %v326, 0.0
        %v359 = vmax.f32 %v327, 0.0
        %v360 = vmax.f32 %v328, 0.0
        %v361 = vmax.f32 %v329, 0.0
        %v362 = vmax.f32 %v330, 0.0
        %v363 = vmax.f32 %v331, 0.0
        %v364 = vmax.f32 %v332, 0.0
        %v365 = vmax.f32 %v333, 0.0
        %v366 = vmax.f32 %v334, 0.0
        %v367 = vmax.f32 %v335, 0.0
        %v368 = vmax.f32 %v336, 0.0
        %v369 = vmax.f32 %v337, 0.0
        %v370 = vmax.f32 %v338, 0.0
        %v371 = vmax.f32 %v339, 0.0
        %v372 = vmax.f32 %v340, 0.0
        %v373 = vmax.f32 %v341, 0.0
        %v374 = vmax.f32 %v342, 0.0
        %v375 = vmax.f32 %v343, 0.0
        %v376 = vmax.f32 %v344, 0.0
        %v377 = vmax.f32 %v345, 0.0
        %v378 = vmax.f32 %v346, 0.0
        %v379 = vmax.f32 %v347, 0.0
        %v380 = vmax.f32 %v348, 0.0
        %v381 = vpack.c.bf16 %v350, %v349
        %v382 = vpack.c.bf16 %v352, %v351
        %v383 = vpack.c.bf16 %v354, %v353
        %v384 = vpack.c.bf16 %v356, %v355
        %v385 = vpack.c.bf16 %v358, %v357
        %v386 = vpack.c.bf16 %v360, %v359
        %v387 = vpack.c.bf16 %v362, %v361
        %v388 = vpack.c.bf16 %v364, %v363
        %v389 = vpack.c.bf16 %v366, %v365
        %v390 = vpack.c.bf16 %v368, %v367
        %v391 = vpack.c.bf16 %v370, %v369
        %v392 = vpack.c.bf16 %v372, %v371
        %v393 = vpack.c.bf16 %v374, %v373
        %v394 = vpack.c.bf16 %v376, %v375
        %v395 = vpack.c.bf16 %v378, %v377
        %v396 = vpack.c.bf16 %v380, %v379
        %v397 = vlaneseq
        %v398 = vshrl.u32 %v397, 7
        %v399 = vadd.s32 %v398, 8
        %v400 = vadd.s32 %v398, 16
        %v401 = vadd.s32 %v398, 24
        %v402 = vadd.s32 %v398, 32
        %v403 = vadd.s32 %v398, 40
        %v404 = vadd.s32 %v398, 48
        %v405 = vadd.s32 %v398, 56
        %v406 = vadd.s32 %v398, 64
        %v407 = vadd.s32 %v398, 72
        %v408 = vadd.s32 %v398, 80
        %v409 = vadd.s32 %v398, 88
        %v410 = vadd.s32 %v398, 96
        %v411 = vadd.s32 %v398, 104
        %v412 = vadd.s32 %v398, 112
        %v413 = vadd.s32 %v398, 120
        %v414 = vadd.s32 %v398, 128
        %v415 = vadd.s32 %v398, 136
        %v416 = vadd.s32 %v398, 144
        %v417 = vadd.s32 %v398, 152
        %v418 = vadd.s32 %v398, 160
        %v419 = vadd.s32 %v398, 168
        %v420 = vadd.s32 %v398, 176
        %v421 = vadd.s32 %v398, 184
        %v422 = vadd.s32 %v398, 192
        %v423 = vadd.s32 %v398, 200
        %v424 = vadd.s32 %v398, 208
        %v425 = vadd.s32 %v398, 216
        %v426 = vadd.s32 %v398, 224
        %v427 = vadd.s32 %v398, 232
        %v428 = vadd.s32 %v398, 240
        %v429 = vadd.s32 %v398, 248
        %vm430 = vcmp.lt.s32.totalorder %v398, 0
        %v431 = vsub.s32 0, %v398
        %v432 = vsel %vm430, %v431, %v398
        %v433 = vshrl.u32 %v432, 4
        %v434 = vand.u32 %v432, 15
        %v435 = vsub.s32 0, %v434
        %v436 = vsel %vm430, %v435, %v434
        %vm437 = vcmp.lt.s32.totalorder %v399, 0
        %v438 = vsub.s32 0, %v399
        %v439 = vsel %vm437, %v438, %v399
        %v440 = vshrl.u32 %v439, 4
        %v441 = vand.u32 %v439, 15
        %v442 = vsub.s32 0, %v441
        %v443 = vsel %vm437, %v442, %v441
        %vm444 = vcmp.lt.s32.totalorder %v400, 0
        %v445 = vsub.s32 0, %v400
        %v446 = vsel %vm444, %v445, %v400
        %v447 = vshrl.u32 %v446, 4
        %v448 = vand.u32 %v446, 15
        %v449 = vsub.s32 0, %v448
        %v450 = vsel %vm444, %v449, %v448
        %vm451 = vcmp.lt.s32.totalorder %v401, 0
        %v452 = vsub.s32 0, %v401
        %v453 = vsel %vm451, %v452, %v401
        %v454 = vshrl.u32 %v453, 4
        %v455 = vand.u32 %v453, 15
        %v456 = vsub.s32 0, %v455
        %v457 = vsel %vm451, %v456, %v455
        %vm458 = vcmp.lt.s32.totalorder %v402, 0
        %v459 = vsub.s32 0, %v402
        %v460 = vsel %vm458, %v459, %v402
        %v461 = vshrl.u32 %v460, 4
        %v462 = vand.u32 %v460, 15
        %v463 = vsub.s32 0, %v462
        %v464 = vsel %vm458, %v463, %v462
        %vm465 = vcmp.lt.s32.totalorder %v403, 0
        %v466 = vsub.s32 0, %v403
        %v467 = vsel %vm465, %v466, %v403
        %v468 = vshrl.u32 %v467, 4
        %v469 = vand.u32 %v467, 15
        %v470 = vsub.s32 0, %v469
        %v471 = vsel %vm465, %v470, %v469
        %vm472 = vcmp.lt.s32.totalorder %v404, 0
        %v473 = vsub.s32 0, %v404
        %v474 = vsel %vm472, %v473, %v404
        %v475 = vshrl.u32 %v474, 4
        %v476 = vand.u32 %v474, 15
        %v477 = vsub.s32 0, %v476
        %v478 = vsel %vm472, %v477, %v476
        %vm479 = vcmp.lt.s32.totalorder %v405, 0
        %v480 = vsub.s32 0, %v405
        %v481 = vsel %vm479, %v480, %v405
        %v482 = vshrl.u32 %v481, 4
        %v483 = vand.u32 %v481, 15
        %v484 = vsub.s32 0, %v483
        %v485 = vsel %vm479, %v484, %v483
        %vm486 = vcmp.lt.s32.totalorder %v406, 0
        %v487 = vsub.s32 0, %v406
        %v488 = vsel %vm486, %v487, %v406
        %v489 = vshrl.u32 %v488, 4
        %v490 = vand.u32 %v488, 15
        %v491 = vsub.s32 0, %v490
        %v492 = vsel %vm486, %v491, %v490
        %vm493 = vcmp.lt.s32.totalorder %v407, 0
        %v494 = vsub.s32 0, %v407
        %v495 = vsel %vm493, %v494, %v407
        %v496 = vshrl.u32 %v495, 4
        %v497 = vand.u32 %v495, 15
        %v498 = vsub.s32 0, %v497
        %v499 = vsel %vm493, %v498, %v497
        %vm500 = vcmp.lt.s32.totalorder %v408, 0
        %v501 = vsub.s32 0, %v408
        %v502 = vsel %vm500, %v501, %v408
        %v503 = vshrl.u32 %v502, 4
        %v504 = vand.u32 %v502, 15
        %v505 = vsub.s32 0, %v504
        %v506 = vsel %vm500, %v505, %v504
        %vm507 = vcmp.lt.s32.totalorder %v409, 0
        %v508 = vsub.s32 0, %v409
        %v509 = vsel %vm507, %v508, %v409
        %v510 = vshrl.u32 %v509, 4
        %v511 = vand.u32 %v509, 15
        %v512 = vsub.s32 0, %v511
        %v513 = vsel %vm507, %v512, %v511
        %vm514 = vcmp.lt.s32.totalorder %v410, 0
        %v515 = vsub.s32 0, %v410
        %v516 = vsel %vm514, %v515, %v410
        %v517 = vshrl.u32 %v516, 4
        %v518 = vand.u32 %v516, 15
        %v519 = vsub.s32 0, %v518
        %v520 = vsel %vm514, %v519, %v518
        %vm521 = vcmp.lt.s32.totalorder %v411, 0
        %v522 = vsub.s32 0, %v411
        %v523 = vsel %vm521, %v522, %v411
        %v524 = vshrl.u32 %v523, 4
        %v525 = vand.u32 %v523, 15
        %v526 = vsub.s32 0, %v525
        %v527 = vsel %vm521, %v526, %v525
        %vm528 = vcmp.lt.s32.totalorder %v412, 0
        %v529 = vsub.s32 0, %v412
        %v530 = vsel %vm528, %v529, %v412
        %v531 = vshrl.u32 %v530, 4
        %v532 = vand.u32 %v530, 15
        %v533 = vsub.s32 0, %v532
        %v534 = vsel %vm528, %v533, %v532
        %vm535 = vcmp.lt.s32.totalorder %v413, 0
        %v536 = vsub.s32 0, %v413
        %v537 = vsel %vm535, %v536, %v413
        %v538 = vshrl.u32 %v537, 4
        %v539 = vand.u32 %v537, 15
        %v540 = vsub.s32 0, %v539
        %v541 = vsel %vm535, %v540, %v539
        %vm542 = vcmp.lt.s32.totalorder %v414, 0
        %v543 = vsub.s32 0, %v414
        %v544 = vsel %vm542, %v543, %v414
        %v545 = vshrl.u32 %v544, 4
        %v546 = vand.u32 %v544, 15
        %v547 = vsub.s32 0, %v546
        %v548 = vsel %vm542, %v547, %v546
        %vm549 = vcmp.lt.s32.totalorder %v415, 0
        %v550 = vsub.s32 0, %v415
        %v551 = vsel %vm549, %v550, %v415
        %v552 = vshrl.u32 %v551, 4
        %v553 = vand.u32 %v551, 15
        %v554 = vsub.s32 0, %v553
        %v555 = vsel %vm549, %v554, %v553
        %vm556 = vcmp.lt.s32.totalorder %v416, 0
        %v557 = vsub.s32 0, %v416
        %v558 = vsel %vm556, %v557, %v416
        %v559 = vshrl.u32 %v558, 4
        %v560 = vand.u32 %v558, 15
        %v561 = vsub.s32 0, %v560
        %v562 = vsel %vm556, %v561, %v560
        %vm563 = vcmp.lt.s32.totalorder %v417, 0
        %v564 = vsub.s32 0, %v417
        %v565 = vsel %vm563, %v564, %v417
        %v566 = vshrl.u32 %v565, 4
        %v567 = vand.u32 %v565, 15
        %v568 = vsub.s32 0, %v567
        %v569 = vsel %vm563, %v568, %v567
        %vm570 = vcmp.lt.s32.totalorder %v418, 0
        %v571 = vsub.s32 0, %v418
        %v572 = vsel %vm570, %v571, %v418
        %v573 = vshrl.u32 %v572, 4
        %v574 = vand.u32 %v572, 15
        %v575 = vsub.s32 0, %v574
        %v576 = vsel %vm570, %v575, %v574
        %vm577 = vcmp.lt.s32.totalorder %v419, 0
        %v578 = vsub.s32 0, %v419
        %v579 = vsel %vm577, %v578, %v419
        %v580 = vshrl.u32 %v579, 4
        %v581 = vand.u32 %v579, 15
        %v582 = vsub.s32 0, %v581
        %v583 = vsel %vm577, %v582, %v581
        %vm584 = vcmp.lt.s32.totalorder %v420, 0
        %v585 = vsub.s32 0, %v420
        %v586 = vsel %vm584, %v585, %v420
        %v587 = vshrl.u32 %v586, 4
        %v588 = vand.u32 %v586, 15
        %v589 = vsub.s32 0, %v588
        %v590 = vsel %vm584, %v589, %v588
        %vm591 = vcmp.lt.s32.totalorder %v421, 0
        %v592 = vsub.s32 0, %v421
        %v593 = vsel %vm591, %v592, %v421
        %v594 = vshrl.u32 %v593, 4
        %v595 = vand.u32 %v593, 15
        %v596 = vsub.s32 0, %v595
        %v597 = vsel %vm591, %v596, %v595
        %vm598 = vcmp.lt.s32.totalorder %v422, 0
        %v599 = vsub.s32 0, %v422
        %v600 = vsel %vm598, %v599, %v422
        %v601 = vshrl.u32 %v600, 4
        %v602 = vand.u32 %v600, 15
        %v603 = vsub.s32 0, %v602
        %v604 = vsel %vm598, %v603, %v602
        %vm605 = vcmp.lt.s32.totalorder %v423, 0
        %v606 = vsub.s32 0, %v423
        %v607 = vsel %vm605, %v606, %v423
        %v608 = vshrl.u32 %v607, 4
        %v609 = vand.u32 %v607, 15
        %v610 = vsub.s32 0, %v609
        %v611 = vsel %vm605, %v610, %v609
        %vm612 = vcmp.lt.s32.totalorder %v424, 0
        %v613 = vsub.s32 0, %v424
        %v614 = vsel %vm612, %v613, %v424
        %v615 = vshrl.u32 %v614, 4
        %v616 = vand.u32 %v614, 15
        %v617 = vsub.s32 0, %v616
        %v618 = vsel %vm612, %v617, %v616
        %vm619 = vcmp.lt.s32.totalorder %v425, 0
        %v620 = vsub.s32 0, %v425
        %v621 = vsel %vm619, %v620, %v425
        %v622 = vshrl.u32 %v621, 4
        %v623 = vand.u32 %v621, 15
        %v624 = vsub.s32 0, %v623
        %v625 = vsel %vm619, %v624, %v623
        %vm626 = vcmp.lt.s32.totalorder %v426, 0
        %v627 = vsub.s32 0, %v426
        %v628 = vsel %vm626, %v627, %v426
        %v629 = vshrl.u32 %v628, 4
        %v630 = vand.u32 %v628, 15
        %v631 = vsub.s32 0, %v630
        %v632 = vsel %vm626, %v631, %v630
        %vm633 = vcmp.lt.s32.totalorder %v427, 0
        %v634 = vsub.s32 0, %v427
        %v635 = vsel %vm633, %v634, %v427
        %v636 = vshrl.u32 %v635, 4
        %v637 = vand.u32 %v635, 15
        %v638 = vsub.s32 0, %v637
        %v639 = vsel %vm633, %v638, %v637
        %vm640 = vcmp.lt.s32.totalorder %v428, 0
        %v641 = vsub.s32 0, %v428
        %v642 = vsel %vm640, %v641, %v428
        %v643 = vshrl.u32 %v642, 4
        %v644 = vand.u32 %v642, 15
        %v645 = vsub.s32 0, %v644
        %v646 = vsel %vm640, %v645, %v644
        %vm647 = vcmp.lt.s32.totalorder %v429, 0
        %v648 = vsub.s32 0, %v429
        %v649 = vsel %vm647, %v648, %v429
        %v650 = vshrl.u32 %v649, 4
        %v651 = vand.u32 %v649, 15
        %v652 = vsub.s32 0, %v651
        %v653 = vsel %vm647, %v652, %v651
        %vm654 = vcmp.ne.s32.totalorder %v436, 0
        %vm655 = vcmp.ne.s32.totalorder %v443, 0
        %vm656 = vcmp.ne.s32.totalorder %v450, 0
        %vm657 = vcmp.ne.s32.totalorder %v457, 0
        %vm658 = vcmp.ne.s32.totalorder %v464, 0
        %vm659 = vcmp.ne.s32.totalorder %v471, 0
        %vm660 = vcmp.ne.s32.totalorder %v478, 0
        %vm661 = vcmp.ne.s32.totalorder %v485, 0
        %vm662 = vcmp.ne.s32.totalorder %v492, 0
        %vm663 = vcmp.ne.s32.totalorder %v499, 0
        %vm664 = vcmp.ne.s32.totalorder %v506, 0
        %vm665 = vcmp.ne.s32.totalorder %v513, 0
        %vm666 = vcmp.ne.s32.totalorder %v520, 0
        %vm667 = vcmp.ne.s32.totalorder %v527, 0
        %vm668 = vcmp.ne.s32.totalorder %v534, 0
        %vm669 = vcmp.ne.s32.totalorder %v541, 0
        %vm670 = vcmp.ne.s32.totalorder %v548, 0
        %vm671 = vcmp.ne.s32.totalorder %v555, 0
        %vm672 = vcmp.ne.s32.totalorder %v562, 0
        %vm673 = vcmp.ne.s32.totalorder %v569, 0
        %vm674 = vcmp.ne.s32.totalorder %v576, 0
        %vm675 = vcmp.ne.s32.totalorder %v583, 0
        %vm676 = vcmp.ne.s32.totalorder %v590, 0
        %vm677 = vcmp.ne.s32.totalorder %v597, 0
        %vm678 = vcmp.ne.s32.totalorder %v604, 0
        %vm679 = vcmp.ne.s32.totalorder %v611, 0
        %vm680 = vcmp.ne.s32.totalorder %v618, 0
        %vm681 = vcmp.ne.s32.totalorder %v625, 0
        %vm682 = vcmp.ne.s32.totalorder %v632, 0
        %vm683 = vcmp.ne.s32.totalorder %v639, 0
        %vm684 = vcmp.ne.s32.totalorder %v646, 0
        %vm685 = vcmp.ne.s32.totalorder %v653, 0
        %vm686 = vcmp.lt.s32.totalorder %v436, 0
        %vm687 = vcmp.lt.s32.totalorder %v443, 0
        %vm688 = vcmp.lt.s32.totalorder %v450, 0
        %vm689 = vcmp.lt.s32.totalorder %v457, 0
        %vm690 = vcmp.lt.s32.totalorder %v464, 0
        %vm691 = vcmp.lt.s32.totalorder %v471, 0
        %vm692 = vcmp.lt.s32.totalorder %v478, 0
        %vm693 = vcmp.lt.s32.totalorder %v485, 0
        %vm694 = vcmp.lt.s32.totalorder %v492, 0
        %vm695 = vcmp.lt.s32.totalorder %v499, 0
        %vm696 = vcmp.lt.s32.totalorder %v506, 0
        %vm697 = vcmp.lt.s32.totalorder %v513, 0
        %vm698 = vcmp.lt.s32.totalorder %v520, 0
        %vm699 = vcmp.lt.s32.totalorder %v527, 0
        %vm700 = vcmp.lt.s32.totalorder %v534, 0
        %vm701 = vcmp.lt.s32.totalorder %v541, 0
        %vm702 = vcmp.lt.s32.totalorder %v548, 0
        %vm703 = vcmp.lt.s32.totalorder %v555, 0
        %vm704 = vcmp.lt.s32.totalorder %v562, 0
        %vm705 = vcmp.lt.s32.totalorder %v569, 0
        %vm706 = vcmp.lt.s32.totalorder %v576, 0
        %vm707 = vcmp.lt.s32.totalorder %v583, 0
        %vm708 = vcmp.lt.s32.totalorder %v590, 0
        %vm709 = vcmp.lt.s32.totalorder %v597, 0
        %vm710 = vcmp.lt.s32.totalorder %v604, 0
        %vm711 = vcmp.lt.s32.totalorder %v611, 0
        %vm712 = vcmp.lt.s32.totalorder %v618, 0
        %vm713 = vcmp.lt.s32.totalorder %v625, 0
        %vm714 = vcmp.lt.s32.totalorder %v632, 0
        %vm715 = vcmp.lt.s32.totalorder %v639, 0
        %vm716 = vcmp.lt.s32.totalorder %v646, 0
        %vm717 = vcmp.lt.s32.totalorder %v653, 0
        %vm718 = vmand %vm686, %vm654
        %vm719 = vmand %vm687, %vm655
        %vm720 = vmand %vm688, %vm656
        %vm721 = vmand %vm689, %vm657
        %vm722 = vmand %vm690, %vm658
        %vm723 = vmand %vm691, %vm659
        %vm724 = vmand %vm692, %vm660
        %vm725 = vmand %vm693, %vm661
        %vm726 = vmand %vm694, %vm662
        %vm727 = vmand %vm695, %vm663
        %vm728 = vmand %vm696, %vm664
        %vm729 = vmand %vm697, %vm665
        %vm730 = vmand %vm698, %vm666
        %vm731 = vmand %vm699, %vm667
        %vm732 = vmand %vm700, %vm668
        %vm733 = vmand %vm701, %vm669
        %vm734 = vmand %vm702, %vm670
        %vm735 = vmand %vm703, %vm671
        %vm736 = vmand %vm704, %vm672
        %vm737 = vmand %vm705, %vm673
        %vm738 = vmand %vm706, %vm674
        %vm739 = vmand %vm707, %vm675
        %vm740 = vmand %vm708, %vm676
        %vm741 = vmand %vm709, %vm677
        %vm742 = vmand %vm710, %vm678
        %vm743 = vmand %vm711, %vm679
        %vm744 = vmand %vm712, %vm680
        %vm745 = vmand %vm713, %vm681
        %vm746 = vmand %vm714, %vm682
        %vm747 = vmand %vm715, %vm683
        %vm748 = vmand %vm716, %vm684
        %vm749 = vmand %vm717, %vm685
        %v750 = vadd.s32 %v436, 16
        %v751 = vadd.s32 %v443, 16
        %v752 = vadd.s32 %v450, 16
        %v753 = vadd.s32 %v457, 16
        %v754 = vadd.s32 %v464, 16
        %v755 = vadd.s32 %v471, 16
        %v756 = vadd.s32 %v478, 16
        %v757 = vadd.s32 %v485, 16
        %v758 = vadd.s32 %v492, 16
        %v759 = vadd.s32 %v499, 16
        %v760 = vadd.s32 %v506, 16
        %v761 = vadd.s32 %v513, 16
        %v762 = vadd.s32 %v520, 16
        %v763 = vadd.s32 %v527, 16
        %v764 = vadd.s32 %v534, 16
        %v765 = vadd.s32 %v541, 16
        %v766 = vadd.s32 %v548, 16
        %v767 = vadd.s32 %v555, 16
        %v768 = vadd.s32 %v562, 16
        %v769 = vadd.s32 %v569, 16
        %v770 = vadd.s32 %v576, 16
        %v771 = vadd.s32 %v583, 16
        %v772 = vadd.s32 %v590, 16
        %v773 = vadd.s32 %v597, 16
        %v774 = vadd.s32 %v604, 16
        %v775 = vadd.s32 %v611, 16
        %v776 = vadd.s32 %v618, 16
        %v777 = vadd.s32 %v625, 16
        %v778 = vadd.s32 %v632, 16
        %v779 = vadd.s32 %v639, 16
        %v780 = vadd.s32 %v646, 16
        %v781 = vadd.s32 %v653, 16
        %v782 = vsel %vm718, %v750, %v436
        %v783 = vsel %vm719, %v751, %v443
        %v784 = vsel %vm720, %v752, %v450
        %v785 = vsel %vm721, %v753, %v457
        %v786 = vsel %vm722, %v754, %v464
        %v787 = vsel %vm723, %v755, %v471
        %v788 = vsel %vm724, %v756, %v478
        %v789 = vsel %vm725, %v757, %v485
        %v790 = vsel %vm726, %v758, %v492
        %v791 = vsel %vm727, %v759, %v499
        %v792 = vsel %vm728, %v760, %v506
        %v793 = vsel %vm729, %v761, %v513
        %v794 = vsel %vm730, %v762, %v520
        %v795 = vsel %vm731, %v763, %v527
        %v796 = vsel %vm732, %v764, %v534
        %v797 = vsel %vm733, %v765, %v541
        %v798 = vsel %vm734, %v766, %v548
        %v799 = vsel %vm735, %v767, %v555
        %v800 = vsel %vm736, %v768, %v562
        %v801 = vsel %vm737, %v769, %v569
        %v802 = vsel %vm738, %v770, %v576
        %v803 = vsel %vm739, %v771, %v583
        %v804 = vsel %vm740, %v772, %v590
        %v805 = vsel %vm741, %v773, %v597
        %v806 = vsel %vm742, %v774, %v604
        %v807 = vsel %vm743, %v775, %v611
        %v808 = vsel %vm744, %v776, %v618
        %v809 = vsel %vm745, %v777, %v625
        %v810 = vsel %vm746, %v778, %v632
        %v811 = vsel %vm747, %v779, %v639
        %v812 = vsel %vm748, %v780, %v646
        %v813 = vsel %vm749, %v781, %v653
        %vm814 = vsmask.f32 256
        %v816 = vshrl.u32 %v381, 16
        %v818 = vrot.slane %v816, 7
        %v819 = vshll.u32 %v381, 16
        %v821 = vor.u32 %v818, %v819
        %v823 = vshrl.u32 %v382, 16
        %v825 = vrot.slane %v823, 7
        %v826 = vshll.u32 %v382, 16
        %v828 = vor.u32 %v825, %v826
        %v829 = vsel %vm814, %v818, %v828
        %v831 = vshrl.u32 %v383, 16
        %v833 = vrot.slane %v831, 7
        %v834 = vshll.u32 %v383, 16
        %v836 = vor.u32 %v833, %v834
        %v837 = vsel %vm814, %v825, %v836
        %v839 = vshrl.u32 %v384, 16
        %v841 = vrot.slane %v839, 7
        %v842 = vshll.u32 %v384, 16
        %v844 = vor.u32 %v841, %v842
        %v845 = vsel %vm814, %v833, %v844
        %v847 = vshrl.u32 %v385, 16
        %v849 = vrot.slane %v847, 7
        %v850 = vshll.u32 %v385, 16
        %v852 = vor.u32 %v849, %v850
        %v853 = vsel %vm814, %v841, %v852
        %v855 = vshrl.u32 %v386, 16
        %v857 = vrot.slane %v855, 7
        %v858 = vshll.u32 %v386, 16
        %v860 = vor.u32 %v857, %v858
        %v861 = vsel %vm814, %v849, %v860
        %v863 = vshrl.u32 %v387, 16
        %v865 = vrot.slane %v863, 7
        %v866 = vshll.u32 %v387, 16
        %v868 = vor.u32 %v865, %v866
        %v869 = vsel %vm814, %v857, %v868
        %v871 = vshrl.u32 %v388, 16
        %v873 = vrot.slane %v871, 7
        %v874 = vshll.u32 %v388, 16
        %v876 = vor.u32 %v873, %v874
        %v877 = vsel %vm814, %v865, %v876
        %v879 = vshrl.u32 %v389, 16
        %v881 = vrot.slane %v879, 7
        %v882 = vshll.u32 %v389, 16
        %v884 = vor.u32 %v881, %v882
        %v885 = vsel %vm814, %v873, %v884
        %v887 = vshrl.u32 %v390, 16
        %v889 = vrot.slane %v887, 7
        %v890 = vshll.u32 %v390, 16
        %v892 = vor.u32 %v889, %v890
        %v893 = vsel %vm814, %v881, %v892
        %v895 = vshrl.u32 %v391, 16
        %v897 = vrot.slane %v895, 7
        %v898 = vshll.u32 %v391, 16
        %v900 = vor.u32 %v897, %v898
        %v901 = vsel %vm814, %v889, %v900
        %v903 = vshrl.u32 %v392, 16
        %v905 = vrot.slane %v903, 7
        %v906 = vshll.u32 %v392, 16
        %v908 = vor.u32 %v905, %v906
        %v909 = vsel %vm814, %v897, %v908
        %v911 = vshrl.u32 %v393, 16
        %v913 = vrot.slane %v911, 7
        %v914 = vshll.u32 %v393, 16
        %v916 = vor.u32 %v913, %v914
        %v917 = vsel %vm814, %v905, %v916
        %v919 = vshrl.u32 %v394, 16
        %v921 = vrot.slane %v919, 7
        %v922 = vshll.u32 %v394, 16
        %v924 = vor.u32 %v921, %v922
        %v925 = vsel %vm814, %v913, %v924
        %v927 = vshrl.u32 %v395, 16
        %v929 = vrot.slane %v927, 7
        %v930 = vshll.u32 %v395, 16
        %v932 = vor.u32 %v929, %v930
        %v933 = vsel %vm814, %v921, %v932
        %vm949 = vcmask 1040384
        %vm950 = vmand %vm949, %vm814
        %v951 = vsel %vm950, 0, %v821
        %v952 = vadd.s32 %v782, 4294967295
        %v953 = vadd.s32 %v783, 4294967295
        %v954 = vadd.s32 %v784, 4294967295
        %v955 = vadd.s32 %v785, 4294967295
        %v956 = vadd.s32 %v786, 4294967295
        %v957 = vadd.s32 %v787, 4294967295
        %v958 = vadd.s32 %v788, 4294967295
        %v959 = vadd.s32 %v789, 4294967295
        %v960 = vadd.s32 %v790, 4294967295
        %v961 = vadd.s32 %v791, 4294967295
        %v962 = vadd.s32 %v792, 4294967295
        %v963 = vadd.s32 %v793, 4294967295
        %v964 = vadd.s32 %v794, 4294967295
        %v965 = vadd.s32 %v795, 4294967295
        %v966 = vadd.s32 %v796, 4294967295
        %v967 = vadd.s32 %v797, 4294967295
        %v968 = vadd.s32 %v798, 4294967295
        %v969 = vadd.s32 %v799, 4294967295
        %v970 = vadd.s32 %v800, 4294967295
        %v971 = vadd.s32 %v801, 4294967295
        %v972 = vadd.s32 %v802, 4294967295
        %v973 = vadd.s32 %v803, 4294967295
        %v974 = vadd.s32 %v804, 4294967295
        %v975 = vadd.s32 %v805, 4294967295
        %v976 = vadd.s32 %v806, 4294967295
        %v977 = vadd.s32 %v807, 4294967295
        %v978 = vadd.s32 %v808, 4294967295
        %v979 = vadd.s32 %v809, 4294967295
        %v980 = vadd.s32 %v810, 4294967295
        %v981 = vadd.s32 %v811, 4294967295
        %v982 = vadd.s32 %v812, 4294967295
        %v983 = vadd.s32 %v813, 4294967295
        %vm984 = vcmp.ge.s32.totalorder %v952, 0
        %vm985 = vcmp.ge.s32.totalorder %v953, 0
        %vm986 = vcmp.ge.s32.totalorder %v954, 0
        %vm987 = vcmp.ge.s32.totalorder %v955, 0
        %vm988 = vcmp.ge.s32.totalorder %v956, 0
        %vm989 = vcmp.ge.s32.totalorder %v957, 0
        %vm990 = vcmp.ge.s32.totalorder %v958, 0
        %vm991 = vcmp.ge.s32.totalorder %v959, 0
        %vm992 = vcmp.ge.s32.totalorder %v960, 0
        %vm993 = vcmp.ge.s32.totalorder %v961, 0
        %vm994 = vcmp.ge.s32.totalorder %v962, 0
        %vm995 = vcmp.ge.s32.totalorder %v963, 0
        %vm996 = vcmp.ge.s32.totalorder %v964, 0
        %vm997 = vcmp.ge.s32.totalorder %v965, 0
        %vm998 = vcmp.ge.s32.totalorder %v966, 0
        %vm999 = vcmp.ge.s32.totalorder %v967, 0
        %vm1000 = vcmp.ge.s32.totalorder %v968, 0
        %vm1001 = vcmp.ge.s32.totalorder %v969, 0
        %vm1002 = vcmp.ge.s32.totalorder %v970, 0
        %vm1003 = vcmp.ge.s32.totalorder %v971, 0
        %vm1004 = vcmp.ge.s32.totalorder %v972, 0
        %vm1005 = vcmp.ge.s32.totalorder %v973, 0
        %vm1006 = vcmp.ge.s32.totalorder %v974, 0
        %vm1007 = vcmp.ge.s32.totalorder %v975, 0
        %vm1008 = vcmp.ge.s32.totalorder %v976, 0
        %vm1009 = vcmp.ge.s32.totalorder %v977, 0
        %vm1010 = vcmp.ge.s32.totalorder %v978, 0
        %vm1011 = vcmp.ge.s32.totalorder %v979, 0
        %vm1012 = vcmp.ge.s32.totalorder %v980, 0
        %vm1013 = vcmp.ge.s32.totalorder %v981, 0
        %vm1014 = vcmp.ge.s32.totalorder %v982, 0
        %vm1015 = vcmp.ge.s32.totalorder %v983, 0
        %vm1016 = vcmp.lt.s32.totalorder %v952, 16
        %vm1017 = vcmp.lt.s32.totalorder %v953, 16
        %vm1018 = vcmp.lt.s32.totalorder %v954, 16
        %vm1019 = vcmp.lt.s32.totalorder %v955, 16
        %vm1020 = vcmp.lt.s32.totalorder %v956, 16
        %vm1021 = vcmp.lt.s32.totalorder %v957, 16
        %vm1022 = vcmp.lt.s32.totalorder %v958, 16
        %vm1023 = vcmp.lt.s32.totalorder %v959, 16
        %vm1024 = vcmp.lt.s32.totalorder %v960, 16
        %vm1025 = vcmp.lt.s32.totalorder %v961, 16
        %vm1026 = vcmp.lt.s32.totalorder %v962, 16
        %vm1027 = vcmp.lt.s32.totalorder %v963, 16
        %vm1028 = vcmp.lt.s32.totalorder %v964, 16
        %vm1029 = vcmp.lt.s32.totalorder %v965, 16
        %vm1030 = vcmp.lt.s32.totalorder %v966, 16
        %vm1031 = vcmp.lt.s32.totalorder %v967, 16
        %vm1032 = vcmp.lt.s32.totalorder %v968, 16
        %vm1033 = vcmp.lt.s32.totalorder %v969, 16
        %vm1034 = vcmp.lt.s32.totalorder %v970, 16
        %vm1035 = vcmp.lt.s32.totalorder %v971, 16
        %vm1036 = vcmp.lt.s32.totalorder %v972, 16
        %vm1037 = vcmp.lt.s32.totalorder %v973, 16
        %vm1038 = vcmp.lt.s32.totalorder %v974, 16
        %vm1039 = vcmp.lt.s32.totalorder %v975, 16
        %vm1040 = vcmp.lt.s32.totalorder %v976, 16
        %vm1041 = vcmp.lt.s32.totalorder %v977, 16
        %vm1042 = vcmp.lt.s32.totalorder %v978, 16
        %vm1043 = vcmp.lt.s32.totalorder %v979, 16
        %vm1044 = vcmp.lt.s32.totalorder %v980, 16
        %vm1045 = vcmp.lt.s32.totalorder %v981, 16
        %vm1046 = vcmp.lt.s32.totalorder %v982, 16
        %vm1047 = vcmp.lt.s32.totalorder %v983, 16
        %vm1048 = vmand %vm984, %vm1016
        %vm1049 = vmand %vm985, %vm1017
        %vm1050 = vmand %vm986, %vm1018
        %vm1051 = vmand %vm987, %vm1019
        %vm1052 = vmand %vm988, %vm1020
        %vm1053 = vmand %vm989, %vm1021
        %vm1054 = vmand %vm990, %vm1022
        %vm1055 = vmand %vm991, %vm1023
        %vm1056 = vmand %vm992, %vm1024
        %vm1057 = vmand %vm993, %vm1025
        %vm1058 = vmand %vm994, %vm1026
        %vm1059 = vmand %vm995, %vm1027
        %vm1060 = vmand %vm996, %vm1028
        %vm1061 = vmand %vm997, %vm1029
        %vm1062 = vmand %vm998, %vm1030
        %vm1063 = vmand %vm999, %vm1031
        %vm1064 = vmand %vm1000, %vm1032
        %vm1065 = vmand %vm1001, %vm1033
        %vm1066 = vmand %vm1002, %vm1034
        %vm1067 = vmand %vm1003, %vm1035
        %vm1068 = vmand %vm1004, %vm1036
        %vm1069 = vmand %vm1005, %vm1037
        %vm1070 = vmand %vm1006, %vm1038
        %vm1071 = vmand %vm1007, %vm1039
        %vm1072 = vmand %vm1008, %vm1040
        %vm1073 = vmand %vm1009, %vm1041
        %vm1074 = vmand %vm1010, %vm1042
        %vm1075 = vmand %vm1011, %vm1043
        %vm1076 = vmand %vm1012, %vm1044
        %vm1077 = vmand %vm1013, %vm1045
        %vm1078 = vmand %vm1014, %vm1046
        %vm1079 = vmand %vm1015, %vm1047
        %v1080 = vsel %vm1048, 1, 0
        %v1081 = vsel %vm1049, 1, 0
        %v1082 = vsel %vm1050, 1, 0
        %v1083 = vsel %vm1051, 1, 0
        %v1084 = vsel %vm1052, 1, 0
        %v1085 = vsel %vm1053, 1, 0
        %v1086 = vsel %vm1054, 1, 0
        %v1087 = vsel %vm1055, 1, 0
        %v1088 = vsel %vm1056, 1, 0
        %v1089 = vsel %vm1057, 1, 0
        %v1090 = vsel %vm1058, 1, 0
        %v1091 = vsel %vm1059, 1, 0
        %v1092 = vsel %vm1060, 1, 0
        %v1093 = vsel %vm1061, 1, 0
        %v1094 = vsel %vm1062, 1, 0
        %v1095 = vsel %vm1063, 1, 0
        %v1096 = vsel %vm1064, 1, 0
        %v1097 = vsel %vm1065, 1, 0
        %v1098 = vsel %vm1066, 1, 0
        %v1099 = vsel %vm1067, 1, 0
        %v1100 = vsel %vm1068, 1, 0
        %v1101 = vsel %vm1069, 1, 0
        %v1102 = vsel %vm1070, 1, 0
        %v1103 = vsel %vm1071, 1, 0
        %v1104 = vsel %vm1072, 1, 0
        %v1105 = vsel %vm1073, 1, 0
        %v1106 = vsel %vm1074, 1, 0
        %v1107 = vsel %vm1075, 1, 0
        %v1108 = vsel %vm1076, 1, 0
        %v1109 = vsel %vm1077, 1, 0
        %v1110 = vsel %vm1078, 1, 0
        %v1111 = vsel %vm1079, 1, 0
        %vm1112 = vcmp.eq.s32.totalorder %v1080, 1
        %vm1113 = vcmp.eq.s32.totalorder %v1081, 1
        %vm1114 = vcmp.eq.s32.totalorder %v1082, 1
        %vm1115 = vcmp.eq.s32.totalorder %v1083, 1
        %vm1116 = vcmp.eq.s32.totalorder %v1084, 1
        %vm1117 = vcmp.eq.s32.totalorder %v1085, 1
        %vm1118 = vcmp.eq.s32.totalorder %v1086, 1
        %vm1119 = vcmp.eq.s32.totalorder %v1087, 1
        %vm1120 = vcmp.eq.s32.totalorder %v1088, 1
        %vm1121 = vcmp.eq.s32.totalorder %v1089, 1
        %vm1122 = vcmp.eq.s32.totalorder %v1090, 1
        %vm1123 = vcmp.eq.s32.totalorder %v1091, 1
        %vm1124 = vcmp.eq.s32.totalorder %v1092, 1
        %vm1125 = vcmp.eq.s32.totalorder %v1093, 1
        %vm1126 = vcmp.eq.s32.totalorder %v1094, 1
        %vm1127 = vcmp.eq.s32.totalorder %v1095, 1
        %vm1128 = vcmp.eq.s32.totalorder %v1096, 1
        %vm1129 = vcmp.eq.s32.totalorder %v1097, 1
        %vm1130 = vcmp.eq.s32.totalorder %v1098, 1
        %vm1131 = vcmp.eq.s32.totalorder %v1099, 1
        %vm1132 = vcmp.eq.s32.totalorder %v1100, 1
        %vm1133 = vcmp.eq.s32.totalorder %v1101, 1
        %vm1134 = vcmp.eq.s32.totalorder %v1102, 1
        %vm1135 = vcmp.eq.s32.totalorder %v1103, 1
        %vm1136 = vcmp.eq.s32.totalorder %v1104, 1
        %vm1137 = vcmp.eq.s32.totalorder %v1105, 1
        %vm1138 = vcmp.eq.s32.totalorder %v1106, 1
        %vm1139 = vcmp.eq.s32.totalorder %v1107, 1
        %vm1140 = vcmp.eq.s32.totalorder %v1108, 1
        %vm1141 = vcmp.eq.s32.totalorder %v1109, 1
        %vm1142 = vcmp.eq.s32.totalorder %v1110, 1
        %vm1143 = vcmp.eq.s32.totalorder %v1111, 1
        %vm1144 = vmpackc.low %vm1114, %vm1114
        %vm1145 = vmpackc.low %vm1115, %vm1115
        %vm1146 = vmpackc.low %vm1116, %vm1116
        %vm1147 = vmpackc.low %vm1117, %vm1117
        %vm1148 = vmpackc.low %vm1118, %vm1118
        %vm1149 = vmpackc.low %vm1119, %vm1119
        %vm1150 = vmpackc.low %vm1120, %vm1120
        %vm1151 = vmpackc.low %vm1121, %vm1121
        %vm1152 = vmpackc.low %vm1122, %vm1122
        %vm1153 = vmpackc.low %vm1123, %vm1123
        %vm1154 = vmpackc.low %vm1124, %vm1124
        %vm1155 = vmpackc.low %vm1125, %vm1125
        %vm1156 = vmpackc.low %vm1126, %vm1126
        %vm1157 = vmpackc.low %vm1127, %vm1127
        %vm1158 = vmpackc.low %vm1128, %vm1128
        %vm1159 = vmpackc.low %vm1129, %vm1129
        %vm1160 = vmpackc.low %vm1130, %vm1130
        %vm1161 = vmpackc.low %vm1131, %vm1131
        %vm1162 = vmpackc.low %vm1132, %vm1132
        %vm1163 = vmpackc.low %vm1133, %vm1133
        %vm1164 = vmpackc.low %vm1134, %vm1134
        %vm1165 = vmpackc.low %vm1135, %vm1135
        %vm1166 = vmpackc.low %vm1136, %vm1136
        %vm1167 = vmpackc.low %vm1137, %vm1137
        %vm1168 = vmpackc.low %vm1138, %vm1138
        %vm1169 = vmpackc.low %vm1139, %vm1139
        %vm1170 = vmpackc.low %vm1140, %vm1140
        %vm1171 = vmpackc.low %vm1141, %vm1141
        %vm1172 = vmpackc.low %vm1142, %vm1142
        %vm1173 = vmpackc.low %vm1143, %vm1143
        %v1174 = vsel %vm1144, 65537, 0
        %v1175 = vsel %vm1145, 65537, 0
        %v1176 = vsel %vm1146, 65537, 0
        %v1177 = vsel %vm1147, 65537, 0
        %v1178 = vsel %vm1148, 65537, 0
        %v1179 = vsel %vm1149, 65537, 0
        %v1180 = vsel %vm1150, 65537, 0
        %v1181 = vsel %vm1151, 65537, 0
        %v1182 = vsel %vm1152, 65537, 0
        %v1183 = vsel %vm1153, 65537, 0
        %v1184 = vsel %vm1154, 65537, 0
        %v1185 = vsel %vm1155, 65537, 0
        %v1186 = vsel %vm1156, 65537, 0
        %v1187 = vsel %vm1157, 65537, 0
        %v1188 = vsel %vm1158, 65537, 0
        %v1189 = vsel %vm1159, 65537, 0
        %v1190 = vsel %vm1160, 65537, 0
        %v1191 = vsel %vm1161, 65537, 0
        %v1192 = vsel %vm1162, 65537, 0
        %v1193 = vsel %vm1163, 65537, 0
        %v1194 = vsel %vm1164, 65537, 0
        %v1195 = vsel %vm1165, 65537, 0
        %v1196 = vsel %vm1166, 65537, 0
        %v1197 = vsel %vm1167, 65537, 0
        %v1198 = vsel %vm1168, 65537, 0
        %v1199 = vsel %vm1169, 65537, 0
        %v1200 = vsel %vm1170, 65537, 0
        %v1201 = vsel %vm1171, 65537, 0
        %v1202 = vsel %vm1172, 65537, 0
        %v1203 = vsel %vm1173, 65537, 0
        %v1204 = vunpack.c.l.b16 %v1174
        %v1205 = vunpack.c.l.b16 %v1175
        %v1206 = vunpack.c.l.b16 %v1176
        %v1207 = vunpack.c.l.b16 %v1177
        %v1208 = vunpack.c.l.b16 %v1178
        %v1209 = vunpack.c.l.b16 %v1179
        %v1210 = vunpack.c.l.b16 %v1180
        %v1211 = vunpack.c.l.b16 %v1181
        %v1212 = vunpack.c.l.b16 %v1182
        %v1213 = vunpack.c.l.b16 %v1183
        %v1214 = vunpack.c.l.b16 %v1184
        %v1215 = vunpack.c.l.b16 %v1185
        %v1216 = vunpack.c.l.b16 %v1186
        %v1217 = vunpack.c.l.b16 %v1187
        %v1218 = vunpack.c.l.b16 %v1188
        %v1219 = vunpack.c.l.b16 %v1189
        %v1220 = vunpack.c.l.b16 %v1190
        %v1221 = vunpack.c.l.b16 %v1191
        %v1222 = vunpack.c.l.b16 %v1192
        %v1223 = vunpack.c.l.b16 %v1193
        %v1224 = vunpack.c.l.b16 %v1194
        %v1225 = vunpack.c.l.b16 %v1195
        %v1226 = vunpack.c.l.b16 %v1196
        %v1227 = vunpack.c.l.b16 %v1197
        %v1228 = vunpack.c.l.b16 %v1198
        %v1229 = vunpack.c.l.b16 %v1199
        %v1230 = vunpack.c.l.b16 %v1200
        %v1231 = vunpack.c.l.b16 %v1201
        %v1232 = vunpack.c.l.b16 %v1202
        %v1233 = vunpack.c.l.b16 %v1203
        %v1234 = vpack.c.b16 %v1205, %v1204
        %v1235 = vpack.c.b16 %v1207, %v1206
        %v1236 = vpack.c.b16 %v1209, %v1208
        %v1237 = vpack.c.b16 %v1211, %v1210
        %v1238 = vpack.c.b16 %v1213, %v1212
        %v1239 = vpack.c.b16 %v1215, %v1214
        %v1240 = vpack.c.b16 %v1217, %v1216
        %v1241 = vpack.c.b16 %v1219, %v1218
        %v1242 = vpack.c.b16 %v1221, %v1220
        %v1243 = vpack.c.b16 %v1223, %v1222
        %v1244 = vpack.c.b16 %v1225, %v1224
        %v1245 = vpack.c.b16 %v1227, %v1226
        %v1246 = vpack.c.b16 %v1229, %v1228
        %v1247 = vpack.c.b16 %v1231, %v1230
        %v1248 = vpack.c.b16 %v1233, %v1232
        %vm1249 = vcmp.ne.s16.totalorder %v1234, 0
        %vm1250 = vcmp.ne.s16.totalorder %v1235, 0
        %vm1251 = vcmp.ne.s16.totalorder %v1236, 0
        %vm1252 = vcmp.ne.s16.totalorder %v1237, 0
        %vm1253 = vcmp.ne.s16.totalorder %v1238, 0
        %vm1254 = vcmp.ne.s16.totalorder %v1239, 0
        %vm1255 = vcmp.ne.s16.totalorder %v1240, 0
        %vm1256 = vcmp.ne.s16.totalorder %v1241, 0
        %vm1257 = vcmp.ne.s16.totalorder %v1242, 0
        %vm1258 = vcmp.ne.s16.totalorder %v1243, 0
        %vm1259 = vcmp.ne.s16.totalorder %v1244, 0
        %vm1260 = vcmp.ne.s16.totalorder %v1245, 0
        %vm1261 = vcmp.ne.s16.totalorder %v1246, 0
        %vm1262 = vcmp.ne.s16.totalorder %v1247, 0
        %vm1263 = vcmp.ne.s16.totalorder %v1248, 0
        %v1264 = vsel %vm1249, %v951, 0
        %v1265 = vsel %vm1250, %v829, 0
        %v1266 = vsel %vm1251, %v837, 0
        %v1267 = vsel %vm1252, %v845, 0
        %v1268 = vsel %vm1253, %v853, 0
        %v1269 = vsel %vm1254, %v861, 0
        %v1270 = vsel %vm1255, %v869, 0
        %v1271 = vsel %vm1256, %v877, 0
        %v1272 = vsel %vm1257, %v885, 0
        %v1273 = vsel %vm1258, %v893, 0
        %v1274 = vsel %vm1259, %v901, 0
        %v1275 = vsel %vm1260, %v909, 0
        %v1276 = vsel %vm1261, %v917, 0
        %v1277 = vsel %vm1262, %v925, 0
        %v1278 = vsel %vm1263, %v933, 0
        %v1279 = vld [vmem:[%s3] sm:$0xf]
        %v1280 = vld [vmem:[%s3 + $0x4] sm:$0xf]
        %v1281 = vld [vmem:[%s3 + $0x8] sm:$0xf]
        %v1282 = vld [vmem:[%s3 + $0xc] sm:$0xf]
        %s1283 = scalar_lea.vmem %s3, 16
        %v1284 = vld [vmem:[%s1283] sm:$0xf]
        %v1285 = vld [vmem:[%s1283 + $0x4] sm:$0xf]
        %v1286 = vld [vmem:[%s1283 + $0x8] sm:$0xf]
        %v1287 = vld [vmem:[%s1283 + $0xc] sm:$0xf]
        %v1292 = vunpack.c.l.b16 %v1284
        %v1293 = vunpack.c.l.b16 %v1285
        %v1294 = vunpack.c.l.b16 %v1286
        %v1295 = vunpack.c.l.b16 %v1287
        %v1296 = vpack.c.b16 %v1293, %v1292
        %v1297 = vpack.c.b16 %v1295, %v1294
        %vm1300 = vcmask 261120
        %v1302 = vsel %vm1300, 0, 0
        %v1304 = vsel %vm1300, %v381, 0
        %v1306 = vsel %vm1300, %v382, 0
        %v1308 = vsel %vm1300, %v383, 0
        %v1310 = vsel %vm1300, %v384, 0
        %v1312 = vsel %vm1300, %v385, 0
        %v1314 = vsel %vm1300, %v386, 0
        %v1316 = vsel %vm1300, %v387, 0
        %v1318 = vsel %vm1300, %v388, 0
        %v1320 = vsel %vm1300, %v389, 0
        %v1322 = vsel %vm1300, %v390, 0
        %v1324 = vsel %vm1300, %v391, 0
        %v1326 = vsel %vm1300, %v392, 0
        %v1328 = vsel %vm1300, %v393, 0
        %v1330 = vsel %vm1300, %v394, 0
        %v1332 = vsel %vm1300, %v395, 0
        %1334 = vmatprep.subr.bf16.mxu0 0
        %1335 = vmatpush1.bf16.msra.mxu0 0
        %1336 = vmatprep.subr.bf16.mxu0 0
        %1337 = vmatpush1.bf16.msra.mxu0 0
        %1338 = vmatprep.subr.bf16.mxu0 0
        %1339 = vmatpush1.bf16.msra.mxu0 0
        %1340 = vmatprep.subr.bf16.mxu0 0
        %1341 = vmatpush1.bf16.msra.mxu0 0
        %1342 = vmatprep.subr.bf16.mxu0 0
        %1343 = vmatpush1.bf16.msra.mxu0 0
        %1344 = vmatprep.subr.bf16.mxu0 0
        %1345 = vmatpush1.bf16.msra.mxu0 0
        %1346 = vmatprep.subr.bf16.mxu0 0
        %1347 = vmatpush1.bf16.msra.mxu0 %v1297
        %1348 = vmatprep.subr.bf16.mxu0 0
        %1349 = vmatpush1.bf16.msra.mxu0 %v1296
        %1350 = vmatprep.subr.bf16.mxu0 0
        %1351 = vmatpush2.bf16.msra.mxu0 0
        %1352 = vmatprep.subr.bf16.mxu0 0
        %1353 = vmatpush2.bf16.msra.mxu0 0
        %1354 = vmatprep.subr.bf16.mxu0 0
        %1355 = vmatpush2.bf16.msra.mxu0 0
        %1356 = vmatprep.subr.bf16.mxu0 0
        %1357 = vmatpush2.bf16.msra.mxu0 0
        %1358 = vmatprep.subr.bf16.mxu0 0
        %1359 = vmatpush2.bf16.msra.mxu0 0
        %1360 = vmatprep.subr.bf16.mxu0 0
        %1361 = vmatpush2.bf16.msra.mxu0 0
        %1362 = vmatprep.subr.bf16.mxu0 0
        %1363 = vmatpush2.bf16.msra.mxu0 0
        %1364 = vmatprep.subr.bf16.mxu0 0
        %1365 = vmatpush2.bf16.msra.mxu0 0
        %1366 = vmatprep.mubr.bf16.mxu0 0
        %1367 = vmatmul.mubr.bf16.gmra.mxu0 %v1302
        %v1368 = vpop.f32.mrf.mxu0
        %v1369 = vadd.f32 0.0, %v1368
        %v1370 = vpop.f32.mrf.mxu0
        %v1371 = vpop.f32.mrf.mxu0
        %v1372 = vadd.f32 0.0, %v1371
        %v1373 = vpop.f32.mrf.mxu0
        %1374 = vmatprep.mubr.bf16.mxu0 0
        %1375 = vmatmul.mubr.bf16.gmra.mxu0 %v1304
        %v1376 = vpop.f32.mrf.mxu0
        %v1377 = vadd.f32 0.0, %v1376
        %v1378 = vpop.f32.mrf.mxu0
        %v1379 = vpop.f32.mrf.mxu0
        %v1380 = vadd.f32 0.0, %v1379
        %v1381 = vpop.f32.mrf.mxu0
        %1382 = vmatprep.mubr.bf16.mxu0 0
        %1383 = vmatmul.mubr.bf16.gmra.mxu0 %v1306
        %v1384 = vpop.f32.mrf.mxu0
        %v1385 = vadd.f32 0.0, %v1384
        %v1386 = vpop.f32.mrf.mxu0
        %v1387 = vpop.f32.mrf.mxu0
        %v1388 = vadd.f32 0.0, %v1387
        %v1389 = vpop.f32.mrf.mxu0
        %1390 = vmatprep.mubr.bf16.mxu0 0
        %1391 = vmatmul.mubr.bf16.gmra.mxu0 %v1308
        %v1392 = vpop.f32.mrf.mxu0
        %v1393 = vadd.f32 0.0, %v1392
        %v1394 = vpop.f32.mrf.mxu0
        %v1395 = vpop.f32.mrf.mxu0
        %v1396 = vadd.f32 0.0, %v1395
        %v1397 = vpop.f32.mrf.mxu0
        %1398 = vmatprep.mubr.bf16.mxu0 0
        %1399 = vmatmul.mubr.bf16.gmra.mxu0 %v1310
        %v1400 = vpop.f32.mrf.mxu0
        %v1401 = vadd.f32 0.0, %v1400
        %v1402 = vpop.f32.mrf.mxu0
        %v1403 = vpop.f32.mrf.mxu0
        %v1404 = vadd.f32 0.0, %v1403
        %v1405 = vpop.f32.mrf.mxu0
        %1406 = vmatprep.mubr.bf16.mxu0 0
        %1407 = vmatmul.mubr.bf16.gmra.mxu0 %v1312
        %v1408 = vpop.f32.mrf.mxu0
        %v1409 = vadd.f32 0.0, %v1408
        %v1410 = vpop.f32.mrf.mxu0
        %v1411 = vpop.f32.mrf.mxu0
        %v1412 = vadd.f32 0.0, %v1411
        %v1413 = vpop.f32.mrf.mxu0
        %1414 = vmatprep.mubr.bf16.mxu0 0
        %1415 = vmatmul.mubr.bf16.gmra.mxu0 %v1314
        %v1416 = vpop.f32.mrf.mxu0
        %v1417 = vadd.f32 0.0, %v1416
        %v1418 = vpop.f32.mrf.mxu0
        %v1419 = vpop.f32.mrf.mxu0
        %v1420 = vadd.f32 0.0, %v1419
        %v1421 = vpop.f32.mrf.mxu0
        %1422 = vmatprep.mubr.bf16.mxu0 0
        %1423 = vmatmul.mubr.bf16.gmra.mxu0 %v1316
        %v1424 = vpop.f32.mrf.mxu0
        %v1425 = vadd.f32 0.0, %v1424
        %v1426 = vpop.f32.mrf.mxu0
        %v1427 = vpop.f32.mrf.mxu0
        %v1428 = vadd.f32 0.0, %v1427
        %v1429 = vpop.f32.mrf.mxu0
        %1430 = vmatprep.mubr.bf16.mxu0 0
        %1431 = vmatmul.mubr.bf16.gmra.mxu0 %v1318
        %v1432 = vpop.f32.mrf.mxu0
        %v1433 = vadd.f32 0.0, %v1432
        %v1434 = vpop.f32.mrf.mxu0
        %v1435 = vpop.f32.mrf.mxu0
        %v1436 = vadd.f32 0.0, %v1435
        %v1437 = vpop.f32.mrf.mxu0
        %1438 = vmatprep.mubr.bf16.mxu0 0
        %1439 = vmatmul.mubr.bf16.gmra.mxu0 %v1320
        %v1440 = vpop.f32.mrf.mxu0
        %v1441 = vadd.f32 0.0, %v1440
        %v1442 = vpop.f32.mrf.mxu0
        %v1443 = vpop.f32.mrf.mxu0
        %v1444 = vadd.f32 0.0, %v1443
        %v1445 = vpop.f32.mrf.mxu0
        %1446 = vmatprep.mubr.bf16.mxu0 0
        %1447 = vmatmul.mubr.bf16.gmra.mxu0 %v1322
        %v1448 = vpop.f32.mrf.mxu0
        %v1449 = vadd.f32 0.0, %v1448
        %v1450 = vpop.f32.mrf.mxu0
        %v1451 = vpop.f32.mrf.mxu0
        %v1452 = vadd.f32 0.0, %v1451
        %v1453 = vpop.f32.mrf.mxu0
        %1454 = vmatprep.mubr.bf16.mxu0 0
        %1455 = vmatmul.mubr.bf16.gmra.mxu0 %v1324
        %v1456 = vpop.f32.mrf.mxu0
        %v1457 = vadd.f32 0.0, %v1456
        %v1458 = vpop.f32.mrf.mxu0
        %v1459 = vpop.f32.mrf.mxu0
        %v1460 = vadd.f32 0.0, %v1459
        %v1461 = vpop.f32.mrf.mxu0
        %1462 = vmatprep.mubr.bf16.mxu0 0
        %1463 = vmatmul.mubr.bf16.gmra.mxu0 %v1326
        %v1464 = vpop.f32.mrf.mxu0
        %v1465 = vadd.f32 0.0, %v1464
        %v1466 = vpop.f32.mrf.mxu0
        %v1467 = vpop.f32.mrf.mxu0
        %v1468 = vadd.f32 0.0, %v1467
        %v1469 = vpop.f32.mrf.mxu0
        %1470 = vmatprep.mubr.bf16.mxu0 0
        %1471 = vmatmul.mubr.bf16.gmra.mxu0 %v1328
        %v1472 = vpop.f32.mrf.mxu0
        %v1473 = vadd.f32 0.0, %v1472
        %v1474 = vpop.f32.mrf.mxu0
        %v1475 = vpop.f32.mrf.mxu0
        %v1476 = vadd.f32 0.0, %v1475
        %v1477 = vpop.f32.mrf.mxu0
        %1478 = vmatprep.mubr.bf16.mxu0 0
        %1479 = vmatmul.mubr.bf16.gmra.mxu0 %v1330
        %v1480 = vpop.f32.mrf.mxu0
        %v1481 = vadd.f32 0.0, %v1480
        %v1482 = vpop.f32.mrf.mxu0
        %v1483 = vpop.f32.mrf.mxu0
        %v1484 = vadd.f32 0.0, %v1483
        %v1485 = vpop.f32.mrf.mxu0
        %1486 = vmatprep.mubr.bf16.mxu0 0
        %1487 = vmatmul.mubr.bf16.gmra.mxu0 %v1332
        %v1488 = vpop.f32.mrf.mxu0
        %v1489 = vadd.f32 0.0, %v1488
        %v1490 = vpop.f32.mrf.mxu0
        %v1491 = vpop.f32.mrf.mxu0
        %v1492 = vadd.f32 0.0, %v1491
        %v1493 = vpop.f32.mrf.mxu0
        %1494 = vdwg.mxu0
        %v1499 = vunpack.c.l.b16 %v1279
        %v1500 = vunpack.c.l.b16 %v1280
        %v1501 = vunpack.c.l.b16 %v1281
        %v1502 = vunpack.c.l.b16 %v1282
        %v1503 = vpack.c.b16 %v1500, %v1499
        %v1504 = vpack.c.b16 %v1502, %v1501
        %v1508 = vsel %vm1300, %v1264, 0
        %v1511 = vsel %vm1300, %v1265, 0
        %v1514 = vsel %vm1300, %v1266, 0
        %v1517 = vsel %vm1300, %v1267, 0
        %v1520 = vsel %vm1300, %v1268, 0
        %v1523 = vsel %vm1300, %v1269, 0
        %v1526 = vsel %vm1300, %v1270, 0
        %v1529 = vsel %vm1300, %v1271, 0
        %v1532 = vsel %vm1300, %v1272, 0
        %v1535 = vsel %vm1300, %v1273, 0
        %v1538 = vsel %vm1300, %v1274, 0
        %v1541 = vsel %vm1300, %v1275, 0
        %v1544 = vsel %vm1300, %v1276, 0
        %v1547 = vsel %vm1300, %v1277, 0
        %v1550 = vsel %vm1300, %v1278, 0
        %1552 = vmatprep.subr.bf16.mxu0 0
        %1553 = vmatpush1.bf16.msra.mxu0 0
        %1554 = vmatprep.subr.bf16.mxu0 0
        %1555 = vmatpush1.bf16.msra.mxu0 0
        %1556 = vmatprep.subr.bf16.mxu0 0
        %1557 = vmatpush1.bf16.msra.mxu0 0
        %1558 = vmatprep.subr.bf16.mxu0 0
        %1559 = vmatpush1.bf16.msra.mxu0 0
        %1560 = vmatprep.subr.bf16.mxu0 0
        %1561 = vmatpush1.bf16.msra.mxu0 0
        %1562 = vmatprep.subr.bf16.mxu0 0
        %1563 = vmatpush1.bf16.msra.mxu0 0
        %1564 = vmatprep.subr.bf16.mxu0 0
        %1565 = vmatpush1.bf16.msra.mxu0 %v1504
        %1566 = vmatprep.subr.bf16.mxu0 0
        %1567 = vmatpush1.bf16.msra.mxu0 %v1503
        %1568 = vmatprep.subr.bf16.mxu0 0
        %1569 = vmatpush2.bf16.msra.mxu0 0
        %1570 = vmatprep.subr.bf16.mxu0 0
        %1571 = vmatpush2.bf16.msra.mxu0 0
        %1572 = vmatprep.subr.bf16.mxu0 0
        %1573 = vmatpush2.bf16.msra.mxu0 0
        %1574 = vmatprep.subr.bf16.mxu0 0
        %1575 = vmatpush2.bf16.msra.mxu0 0
        %1576 = vmatprep.subr.bf16.mxu0 0
        %1577 = vmatpush2.bf16.msra.mxu0 0
        %1578 = vmatprep.subr.bf16.mxu0 0
        %1579 = vmatpush2.bf16.msra.mxu0 0
        %1580 = vmatprep.subr.bf16.mxu0 0
        %1581 = vmatpush2.bf16.msra.mxu0 0
        %1582 = vmatprep.subr.bf16.mxu0 0
        %1583 = vmatpush2.bf16.msra.mxu0 0
        %1584 = vmatprep.mubr.bf16.mxu0 0
        %1585 = vmatmul.mubr.bf16.gmra.mxu0 %v1302
        %v1586 = vpop.f32.mrf.mxu0
        %v1587 = vadd.f32 %v1369, %v1586
        %v1588 = vpop.f32.mrf.mxu0
        %v1589 = vpop.f32.mrf.mxu0
        %v1590 = vadd.f32 %v1372, %v1589
        %v1591 = vpop.f32.mrf.mxu0
        %1592 = vmatprep.mubr.bf16.mxu0 0
        %1593 = vmatmul.mubr.bf16.gmra.mxu0 %v1508
        %v1594 = vpop.f32.mrf.mxu0
        %v1595 = vadd.f32 %v1377, %v1594
        %v1596 = vpop.f32.mrf.mxu0
        %v1597 = vpop.f32.mrf.mxu0
        %v1598 = vadd.f32 %v1380, %v1597
        %v1599 = vpop.f32.mrf.mxu0
        %1600 = vmatprep.mubr.bf16.mxu0 0
        %1601 = vmatmul.mubr.bf16.gmra.mxu0 %v1511
        %v1602 = vpop.f32.mrf.mxu0
        %v1603 = vadd.f32 %v1385, %v1602
        %v1604 = vpop.f32.mrf.mxu0
        %v1605 = vpop.f32.mrf.mxu0
        %v1606 = vadd.f32 %v1388, %v1605
        %v1607 = vpop.f32.mrf.mxu0
        %1608 = vmatprep.mubr.bf16.mxu0 0
        %1609 = vmatmul.mubr.bf16.gmra.mxu0 %v1514
        %v1610 = vpop.f32.mrf.mxu0
        %v1611 = vadd.f32 %v1393, %v1610
        %v1612 = vpop.f32.mrf.mxu0
        %v1613 = vpop.f32.mrf.mxu0
        %v1614 = vadd.f32 %v1396, %v1613
        %v1615 = vpop.f32.mrf.mxu0
        %1616 = vmatprep.mubr.bf16.mxu0 0
        %1617 = vmatmul.mubr.bf16.gmra.mxu0 %v1517
        %v1618 = vpop.f32.mrf.mxu0
        %v1619 = vadd.f32 %v1401, %v1618
        %v1620 = vpop.f32.mrf.mxu0
        %v1621 = vpop.f32.mrf.mxu0
        %v1622 = vadd.f32 %v1404, %v1621
        %v1623 = vpop.f32.mrf.mxu0
        %1624 = vmatprep.mubr.bf16.mxu0 0
        %1625 = vmatmul.mubr.bf16.gmra.mxu0 %v1520
        %v1626 = vpop.f32.mrf.mxu0
        %v1627 = vadd.f32 %v1409, %v1626
        %v1628 = vpop.f32.mrf.mxu0
        %v1629 = vpop.f32.mrf.mxu0
        %v1630 = vadd.f32 %v1412, %v1629
        %v1631 = vpop.f32.mrf.mxu0
        %1632 = vmatprep.mubr.bf16.mxu0 0
        %1633 = vmatmul.mubr.bf16.gmra.mxu0 %v1523
        %v1634 = vpop.f32.mrf.mxu0
        %v1635 = vadd.f32 %v1417, %v1634
        %v1636 = vpop.f32.mrf.mxu0
        %v1637 = vpop.f32.mrf.mxu0
        %v1638 = vadd.f32 %v1420, %v1637
        %v1639 = vpop.f32.mrf.mxu0
        %1640 = vmatprep.mubr.bf16.mxu0 0
        %1641 = vmatmul.mubr.bf16.gmra.mxu0 %v1526
        %v1642 = vpop.f32.mrf.mxu0
        %v1643 = vadd.f32 %v1425, %v1642
        %v1644 = vpop.f32.mrf.mxu0
        %v1645 = vpop.f32.mrf.mxu0
        %v1646 = vadd.f32 %v1428, %v1645
        %v1647 = vpop.f32.mrf.mxu0
        %1648 = vmatprep.mubr.bf16.mxu0 0
        %1649 = vmatmul.mubr.bf16.gmra.mxu0 %v1529
        %v1650 = vpop.f32.mrf.mxu0
        %v1651 = vadd.f32 %v1433, %v1650
        %v1652 = vpop.f32.mrf.mxu0
        %v1653 = vpop.f32.mrf.mxu0
        %v1654 = vadd.f32 %v1436, %v1653
        %v1655 = vpop.f32.mrf.mxu0
        %1656 = vmatprep.mubr.bf16.mxu0 0
        %1657 = vmatmul.mubr.bf16.gmra.mxu0 %v1532
        %v1658 = vpop.f32.mrf.mxu0
        %v1659 = vadd.f32 %v1441, %v1658
        %v1660 = vpop.f32.mrf.mxu0
        %v1661 = vpop.f32.mrf.mxu0
        %v1662 = vadd.f32 %v1444, %v1661
        %v1663 = vpop.f32.mrf.mxu0
        %1664 = vmatprep.mubr.bf16.mxu0 0
        %1665 = vmatmul.mubr.bf16.gmra.mxu0 %v1535
        %v1666 = vpop.f32.mrf.mxu0
        %v1667 = vadd.f32 %v1449, %v1666
        %v1668 = vpop.f32.mrf.mxu0
        %v1669 = vpop.f32.mrf.mxu0
        %v1670 = vadd.f32 %v1452, %v1669
        %v1671 = vpop.f32.mrf.mxu0
        %1672 = vmatprep.mubr.bf16.mxu0 0
        %1673 = vmatmul.mubr.bf16.gmra.mxu0 %v1538
        %v1674 = vpop.f32.mrf.mxu0
        %v1675 = vadd.f32 %v1457, %v1674
        %v1676 = vpop.f32.mrf.mxu0
        %v1677 = vpop.f32.mrf.mxu0
        %v1678 = vadd.f32 %v1460, %v1677
        %v1679 = vpop.f32.mrf.mxu0
        %1680 = vmatprep.mubr.bf16.mxu0 0
        %1681 = vmatmul.mubr.bf16.gmra.mxu0 %v1541
        %v1682 = vpop.f32.mrf.mxu0
        %v1683 = vadd.f32 %v1465, %v1682
        %v1684 = vpop.f32.mrf.mxu0
        %v1685 = vpop.f32.mrf.mxu0
        %v1686 = vadd.f32 %v1468, %v1685
        %v1687 = vpop.f32.mrf.mxu0
        %1688 = vmatprep.mubr.bf16.mxu0 0
        %1689 = vmatmul.mubr.bf16.gmra.mxu0 %v1544
        %v1690 = vpop.f32.mrf.mxu0
        %v1691 = vadd.f32 %v1473, %v1690
        %v1692 = vpop.f32.mrf.mxu0
        %v1693 = vpop.f32.mrf.mxu0
        %v1694 = vadd.f32 %v1476, %v1693
        %v1695 = vpop.f32.mrf.mxu0
        %1696 = vmatprep.mubr.bf16.mxu0 0
        %1697 = vmatmul.mubr.bf16.gmra.mxu0 %v1547
        %v1698 = vpop.f32.mrf.mxu0
        %v1699 = vadd.f32 %v1481, %v1698
        %v1700 = vpop.f32.mrf.mxu0
        %v1701 = vpop.f32.mrf.mxu0
        %v1702 = vadd.f32 %v1484, %v1701
        %v1703 = vpop.f32.mrf.mxu0
        %1704 = vmatprep.mubr.bf16.mxu0 0
        %1705 = vmatmul.mubr.bf16.gmra.mxu0 %v1550
        %v1706 = vpop.f32.mrf.mxu0
        %v1707 = vadd.f32 %v1489, %v1706
        %v1708 = vpop.f32.mrf.mxu0
        %v1709 = vpop.f32.mrf.mxu0
        %v1710 = vadd.f32 %v1492, %v1709
        %v1711 = vpop.f32.mrf.mxu0
        %1712 = vdwg.mxu0
        %vm1713 = vsmask.f32 7424
        %v1714 = vrot.slane %v819, 1
        %v1715 = vor.u32 %v816, %v1714
        %v1716 = vrot.slane %v826, 1
        %v1717 = vsel %vm1713, %v1715, %v1716
        %v1718 = vor.u32 %v823, %v1716
        %v1719 = vrot.slane %v834, 1
        %v1720 = vsel %vm1713, %v1718, %v1719
        %v1721 = vor.u32 %v831, %v1719
        %v1722 = vrot.slane %v842, 1
        %v1723 = vsel %vm1713, %v1721, %v1722
        %v1724 = vor.u32 %v839, %v1722
        %v1725 = vrot.slane %v850, 1
        %v1726 = vsel %vm1713, %v1724, %v1725
        %v1727 = vor.u32 %v847, %v1725
        %v1728 = vrot.slane %v858, 1
        %v1729 = vsel %vm1713, %v1727, %v1728
        %v1730 = vor.u32 %v855, %v1728
        %v1731 = vrot.slane %v866, 1
        %v1732 = vsel %vm1713, %v1730, %v1731
        %v1733 = vor.u32 %v863, %v1731
        %v1734 = vrot.slane %v874, 1
        %v1735 = vsel %vm1713, %v1733, %v1734
        %v1736 = vor.u32 %v871, %v1734
        %v1737 = vrot.slane %v882, 1
        %v1738 = vsel %vm1713, %v1736, %v1737
        %v1739 = vor.u32 %v879, %v1737
        %v1740 = vrot.slane %v890, 1
        %v1741 = vsel %vm1713, %v1739, %v1740
        %v1742 = vor.u32 %v887, %v1740
        %v1743 = vrot.slane %v898, 1
        %v1744 = vsel %vm1713, %v1742, %v1743
        %v1745 = vor.u32 %v895, %v1743
        %v1746 = vrot.slane %v906, 1
        %v1747 = vsel %vm1713, %v1745, %v1746
        %v1748 = vor.u32 %v903, %v1746
        %v1749 = vrot.slane %v914, 1
        %v1750 = vsel %vm1713, %v1748, %v1749
        %v1751 = vor.u32 %v911, %v1749
        %v1752 = vrot.slane %v922, 1
        %v1753 = vsel %vm1713, %v1751, %v1752
        %v1754 = vor.u32 %v919, %v1752
        %v1755 = vrot.slane %v930, 1
        %v1756 = vsel %vm1713, %v1754, %v1755
        %v1757 = vor.u32 %v927, %v1755
        %v1759 = vshll.u32 %v396, 16
        %v1761 = vrot.slane %v1759, 1
        %v1762 = vsel %vm1713, %v1757, %v1761
        %vm1779 = vcmask 1047552
        %vm1780 = vmand %vm1779, %vm1713
        %v1781 = vsel %vm1780, 0, %v1714
        %v1782 = vadd.s32 %v782, 1
        %v1783 = vadd.s32 %v783, 1
        %v1784 = vadd.s32 %v784, 1
        %v1785 = vadd.s32 %v785, 1
        %v1786 = vadd.s32 %v786, 1
        %v1787 = vadd.s32 %v787, 1
        %v1788 = vadd.s32 %v788, 1
        %v1789 = vadd.s32 %v789, 1
        %v1790 = vadd.s32 %v790, 1
        %v1791 = vadd.s32 %v791, 1
        %v1792 = vadd.s32 %v792, 1
        %v1793 = vadd.s32 %v793, 1
        %v1794 = vadd.s32 %v794, 1
        %v1795 = vadd.s32 %v795, 1
        %v1796 = vadd.s32 %v796, 1
        %v1797 = vadd.s32 %v797, 1
        %v1798 = vadd.s32 %v798, 1
        %v1799 = vadd.s32 %v799, 1
        %v1800 = vadd.s32 %v800, 1
        %v1801 = vadd.s32 %v801, 1
        %v1802 = vadd.s32 %v802, 1
        %v1803 = vadd.s32 %v803, 1
        %v1804 = vadd.s32 %v804, 1
        %v1805 = vadd.s32 %v805, 1
        %v1806 = vadd.s32 %v806, 1
        %v1807 = vadd.s32 %v807, 1
        %v1808 = vadd.s32 %v808, 1
        %v1809 = vadd.s32 %v809, 1
        %v1810 = vadd.s32 %v810, 1
        %v1811 = vadd.s32 %v811, 1
        %v1812 = vadd.s32 %v812, 1
        %v1813 = vadd.s32 %v813, 1
        %vm1814 = vcmp.ge.s32.totalorder %v1782, 0
        %vm1815 = vcmp.ge.s32.totalorder %v1783, 0
        %vm1816 = vcmp.ge.s32.totalorder %v1784, 0
        %vm1817 = vcmp.ge.s32.totalorder %v1785, 0
        %vm1818 = vcmp.ge.s32.totalorder %v1786, 0
        %vm1819 = vcmp.ge.s32.totalorder %v1787, 0
        %vm1820 = vcmp.ge.s32.totalorder %v1788, 0
        %vm1821 = vcmp.ge.s32.totalorder %v1789, 0
        %vm1822 = vcmp.ge.s32.totalorder %v1790, 0
        %vm1823 = vcmp.ge.s32.totalorder %v1791, 0
        %vm1824 = vcmp.ge.s32.totalorder %v1792, 0
        %vm1825 = vcmp.ge.s32.totalorder %v1793, 0
        %vm1826 = vcmp.ge.s32.totalorder %v1794, 0
        %vm1827 = vcmp.ge.s32.totalorder %v1795, 0
        %vm1828 = vcmp.ge.s32.totalorder %v1796, 0
        %vm1829 = vcmp.ge.s32.totalorder %v1797, 0
        %vm1830 = vcmp.ge.s32.totalorder %v1798, 0
        %vm1831 = vcmp.ge.s32.totalorder %v1799, 0
        %vm1832 = vcmp.ge.s32.totalorder %v1800, 0
        %vm1833 = vcmp.ge.s32.totalorder %v1801, 0
        %vm1834 = vcmp.ge.s32.totalorder %v1802, 0
        %vm1835 = vcmp.ge.s32.totalorder %v1803, 0
        %vm1836 = vcmp.ge.s32.totalorder %v1804, 0
        %vm1837 = vcmp.ge.s32.totalorder %v1805, 0
        %vm1838 = vcmp.ge.s32.totalorder %v1806, 0
        %vm1839 = vcmp.ge.s32.totalorder %v1807, 0
        %vm1840 = vcmp.ge.s32.totalorder %v1808, 0
        %vm1841 = vcmp.ge.s32.totalorder %v1809, 0
        %vm1842 = vcmp.ge.s32.totalorder %v1810, 0
        %vm1843 = vcmp.ge.s32.totalorder %v1811, 0
        %vm1844 = vcmp.ge.s32.totalorder %v1812, 0
        %vm1845 = vcmp.ge.s32.totalorder %v1813, 0
        %vm1846 = vcmp.lt.s32.totalorder %v1782, 16
        %vm1847 = vcmp.lt.s32.totalorder %v1783, 16
        %vm1848 = vcmp.lt.s32.totalorder %v1784, 16
        %vm1849 = vcmp.lt.s32.totalorder %v1785, 16
        %vm1850 = vcmp.lt.s32.totalorder %v1786, 16
        %vm1851 = vcmp.lt.s32.totalorder %v1787, 16
        %vm1852 = vcmp.lt.s32.totalorder %v1788, 16
        %vm1853 = vcmp.lt.s32.totalorder %v1789, 16
        %vm1854 = vcmp.lt.s32.totalorder %v1790, 16
        %vm1855 = vcmp.lt.s32.totalorder %v1791, 16
        %vm1856 = vcmp.lt.s32.totalorder %v1792, 16
        %vm1857 = vcmp.lt.s32.totalorder %v1793, 16
        %vm1858 = vcmp.lt.s32.totalorder %v1794, 16
        %vm1859 = vcmp.lt.s32.totalorder %v1795, 16
        %vm1860 = vcmp.lt.s32.totalorder %v1796, 16
        %vm1861 = vcmp.lt.s32.totalorder %v1797, 16
        %vm1862 = vcmp.lt.s32.totalorder %v1798, 16
        %vm1863 = vcmp.lt.s32.totalorder %v1799, 16
        %vm1864 = vcmp.lt.s32.totalorder %v1800, 16
        %vm1865 = vcmp.lt.s32.totalorder %v1801, 16
        %vm1866 = vcmp.lt.s32.totalorder %v1802, 16
        %vm1867 = vcmp.lt.s32.totalorder %v1803, 16
        %vm1868 = vcmp.lt.s32.totalorder %v1804, 16
        %vm1869 = vcmp.lt.s32.totalorder %v1805, 16
        %vm1870 = vcmp.lt.s32.totalorder %v1806, 16
        %vm1871 = vcmp.lt.s32.totalorder %v1807, 16
        %vm1872 = vcmp.lt.s32.totalorder %v1808, 16
        %vm1873 = vcmp.lt.s32.totalorder %v1809, 16
        %vm1874 = vcmp.lt.s32.totalorder %v1810, 16
        %vm1875 = vcmp.lt.s32.totalorder %v1811, 16
        %vm1876 = vcmp.lt.s32.totalorder %v1812, 16
        %vm1877 = vcmp.lt.s32.totalorder %v1813, 16
        %vm1878 = vmand %vm1814, %vm1846
        %vm1879 = vmand %vm1815, %vm1847
        %vm1880 = vmand %vm1816, %vm1848
        %vm1881 = vmand %vm1817, %vm1849
        %vm1882 = vmand %vm1818, %vm1850
        %vm1883 = vmand %vm1819, %vm1851
        %vm1884 = vmand %vm1820, %vm1852
        %vm1885 = vmand %vm1821, %vm1853
        %vm1886 = vmand %vm1822, %vm1854
        %vm1887 = vmand %vm1823, %vm1855
        %vm1888 = vmand %vm1824, %vm1856
        %vm1889 = vmand %vm1825, %vm1857
        %vm1890 = vmand %vm1826, %vm1858
        %vm1891 = vmand %vm1827, %vm1859
        %vm1892 = vmand %vm1828, %vm1860
        %vm1893 = vmand %vm1829, %vm1861
        %vm1894 = vmand %vm1830, %vm1862
        %vm1895 = vmand %vm1831, %vm1863
        %vm1896 = vmand %vm1832, %vm1864
        %vm1897 = vmand %vm1833, %vm1865
        %vm1898 = vmand %vm1834, %vm1866
        %vm1899 = vmand %vm1835, %vm1867
        %vm1900 = vmand %vm1836, %vm1868
        %vm1901 = vmand %vm1837, %vm1869
        %vm1902 = vmand %vm1838, %vm1870
        %vm1903 = vmand %vm1839, %vm1871
        %vm1904 = vmand %vm1840, %vm1872
        %vm1905 = vmand %vm1841, %vm1873
        %vm1906 = vmand %vm1842, %vm1874
        %vm1907 = vmand %vm1843, %vm1875
        %vm1908 = vmand %vm1844, %vm1876
        %vm1909 = vmand %vm1845, %vm1877
        %v1910 = vsel %vm1878, 1, 0
        %v1911 = vsel %vm1879, 1, 0
        %v1912 = vsel %vm1880, 1, 0
        %v1913 = vsel %vm1881, 1, 0
        %v1914 = vsel %vm1882, 1, 0
        %v1915 = vsel %vm1883, 1, 0
        %v1916 = vsel %vm1884, 1, 0
        %v1917 = vsel %vm1885, 1, 0
        %v1918 = vsel %vm1886, 1, 0
        %v1919 = vsel %vm1887, 1, 0
        %v1920 = vsel %vm1888, 1, 0
        %v1921 = vsel %vm1889, 1, 0
        %v1922 = vsel %vm1890, 1, 0
        %v1923 = vsel %vm1891, 1, 0
        %v1924 = vsel %vm1892, 1, 0
        %v1925 = vsel %vm1893, 1, 0
        %v1926 = vsel %vm1894, 1, 0
        %v1927 = vsel %vm1895, 1, 0
        %v1928 = vsel %vm1896, 1, 0
        %v1929 = vsel %vm1897, 1, 0
        %v1930 = vsel %vm1898, 1, 0
        %v1931 = vsel %vm1899, 1, 0
        %v1932 = vsel %vm1900, 1, 0
        %v1933 = vsel %vm1901, 1, 0
        %v1934 = vsel %vm1902, 1, 0
        %v1935 = vsel %vm1903, 1, 0
        %v1936 = vsel %vm1904, 1, 0
        %v1937 = vsel %vm1905, 1, 0
        %v1938 = vsel %vm1906, 1, 0
        %v1939 = vsel %vm1907, 1, 0
        %v1940 = vsel %vm1908, 1, 0
        %v1941 = vsel %vm1909, 1, 0
        %vm1942 = vcmp.eq.s32.totalorder %v1910, 1
        %vm1943 = vcmp.eq.s32.totalorder %v1911, 1
        %vm1944 = vcmp.eq.s32.totalorder %v1912, 1
        %vm1945 = vcmp.eq.s32.totalorder %v1913, 1
        %vm1946 = vcmp.eq.s32.totalorder %v1914, 1
        %vm1947 = vcmp.eq.s32.totalorder %v1915, 1
        %vm1948 = vcmp.eq.s32.totalorder %v1916, 1
        %vm1949 = vcmp.eq.s32.totalorder %v1917, 1
        %vm1950 = vcmp.eq.s32.totalorder %v1918, 1
        %vm1951 = vcmp.eq.s32.totalorder %v1919, 1
        %vm1952 = vcmp.eq.s32.totalorder %v1920, 1
        %vm1953 = vcmp.eq.s32.totalorder %v1921, 1
        %vm1954 = vcmp.eq.s32.totalorder %v1922, 1
        %vm1955 = vcmp.eq.s32.totalorder %v1923, 1
        %vm1956 = vcmp.eq.s32.totalorder %v1924, 1
        %vm1957 = vcmp.eq.s32.totalorder %v1925, 1
        %vm1958 = vcmp.eq.s32.totalorder %v1926, 1
        %vm1959 = vcmp.eq.s32.totalorder %v1927, 1
        %vm1960 = vcmp.eq.s32.totalorder %v1928, 1
        %vm1961 = vcmp.eq.s32.totalorder %v1929, 1
        %vm1962 = vcmp.eq.s32.totalorder %v1930, 1
        %vm1963 = vcmp.eq.s32.totalorder %v1931, 1
        %vm1964 = vcmp.eq.s32.totalorder %v1932, 1
        %vm1965 = vcmp.eq.s32.totalorder %v1933, 1
        %vm1966 = vcmp.eq.s32.totalorder %v1934, 1
        %vm1967 = vcmp.eq.s32.totalorder %v1935, 1
        %vm1968 = vcmp.eq.s32.totalorder %v1936, 1
        %vm1969 = vcmp.eq.s32.totalorder %v1937, 1
        %vm1970 = vcmp.eq.s32.totalorder %v1938, 1
        %vm1971 = vcmp.eq.s32.totalorder %v1939, 1
        %vm1972 = vcmp.eq.s32.totalorder %v1940, 1
        %vm1973 = vcmp.eq.s32.totalorder %v1941, 1
        %vm1974 = vmpackc.low %vm1942, %vm1942
        %vm1975 = vmpackc.low %vm1943, %vm1943
        %vm1976 = vmpackc.low %vm1944, %vm1944
        %vm1977 = vmpackc.low %vm1945, %vm1945
        %vm1978 = vmpackc.low %vm1946, %vm1946
        %vm1979 = vmpackc.low %vm1947, %vm1947
        %vm1980 = vmpackc.low %vm1948, %vm1948
        %vm1981 = vmpackc.low %vm1949, %vm1949
        %vm1982 = vmpackc.low %vm1950, %vm1950
        %vm1983 = vmpackc.low %vm1951, %vm1951
        %vm1984 = vmpackc.low %vm1952, %vm1952
        %vm1985 = vmpackc.low %vm1953, %vm1953
        %vm1986 = vmpackc.low %vm1954, %vm1954
        %vm1987 = vmpackc.low %vm1955, %vm1955
        %vm1988 = vmpackc.low %vm1956, %vm1956
        %vm1989 = vmpackc.low %vm1957, %vm1957
        %vm1990 = vmpackc.low %vm1958, %vm1958
        %vm1991 = vmpackc.low %vm1959, %vm1959
        %vm1992 = vmpackc.low %vm1960, %vm1960
        %vm1993 = vmpackc.low %vm1961, %vm1961
        %vm1994 = vmpackc.low %vm1962, %vm1962
        %vm1995 = vmpackc.low %vm1963, %vm1963
        %vm1996 = vmpackc.low %vm1964, %vm1964
        %vm1997 = vmpackc.low %vm1965, %vm1965
        %vm1998 = vmpackc.low %vm1966, %vm1966
        %vm1999 = vmpackc.low %vm1967, %vm1967
        %vm2000 = vmpackc.low %vm1968, %vm1968
        %vm2001 = vmpackc.low %vm1969, %vm1969
        %vm2002 = vmpackc.low %vm1970, %vm1970
        %vm2003 = vmpackc.low %vm1971, %vm1971
        %vm2004 = vmpackc.low %vm1972, %vm1972
        %vm2005 = vmpackc.low %vm1973, %vm1973
        %v2006 = vsel %vm1974, 65537, 0
        %v2007 = vsel %vm1975, 65537, 0
        %v2008 = vsel %vm1976, 65537, 0
        %v2009 = vsel %vm1977, 65537, 0
        %v2010 = vsel %vm1978, 65537, 0
        %v2011 = vsel %vm1979, 65537, 0
        %v2012 = vsel %vm1980, 65537, 0
        %v2013 = vsel %vm1981, 65537, 0
        %v2014 = vsel %vm1982, 65537, 0
        %v2015 = vsel %vm1983, 65537, 0
        %v2016 = vsel %vm1984, 65537, 0
        %v2017 = vsel %vm1985, 65537, 0
        %v2018 = vsel %vm1986, 65537, 0
        %v2019 = vsel %vm1987, 65537, 0
        %v2020 = vsel %vm1988, 65537, 0
        %v2021 = vsel %vm1989, 65537, 0
        %v2022 = vsel %vm1990, 65537, 0
        %v2023 = vsel %vm1991, 65537, 0
        %v2024 = vsel %vm1992, 65537, 0
        %v2025 = vsel %vm1993, 65537, 0
        %v2026 = vsel %vm1994, 65537, 0
        %v2027 = vsel %vm1995, 65537, 0
        %v2028 = vsel %vm1996, 65537, 0
        %v2029 = vsel %vm1997, 65537, 0
        %v2030 = vsel %vm1998, 65537, 0
        %v2031 = vsel %vm1999, 65537, 0
        %v2032 = vsel %vm2000, 65537, 0
        %v2033 = vsel %vm2001, 65537, 0
        %v2034 = vsel %vm2002, 65537, 0
        %v2035 = vsel %vm2003, 65537, 0
        %v2036 = vsel %vm2004, 65537, 0
        %v2037 = vsel %vm2005, 65537, 0
        %v2038 = vunpack.c.l.b16 %v2006
        %v2039 = vunpack.c.l.b16 %v2007
        %v2040 = vunpack.c.l.b16 %v2008
        %v2041 = vunpack.c.l.b16 %v2009
        %v2042 = vunpack.c.l.b16 %v2010
        %v2043 = vunpack.c.l.b16 %v2011
        %v2044 = vunpack.c.l.b16 %v2012
        %v2045 = vunpack.c.l.b16 %v2013
        %v2046 = vunpack.c.l.b16 %v2014
        %v2047 = vunpack.c.l.b16 %v2015
        %v2048 = vunpack.c.l.b16 %v2016
        %v2049 = vunpack.c.l.b16 %v2017
        %v2050 = vunpack.c.l.b16 %v2018
        %v2051 = vunpack.c.l.b16 %v2019
        %v2052 = vunpack.c.l.b16 %v2020
        %v2053 = vunpack.c.l.b16 %v2021
        %v2054 = vunpack.c.l.b16 %v2022
        %v2055 = vunpack.c.l.b16 %v2023
        %v2056 = vunpack.c.l.b16 %v2024
        %v2057 = vunpack.c.l.b16 %v2025
        %v2058 = vunpack.c.l.b16 %v2026
        %v2059 = vunpack.c.l.b16 %v2027
        %v2060 = vunpack.c.l.b16 %v2028
        %v2061 = vunpack.c.l.b16 %v2029
        %v2062 = vunpack.c.l.b16 %v2030
        %v2063 = vunpack.c.l.b16 %v2031
        %v2064 = vunpack.c.l.b16 %v2032
        %v2065 = vunpack.c.l.b16 %v2033
        %v2066 = vunpack.c.l.b16 %v2034
        %v2067 = vunpack.c.l.b16 %v2035
        %v2068 = vunpack.c.l.b16 %v2036
        %v2069 = vunpack.c.l.b16 %v2037
        %v2070 = vpack.c.b16 %v2039, %v2038
        %v2071 = vpack.c.b16 %v2041, %v2040
        %v2072 = vpack.c.b16 %v2043, %v2042
        %v2073 = vpack.c.b16 %v2045, %v2044
        %v2074 = vpack.c.b16 %v2047, %v2046
        %v2075 = vpack.c.b16 %v2049, %v2048
        %v2076 = vpack.c.b16 %v2051, %v2050
        %v2077 = vpack.c.b16 %v2053, %v2052
        %v2078 = vpack.c.b16 %v2055, %v2054
        %v2079 = vpack.c.b16 %v2057, %v2056
        %v2080 = vpack.c.b16 %v2059, %v2058
        %v2081 = vpack.c.b16 %v2061, %v2060
        %v2082 = vpack.c.b16 %v2063, %v2062
        %v2083 = vpack.c.b16 %v2065, %v2064
        %v2084 = vpack.c.b16 %v2067, %v2066
        %v2085 = vpack.c.b16 %v2069, %v2068
        %vm2086 = vcmp.ne.s16.totalorder %v2070, 0
        %vm2087 = vcmp.ne.s16.totalorder %v2071, 0
        %vm2088 = vcmp.ne.s16.totalorder %v2072, 0
        %vm2089 = vcmp.ne.s16.totalorder %v2073, 0
        %vm2090 = vcmp.ne.s16.totalorder %v2074, 0
        %vm2091 = vcmp.ne.s16.totalorder %v2075, 0
        %vm2092 = vcmp.ne.s16.totalorder %v2076, 0
        %vm2093 = vcmp.ne.s16.totalorder %v2077, 0
        %vm2094 = vcmp.ne.s16.totalorder %v2078, 0
        %vm2095 = vcmp.ne.s16.totalorder %v2079, 0
        %vm2096 = vcmp.ne.s16.totalorder %v2080, 0
        %vm2097 = vcmp.ne.s16.totalorder %v2081, 0
        %vm2098 = vcmp.ne.s16.totalorder %v2082, 0
        %vm2099 = vcmp.ne.s16.totalorder %v2083, 0
        %vm2100 = vcmp.ne.s16.totalorder %v2084, 0
        %vm2101 = vcmp.ne.s16.totalorder %v2085, 0
        %v2102 = vsel %vm2086, %v1781, 0
        %v2103 = vsel %vm2087, %v1717, 0
        %v2104 = vsel %vm2088, %v1720, 0
        %v2105 = vsel %vm2089, %v1723, 0
        %v2106 = vsel %vm2090, %v1726, 0
        %v2107 = vsel %vm2091, %v1729, 0
        %v2108 = vsel %vm2092, %v1732, 0
        %v2109 = vsel %vm2093, %v1735, 0
        %v2110 = vsel %vm2094, %v1738, 0
        %v2111 = vsel %vm2095, %v1741, 0
        %v2112 = vsel %vm2096, %v1744, 0
        %v2113 = vsel %vm2097, %v1747, 0
        %v2114 = vsel %vm2098, %v1750, 0
        %v2115 = vsel %vm2099, %v1753, 0
        %v2116 = vsel %vm2100, %v1756, 0
        %v2117 = vsel %vm2101, %v1762, 0
        %s2118 = scalar_lea.vmem %s3, 32
        %v2119 = vld [vmem:[%s2118] sm:$0xf]
        %v2120 = vld [vmem:[%s2118 + $0x4] sm:$0xf]
        %v2121 = vld [vmem:[%s2118 + $0x8] sm:$0xf]
        %v2122 = vld [vmem:[%s2118 + $0xc] sm:$0xf]
        %v2127 = vunpack.c.l.b16 %v2119
        %v2128 = vunpack.c.l.b16 %v2120
        %v2129 = vunpack.c.l.b16 %v2121
        %v2130 = vunpack.c.l.b16 %v2122
        %v2131 = vpack.c.b16 %v2128, %v2127
        %v2132 = vpack.c.b16 %v2130, %v2129
        %v2136 = vsel %vm1300, %v2102, 0
        %v2139 = vsel %vm1300, %v2103, 0
        %v2142 = vsel %vm1300, %v2104, 0
        %v2145 = vsel %vm1300, %v2105, 0
        %v2148 = vsel %vm1300, %v2106, 0
        %v2151 = vsel %vm1300, %v2107, 0
        %v2154 = vsel %vm1300, %v2108, 0
        %v2157 = vsel %vm1300, %v2109, 0
        %v2160 = vsel %vm1300, %v2110, 0
        %v2163 = vsel %vm1300, %v2111, 0
        %v2166 = vsel %vm1300, %v2112, 0
        %v2169 = vsel %vm1300, %v2113, 0
        %v2172 = vsel %vm1300, %v2114, 0
        %v2175 = vsel %vm1300, %v2115, 0
        %v2178 = vsel %vm1300, %v2116, 0
        %v2181 = vsel %vm1300, %v2117, 0
        %2183 = vmatprep.subr.bf16.mxu0 0
        %2184 = vmatpush1.bf16.msra.mxu0 0
        %2185 = vmatprep.subr.bf16.mxu0 0
        %2186 = vmatpush1.bf16.msra.mxu0 0
        %2187 = vmatprep.subr.bf16.mxu0 0
        %2188 = vmatpush1.bf16.msra.mxu0 0
        %2189 = vmatprep.subr.bf16.mxu0 0
        %2190 = vmatpush1.bf16.msra.mxu0 0
        %2191 = vmatprep.subr.bf16.mxu0 0
        %2192 = vmatpush1.bf16.msra.mxu0 0
        %2193 = vmatprep.subr.bf16.mxu0 0
        %2194 = vmatpush1.bf16.msra.mxu0 0
        %2195 = vmatprep.subr.bf16.mxu0 0
        %2196 = vmatpush1.bf16.msra.mxu0 %v2132
        %2197 = vmatprep.subr.bf16.mxu0 0
        %2198 = vmatpush1.bf16.msra.mxu0 %v2131
        %2199 = vmatprep.subr.bf16.mxu0 0
        %2200 = vmatpush2.bf16.msra.mxu0 0
        %2201 = vmatprep.subr.bf16.mxu0 0
        %2202 = vmatpush2.bf16.msra.mxu0 0
        %2203 = vmatprep.subr.bf16.mxu0 0
        %2204 = vmatpush2.bf16.msra.mxu0 0
        %2205 = vmatprep.subr.bf16.mxu0 0
        %2206 = vmatpush2.bf16.msra.mxu0 0
        %2207 = vmatprep.subr.bf16.mxu0 0
        %2208 = vmatpush2.bf16.msra.mxu0 0
        %2209 = vmatprep.subr.bf16.mxu0 0
        %2210 = vmatpush2.bf16.msra.mxu0 0
        %2211 = vmatprep.subr.bf16.mxu0 0
        %2212 = vmatpush2.bf16.msra.mxu0 0
        %2213 = vmatprep.subr.bf16.mxu0 0
        %2214 = vmatpush2.bf16.msra.mxu0 0
        %2215 = vmatprep.mubr.bf16.mxu0 0
        %2216 = vmatmul.mubr.bf16.gmra.mxu0 %v2136
        %v2217 = vpop.f32.mrf.mxu0
        %v2218 = vadd.f32 0.0, %v2217
        %v2219 = vpop.f32.mrf.mxu0
        %v2220 = vpop.f32.mrf.mxu0
        %v2221 = vadd.f32 0.0, %v2220
        %v2222 = vpop.f32.mrf.mxu0
        %2223 = vmatprep.mubr.bf16.mxu0 0
        %2224 = vmatmul.mubr.bf16.gmra.mxu0 %v2139
        %v2225 = vpop.f32.mrf.mxu0
        %v2226 = vadd.f32 0.0, %v2225
        %v2227 = vpop.f32.mrf.mxu0
        %v2228 = vpop.f32.mrf.mxu0
        %v2229 = vadd.f32 0.0, %v2228
        %v2230 = vpop.f32.mrf.mxu0
        %2231 = vmatprep.mubr.bf16.mxu0 0
        %2232 = vmatmul.mubr.bf16.gmra.mxu0 %v2142
        %v2233 = vpop.f32.mrf.mxu0
        %v2234 = vadd.f32 0.0, %v2233
        %v2235 = vpop.f32.mrf.mxu0
        %v2236 = vpop.f32.mrf.mxu0
        %v2237 = vadd.f32 0.0, %v2236
        %v2238 = vpop.f32.mrf.mxu0
        %2239 = vmatprep.mubr.bf16.mxu0 0
        %2240 = vmatmul.mubr.bf16.gmra.mxu0 %v2145
        %v2241 = vpop.f32.mrf.mxu0
        %v2242 = vadd.f32 0.0, %v2241
        %v2243 = vpop.f32.mrf.mxu0
        %v2244 = vpop.f32.mrf.mxu0
        %v2245 = vadd.f32 0.0, %v2244
        %v2246 = vpop.f32.mrf.mxu0
        %2247 = vmatprep.mubr.bf16.mxu0 0
        %2248 = vmatmul.mubr.bf16.gmra.mxu0 %v2148
        %v2249 = vpop.f32.mrf.mxu0
        %v2250 = vadd.f32 0.0, %v2249
        %v2251 = vpop.f32.mrf.mxu0
        %v2252 = vpop.f32.mrf.mxu0
        %v2253 = vadd.f32 0.0, %v2252
        %v2254 = vpop.f32.mrf.mxu0
        %2255 = vmatprep.mubr.bf16.mxu0 0
        %2256 = vmatmul.mubr.bf16.gmra.mxu0 %v2151
        %v2257 = vpop.f32.mrf.mxu0
        %v2258 = vadd.f32 0.0, %v2257
        %v2259 = vpop.f32.mrf.mxu0
        %v2260 = vpop.f32.mrf.mxu0
        %v2261 = vadd.f32 0.0, %v2260
        %v2262 = vpop.f32.mrf.mxu0
        %2263 = vmatprep.mubr.bf16.mxu0 0
        %2264 = vmatmul.mubr.bf16.gmra.mxu0 %v2154
        %v2265 = vpop.f32.mrf.mxu0
        %v2266 = vadd.f32 0.0, %v2265
        %v2267 = vpop.f32.mrf.mxu0
        %v2268 = vpop.f32.mrf.mxu0
        %v2269 = vadd.f32 0.0, %v2268
        %v2270 = vpop.f32.mrf.mxu0
        %2271 = vmatprep.mubr.bf16.mxu0 0
        %2272 = vmatmul.mubr.bf16.gmra.mxu0 %v2157
        %v2273 = vpop.f32.mrf.mxu0
        %v2274 = vadd.f32 0.0, %v2273
        %v2275 = vpop.f32.mrf.mxu0
        %v2276 = vpop.f32.mrf.mxu0
        %v2277 = vadd.f32 0.0, %v2276
        %v2278 = vpop.f32.mrf.mxu0
        %2279 = vmatprep.mubr.bf16.mxu0 0
        %2280 = vmatmul.mubr.bf16.gmra.mxu0 %v2160
        %v2281 = vpop.f32.mrf.mxu0
        %v2282 = vadd.f32 0.0, %v2281
        %v2283 = vpop.f32.mrf.mxu0
        %v2284 = vpop.f32.mrf.mxu0
        %v2285 = vadd.f32 0.0, %v2284
        %v2286 = vpop.f32.mrf.mxu0
        %2287 = vmatprep.mubr.bf16.mxu0 0
        %2288 = vmatmul.mubr.bf16.gmra.mxu0 %v2163
        %v2289 = vpop.f32.mrf.mxu0
        %v2290 = vadd.f32 0.0, %v2289
        %v2291 = vpop.f32.mrf.mxu0
        %v2292 = vpop.f32.mrf.mxu0
        %v2293 = vadd.f32 0.0, %v2292
        %v2294 = vpop.f32.mrf.mxu0
        %2295 = vmatprep.mubr.bf16.mxu0 0
        %2296 = vmatmul.mubr.bf16.gmra.mxu0 %v2166
        %v2297 = vpop.f32.mrf.mxu0
        %v2298 = vadd.f32 0.0, %v2297
        %v2299 = vpop.f32.mrf.mxu0
        %v2300 = vpop.f32.mrf.mxu0
        %v2301 = vadd.f32 0.0, %v2300
        %v2302 = vpop.f32.mrf.mxu0
        %2303 = vmatprep.mubr.bf16.mxu0 0
        %2304 = vmatmul.mubr.bf16.gmra.mxu0 %v2169
        %v2305 = vpop.f32.mrf.mxu0
        %v2306 = vadd.f32 0.0, %v2305
        %v2307 = vpop.f32.mrf.mxu0
        %v2308 = vpop.f32.mrf.mxu0
        %v2309 = vadd.f32 0.0, %v2308
        %v2310 = vpop.f32.mrf.mxu0
        %2311 = vmatprep.mubr.bf16.mxu0 0
        %2312 = vmatmul.mubr.bf16.gmra.mxu0 %v2172
        %v2313 = vpop.f32.mrf.mxu0
        %v2314 = vadd.f32 0.0, %v2313
        %v2315 = vpop.f32.mrf.mxu0
        %v2316 = vpop.f32.mrf.mxu0
        %v2317 = vadd.f32 0.0, %v2316
        %v2318 = vpop.f32.mrf.mxu0
        %2319 = vmatprep.mubr.bf16.mxu0 0
        %2320 = vmatmul.mubr.bf16.gmra.mxu0 %v2175
        %v2321 = vpop.f32.mrf.mxu0
        %v2322 = vadd.f32 0.0, %v2321
        %v2323 = vpop.f32.mrf.mxu0
        %v2324 = vpop.f32.mrf.mxu0
        %v2325 = vadd.f32 0.0, %v2324
        %v2326 = vpop.f32.mrf.mxu0
        %2327 = vmatprep.mubr.bf16.mxu0 0
        %2328 = vmatmul.mubr.bf16.gmra.mxu0 %v2178
        %v2329 = vpop.f32.mrf.mxu0
        %v2330 = vadd.f32 0.0, %v2329
        %v2331 = vpop.f32.mrf.mxu0
        %v2332 = vpop.f32.mrf.mxu0
        %v2333 = vadd.f32 0.0, %v2332
        %v2334 = vpop.f32.mrf.mxu0
        %2335 = vmatprep.mubr.bf16.mxu0 0
        %2336 = vmatmul.mubr.bf16.gmra.mxu0 %v2181
        %v2337 = vpop.f32.mrf.mxu0
        %v2338 = vadd.f32 0.0, %v2337
        %v2339 = vpop.f32.mrf.mxu0
        %v2340 = vpop.f32.mrf.mxu0
        %v2341 = vadd.f32 0.0, %v2340
        %v2342 = vpop.f32.mrf.mxu0
        %2343 = vdwg.mxu0
        %v2344 = vadd.f32 %v1587, %v2218
        %v2345 = vadd.f32 %v1590, %v2221
        %v2346 = vadd.f32 %v1595, %v2226
        %v2347 = vadd.f32 %v1598, %v2229
        %v2348 = vadd.f32 %v1603, %v2234
        %v2349 = vadd.f32 %v1606, %v2237
        %v2350 = vadd.f32 %v1611, %v2242
        %v2351 = vadd.f32 %v1614, %v2245
        %v2352 = vadd.f32 %v1619, %v2250
        %v2353 = vadd.f32 %v1622, %v2253
        %v2354 = vadd.f32 %v1627, %v2258
        %v2355 = vadd.f32 %v1630, %v2261
        %v2356 = vadd.f32 %v1635, %v2266
        %v2357 = vadd.f32 %v1638, %v2269
        %v2358 = vadd.f32 %v1643, %v2274
        %v2359 = vadd.f32 %v1646, %v2277
        %v2360 = vadd.f32 %v1651, %v2282
        %v2361 = vadd.f32 %v1654, %v2285
        %v2362 = vadd.f32 %v1659, %v2290
        %v2363 = vadd.f32 %v1662, %v2293
        %v2364 = vadd.f32 %v1667, %v2298
        %v2365 = vadd.f32 %v1670, %v2301
        %v2366 = vadd.f32 %v1675, %v2306
        %v2367 = vadd.f32 %v1678, %v2309
        %v2368 = vadd.f32 %v1683, %v2314
        %v2369 = vadd.f32 %v1686, %v2317
        %v2370 = vadd.f32 %v1691, %v2322
        %v2371 = vadd.f32 %v1694, %v2325
        %v2372 = vadd.f32 %v1699, %v2330
        %v2373 = vadd.f32 %v1702, %v2333
        %v2374 = vadd.f32 %v1707, %v2338
        %v2375 = vadd.f32 %v1710, %v2341
        %v2376 = vshrl.u32 %v396, 16
        %v2378 = vrot.slane %v2376, 7
        %v2379 = vor.u32 %v2378, %v1759
        %v2380 = vsel %vm814, %v929, %v2379
        %vm2382 = vmpackc.low %vm1112, %vm1112
        %vm2383 = vmpackc.low %vm1113, %vm1113
        %v2384 = vsel %vm2382, 65537, 0
        %v2385 = vsel %vm2383, 65537, 0
        %v2386 = vunpack.c.l.b16 %v2384
        %v2387 = vunpack.c.l.b16 %v2385
        %v2388 = vpack.c.b16 %v2387, %v2386
        %vm2389 = vcmp.ne.s16.totalorder %v2388, 0
        %v2390 = vsel %vm2389, %v951, 0
        %v2391 = vsel %vm1249, %v829, 0
        %v2392 = vsel %vm1250, %v837, 0
        %v2393 = vsel %vm1251, %v845, 0
        %v2394 = vsel %vm1252, %v853, 0
        %v2395 = vsel %vm1253, %v861, 0
        %v2396 = vsel %vm1254, %v869, 0
        %v2397 = vsel %vm1255, %v877, 0
        %v2398 = vsel %vm1256, %v885, 0
        %v2399 = vsel %vm1257, %v893, 0
        %v2400 = vsel %vm1258, %v901, 0
        %v2401 = vsel %vm1259, %v909, 0
        %v2402 = vsel %vm1260, %v917, 0
        %v2403 = vsel %vm1261, %v925, 0
        %v2404 = vsel %vm1262, %v933, 0
        %v2405 = vsel %vm1263, %v2380, 0
        %s2406 = scalar_lea.vmem %s3, 48
        %v2407 = vld [vmem:[%s2406] sm:$0xf]
        %v2408 = vld [vmem:[%s2406 + $0x4] sm:$0xf]
        %v2409 = vld [vmem:[%s2406 + $0x8] sm:$0xf]
        %v2410 = vld [vmem:[%s2406 + $0xc] sm:$0xf]
        %v2415 = vunpack.c.l.b16 %v2407
        %v2416 = vunpack.c.l.b16 %v2408
        %v2417 = vunpack.c.l.b16 %v2409
        %v2418 = vunpack.c.l.b16 %v2410
        %v2419 = vpack.c.b16 %v2416, %v2415
        %v2420 = vpack.c.b16 %v2418, %v2417
        %v2424 = vsel %vm1300, %v2390, 0
        %v2427 = vsel %vm1300, %v2391, 0
        %v2430 = vsel %vm1300, %v2392, 0
        %v2433 = vsel %vm1300, %v2393, 0
        %v2436 = vsel %vm1300, %v2394, 0
        %v2439 = vsel %vm1300, %v2395, 0
        %v2442 = vsel %vm1300, %v2396, 0
        %v2445 = vsel %vm1300, %v2397, 0
        %v2448 = vsel %vm1300, %v2398, 0
        %v2451 = vsel %vm1300, %v2399, 0
        %v2454 = vsel %vm1300, %v2400, 0
        %v2457 = vsel %vm1300, %v2401, 0
        %v2460 = vsel %vm1300, %v2402, 0
        %v2463 = vsel %vm1300, %v2403, 0
        %v2466 = vsel %vm1300, %v2404, 0
        %v2469 = vsel %vm1300, %v2405, 0
        %2471 = vmatprep.subr.bf16.mxu0 0
        %2472 = vmatpush1.bf16.msra.mxu0 0
        %2473 = vmatprep.subr.bf16.mxu0 0
        %2474 = vmatpush1.bf16.msra.mxu0 0
        %2475 = vmatprep.subr.bf16.mxu0 0
        %2476 = vmatpush1.bf16.msra.mxu0 0
        %2477 = vmatprep.subr.bf16.mxu0 0
        %2478 = vmatpush1.bf16.msra.mxu0 0
        %2479 = vmatprep.subr.bf16.mxu0 0
        %2480 = vmatpush1.bf16.msra.mxu0 0
        %2481 = vmatprep.subr.bf16.mxu0 0
        %2482 = vmatpush1.bf16.msra.mxu0 0
        %2483 = vmatprep.subr.bf16.mxu0 0
        %2484 = vmatpush1.bf16.msra.mxu0 %v2420
        %2485 = vmatprep.subr.bf16.mxu0 0
        %2486 = vmatpush1.bf16.msra.mxu0 %v2419
        %2487 = vmatprep.subr.bf16.mxu0 0
        %2488 = vmatpush2.bf16.msra.mxu0 0
        %2489 = vmatprep.subr.bf16.mxu0 0
        %2490 = vmatpush2.bf16.msra.mxu0 0
        %2491 = vmatprep.subr.bf16.mxu0 0
        %2492 = vmatpush2.bf16.msra.mxu0 0
        %2493 = vmatprep.subr.bf16.mxu0 0
        %2494 = vmatpush2.bf16.msra.mxu0 0
        %2495 = vmatprep.subr.bf16.mxu0 0
        %2496 = vmatpush2.bf16.msra.mxu0 0
        %2497 = vmatprep.subr.bf16.mxu0 0
        %2498 = vmatpush2.bf16.msra.mxu0 0
        %2499 = vmatprep.subr.bf16.mxu0 0
        %2500 = vmatpush2.bf16.msra.mxu0 0
        %2501 = vmatprep.subr.bf16.mxu0 0
        %2502 = vmatpush2.bf16.msra.mxu0 0
        %2503 = vmatprep.mubr.bf16.mxu0 0
        %2504 = vmatmul.mubr.bf16.gmra.mxu0 %v2424
        %v2505 = vpop.f32.mrf.mxu0
        %v2506 = vadd.f32 0.0, %v2505
        %v2507 = vpop.f32.mrf.mxu0
        %v2508 = vpop.f32.mrf.mxu0
        %v2509 = vadd.f32 0.0, %v2508
        %v2510 = vpop.f32.mrf.mxu0
        %2511 = vmatprep.mubr.bf16.mxu0 0
        %2512 = vmatmul.mubr.bf16.gmra.mxu0 %v2427
        %v2513 = vpop.f32.mrf.mxu0
        %v2514 = vadd.f32 0.0, %v2513
        %v2515 = vpop.f32.mrf.mxu0
        %v2516 = vpop.f32.mrf.mxu0
        %v2517 = vadd.f32 0.0, %v2516
        %v2518 = vpop.f32.mrf.mxu0
        %2519 = vmatprep.mubr.bf16.mxu0 0
        %2520 = vmatmul.mubr.bf16.gmra.mxu0 %v2430
        %v2521 = vpop.f32.mrf.mxu0
        %v2522 = vadd.f32 0.0, %v2521
        %v2523 = vpop.f32.mrf.mxu0
        %v2524 = vpop.f32.mrf.mxu0
        %v2525 = vadd.f32 0.0, %v2524
        %v2526 = vpop.f32.mrf.mxu0
        %2527 = vmatprep.mubr.bf16.mxu0 0
        %2528 = vmatmul.mubr.bf16.gmra.mxu0 %v2433
        %v2529 = vpop.f32.mrf.mxu0
        %v2530 = vadd.f32 0.0, %v2529
        %v2531 = vpop.f32.mrf.mxu0
        %v2532 = vpop.f32.mrf.mxu0
        %v2533 = vadd.f32 0.0, %v2532
        %v2534 = vpop.f32.mrf.mxu0
        %2535 = vmatprep.mubr.bf16.mxu0 0
        %2536 = vmatmul.mubr.bf16.gmra.mxu0 %v2436
        %v2537 = vpop.f32.mrf.mxu0
        %v2538 = vadd.f32 0.0, %v2537
        %v2539 = vpop.f32.mrf.mxu0
        %v2540 = vpop.f32.mrf.mxu0
        %v2541 = vadd.f32 0.0, %v2540
        %v2542 = vpop.f32.mrf.mxu0
        %2543 = vmatprep.mubr.bf16.mxu0 0
        %2544 = vmatmul.mubr.bf16.gmra.mxu0 %v2439
        %v2545 = vpop.f32.mrf.mxu0
        %v2546 = vadd.f32 0.0, %v2545
        %v2547 = vpop.f32.mrf.mxu0
        %v2548 = vpop.f32.mrf.mxu0
        %v2549 = vadd.f32 0.0, %v2548
        %v2550 = vpop.f32.mrf.mxu0
        %2551 = vmatprep.mubr.bf16.mxu0 0
        %2552 = vmatmul.mubr.bf16.gmra.mxu0 %v2442
        %v2553 = vpop.f32.mrf.mxu0
        %v2554 = vadd.f32 0.0, %v2553
        %v2555 = vpop.f32.mrf.mxu0
        %v2556 = vpop.f32.mrf.mxu0
        %v2557 = vadd.f32 0.0, %v2556
        %v2558 = vpop.f32.mrf.mxu0
        %2559 = vmatprep.mubr.bf16.mxu0 0
        %2560 = vmatmul.mubr.bf16.gmra.mxu0 %v2445
        %v2561 = vpop.f32.mrf.mxu0
        %v2562 = vadd.f32 0.0, %v2561
        %v2563 = vpop.f32.mrf.mxu0
        %v2564 = vpop.f32.mrf.mxu0
        %v2565 = vadd.f32 0.0, %v2564
        %v2566 = vpop.f32.mrf.mxu0
        %2567 = vmatprep.mubr.bf16.mxu0 0
        %2568 = vmatmul.mubr.bf16.gmra.mxu0 %v2448
        %v2569 = vpop.f32.mrf.mxu0
        %v2570 = vadd.f32 0.0, %v2569
        %v2571 = vpop.f32.mrf.mxu0
        %v2572 = vpop.f32.mrf.mxu0
        %v2573 = vadd.f32 0.0, %v2572
        %v2574 = vpop.f32.mrf.mxu0
        %2575 = vmatprep.mubr.bf16.mxu0 0
        %2576 = vmatmul.mubr.bf16.gmra.mxu0 %v2451
        %v2577 = vpop.f32.mrf.mxu0
        %v2578 = vadd.f32 0.0, %v2577
        %v2579 = vpop.f32.mrf.mxu0
        %v2580 = vpop.f32.mrf.mxu0
        %v2581 = vadd.f32 0.0, %v2580
        %v2582 = vpop.f32.mrf.mxu0
        %2583 = vmatprep.mubr.bf16.mxu0 0
        %2584 = vmatmul.mubr.bf16.gmra.mxu0 %v2454
        %v2585 = vpop.f32.mrf.mxu0
        %v2586 = vadd.f32 0.0, %v2585
        %v2587 = vpop.f32.mrf.mxu0
        %v2588 = vpop.f32.mrf.mxu0
        %v2589 = vadd.f32 0.0, %v2588
        %v2590 = vpop.f32.mrf.mxu0
        %2591 = vmatprep.mubr.bf16.mxu0 0
        %2592 = vmatmul.mubr.bf16.gmra.mxu0 %v2457
        %v2593 = vpop.f32.mrf.mxu0
        %v2594 = vadd.f32 0.0, %v2593
        %v2595 = vpop.f32.mrf.mxu0
        %v2596 = vpop.f32.mrf.mxu0
        %v2597 = vadd.f32 0.0, %v2596
        %v2598 = vpop.f32.mrf.mxu0
        %2599 = vmatprep.mubr.bf16.mxu0 0
        %2600 = vmatmul.mubr.bf16.gmra.mxu0 %v2460
        %v2601 = vpop.f32.mrf.mxu0
        %v2602 = vadd.f32 0.0, %v2601
        %v2603 = vpop.f32.mrf.mxu0
        %v2604 = vpop.f32.mrf.mxu0
        %v2605 = vadd.f32 0.0, %v2604
        %v2606 = vpop.f32.mrf.mxu0
        %2607 = vmatprep.mubr.bf16.mxu0 0
        %2608 = vmatmul.mubr.bf16.gmra.mxu0 %v2463
        %v2609 = vpop.f32.mrf.mxu0
        %v2610 = vadd.f32 0.0, %v2609
        %v2611 = vpop.f32.mrf.mxu0
        %v2612 = vpop.f32.mrf.mxu0
        %v2613 = vadd.f32 0.0, %v2612
        %v2614 = vpop.f32.mrf.mxu0
        %2615 = vmatprep.mubr.bf16.mxu0 0
        %2616 = vmatmul.mubr.bf16.gmra.mxu0 %v2466
        %v2617 = vpop.f32.mrf.mxu0
        %v2618 = vadd.f32 0.0, %v2617
        %v2619 = vpop.f32.mrf.mxu0
        %v2620 = vpop.f32.mrf.mxu0
        %v2621 = vadd.f32 0.0, %v2620
        %v2622 = vpop.f32.mrf.mxu0
        %2623 = vmatprep.mubr.bf16.mxu0 0
        %2624 = vmatmul.mubr.bf16.gmra.mxu0 %v2469
        %v2625 = vpop.f32.mrf.mxu0
        %v2626 = vadd.f32 0.0, %v2625
        %v2627 = vpop.f32.mrf.mxu0
        %v2628 = vpop.f32.mrf.mxu0
        %v2629 = vadd.f32 0.0, %v2628
        %v2630 = vpop.f32.mrf.mxu0
        %2631 = vdwg.mxu0
        %v2632 = vadd.f32 %v2344, %v2506
        %v2633 = vadd.f32 %v2345, %v2509
        %v2634 = vadd.f32 %v2346, %v2514
        %v2635 = vadd.f32 %v2347, %v2517
        %v2636 = vadd.f32 %v2348, %v2522
        %v2637 = vadd.f32 %v2349, %v2525
        %v2638 = vadd.f32 %v2350, %v2530
        %v2639 = vadd.f32 %v2351, %v2533
        %v2640 = vadd.f32 %v2352, %v2538
        %v2641 = vadd.f32 %v2353, %v2541
        %v2642 = vadd.f32 %v2354, %v2546
        %v2643 = vadd.f32 %v2355, %v2549
        %v2644 = vadd.f32 %v2356, %v2554
        %v2645 = vadd.f32 %v2357, %v2557
        %v2646 = vadd.f32 %v2358, %v2562
        %v2647 = vadd.f32 %v2359, %v2565
        %v2648 = vadd.f32 %v2360, %v2570
        %v2649 = vadd.f32 %v2361, %v2573
        %v2650 = vadd.f32 %v2362, %v2578
        %v2651 = vadd.f32 %v2363, %v2581
        %v2652 = vadd.f32 %v2364, %v2586
        %v2653 = vadd.f32 %v2365, %v2589
        %v2654 = vadd.f32 %v2366, %v2594
        %v2655 = vadd.f32 %v2367, %v2597
        %v2656 = vadd.f32 %v2368, %v2602
        %v2657 = vadd.f32 %v2369, %v2605
        %v2658 = vadd.f32 %v2370, %v2610
        %v2659 = vadd.f32 %v2371, %v2613
        %v2660 = vadd.f32 %v2372, %v2618
        %v2661 = vadd.f32 %v2373, %v2621
        %v2662 = vadd.f32 %v2374, %v2626
        %v2663 = vadd.f32 %v2375, %v2629
        %s2664 = scalar_lea.vmem %s3, 64
        %v2665 = vld [vmem:[%s2664] sm:$0xf]
        %v2666 = vld [vmem:[%s2664 + $0x4] sm:$0xf]
        %v2667 = vld [vmem:[%s2664 + $0x8] sm:$0xf]
        %v2668 = vld [vmem:[%s2664 + $0xc] sm:$0xf]
        %v2673 = vunpack.c.l.b16 %v2665
        %v2674 = vunpack.c.l.b16 %v2666
        %v2675 = vunpack.c.l.b16 %v2667
        %v2676 = vunpack.c.l.b16 %v2668
        %v2677 = vpack.c.b16 %v2674, %v2673
        %v2678 = vpack.c.b16 %v2676, %v2675
        %v2681 = vsel %vm1300, %v396, 0
        %2683 = vmatprep.subr.bf16.mxu0 0
        %2684 = vmatpush1.bf16.msra.mxu0 0
        %2685 = vmatprep.subr.bf16.mxu0 0
        %2686 = vmatpush1.bf16.msra.mxu0 0
        %2687 = vmatprep.subr.bf16.mxu0 0
        %2688 = vmatpush1.bf16.msra.mxu0 0
        %2689 = vmatprep.subr.bf16.mxu0 0
        %2690 = vmatpush1.bf16.msra.mxu0 0
        %2691 = vmatprep.subr.bf16.mxu0 0
        %2692 = vmatpush1.bf16.msra.mxu0 0
        %2693 = vmatprep.subr.bf16.mxu0 0
        %2694 = vmatpush1.bf16.msra.mxu0 0
        %2695 = vmatprep.subr.bf16.mxu0 0
        %2696 = vmatpush1.bf16.msra.mxu0 %v2678
        %2697 = vmatprep.subr.bf16.mxu0 0
        %2698 = vmatpush1.bf16.msra.mxu0 %v2677
        %2699 = vmatprep.subr.bf16.mxu0 0
        %2700 = vmatpush2.bf16.msra.mxu0 0
        %2701 = vmatprep.subr.bf16.mxu0 0
        %2702 = vmatpush2.bf16.msra.mxu0 0
        %2703 = vmatprep.subr.bf16.mxu0 0
        %2704 = vmatpush2.bf16.msra.mxu0 0
        %2705 = vmatprep.subr.bf16.mxu0 0
        %2706 = vmatpush2.bf16.msra.mxu0 0
        %2707 = vmatprep.subr.bf16.mxu0 0
        %2708 = vmatpush2.bf16.msra.mxu0 0
        %2709 = vmatprep.subr.bf16.mxu0 0
        %2710 = vmatpush2.bf16.msra.mxu0 0
        %2711 = vmatprep.subr.bf16.mxu0 0
        %2712 = vmatpush2.bf16.msra.mxu0 0
        %2713 = vmatprep.subr.bf16.mxu0 0
        %2714 = vmatpush2.bf16.msra.mxu0 0
        %2715 = vmatprep.mubr.bf16.mxu0 0
        %2716 = vmatmul.mubr.bf16.gmra.mxu0 %v1304
        %v2717 = vpop.f32.mrf.mxu0
        %v2718 = vadd.f32 0.0, %v2717
        %v2719 = vpop.f32.mrf.mxu0
        %v2720 = vpop.f32.mrf.mxu0
        %v2721 = vadd.f32 0.0, %v2720
        %v2722 = vpop.f32.mrf.mxu0
        %2723 = vmatprep.mubr.bf16.mxu0 0
        %2724 = vmatmul.mubr.bf16.gmra.mxu0 %v1306
        %v2725 = vpop.f32.mrf.mxu0
        %v2726 = vadd.f32 0.0, %v2725
        %v2727 = vpop.f32.mrf.mxu0
        %v2728 = vpop.f32.mrf.mxu0
        %v2729 = vadd.f32 0.0, %v2728
        %v2730 = vpop.f32.mrf.mxu0
        %2731 = vmatprep.mubr.bf16.mxu0 0
        %2732 = vmatmul.mubr.bf16.gmra.mxu0 %v1308
        %v2733 = vpop.f32.mrf.mxu0
        %v2734 = vadd.f32 0.0, %v2733
        %v2735 = vpop.f32.mrf.mxu0
        %v2736 = vpop.f32.mrf.mxu0
        %v2737 = vadd.f32 0.0, %v2736
        %v2738 = vpop.f32.mrf.mxu0
        %2739 = vmatprep.mubr.bf16.mxu0 0
        %2740 = vmatmul.mubr.bf16.gmra.mxu0 %v1310
        %v2741 = vpop.f32.mrf.mxu0
        %v2742 = vadd.f32 0.0, %v2741
        %v2743 = vpop.f32.mrf.mxu0
        %v2744 = vpop.f32.mrf.mxu0
        %v2745 = vadd.f32 0.0, %v2744
        %v2746 = vpop.f32.mrf.mxu0
        %2747 = vmatprep.mubr.bf16.mxu0 0
        %2748 = vmatmul.mubr.bf16.gmra.mxu0 %v1312
        %v2749 = vpop.f32.mrf.mxu0
        %v2750 = vadd.f32 0.0, %v2749
        %v2751 = vpop.f32.mrf.mxu0
        %v2752 = vpop.f32.mrf.mxu0
        %v2753 = vadd.f32 0.0, %v2752
        %v2754 = vpop.f32.mrf.mxu0
        %2755 = vmatprep.mubr.bf16.mxu0 0
        %2756 = vmatmul.mubr.bf16.gmra.mxu0 %v1314
        %v2757 = vpop.f32.mrf.mxu0
        %v2758 = vadd.f32 0.0, %v2757
        %v2759 = vpop.f32.mrf.mxu0
        %v2760 = vpop.f32.mrf.mxu0
        %v2761 = vadd.f32 0.0, %v2760
        %v2762 = vpop.f32.mrf.mxu0
        %2763 = vmatprep.mubr.bf16.mxu0 0
        %2764 = vmatmul.mubr.bf16.gmra.mxu0 %v1316
        %v2765 = vpop.f32.mrf.mxu0
        %v2766 = vadd.f32 0.0, %v2765
        %v2767 = vpop.f32.mrf.mxu0
        %v2768 = vpop.f32.mrf.mxu0
        %v2769 = vadd.f32 0.0, %v2768
        %v2770 = vpop.f32.mrf.mxu0
        %2771 = vmatprep.mubr.bf16.mxu0 0
        %2772 = vmatmul.mubr.bf16.gmra.mxu0 %v1318
        %v2773 = vpop.f32.mrf.mxu0
        %v2774 = vadd.f32 0.0, %v2773
        %v2775 = vpop.f32.mrf.mxu0
        %v2776 = vpop.f32.mrf.mxu0
        %v2777 = vadd.f32 0.0, %v2776
        %v2778 = vpop.f32.mrf.mxu0
        %2779 = vmatprep.mubr.bf16.mxu0 0
        %2780 = vmatmul.mubr.bf16.gmra.mxu0 %v1320
        %v2781 = vpop.f32.mrf.mxu0
        %v2782 = vadd.f32 0.0, %v2781
        %v2783 = vpop.f32.mrf.mxu0
        %v2784 = vpop.f32.mrf.mxu0
        %v2785 = vadd.f32 0.0, %v2784
        %v2786 = vpop.f32.mrf.mxu0
        %2787 = vmatprep.mubr.bf16.mxu0 0
        %2788 = vmatmul.mubr.bf16.gmra.mxu0 %v1322
        %v2789 = vpop.f32.mrf.mxu0
        %v2790 = vadd.f32 0.0, %v2789
        %v2791 = vpop.f32.mrf.mxu0
        %v2792 = vpop.f32.mrf.mxu0
        %v2793 = vadd.f32 0.0, %v2792
        %v2794 = vpop.f32.mrf.mxu0
        %2795 = vmatprep.mubr.bf16.mxu0 0
        %2796 = vmatmul.mubr.bf16.gmra.mxu0 %v1324
        %v2797 = vpop.f32.mrf.mxu0
        %v2798 = vadd.f32 0.0, %v2797
        %v2799 = vpop.f32.mrf.mxu0
        %v2800 = vpop.f32.mrf.mxu0
        %v2801 = vadd.f32 0.0, %v2800
        %v2802 = vpop.f32.mrf.mxu0
        %2803 = vmatprep.mubr.bf16.mxu0 0
        %2804 = vmatmul.mubr.bf16.gmra.mxu0 %v1326
        %v2805 = vpop.f32.mrf.mxu0
        %v2806 = vadd.f32 0.0, %v2805
        %v2807 = vpop.f32.mrf.mxu0
        %v2808 = vpop.f32.mrf.mxu0
        %v2809 = vadd.f32 0.0, %v2808
        %v2810 = vpop.f32.mrf.mxu0
        %2811 = vmatprep.mubr.bf16.mxu0 0
        %2812 = vmatmul.mubr.bf16.gmra.mxu0 %v1328
        %v2813 = vpop.f32.mrf.mxu0
        %v2814 = vadd.f32 0.0, %v2813
        %v2815 = vpop.f32.mrf.mxu0
        %v2816 = vpop.f32.mrf.mxu0
        %v2817 = vadd.f32 0.0, %v2816
        %v2818 = vpop.f32.mrf.mxu0
        %2819 = vmatprep.mubr.bf16.mxu0 0
        %2820 = vmatmul.mubr.bf16.gmra.mxu0 %v1330
        %v2821 = vpop.f32.mrf.mxu0
        %v2822 = vadd.f32 0.0, %v2821
        %v2823 = vpop.f32.mrf.mxu0
        %v2824 = vpop.f32.mrf.mxu0
        %v2825 = vadd.f32 0.0, %v2824
        %v2826 = vpop.f32.mrf.mxu0
        %2827 = vmatprep.mubr.bf16.mxu0 0
        %2828 = vmatmul.mubr.bf16.gmra.mxu0 %v1332
        %v2829 = vpop.f32.mrf.mxu0
        %v2830 = vadd.f32 0.0, %v2829
        %v2831 = vpop.f32.mrf.mxu0
        %v2832 = vpop.f32.mrf.mxu0
        %v2833 = vadd.f32 0.0, %v2832
        %v2834 = vpop.f32.mrf.mxu0
        %2835 = vmatprep.mubr.bf16.mxu0 0
        %2836 = vmatmul.mubr.bf16.gmra.mxu0 %v2681
        %v2837 = vpop.f32.mrf.mxu0
        %v2838 = vadd.f32 0.0, %v2837
        %v2839 = vpop.f32.mrf.mxu0
        %v2840 = vpop.f32.mrf.mxu0
        %v2841 = vadd.f32 0.0, %v2840
        %v2842 = vpop.f32.mrf.mxu0
        %2843 = vdwg.mxu0
        %v2844 = vadd.f32 %v2632, %v2718
        %v2845 = vadd.f32 %v2633, %v2721
        %v2846 = vadd.f32 %v2634, %v2726
        %v2847 = vadd.f32 %v2635, %v2729
        %v2848 = vadd.f32 %v2636, %v2734
        %v2849 = vadd.f32 %v2637, %v2737
        %v2850 = vadd.f32 %v2638, %v2742
        %v2851 = vadd.f32 %v2639, %v2745
        %v2852 = vadd.f32 %v2640, %v2750
        %v2853 = vadd.f32 %v2641, %v2753
        %v2854 = vadd.f32 %v2642, %v2758
        %v2855 = vadd.f32 %v2643, %v2761
        %v2856 = vadd.f32 %v2644, %v2766
        %v2857 = vadd.f32 %v2645, %v2769
        %v2858 = vadd.f32 %v2646, %v2774
        %v2859 = vadd.f32 %v2647, %v2777
        %v2860 = vadd.f32 %v2648, %v2782
        %v2861 = vadd.f32 %v2649, %v2785
        %v2862 = vadd.f32 %v2650, %v2790
        %v2863 = vadd.f32 %v2651, %v2793
        %v2864 = vadd.f32 %v2652, %v2798
        %v2865 = vadd.f32 %v2653, %v2801
        %v2866 = vadd.f32 %v2654, %v2806
        %v2867 = vadd.f32 %v2655, %v2809
        %v2868 = vadd.f32 %v2656, %v2814
        %v2869 = vadd.f32 %v2657, %v2817
        %v2870 = vadd.f32 %v2658, %v2822
        %v2871 = vadd.f32 %v2659, %v2825
        %v2872 = vadd.f32 %v2660, %v2830
        %v2873 = vadd.f32 %v2661, %v2833
        %v2874 = vadd.f32 %v2662, %v2838
        %v2875 = vadd.f32 %v2663, %v2841
        %v2876 = vor.u32 %v2376, %v1761
        %v2878 = vsel %vm1780, %v2876, 0
        %v2879 = vsel %vm2086, %v1717, 0
        %v2880 = vsel %vm2087, %v1720, 0
        %v2881 = vsel %vm2088, %v1723, 0
        %v2882 = vsel %vm2089, %v1726, 0
        %v2883 = vsel %vm2090, %v1729, 0
        %v2884 = vsel %vm2091, %v1732, 0
        %v2885 = vsel %vm2092, %v1735, 0
        %v2886 = vsel %vm2093, %v1738, 0
        %v2887 = vsel %vm2094, %v1741, 0
        %v2888 = vsel %vm2095, %v1744, 0
        %v2889 = vsel %vm2096, %v1747, 0
        %v2890 = vsel %vm2097, %v1750, 0
        %v2891 = vsel %vm2098, %v1753, 0
        %v2892 = vsel %vm2099, %v1756, 0
        %v2893 = vsel %vm2100, %v1762, 0
        %v2894 = vsel %vm2101, %v2878, 0
        %s2895 = scalar_lea.vmem %s3, 80
        %v2896 = vld [vmem:[%s2895] sm:$0xf]
        %v2897 = vld [vmem:[%s2895 + $0x4] sm:$0xf]
        %v2898 = vld [vmem:[%s2895 + $0x8] sm:$0xf]
        %v2899 = vld [vmem:[%s2895 + $0xc] sm:$0xf]
        %v2904 = vunpack.c.l.b16 %v2896
        %v2905 = vunpack.c.l.b16 %v2897
        %v2906 = vunpack.c.l.b16 %v2898
        %v2907 = vunpack.c.l.b16 %v2899
        %v2908 = vpack.c.b16 %v2905, %v2904
        %v2909 = vpack.c.b16 %v2907, %v2906
        %v2913 = vsel %vm1300, %v2879, 0
        %v2916 = vsel %vm1300, %v2880, 0
        %v2919 = vsel %vm1300, %v2881, 0
        %v2922 = vsel %vm1300, %v2882, 0
        %v2925 = vsel %vm1300, %v2883, 0
        %v2928 = vsel %vm1300, %v2884, 0
        %v2931 = vsel %vm1300, %v2885, 0
        %v2934 = vsel %vm1300, %v2886, 0
        %v2937 = vsel %vm1300, %v2887, 0
        %v2940 = vsel %vm1300, %v2888, 0
        %v2943 = vsel %vm1300, %v2889, 0
        %v2946 = vsel %vm1300, %v2890, 0
        %v2949 = vsel %vm1300, %v2891, 0
        %v2952 = vsel %vm1300, %v2892, 0
        %v2955 = vsel %vm1300, %v2893, 0
        %v2958 = vsel %vm1300, %v2894, 0
        %2960 = vmatprep.subr.bf16.mxu0 0
        %2961 = vmatpush1.bf16.msra.mxu0 0
        %2962 = vmatprep.subr.bf16.mxu0 0
        %2963 = vmatpush1.bf16.msra.mxu0 0
        %2964 = vmatprep.subr.bf16.mxu0 0
        %2965 = vmatpush1.bf16.msra.mxu0 0
        %2966 = vmatprep.subr.bf16.mxu0 0
        %2967 = vmatpush1.bf16.msra.mxu0 0
        %2968 = vmatprep.subr.bf16.mxu0 0
        %2969 = vmatpush1.bf16.msra.mxu0 0
        %2970 = vmatprep.subr.bf16.mxu0 0
        %2971 = vmatpush1.bf16.msra.mxu0 0
        %2972 = vmatprep.subr.bf16.mxu0 0
        %2973 = vmatpush1.bf16.msra.mxu0 %v2909
        %2974 = vmatprep.subr.bf16.mxu0 0
        %2975 = vmatpush1.bf16.msra.mxu0 %v2908
        %2976 = vmatprep.subr.bf16.mxu0 0
        %2977 = vmatpush2.bf16.msra.mxu0 0
        %2978 = vmatprep.subr.bf16.mxu0 0
        %2979 = vmatpush2.bf16.msra.mxu0 0
        %2980 = vmatprep.subr.bf16.mxu0 0
        %2981 = vmatpush2.bf16.msra.mxu0 0
        %2982 = vmatprep.subr.bf16.mxu0 0
        %2983 = vmatpush2.bf16.msra.mxu0 0
        %2984 = vmatprep.subr.bf16.mxu0 0
        %2985 = vmatpush2.bf16.msra.mxu0 0
        %2986 = vmatprep.subr.bf16.mxu0 0
        %2987 = vmatpush2.bf16.msra.mxu0 0
        %2988 = vmatprep.subr.bf16.mxu0 0
        %2989 = vmatpush2.bf16.msra.mxu0 0
        %2990 = vmatprep.subr.bf16.mxu0 0
        %2991 = vmatpush2.bf16.msra.mxu0 0
        %2992 = vmatprep.mubr.bf16.mxu0 0
        %2993 = vmatmul.mubr.bf16.gmra.mxu0 %v2913
        %v2994 = vpop.f32.mrf.mxu0
        %v2995 = vadd.f32 0.0, %v2994
        %v2996 = vpop.f32.mrf.mxu0
        %v2997 = vpop.f32.mrf.mxu0
        %v2998 = vadd.f32 0.0, %v2997
        %v2999 = vpop.f32.mrf.mxu0
        %3000 = vmatprep.mubr.bf16.mxu0 0
        %3001 = vmatmul.mubr.bf16.gmra.mxu0 %v2916
        %v3002 = vpop.f32.mrf.mxu0
        %v3003 = vadd.f32 0.0, %v3002
        %v3004 = vpop.f32.mrf.mxu0
        %v3005 = vpop.f32.mrf.mxu0
        %v3006 = vadd.f32 0.0, %v3005
        %v3007 = vpop.f32.mrf.mxu0
        %3008 = vmatprep.mubr.bf16.mxu0 0
        %3009 = vmatmul.mubr.bf16.gmra.mxu0 %v2919
        %v3010 = vpop.f32.mrf.mxu0
        %v3011 = vadd.f32 0.0, %v3010
        %v3012 = vpop.f32.mrf.mxu0
        %v3013 = vpop.f32.mrf.mxu0
        %v3014 = vadd.f32 0.0, %v3013
        %v3015 = vpop.f32.mrf.mxu0
        %3016 = vmatprep.mubr.bf16.mxu0 0
        %3017 = vmatmul.mubr.bf16.gmra.mxu0 %v2922
        %v3018 = vpop.f32.mrf.mxu0
        %v3019 = vadd.f32 0.0, %v3018
        %v3020 = vpop.f32.mrf.mxu0
        %v3021 = vpop.f32.mrf.mxu0
        %v3022 = vadd.f32 0.0, %v3021
        %v3023 = vpop.f32.mrf.mxu0
        %3024 = vmatprep.mubr.bf16.mxu0 0
        %3025 = vmatmul.mubr.bf16.gmra.mxu0 %v2925
        %v3026 = vpop.f32.mrf.mxu0
        %v3027 = vadd.f32 0.0, %v3026
        %v3028 = vpop.f32.mrf.mxu0
        %v3029 = vpop.f32.mrf.mxu0
        %v3030 = vadd.f32 0.0, %v3029
        %v3031 = vpop.f32.mrf.mxu0
        %3032 = vmatprep.mubr.bf16.mxu0 0
        %3033 = vmatmul.mubr.bf16.gmra.mxu0 %v2928
        %v3034 = vpop.f32.mrf.mxu0
        %v3035 = vadd.f32 0.0, %v3034
        %v3036 = vpop.f32.mrf.mxu0
        %v3037 = vpop.f32.mrf.mxu0
        %v3038 = vadd.f32 0.0, %v3037
        %v3039 = vpop.f32.mrf.mxu0
        %3040 = vmatprep.mubr.bf16.mxu0 0
        %3041 = vmatmul.mubr.bf16.gmra.mxu0 %v2931
        %v3042 = vpop.f32.mrf.mxu0
        %v3043 = vadd.f32 0.0, %v3042
        %v3044 = vpop.f32.mrf.mxu0
        %v3045 = vpop.f32.mrf.mxu0
        %v3046 = vadd.f32 0.0, %v3045
        %v3047 = vpop.f32.mrf.mxu0
        %3048 = vmatprep.mubr.bf16.mxu0 0
        %3049 = vmatmul.mubr.bf16.gmra.mxu0 %v2934
        %v3050 = vpop.f32.mrf.mxu0
        %v3051 = vadd.f32 0.0, %v3050
        %v3052 = vpop.f32.mrf.mxu0
        %v3053 = vpop.f32.mrf.mxu0
        %v3054 = vadd.f32 0.0, %v3053
        %v3055 = vpop.f32.mrf.mxu0
        %3056 = vmatprep.mubr.bf16.mxu0 0
        %3057 = vmatmul.mubr.bf16.gmra.mxu0 %v2937
        %v3058 = vpop.f32.mrf.mxu0
        %v3059 = vadd.f32 0.0, %v3058
        %v3060 = vpop.f32.mrf.mxu0
        %v3061 = vpop.f32.mrf.mxu0
        %v3062 = vadd.f32 0.0, %v3061
        %v3063 = vpop.f32.mrf.mxu0
        %3064 = vmatprep.mubr.bf16.mxu0 0
        %3065 = vmatmul.mubr.bf16.gmra.mxu0 %v2940
        %v3066 = vpop.f32.mrf.mxu0
        %v3067 = vadd.f32 0.0, %v3066
        %v3068 = vpop.f32.mrf.mxu0
        %v3069 = vpop.f32.mrf.mxu0
        %v3070 = vadd.f32 0.0, %v3069
        %v3071 = vpop.f32.mrf.mxu0
        %3072 = vmatprep.mubr.bf16.mxu0 0
        %3073 = vmatmul.mubr.bf16.gmra.mxu0 %v2943
        %v3074 = vpop.f32.mrf.mxu0
        %v3075 = vadd.f32 0.0, %v3074
        %v3076 = vpop.f32.mrf.mxu0
        %v3077 = vpop.f32.mrf.mxu0
        %v3078 = vadd.f32 0.0, %v3077
        %v3079 = vpop.f32.mrf.mxu0
        %3080 = vmatprep.mubr.bf16.mxu0 0
        %3081 = vmatmul.mubr.bf16.gmra.mxu0 %v2946
        %v3082 = vpop.f32.mrf.mxu0
        %v3083 = vadd.f32 0.0, %v3082
        %v3084 = vpop.f32.mrf.mxu0
        %v3085 = vpop.f32.mrf.mxu0
        %v3086 = vadd.f32 0.0, %v3085
        %v3087 = vpop.f32.mrf.mxu0
        %3088 = vmatprep.mubr.bf16.mxu0 0
        %3089 = vmatmul.mubr.bf16.gmra.mxu0 %v2949
        %v3090 = vpop.f32.mrf.mxu0
        %v3091 = vadd.f32 0.0, %v3090
        %v3092 = vpop.f32.mrf.mxu0
        %v3093 = vpop.f32.mrf.mxu0
        %v3094 = vadd.f32 0.0, %v3093
        %v3095 = vpop.f32.mrf.mxu0
        %3096 = vmatprep.mubr.bf16.mxu0 0
        %3097 = vmatmul.mubr.bf16.gmra.mxu0 %v2952
        %v3098 = vpop.f32.mrf.mxu0
        %v3099 = vadd.f32 0.0, %v3098
        %v3100 = vpop.f32.mrf.mxu0
        %v3101 = vpop.f32.mrf.mxu0
        %v3102 = vadd.f32 0.0, %v3101
        %v3103 = vpop.f32.mrf.mxu0
        %3104 = vmatprep.mubr.bf16.mxu0 0
        %3105 = vmatmul.mubr.bf16.gmra.mxu0 %v2955
        %v3106 = vpop.f32.mrf.mxu0
        %v3107 = vadd.f32 0.0, %v3106
        %v3108 = vpop.f32.mrf.mxu0
        %v3109 = vpop.f32.mrf.mxu0
        %v3110 = vadd.f32 0.0, %v3109
        %v3111 = vpop.f32.mrf.mxu0
        %3112 = vmatprep.mubr.bf16.mxu0 0
        %3113 = vmatmul.mubr.bf16.gmra.mxu0 %v2958
        %v3114 = vpop.f32.mrf.mxu0
        %v3115 = vadd.f32 0.0, %v3114
        %v3116 = vpop.f32.mrf.mxu0
        %v3117 = vpop.f32.mrf.mxu0
        %v3118 = vadd.f32 0.0, %v3117
        %v3119 = vpop.f32.mrf.mxu0
        %3120 = vdwg.mxu0
        %v3121 = vadd.f32 %v2844, %v2995
        %v3122 = vadd.f32 %v2845, %v2998
        %v3123 = vadd.f32 %v2846, %v3003
        %v3124 = vadd.f32 %v2847, %v3006
        %v3125 = vadd.f32 %v2848, %v3011
        %v3126 = vadd.f32 %v2849, %v3014
        %v3127 = vadd.f32 %v2850, %v3019
        %v3128 = vadd.f32 %v2851, %v3022
        %v3129 = vadd.f32 %v2852, %v3027
        %v3130 = vadd.f32 %v2853, %v3030
        %v3131 = vadd.f32 %v2854, %v3035
        %v3132 = vadd.f32 %v2855, %v3038
        %v3133 = vadd.f32 %v2856, %v3043
        %v3134 = vadd.f32 %v2857, %v3046
        %v3135 = vadd.f32 %v2858, %v3051
        %v3136 = vadd.f32 %v2859, %v3054
        %v3137 = vadd.f32 %v2860, %v3059
        %v3138 = vadd.f32 %v2861, %v3062
        %v3139 = vadd.f32 %v2862, %v3067
        %v3140 = vadd.f32 %v2863, %v3070
        %v3141 = vadd.f32 %v2864, %v3075
        %v3142 = vadd.f32 %v2865, %v3078
        %v3143 = vadd.f32 %v2866, %v3083
        %v3144 = vadd.f32 %v2867, %v3086
        %v3145 = vadd.f32 %v2868, %v3091
        %v3146 = vadd.f32 %v2869, %v3094
        %v3147 = vadd.f32 %v2870, %v3099
        %v3148 = vadd.f32 %v2871, %v3102
        %v3149 = vadd.f32 %v2872, %v3107
        %v3150 = vadd.f32 %v2873, %v3110
        %v3151 = vadd.f32 %v2874, %v3115
        %v3152 = vadd.f32 %v2875, %v3118
        %v3154 = vsel %vm950, %v2378, 0
        %v3155 = vsel %vm2389, %v829, 0
        %v3156 = vsel %vm1249, %v837, 0
        %v3157 = vsel %vm1250, %v845, 0
        %v3158 = vsel %vm1251, %v853, 0
        %v3159 = vsel %vm1252, %v861, 0
        %v3160 = vsel %vm1253, %v869, 0
        %v3161 = vsel %vm1254, %v877, 0
        %v3162 = vsel %vm1255, %v885, 0
        %v3163 = vsel %vm1256, %v893, 0
        %v3164 = vsel %vm1257, %v901, 0
        %v3165 = vsel %vm1258, %v909, 0
        %v3166 = vsel %vm1259, %v917, 0
        %v3167 = vsel %vm1260, %v925, 0
        %v3168 = vsel %vm1261, %v933, 0
        %v3169 = vsel %vm1262, %v2380, 0
        %v3170 = vsel %vm1263, %v3154, 0
        %s3171 = scalar_lea.vmem %s3, 96
        %v3172 = vld [vmem:[%s3171] sm:$0xf]
        %v3173 = vld [vmem:[%s3171 + $0x4] sm:$0xf]
        %v3174 = vld [vmem:[%s3171 + $0x8] sm:$0xf]
        %v3175 = vld [vmem:[%s3171 + $0xc] sm:$0xf]
        %v3180 = vunpack.c.l.b16 %v3172
        %v3181 = vunpack.c.l.b16 %v3173
        %v3182 = vunpack.c.l.b16 %v3174
        %v3183 = vunpack.c.l.b16 %v3175
        %v3184 = vpack.c.b16 %v3181, %v3180
        %v3185 = vpack.c.b16 %v3183, %v3182
        %v3189 = vsel %vm1300, %v3155, 0
        %v3192 = vsel %vm1300, %v3156, 0
        %v3195 = vsel %vm1300, %v3157, 0
        %v3198 = vsel %vm1300, %v3158, 0
        %v3201 = vsel %vm1300, %v3159, 0
        %v3204 = vsel %vm1300, %v3160, 0
        %v3207 = vsel %vm1300, %v3161, 0
        %v3210 = vsel %vm1300, %v3162, 0
        %v3213 = vsel %vm1300, %v3163, 0
        %v3216 = vsel %vm1300, %v3164, 0
        %v3219 = vsel %vm1300, %v3165, 0
        %v3222 = vsel %vm1300, %v3166, 0
        %v3225 = vsel %vm1300, %v3167, 0
        %v3228 = vsel %vm1300, %v3168, 0
        %v3231 = vsel %vm1300, %v3169, 0
        %v3234 = vsel %vm1300, %v3170, 0
        %3236 = vmatprep.subr.bf16.mxu0 0
        %3237 = vmatpush1.bf16.msra.mxu0 0
        %3238 = vmatprep.subr.bf16.mxu0 0
        %3239 = vmatpush1.bf16.msra.mxu0 0
        %3240 = vmatprep.subr.bf16.mxu0 0
        %3241 = vmatpush1.bf16.msra.mxu0 0
        %3242 = vmatprep.subr.bf16.mxu0 0
        %3243 = vmatpush1.bf16.msra.mxu0 0
        %3244 = vmatprep.subr.bf16.mxu0 0
        %3245 = vmatpush1.bf16.msra.mxu0 0
        %3246 = vmatprep.subr.bf16.mxu0 0
        %3247 = vmatpush1.bf16.msra.mxu0 0
        %3248 = vmatprep.subr.bf16.mxu0 0
        %3249 = vmatpush1.bf16.msra.mxu0 %v3185
        %3250 = vmatprep.subr.bf16.mxu0 0
        %3251 = vmatpush1.bf16.msra.mxu0 %v3184
        %3252 = vmatprep.subr.bf16.mxu0 0
        %3253 = vmatpush2.bf16.msra.mxu0 0
        %3254 = vmatprep.subr.bf16.mxu0 0
        %3255 = vmatpush2.bf16.msra.mxu0 0
        %3256 = vmatprep.subr.bf16.mxu0 0
        %3257 = vmatpush2.bf16.msra.mxu0 0
        %3258 = vmatprep.subr.bf16.mxu0 0
        %3259 = vmatpush2.bf16.msra.mxu0 0
        %3260 = vmatprep.subr.bf16.mxu0 0
        %3261 = vmatpush2.bf16.msra.mxu0 0
        %3262 = vmatprep.subr.bf16.mxu0 0
        %3263 = vmatpush2.bf16.msra.mxu0 0
        %3264 = vmatprep.subr.bf16.mxu0 0
        %3265 = vmatpush2.bf16.msra.mxu0 0
        %3266 = vmatprep.subr.bf16.mxu0 0
        %3267 = vmatpush2.bf16.msra.mxu0 0
        %3268 = vmatprep.mubr.bf16.mxu0 0
        %3269 = vmatmul.mubr.bf16.gmra.mxu0 %v3189
        %v3270 = vpop.f32.mrf.mxu0
        %v3271 = vadd.f32 0.0, %v3270
        %v3272 = vpop.f32.mrf.mxu0
        %v3273 = vpop.f32.mrf.mxu0
        %v3274 = vadd.f32 0.0, %v3273
        %v3275 = vpop.f32.mrf.mxu0
        %3276 = vmatprep.mubr.bf16.mxu0 0
        %3277 = vmatmul.mubr.bf16.gmra.mxu0 %v3192
        %v3278 = vpop.f32.mrf.mxu0
        %v3279 = vadd.f32 0.0, %v3278
        %v3280 = vpop.f32.mrf.mxu0
        %v3281 = vpop.f32.mrf.mxu0
        %v3282 = vadd.f32 0.0, %v3281
        %v3283 = vpop.f32.mrf.mxu0
        %3284 = vmatprep.mubr.bf16.mxu0 0
        %3285 = vmatmul.mubr.bf16.gmra.mxu0 %v3195
        %v3286 = vpop.f32.mrf.mxu0
        %v3287 = vadd.f32 0.0, %v3286
        %v3288 = vpop.f32.mrf.mxu0
        %v3289 = vpop.f32.mrf.mxu0
        %v3290 = vadd.f32 0.0, %v3289
        %v3291 = vpop.f32.mrf.mxu0
        %3292 = vmatprep.mubr.bf16.mxu0 0
        %3293 = vmatmul.mubr.bf16.gmra.mxu0 %v3198
        %v3294 = vpop.f32.mrf.mxu0
        %v3295 = vadd.f32 0.0, %v3294
        %v3296 = vpop.f32.mrf.mxu0
        %v3297 = vpop.f32.mrf.mxu0
        %v3298 = vadd.f32 0.0, %v3297
        %v3299 = vpop.f32.mrf.mxu0
        %3300 = vmatprep.mubr.bf16.mxu0 0
        %3301 = vmatmul.mubr.bf16.gmra.mxu0 %v3201
        %v3302 = vpop.f32.mrf.mxu0
        %v3303 = vadd.f32 0.0, %v3302
        %v3304 = vpop.f32.mrf.mxu0
        %v3305 = vpop.f32.mrf.mxu0
        %v3306 = vadd.f32 0.0, %v3305
        %v3307 = vpop.f32.mrf.mxu0
        %3308 = vmatprep.mubr.bf16.mxu0 0
        %3309 = vmatmul.mubr.bf16.gmra.mxu0 %v3204
        %v3310 = vpop.f32.mrf.mxu0
        %v3311 = vadd.f32 0.0, %v3310
        %v3312 = vpop.f32.mrf.mxu0
        %v3313 = vpop.f32.mrf.mxu0
        %v3314 = vadd.f32 0.0, %v3313
        %v3315 = vpop.f32.mrf.mxu0
        %3316 = vmatprep.mubr.bf16.mxu0 0
        %3317 = vmatmul.mubr.bf16.gmra.mxu0 %v3207
        %v3318 = vpop.f32.mrf.mxu0
        %v3319 = vadd.f32 0.0, %v3318
        %v3320 = vpop.f32.mrf.mxu0
        %v3321 = vpop.f32.mrf.mxu0
        %v3322 = vadd.f32 0.0, %v3321
        %v3323 = vpop.f32.mrf.mxu0
        %3324 = vmatprep.mubr.bf16.mxu0 0
        %3325 = vmatmul.mubr.bf16.gmra.mxu0 %v3210
        %v3326 = vpop.f32.mrf.mxu0
        %v3327 = vadd.f32 0.0, %v3326
        %v3328 = vpop.f32.mrf.mxu0
        %v3329 = vpop.f32.mrf.mxu0
        %v3330 = vadd.f32 0.0, %v3329
        %v3331 = vpop.f32.mrf.mxu0
        %3332 = vmatprep.mubr.bf16.mxu0 0
        %3333 = vmatmul.mubr.bf16.gmra.mxu0 %v3213
        %v3334 = vpop.f32.mrf.mxu0
        %v3335 = vadd.f32 0.0, %v3334
        %v3336 = vpop.f32.mrf.mxu0
        %v3337 = vpop.f32.mrf.mxu0
        %v3338 = vadd.f32 0.0, %v3337
        %v3339 = vpop.f32.mrf.mxu0
        %3340 = vmatprep.mubr.bf16.mxu0 0
        %3341 = vmatmul.mubr.bf16.gmra.mxu0 %v3216
        %v3342 = vpop.f32.mrf.mxu0
        %v3343 = vadd.f32 0.0, %v3342
        %v3344 = vpop.f32.mrf.mxu0
        %v3345 = vpop.f32.mrf.mxu0
        %v3346 = vadd.f32 0.0, %v3345
        %v3347 = vpop.f32.mrf.mxu0
        %3348 = vmatprep.mubr.bf16.mxu0 0
        %3349 = vmatmul.mubr.bf16.gmra.mxu0 %v3219
        %v3350 = vpop.f32.mrf.mxu0
        %v3351 = vadd.f32 0.0, %v3350
        %v3352 = vpop.f32.mrf.mxu0
        %v3353 = vpop.f32.mrf.mxu0
        %v3354 = vadd.f32 0.0, %v3353
        %v3355 = vpop.f32.mrf.mxu0
        %3356 = vmatprep.mubr.bf16.mxu0 0
        %3357 = vmatmul.mubr.bf16.gmra.mxu0 %v3222
        %v3358 = vpop.f32.mrf.mxu0
        %v3359 = vadd.f32 0.0, %v3358
        %v3360 = vpop.f32.mrf.mxu0
        %v3361 = vpop.f32.mrf.mxu0
        %v3362 = vadd.f32 0.0, %v3361
        %v3363 = vpop.f32.mrf.mxu0
        %3364 = vmatprep.mubr.bf16.mxu0 0
        %3365 = vmatmul.mubr.bf16.gmra.mxu0 %v3225
        %v3366 = vpop.f32.mrf.mxu0
        %v3367 = vadd.f32 0.0, %v3366
        %v3368 = vpop.f32.mrf.mxu0
        %v3369 = vpop.f32.mrf.mxu0
        %v3370 = vadd.f32 0.0, %v3369
        %v3371 = vpop.f32.mrf.mxu0
        %3372 = vmatprep.mubr.bf16.mxu0 0
        %3373 = vmatmul.mubr.bf16.gmra.mxu0 %v3228
        %v3374 = vpop.f32.mrf.mxu0
        %v3375 = vadd.f32 0.0, %v3374
        %v3376 = vpop.f32.mrf.mxu0
        %v3377 = vpop.f32.mrf.mxu0
        %v3378 = vadd.f32 0.0, %v3377
        %v3379 = vpop.f32.mrf.mxu0
        %3380 = vmatprep.mubr.bf16.mxu0 0
        %3381 = vmatmul.mubr.bf16.gmra.mxu0 %v3231
        %v3382 = vpop.f32.mrf.mxu0
        %v3383 = vadd.f32 0.0, %v3382
        %v3384 = vpop.f32.mrf.mxu0
        %v3385 = vpop.f32.mrf.mxu0
        %v3386 = vadd.f32 0.0, %v3385
        %v3387 = vpop.f32.mrf.mxu0
        %3388 = vmatprep.mubr.bf16.mxu0 0
        %3389 = vmatmul.mubr.bf16.gmra.mxu0 %v3234
        %v3390 = vpop.f32.mrf.mxu0
        %v3391 = vadd.f32 0.0, %v3390
        %v3392 = vpop.f32.mrf.mxu0
        %v3393 = vpop.f32.mrf.mxu0
        %v3394 = vadd.f32 0.0, %v3393
        %v3395 = vpop.f32.mrf.mxu0
        %3396 = vdwg.mxu0
        %v3397 = vadd.f32 %v3121, %v3271
        %v3398 = vadd.f32 %v3122, %v3274
        %v3399 = vadd.f32 %v3123, %v3279
        %v3400 = vadd.f32 %v3124, %v3282
        %v3401 = vadd.f32 %v3125, %v3287
        %v3402 = vadd.f32 %v3126, %v3290
        %v3403 = vadd.f32 %v3127, %v3295
        %v3404 = vadd.f32 %v3128, %v3298
        %v3405 = vadd.f32 %v3129, %v3303
        %v3406 = vadd.f32 %v3130, %v3306
        %v3407 = vadd.f32 %v3131, %v3311
        %v3408 = vadd.f32 %v3132, %v3314
        %v3409 = vadd.f32 %v3133, %v3319
        %v3410 = vadd.f32 %v3134, %v3322
        %v3411 = vadd.f32 %v3135, %v3327
        %v3412 = vadd.f32 %v3136, %v3330
        %v3413 = vadd.f32 %v3137, %v3335
        %v3414 = vadd.f32 %v3138, %v3338
        %v3415 = vadd.f32 %v3139, %v3343
        %v3416 = vadd.f32 %v3140, %v3346
        %v3417 = vadd.f32 %v3141, %v3351
        %v3418 = vadd.f32 %v3142, %v3354
        %v3419 = vadd.f32 %v3143, %v3359
        %v3420 = vadd.f32 %v3144, %v3362
        %v3421 = vadd.f32 %v3145, %v3367
        %v3422 = vadd.f32 %v3146, %v3370
        %v3423 = vadd.f32 %v3147, %v3375
        %v3424 = vadd.f32 %v3148, %v3378
        %v3425 = vadd.f32 %v3149, %v3383
        %v3426 = vadd.f32 %v3150, %v3386
        %v3427 = vadd.f32 %v3151, %v3391
        %v3428 = vadd.f32 %v3152, %v3394
        %s3429 = scalar_lea.vmem %s3, 112
        %v3430 = vld [vmem:[%s3429] sm:$0xf]
        %v3431 = vld [vmem:[%s3429 + $0x4] sm:$0xf]
        %v3432 = vld [vmem:[%s3429 + $0x8] sm:$0xf]
        %v3433 = vld [vmem:[%s3429 + $0xc] sm:$0xf]
        %v3438 = vunpack.c.l.b16 %v3430
        %v3439 = vunpack.c.l.b16 %v3431
        %v3440 = vunpack.c.l.b16 %v3432
        %v3441 = vunpack.c.l.b16 %v3433
        %v3442 = vpack.c.b16 %v3439, %v3438
        %v3443 = vpack.c.b16 %v3441, %v3440
        %3446 = vmatprep.subr.bf16.mxu0 0
        %3447 = vmatpush1.bf16.msra.mxu0 0
        %3448 = vmatprep.subr.bf16.mxu0 0
        %3449 = vmatpush1.bf16.msra.mxu0 0
        %3450 = vmatprep.subr.bf16.mxu0 0
        %3451 = vmatpush1.bf16.msra.mxu0 0
        %3452 = vmatprep.subr.bf16.mxu0 0
        %3453 = vmatpush1.bf16.msra.mxu0 0
        %3454 = vmatprep.subr.bf16.mxu0 0
        %3455 = vmatpush1.bf16.msra.mxu0 0
        %3456 = vmatprep.subr.bf16.mxu0 0
        %3457 = vmatpush1.bf16.msra.mxu0 0
        %3458 = vmatprep.subr.bf16.mxu0 0
        %3459 = vmatpush1.bf16.msra.mxu0 %v3443
        %3460 = vmatprep.subr.bf16.mxu0 0
        %3461 = vmatpush1.bf16.msra.mxu0 %v3442
        %3462 = vmatprep.subr.bf16.mxu0 0
        %3463 = vmatpush2.bf16.msra.mxu0 0
        %3464 = vmatprep.subr.bf16.mxu0 0
        %3465 = vmatpush2.bf16.msra.mxu0 0
        %3466 = vmatprep.subr.bf16.mxu0 0
        %3467 = vmatpush2.bf16.msra.mxu0 0
        %3468 = vmatprep.subr.bf16.mxu0 0
        %3469 = vmatpush2.bf16.msra.mxu0 0
        %3470 = vmatprep.subr.bf16.mxu0 0
        %3471 = vmatpush2.bf16.msra.mxu0 0
        %3472 = vmatprep.subr.bf16.mxu0 0
        %3473 = vmatpush2.bf16.msra.mxu0 0
        %3474 = vmatprep.subr.bf16.mxu0 0
        %3475 = vmatpush2.bf16.msra.mxu0 0
        %3476 = vmatprep.subr.bf16.mxu0 0
        %3477 = vmatpush2.bf16.msra.mxu0 0
        %3478 = vmatprep.mubr.bf16.mxu0 0
        %3479 = vmatmul.mubr.bf16.gmra.mxu0 %v1306
        %v3480 = vpop.f32.mrf.mxu0
        %v3481 = vadd.f32 0.0, %v3480
        %v3482 = vpop.f32.mrf.mxu0
        %v3483 = vpop.f32.mrf.mxu0
        %v3484 = vadd.f32 0.0, %v3483
        %v3485 = vpop.f32.mrf.mxu0
        %3486 = vmatprep.mubr.bf16.mxu0 0
        %3487 = vmatmul.mubr.bf16.gmra.mxu0 %v1308
        %v3488 = vpop.f32.mrf.mxu0
        %v3489 = vadd.f32 0.0, %v3488
        %v3490 = vpop.f32.mrf.mxu0
        %v3491 = vpop.f32.mrf.mxu0
        %v3492 = vadd.f32 0.0, %v3491
        %v3493 = vpop.f32.mrf.mxu0
        %3494 = vmatprep.mubr.bf16.mxu0 0
        %3495 = vmatmul.mubr.bf16.gmra.mxu0 %v1310
        %v3496 = vpop.f32.mrf.mxu0
        %v3497 = vadd.f32 0.0, %v3496
        %v3498 = vpop.f32.mrf.mxu0
        %v3499 = vpop.f32.mrf.mxu0
        %v3500 = vadd.f32 0.0, %v3499
        %v3501 = vpop.f32.mrf.mxu0
        %3502 = vmatprep.mubr.bf16.mxu0 0
        %3503 = vmatmul.mubr.bf16.gmra.mxu0 %v1312
        %v3504 = vpop.f32.mrf.mxu0
        %v3505 = vadd.f32 0.0, %v3504
        %v3506 = vpop.f32.mrf.mxu0
        %v3507 = vpop.f32.mrf.mxu0
        %v3508 = vadd.f32 0.0, %v3507
        %v3509 = vpop.f32.mrf.mxu0
        %3510 = vmatprep.mubr.bf16.mxu0 0
        %3511 = vmatmul.mubr.bf16.gmra.mxu0 %v1314
        %v3512 = vpop.f32.mrf.mxu0
        %v3513 = vadd.f32 0.0, %v3512
        %v3514 = vpop.f32.mrf.mxu0
        %v3515 = vpop.f32.mrf.mxu0
        %v3516 = vadd.f32 0.0, %v3515
        %v3517 = vpop.f32.mrf.mxu0
        %3518 = vmatprep.mubr.bf16.mxu0 0
        %3519 = vmatmul.mubr.bf16.gmra.mxu0 %v1316
        %v3520 = vpop.f32.mrf.mxu0
        %v3521 = vadd.f32 0.0, %v3520
        %v3522 = vpop.f32.mrf.mxu0
        %v3523 = vpop.f32.mrf.mxu0
        %v3524 = vadd.f32 0.0, %v3523
        %v3525 = vpop.f32.mrf.mxu0
        %3526 = vmatprep.mubr.bf16.mxu0 0
        %3527 = vmatmul.mubr.bf16.gmra.mxu0 %v1318
        %v3528 = vpop.f32.mrf.mxu0
        %v3529 = vadd.f32 0.0, %v3528
        %v3530 = vpop.f32.mrf.mxu0
        %v3531 = vpop.f32.mrf.mxu0
        %v3532 = vadd.f32 0.0, %v3531
        %v3533 = vpop.f32.mrf.mxu0
        %3534 = vmatprep.mubr.bf16.mxu0 0
        %3535 = vmatmul.mubr.bf16.gmra.mxu0 %v1320
        %v3536 = vpop.f32.mrf.mxu0
        %v3537 = vadd.f32 0.0, %v3536
        %v3538 = vpop.f32.mrf.mxu0
        %v3539 = vpop.f32.mrf.mxu0
        %v3540 = vadd.f32 0.0, %v3539
        %v3541 = vpop.f32.mrf.mxu0
        %3542 = vmatprep.mubr.bf16.mxu0 0
        %3543 = vmatmul.mubr.bf16.gmra.mxu0 %v1322
        %v3544 = vpop.f32.mrf.mxu0
        %v3545 = vadd.f32 0.0, %v3544
        %v3546 = vpop.f32.mrf.mxu0
        %v3547 = vpop.f32.mrf.mxu0
        %v3548 = vadd.f32 0.0, %v3547
        %v3549 = vpop.f32.mrf.mxu0
        %3550 = vmatprep.mubr.bf16.mxu0 0
        %3551 = vmatmul.mubr.bf16.gmra.mxu0 %v1324
        %v3552 = vpop.f32.mrf.mxu0
        %v3553 = vadd.f32 0.0, %v3552
        %v3554 = vpop.f32.mrf.mxu0
        %v3555 = vpop.f32.mrf.mxu0
        %v3556 = vadd.f32 0.0, %v3555
        %v3557 = vpop.f32.mrf.mxu0
        %3558 = vmatprep.mubr.bf16.mxu0 0
        %3559 = vmatmul.mubr.bf16.gmra.mxu0 %v1326
        %v3560 = vpop.f32.mrf.mxu0
        %v3561 = vadd.f32 0.0, %v3560
        %v3562 = vpop.f32.mrf.mxu0
        %v3563 = vpop.f32.mrf.mxu0
        %v3564 = vadd.f32 0.0, %v3563
        %v3565 = vpop.f32.mrf.mxu0
        %3566 = vmatprep.mubr.bf16.mxu0 0
        %3567 = vmatmul.mubr.bf16.gmra.mxu0 %v1328
        %v3568 = vpop.f32.mrf.mxu0
        %v3569 = vadd.f32 0.0, %v3568
        %v3570 = vpop.f32.mrf.mxu0
        %v3571 = vpop.f32.mrf.mxu0
        %v3572 = vadd.f32 0.0, %v3571
        %v3573 = vpop.f32.mrf.mxu0
        %3574 = vmatprep.mubr.bf16.mxu0 0
        %3575 = vmatmul.mubr.bf16.gmra.mxu0 %v1330
        %v3576 = vpop.f32.mrf.mxu0
        %v3577 = vadd.f32 0.0, %v3576
        %v3578 = vpop.f32.mrf.mxu0
        %v3579 = vpop.f32.mrf.mxu0
        %v3580 = vadd.f32 0.0, %v3579
        %v3581 = vpop.f32.mrf.mxu0
        %3582 = vmatprep.mubr.bf16.mxu0 0
        %3583 = vmatmul.mubr.bf16.gmra.mxu0 %v1332
        %v3584 = vpop.f32.mrf.mxu0
        %v3585 = vadd.f32 0.0, %v3584
        %v3586 = vpop.f32.mrf.mxu0
        %v3587 = vpop.f32.mrf.mxu0
        %v3588 = vadd.f32 0.0, %v3587
        %v3589 = vpop.f32.mrf.mxu0
        %3590 = vmatprep.mubr.bf16.mxu0 0
        %3591 = vmatmul.mubr.bf16.gmra.mxu0 %v2681
        %v3592 = vpop.f32.mrf.mxu0
        %v3593 = vadd.f32 0.0, %v3592
        %v3594 = vpop.f32.mrf.mxu0
        %v3595 = vpop.f32.mrf.mxu0
        %v3596 = vadd.f32 0.0, %v3595
        %v3597 = vpop.f32.mrf.mxu0
        %3598 = vmatprep.mubr.bf16.mxu0 0
        %3599 = vmatmul.mubr.bf16.gmra.mxu0 %v1302
        %v3600 = vpop.f32.mrf.mxu0
        %v3601 = vadd.f32 0.0, %v3600
        %v3602 = vpop.f32.mrf.mxu0
        %v3603 = vpop.f32.mrf.mxu0
        %v3604 = vadd.f32 0.0, %v3603
        %v3605 = vpop.f32.mrf.mxu0
        %3606 = vdwg.mxu0
        %v3607 = vadd.f32 %v3397, %v3481
        %v3608 = vadd.f32 %v3398, %v3484
        %v3609 = vadd.f32 %v3399, %v3489
        %v3610 = vadd.f32 %v3400, %v3492
        %v3611 = vadd.f32 %v3401, %v3497
        %v3612 = vadd.f32 %v3402, %v3500
        %v3613 = vadd.f32 %v3403, %v3505
        %v3614 = vadd.f32 %v3404, %v3508
        %v3615 = vadd.f32 %v3405, %v3513
        %v3616 = vadd.f32 %v3406, %v3516
        %v3617 = vadd.f32 %v3407, %v3521
        %v3618 = vadd.f32 %v3408, %v3524
        %v3619 = vadd.f32 %v3409, %v3529
        %v3620 = vadd.f32 %v3410, %v3532
        %v3621 = vadd.f32 %v3411, %v3537
        %v3622 = vadd.f32 %v3412, %v3540
        %v3623 = vadd.f32 %v3413, %v3545
        %v3624 = vadd.f32 %v3414, %v3548
        %v3625 = vadd.f32 %v3415, %v3553
        %v3626 = vadd.f32 %v3416, %v3556
        %v3627 = vadd.f32 %v3417, %v3561
        %v3628 = vadd.f32 %v3418, %v3564
        %v3629 = vadd.f32 %v3419, %v3569
        %v3630 = vadd.f32 %v3420, %v3572
        %v3631 = vadd.f32 %v3421, %v3577
        %v3632 = vadd.f32 %v3422, %v3580
        %v3633 = vadd.f32 %v3423, %v3585
        %v3634 = vadd.f32 %v3424, %v3588
        %v3635 = vadd.f32 %v3425, %v3593
        %v3636 = vadd.f32 %v3426, %v3596
        %v3637 = vadd.f32 %v3427, %v3601
        %v3638 = vadd.f32 %v3428, %v3604
        %v3639 = vsel %vm2086, %v1720, 0
        %v3640 = vsel %vm2087, %v1723, 0
        %v3641 = vsel %vm2088, %v1726, 0
        %v3642 = vsel %vm2089, %v1729, 0
        %v3643 = vsel %vm2090, %v1732, 0
        %v3644 = vsel %vm2091, %v1735, 0
        %v3645 = vsel %vm2092, %v1738, 0
        %v3646 = vsel %vm2093, %v1741, 0
        %v3647 = vsel %vm2094, %v1744, 0
        %v3648 = vsel %vm2095, %v1747, 0
        %v3649 = vsel %vm2096, %v1750, 0
        %v3650 = vsel %vm2097, %v1753, 0
        %v3651 = vsel %vm2098, %v1756, 0
        %v3652 = vsel %vm2099, %v1762, 0
        %v3653 = vsel %vm2100, %v2878, 0
        %s3654 = scalar_lea.vmem %s3, 128
        %v3655 = vld [vmem:[%s3654] sm:$0xf]
        %v3656 = vld [vmem:[%s3654 + $0x4] sm:$0xf]
        %v3657 = vld [vmem:[%s3654 + $0x8] sm:$0xf]
        %v3658 = vld [vmem:[%s3654 + $0xc] sm:$0xf]
        %v3663 = vunpack.c.l.b16 %v3655
        %v3664 = vunpack.c.l.b16 %v3656
        %v3665 = vunpack.c.l.b16 %v3657
        %v3666 = vunpack.c.l.b16 %v3658
        %v3667 = vpack.c.b16 %v3664, %v3663
        %v3668 = vpack.c.b16 %v3666, %v3665
        %v3672 = vsel %vm1300, %v3639, 0
        %v3675 = vsel %vm1300, %v3640, 0
        %v3678 = vsel %vm1300, %v3641, 0
        %v3681 = vsel %vm1300, %v3642, 0
        %v3684 = vsel %vm1300, %v3643, 0
        %v3687 = vsel %vm1300, %v3644, 0
        %v3690 = vsel %vm1300, %v3645, 0
        %v3693 = vsel %vm1300, %v3646, 0
        %v3696 = vsel %vm1300, %v3647, 0
        %v3699 = vsel %vm1300, %v3648, 0
        %v3702 = vsel %vm1300, %v3649, 0
        %v3705 = vsel %vm1300, %v3650, 0
        %v3708 = vsel %vm1300, %v3651, 0
        %v3711 = vsel %vm1300, %v3652, 0
        %v3714 = vsel %vm1300, %v3653, 0
        %3716 = vmatprep.subr.bf16.mxu0 0
        %3717 = vmatpush1.bf16.msra.mxu0 0
        %3718 = vmatprep.subr.bf16.mxu0 0
        %3719 = vmatpush1.bf16.msra.mxu0 0
        %3720 = vmatprep.subr.bf16.mxu0 0
        %3721 = vmatpush1.bf16.msra.mxu0 0
        %3722 = vmatprep.subr.bf16.mxu0 0
        %3723 = vmatpush1.bf16.msra.mxu0 0
        %3724 = vmatprep.subr.bf16.mxu0 0
        %3725 = vmatpush1.bf16.msra.mxu0 0
        %3726 = vmatprep.subr.bf16.mxu0 0
        %3727 = vmatpush1.bf16.msra.mxu0 0
        %3728 = vmatprep.subr.bf16.mxu0 0
        %3729 = vmatpush1.bf16.msra.mxu0 %v3668
        %3730 = vmatprep.subr.bf16.mxu0 0
        %3731 = vmatpush1.bf16.msra.mxu0 %v3667
        %3732 = vmatprep.subr.bf16.mxu0 0
        %3733 = vmatpush2.bf16.msra.mxu0 0
        %3734 = vmatprep.subr.bf16.mxu0 0
        %3735 = vmatpush2.bf16.msra.mxu0 0
        %3736 = vmatprep.subr.bf16.mxu0 0
        %3737 = vmatpush2.bf16.msra.mxu0 0
        %3738 = vmatprep.subr.bf16.mxu0 0
        %3739 = vmatpush2.bf16.msra.mxu0 0
        %3740 = vmatprep.subr.bf16.mxu0 0
        %3741 = vmatpush2.bf16.msra.mxu0 0
        %3742 = vmatprep.subr.bf16.mxu0 0
        %3743 = vmatpush2.bf16.msra.mxu0 0
        %3744 = vmatprep.subr.bf16.mxu0 0
        %3745 = vmatpush2.bf16.msra.mxu0 0
        %3746 = vmatprep.subr.bf16.mxu0 0
        %3747 = vmatpush2.bf16.msra.mxu0 0
        %3748 = vmatprep.mubr.bf16.mxu0 0
        %3749 = vmatmul.mubr.bf16.gmra.mxu0 %v3672
        %v3750 = vpop.f32.mrf.mxu0
        %v3751 = vadd.f32 0.0, %v3750
        %v3752 = vpop.f32.mrf.mxu0
        %v3753 = vpop.f32.mrf.mxu0
        %v3754 = vadd.f32 0.0, %v3753
        %v3755 = vpop.f32.mrf.mxu0
        %3756 = vmatprep.mubr.bf16.mxu0 0
        %3757 = vmatmul.mubr.bf16.gmra.mxu0 %v3675
        %v3758 = vpop.f32.mrf.mxu0
        %v3759 = vadd.f32 0.0, %v3758
        %v3760 = vpop.f32.mrf.mxu0
        %v3761 = vpop.f32.mrf.mxu0
        %v3762 = vadd.f32 0.0, %v3761
        %v3763 = vpop.f32.mrf.mxu0
        %3764 = vmatprep.mubr.bf16.mxu0 0
        %3765 = vmatmul.mubr.bf16.gmra.mxu0 %v3678
        %v3766 = vpop.f32.mrf.mxu0
        %v3767 = vadd.f32 0.0, %v3766
        %v3768 = vpop.f32.mrf.mxu0
        %v3769 = vpop.f32.mrf.mxu0
        %v3770 = vadd.f32 0.0, %v3769
        %v3771 = vpop.f32.mrf.mxu0
        %3772 = vmatprep.mubr.bf16.mxu0 0
        %3773 = vmatmul.mubr.bf16.gmra.mxu0 %v3681
        %v3774 = vpop.f32.mrf.mxu0
        %v3775 = vadd.f32 0.0, %v3774
        %v3776 = vpop.f32.mrf.mxu0
        %v3777 = vpop.f32.mrf.mxu0
        %v3778 = vadd.f32 0.0, %v3777
        %v3779 = vpop.f32.mrf.mxu0
        %3780 = vmatprep.mubr.bf16.mxu0 0
        %3781 = vmatmul.mubr.bf16.gmra.mxu0 %v3684
        %v3782 = vpop.f32.mrf.mxu0
        %v3783 = vadd.f32 0.0, %v3782
        %v3784 = vpop.f32.mrf.mxu0
        %v3785 = vpop.f32.mrf.mxu0
        %v3786 = vadd.f32 0.0, %v3785
        %v3787 = vpop.f32.mrf.mxu0
        %3788 = vmatprep.mubr.bf16.mxu0 0
        %3789 = vmatmul.mubr.bf16.gmra.mxu0 %v3687
        %v3790 = vpop.f32.mrf.mxu0
        %v3791 = vadd.f32 0.0, %v3790
        %v3792 = vpop.f32.mrf.mxu0
        %v3793 = vpop.f32.mrf.mxu0
        %v3794 = vadd.f32 0.0, %v3793
        %v3795 = vpop.f32.mrf.mxu0
        %3796 = vmatprep.mubr.bf16.mxu0 0
        %3797 = vmatmul.mubr.bf16.gmra.mxu0 %v3690
        %v3798 = vpop.f32.mrf.mxu0
        %v3799 = vadd.f32 0.0, %v3798
        %v3800 = vpop.f32.mrf.mxu0
        %v3801 = vpop.f32.mrf.mxu0
        %v3802 = vadd.f32 0.0, %v3801
        %v3803 = vpop.f32.mrf.mxu0
        %3804 = vmatprep.mubr.bf16.mxu0 0
        %3805 = vmatmul.mubr.bf16.gmra.mxu0 %v3693
        %v3806 = vpop.f32.mrf.mxu0
        %v3807 = vadd.f32 0.0, %v3806
        %v3808 = vpop.f32.mrf.mxu0
        %v3809 = vpop.f32.mrf.mxu0
        %v3810 = vadd.f32 0.0, %v3809
        %v3811 = vpop.f32.mrf.mxu0
        %3812 = vmatprep.mubr.bf16.mxu0 0
        %3813 = vmatmul.mubr.bf16.gmra.mxu0 %v3696
        %v3814 = vpop.f32.mrf.mxu0
        %v3815 = vadd.f32 0.0, %v3814
        %v3816 = vpop.f32.mrf.mxu0
        %v3817 = vpop.f32.mrf.mxu0
        %v3818 = vadd.f32 0.0, %v3817
        %v3819 = vpop.f32.mrf.mxu0
        %3820 = vmatprep.mubr.bf16.mxu0 0
        %3821 = vmatmul.mubr.bf16.gmra.mxu0 %v3699
        %v3822 = vpop.f32.mrf.mxu0
        %v3823 = vadd.f32 0.0, %v3822
        %v3824 = vpop.f32.mrf.mxu0
        %v3825 = vpop.f32.mrf.mxu0
        %v3826 = vadd.f32 0.0, %v3825
        %v3827 = vpop.f32.mrf.mxu0
        %3828 = vmatprep.mubr.bf16.mxu0 0
        %3829 = vmatmul.mubr.bf16.gmra.mxu0 %v3702
        %v3830 = vpop.f32.mrf.mxu0
        %v3831 = vadd.f32 0.0, %v3830
        %v3832 = vpop.f32.mrf.mxu0
        %v3833 = vpop.f32.mrf.mxu0
        %v3834 = vadd.f32 0.0, %v3833
        %v3835 = vpop.f32.mrf.mxu0
        %3836 = vmatprep.mubr.bf16.mxu0 0
        %3837 = vmatmul.mubr.bf16.gmra.mxu0 %v3705
        %v3838 = vpop.f32.mrf.mxu0
        %v3839 = vadd.f32 0.0, %v3838
        %v3840 = vpop.f32.mrf.mxu0
        %v3841 = vpop.f32.mrf.mxu0
        %v3842 = vadd.f32 0.0, %v3841
        %v3843 = vpop.f32.mrf.mxu0
        %3844 = vmatprep.mubr.bf16.mxu0 0
        %3845 = vmatmul.mubr.bf16.gmra.mxu0 %v3708
        %v3846 = vpop.f32.mrf.mxu0
        %v3847 = vadd.f32 0.0, %v3846
        %v3848 = vpop.f32.mrf.mxu0
        %v3849 = vpop.f32.mrf.mxu0
        %v3850 = vadd.f32 0.0, %v3849
        %v3851 = vpop.f32.mrf.mxu0
        %3852 = vmatprep.mubr.bf16.mxu0 0
        %3853 = vmatmul.mubr.bf16.gmra.mxu0 %v3711
        %v3854 = vpop.f32.mrf.mxu0
        %v3855 = vadd.f32 0.0, %v3854
        %v3856 = vpop.f32.mrf.mxu0
        %v3857 = vpop.f32.mrf.mxu0
        %v3858 = vadd.f32 0.0, %v3857
        %v3859 = vpop.f32.mrf.mxu0
        %3860 = vmatprep.mubr.bf16.mxu0 0
        %3861 = vmatmul.mubr.bf16.gmra.mxu0 %v3714
        %v3862 = vpop.f32.mrf.mxu0
        %v3863 = vadd.f32 0.0, %v3862
        %v3864 = vpop.f32.mrf.mxu0
        %v3865 = vpop.f32.mrf.mxu0
        %v3866 = vadd.f32 0.0, %v3865
        %v3867 = vpop.f32.mrf.mxu0
        %3868 = vmatprep.mubr.bf16.mxu0 0
        %3869 = vmatmul.mubr.bf16.gmra.mxu0 %v1302
        %v3870 = vpop.f32.mrf.mxu0
        %v3871 = vadd.f32 0.0, %v3870
        %v3872 = vpop.f32.mrf.mxu0
        %v3873 = vpop.f32.mrf.mxu0
        %v3874 = vadd.f32 0.0, %v3873
        %v3875 = vpop.f32.mrf.mxu0
        %3876 = vdwg.mxu0
        %v3877 = vadd.f32 %v3607, %v3751
        %v3878 = vadd.f32 %v3608, %v3754
        %v3879 = vadd.f32 %v3609, %v3759
        %v3880 = vadd.f32 %v3610, %v3762
        %v3881 = vadd.f32 %v3611, %v3767
        %v3882 = vadd.f32 %v3612, %v3770
        %v3883 = vadd.f32 %v3613, %v3775
        %v3884 = vadd.f32 %v3614, %v3778
        %v3885 = vadd.f32 %v3615, %v3783
        %v3886 = vadd.f32 %v3616, %v3786
        %v3887 = vadd.f32 %v3617, %v3791
        %v3888 = vadd.f32 %v3618, %v3794
        %v3889 = vadd.f32 %v3619, %v3799
        %v3890 = vadd.f32 %v3620, %v3802
        %v3891 = vadd.f32 %v3621, %v3807
        %v3892 = vadd.f32 %v3622, %v3810
        %v3893 = vadd.f32 %v3623, %v3815
        %v3894 = vadd.f32 %v3624, %v3818
        %v3895 = vadd.f32 %v3625, %v3823
        %v3896 = vadd.f32 %v3626, %v3826
        %v3897 = vadd.f32 %v3627, %v3831
        %v3898 = vadd.f32 %v3628, %v3834
        %v3899 = vadd.f32 %v3629, %v3839
        %v3900 = vadd.f32 %v3630, %v3842
        %v3901 = vadd.f32 %v3631, %v3847
        %v3902 = vadd.f32 %v3632, %v3850
        %v3903 = vadd.f32 %v3633, %v3855
        %v3904 = vadd.f32 %v3634, %v3858
        %v3905 = vadd.f32 %v3635, %v3863
        %v3906 = vadd.f32 %v3636, %v3866
        %v3907 = vadd.f32 %v3637, %v3871
        %v3908 = vadd.f32 %v3638, %v3874
        %vm3909 = vcmask 64512
        %3910 = vst.msk [vmem:[%s235] sm:$0xff] %vm3909, %v3877
        %3911 = vst.msk [vmem:[%s235 + $0x8] sm:$0xff] %vm3909, %v3878
        %3912 = vst.msk [vmem:[%s235 + $0x10] sm:$0xff] %vm3909, %v3879
        %3913 = vst.msk [vmem:[%s235 + $0x18] sm:$0xff] %vm3909, %v3880
        %3914 = vst.msk [vmem:[%s235 + $0x20] sm:$0xff] %vm3909, %v3881
        %3915 = vst.msk [vmem:[%s235 + $0x28] sm:$0xff] %vm3909, %v3882
        %3916 = vst.msk [vmem:[%s235 + $0x30] sm:$0xff] %vm3909, %v3883
        %3917 = vst.msk [vmem:[%s235 + $0x38] sm:$0xff] %vm3909, %v3884
        %3918 = vst.msk [vmem:[%s235 + $0x40] sm:$0xff] %vm3909, %v3885
        %3919 = vst.msk [vmem:[%s235 + $0x48] sm:$0xff] %vm3909, %v3886
        %3920 = vst.msk [vmem:[%s235 + $0x50] sm:$0xff] %vm3909, %v3887
        %3921 = vst.msk [vmem:[%s235 + $0x58] sm:$0xff] %vm3909, %v3888
        %3922 = vst.msk [vmem:[%s235 + $0x60] sm:$0xff] %vm3909, %v3889
        %3923 = vst.msk [vmem:[%s235 + $0x68] sm:$0xff] %vm3909, %v3890
        %3924 = vst.msk [vmem:[%s235 + $0x70] sm:$0xff] %vm3909, %v3891
        %3925 = vst.msk [vmem:[%s235 + $0x78] sm:$0xff] %vm3909, %v3892
        %3926 = vst.msk [vmem:[%s235 + $0x80] sm:$0xff] %vm3909, %v3893
        %3927 = vst.msk [vmem:[%s235 + $0x88] sm:$0xff] %vm3909, %v3894
        %3928 = vst.msk [vmem:[%s235 + $0x90] sm:$0xff] %vm3909, %v3895
        %3929 = vst.msk [vmem:[%s235 + $0x98] sm:$0xff] %vm3909, %v3896
        %3930 = vst.msk [vmem:[%s235 + $0xa0] sm:$0xff] %vm3909, %v3897
        %3931 = vst.msk [vmem:[%s235 + $0xa8] sm:$0xff] %vm3909, %v3898
        %3932 = vst.msk [vmem:[%s235 + $0xb0] sm:$0xff] %vm3909, %v3899
        %3933 = vst.msk [vmem:[%s235 + $0xb8] sm:$0xff] %vm3909, %v3900
        %3934 = vst.msk [vmem:[%s235 + $0xc0] sm:$0xff] %vm3909, %v3901
        %3935 = vst.msk [vmem:[%s235 + $0xc8] sm:$0xff] %vm3909, %v3902
        %3936 = vst.msk [vmem:[%s235 + $0xd0] sm:$0xff] %vm3909, %v3903
        %3937 = vst.msk [vmem:[%s235 + $0xd8] sm:$0xff] %vm3909, %v3904
        %3938 = vst.msk [vmem:[%s235 + $0xe0] sm:$0xff] %vm3909, %v3905
        %3939 = vst.msk [vmem:[%s235 + $0xe8] sm:$0xff] %vm3909, %v3906
        %3940 = vst.msk [vmem:[%s235 + $0xf0] sm:$0xff] %vm3909, %v3907
        %3941 = vst.msk [vmem:[%s235 + $0xf8] sm:$0xff] %vm3909, %v3908
        %v3942 = vsel %vm3909, %v3877, 0.0
        %v3943 = vsel %vm3909, %v3878, 0.0
        %v3944 = vadd.f32 %v3942, %v3943
        %v3945 = vsel %vm3909, %v3879, 0.0
        %v3946 = vadd.f32 %v3944, %v3945
        %v3947 = vsel %vm3909, %v3880, 0.0
        %v3948 = vadd.f32 %v3946, %v3947
        %v3949 = vsel %vm3909, %v3881, 0.0
        %v3950 = vadd.f32 %v3948, %v3949
        %v3951 = vsel %vm3909, %v3882, 0.0
        %v3952 = vadd.f32 %v3950, %v3951
        %v3953 = vsel %vm3909, %v3883, 0.0
        %v3954 = vadd.f32 %v3952, %v3953
        %v3955 = vsel %vm3909, %v3884, 0.0
        %v3956 = vadd.f32 %v3954, %v3955
        %v3957 = vsel %vm3909, %v3885, 0.0
        %v3958 = vadd.f32 %v3956, %v3957
        %v3959 = vsel %vm3909, %v3886, 0.0
        %v3960 = vadd.f32 %v3958, %v3959
        %v3961 = vsel %vm3909, %v3887, 0.0
        %v3962 = vadd.f32 %v3960, %v3961
        %v3963 = vsel %vm3909, %v3888, 0.0
        %v3964 = vadd.f32 %v3962, %v3963
        %v3965 = vsel %vm3909, %v3889, 0.0
        %v3966 = vadd.f32 %v3964, %v3965
        %v3967 = vsel %vm3909, %v3890, 0.0
        %v3968 = vadd.f32 %v3966, %v3967
        %v3969 = vsel %vm3909, %v3891, 0.0
        %v3970 = vadd.f32 %v3968, %v3969
        %v3971 = vsel %vm3909, %v3892, 0.0
        %v3972 = vadd.f32 %v3970, %v3971
        %v3973 = vsel %vm3909, %v3893, 0.0
        %v3974 = vadd.f32 %v3972, %v3973
        %v3975 = vsel %vm3909, %v3894, 0.0
        %v3976 = vadd.f32 %v3974, %v3975
        %v3977 = vsel %vm3909, %v3895, 0.0
        %v3978 = vadd.f32 %v3976, %v3977
        %v3979 = vsel %vm3909, %v3896, 0.0
        %v3980 = vadd.f32 %v3978, %v3979
        %v3981 = vsel %vm3909, %v3897, 0.0
        %v3982 = vadd.f32 %v3980, %v3981
        %v3983 = vsel %vm3909, %v3898, 0.0
        %v3984 = vadd.f32 %v3982, %v3983
        %v3985 = vsel %vm3909, %v3899, 0.0
        %v3986 = vadd.f32 %v3984, %v3985
        %v3987 = vsel %vm3909, %v3900, 0.0
        %v3988 = vadd.f32 %v3986, %v3987
        %v3989 = vsel %vm3909, %v3901, 0.0
        %v3990 = vadd.f32 %v3988, %v3989
        %v3991 = vsel %vm3909, %v3902, 0.0
        %v3992 = vadd.f32 %v3990, %v3991
        %v3993 = vsel %vm3909, %v3903, 0.0
        %v3994 = vadd.f32 %v3992, %v3993
        %v3995 = vsel %vm3909, %v3904, 0.0
        %v3996 = vadd.f32 %v3994, %v3995
        %v3997 = vsel %vm3909, %v3905, 0.0
        %v3998 = vadd.f32 %v3996, %v3997
        %v3999 = vsel %vm3909, %v3906, 0.0
        %v4000 = vadd.f32 %v3998, %v3999
        %v4001 = vsel %vm3909, %v3907, 0.0
        %v4002 = vadd.f32 %v4000, %v4001
        %v4003 = vsel %vm3909, %v3908, 0.0
        %v4004 = vadd.f32 %v4002, %v4003
        %v4005 = vrot.slane %v4004, 4
        %v4006 = vadd.f32 %v4004, %v4005
        %v4007 = vrot.slane %v4006, 2
        %v4008 = vadd.f32 %v4006, %v4007
        %v4009 = vrot.slane %v4008, 1
        %v4010 = vadd.f32 %v4008, %v4009
        %v4011 = vmul.f32 %v3877, %v3877
        %v4012 = vmul.f32 %v3878, %v3878
        %v4013 = vmul.f32 %v3879, %v3879
        %v4014 = vmul.f32 %v3880, %v3880
        %v4015 = vmul.f32 %v3881, %v3881
        %v4016 = vmul.f32 %v3882, %v3882
        %v4017 = vmul.f32 %v3883, %v3883
        %v4018 = vmul.f32 %v3884, %v3884
        %v4019 = vmul.f32 %v3885, %v3885
        %v4020 = vmul.f32 %v3886, %v3886
        %v4021 = vmul.f32 %v3887, %v3887
        %v4022 = vmul.f32 %v3888, %v3888
        %v4023 = vmul.f32 %v3889, %v3889
        %v4024 = vmul.f32 %v3890, %v3890
        %v4025 = vmul.f32 %v3891, %v3891
        %v4026 = vmul.f32 %v3892, %v3892
        %v4027 = vmul.f32 %v3893, %v3893
        %v4028 = vmul.f32 %v3894, %v3894
        %v4029 = vmul.f32 %v3895, %v3895
        %v4030 = vmul.f32 %v3896, %v3896
        %v4031 = vmul.f32 %v3897, %v3897
        %v4032 = vmul.f32 %v3898, %v3898
        %v4033 = vmul.f32 %v3899, %v3899
        %v4034 = vmul.f32 %v3900, %v3900
        %v4035 = vmul.f32 %v3901, %v3901
        %v4036 = vmul.f32 %v3902, %v3902
        %v4037 = vmul.f32 %v3903, %v3903
        %v4038 = vmul.f32 %v3904, %v3904
        %v4039 = vmul.f32 %v3905, %v3905
        %v4040 = vmul.f32 %v3906, %v3906
        %v4041 = vmul.f32 %v3907, %v3907
        %v4042 = vmul.f32 %v3908, %v3908
        %v4043 = vsel %vm3909, %v4011, 0.0
        %v4044 = vsel %vm3909, %v4012, 0.0
        %v4045 = vadd.f32 %v4043, %v4044
        %v4046 = vsel %vm3909, %v4013, 0.0
        %v4047 = vadd.f32 %v4045, %v4046
        %v4048 = vsel %vm3909, %v4014, 0.0
        %v4049 = vadd.f32 %v4047, %v4048
        %v4050 = vsel %vm3909, %v4015, 0.0
        %v4051 = vadd.f32 %v4049, %v4050
        %v4052 = vsel %vm3909, %v4016, 0.0
        %v4053 = vadd.f32 %v4051, %v4052
        %v4054 = vsel %vm3909, %v4017, 0.0
        %v4055 = vadd.f32 %v4053, %v4054
        %v4056 = vsel %vm3909, %v4018, 0.0
        %v4057 = vadd.f32 %v4055, %v4056
        %v4058 = vsel %vm3909, %v4019, 0.0
        %v4059 = vadd.f32 %v4057, %v4058
        %v4060 = vsel %vm3909, %v4020, 0.0
        %v4061 = vadd.f32 %v4059, %v4060
        %v4062 = vsel %vm3909, %v4021, 0.0
        %v4063 = vadd.f32 %v4061, %v4062
        %v4064 = vsel %vm3909, %v4022, 0.0
        %v4065 = vadd.f32 %v4063, %v4064
        %v4066 = vsel %vm3909, %v4023, 0.0
        %v4067 = vadd.f32 %v4065, %v4066
        %v4068 = vsel %vm3909, %v4024, 0.0
        %v4069 = vadd.f32 %v4067, %v4068
        %v4070 = vsel %vm3909, %v4025, 0.0
        %v4071 = vadd.f32 %v4069, %v4070
        %v4072 = vsel %vm3909, %v4026, 0.0
        %v4073 = vadd.f32 %v4071, %v4072
        %v4074 = vsel %vm3909, %v4027, 0.0
        %v4075 = vadd.f32 %v4073, %v4074
        %v4076 = vsel %vm3909, %v4028, 0.0
        %v4077 = vadd.f32 %v4075, %v4076
        %v4078 = vsel %vm3909, %v4029, 0.0
        %v4079 = vadd.f32 %v4077, %v4078
        %v4080 = vsel %vm3909, %v4030, 0.0
        %v4081 = vadd.f32 %v4079, %v4080
        %v4082 = vsel %vm3909, %v4031, 0.0
        %v4083 = vadd.f32 %v4081, %v4082
        %v4084 = vsel %vm3909, %v4032, 0.0
        %v4085 = vadd.f32 %v4083, %v4084
        %v4086 = vsel %vm3909, %v4033, 0.0
        %v4087 = vadd.f32 %v4085, %v4086
        %v4088 = vsel %vm3909, %v4034, 0.0
        %v4089 = vadd.f32 %v4087, %v4088
        %v4090 = vsel %vm3909, %v4035, 0.0
        %v4091 = vadd.f32 %v4089, %v4090
        %v4092 = vsel %vm3909, %v4036, 0.0
        %v4093 = vadd.f32 %v4091, %v4092
        %v4094 = vsel %vm3909, %v4037, 0.0
        %v4095 = vadd.f32 %v4093, %v4094
        %v4096 = vsel %vm3909, %v4038, 0.0
        %v4097 = vadd.f32 %v4095, %v4096
        %v4098 = vsel %vm3909, %v4039, 0.0
        %v4099 = vadd.f32 %v4097, %v4098
        %v4100 = vsel %vm3909, %v4040, 0.0
        %v4101 = vadd.f32 %v4099, %v4100
        %v4102 = vsel %vm3909, %v4041, 0.0
        %v4103 = vadd.f32 %v4101, %v4102
        %v4104 = vsel %vm3909, %v4042, 0.0
        %v4105 = vadd.f32 %v4103, %v4104
        %v4106 = vrot.slane %v4105, 4
        %v4107 = vadd.f32 %v4105, %v4106
        %v4108 = vrot.slane %v4107, 2
        %v4109 = vadd.f32 %v4107, %v4108
        %v4110 = vrot.slane %v4109, 1
        %v4111 = vadd.f32 %v4109, %v4110
        %vm4112 = vcmask 1040384
        %v4113 = vsel %vm4112, %v4010, %v4111
        %vm4114 = vcmask 58368
        %4115 = vst.msk [vmem:[%s225] sm:$0x3] %vm4114, %v4113
        %p4116 = scmp.lt.s32.totalorder %s20, 1
        %s4117 = scalar_select %p4116, %s20, 1
        %s4118 = smul.addr %s4117, 32
        %s4119 = smul.addr %s4118, 8
        %s4120 = scalar_lea.vmem %s4, %s4119
        %s4121 = sand.u32 %s143, 1
        %s4122 = scalar_lea.sflag [#allocation3], %s4121
        %s4123 = sand.u32 %s143, 1
        %s4124 = smul.addr %s4123, 2
        %s4125 = scalar_lea.vmem [#allocation2], %s4124
        // Predicated region
        $region37: #{dense_block_forward.11} parent=35 // pred_check
          %p4126 = pneg %p127
        $region38: #{dense_block_forward.11} parent=35 // pred_check_branch
          %4128 = sbr.rel (%p4126) target = $region40
        $region39: #{dense_block_forward.11} parent=35 // pred_region
          _
        $region40: #{dense_block_forward.11} parent=35 // pred_fallthru
          _
        // Predicated region
        $region41: #{dense_block_forward.11} parent=35 // pred_check
          %p4129 = pneg %p153
        $region42: #{dense_block_forward.11} parent=35 // pred_check_branch
          %4131 = sbr.rel (%p4129) target = $region44
        $region43: #{dense_block_forward.11} parent=35 // pred_region
          %s4133 = ssub.s32 32, 32
          %4134 = vsyncadd %s4122, %s4133
          %s4135 = smul.addr %s20, 32
          %s4136 = scalar_lea.hbm %s5, %s4135
          %s4138 = sshll.u32 %s4125, 4
          %s4139 = int_to_ptr.vmem [resolvable:$true] %s4138
          %4141 = dma.vmem_to_hbm [thread:$0]  %s4139, 32, %s4136, %s4122
        $region44: #{dense_block_forward.11} parent=35 // pred_fallthru
          _
      $region36: #{dense_block_forward.11} parent=5 // pred_fallthru
        _
      %p4142 = scmp.le.s32.totalorder 2, %s15
      // Predicated region
      $region45: #{dense_block_forward.11} parent=5 // pred_check
        %p4143 = pneg %p4142
      $region46: #{dense_block_forward.11} parent=5 // pred_check_branch
        %4145 = sbr.rel (%p4143) target = $region48
      $region47: #{dense_block_forward.11} parent=5 // pred_region
        %s4146 = ssub.s32 %s15, 2
        // Predicated region
        $region49: #{dense_block_forward.11} parent=47 // pred_check
          %p4147 = pneg %p133
        $region50: #{dense_block_forward.11} parent=47 // pred_check_branch
          %4149 = sbr.rel (%p4147) target = $region52
        $region51: #{dense_block_forward.11} parent=47 // pred_region
          %p4150 = scmp.lt.s32.totalorder %s21, 1
          %s4151 = scalar_select %p4150, %s21, 1
          %s4152 = smul.addr %s4151, 32
          %s4153 = smul.addr %s4152, 8
          %s4154 = scalar_lea.vmem %s4, %s4153
        $region52: #{dense_block_forward.11} parent=47 // pred_fallthru
          _
        // Predicated region
        $region53: #{dense_block_forward.11} parent=47 // pred_check
          %p4155 = pneg %p159
        $region54: #{dense_block_forward.11} parent=47 // pred_check_branch
          %4157 = sbr.rel (%p4155) target = $region56
        $region55: #{dense_block_forward.11} parent=47 // pred_region
          %s4158 = sand.u32 %s144, 1
          %s4159 = scalar_lea.sflag [#allocation3], %s4158
          %s4160 = sand.u32 %s144, 1
          %s4161 = smul.addr %s4160, 2
          %s4162 = scalar_lea.vmem [#allocation2], %s4161
          %4163 = dma.done %s4159, 32
        $region56: #{dense_block_forward.11} parent=47 // pred_fallthru
          _
      $region48: #{dense_block_forward.11} parent=5 // pred_fallthru
        _
    $region6: #{dense_block_forward.11} parent=1 // loop_footer
      %s19 = sadd.s32 1, %s15
    $region7: #{dense_block_forward.11} parent=1 // loop_footer_branch
      %14 = sbr.rel target = $region3
    $region8: #{dense_block_forward.11} parent=1 // loop_exit
      _
    %4164 = vsyncpa [#allocation3], 1
    %s4165 = scalar_lea.sflag [#allocation3], 1
    %4166 = vsyncpa %s4165, 1

</llo_original>
